<compile_context>
chip_gen: v7x
topology: tpu7x:2x2x1
jax: 0.10.0
libtpu: 0.0.40
codegen_flags: <defaults>
</compile_context>

<pallas_src>
import jax
import jax.numpy as jnp
from jax.experimental import pallas as pl
from jax.experimental.pallas import tpu as pltpu
from typing import Optional


def _make_divisible(v: float, divisor: int, min_value: Optional[int] = None) -> int:
    if min_value is None:
        min_value = divisor
    new_v = max(min_value, int(v + divisor / 2) // divisor * divisor)
    if new_v < 0.9 * v:
        new_v += divisor
    return new_v


def _hardswish(x):
    # PyTorch Hardswish: x * relu6(x + 3) / 6
    return x * jnp.clip(x + 3.0, 0.0, 6.0) * (1.0 / 6.0)


def _tpu_target():
    """Best-effort generation detection -> (tensorcores_per_chip, vmem_cap_bytes)."""
    kind = ""
    try:
        kind = jax.devices()[0].device_kind.lower()
    except Exception:
        pass
    if "v7" in kind:
        return 2, 48 << 20    # 64 MiB physical VMEM per TC -> leave ~25% headroom
    if "v4" in kind:
        return 2, 64 << 20    # megacore generation, 128 MiB VMEM
    return 1, 64 << 20        # v5e / v6e: single TC, 128 MiB physical VMEM


def _pick_block_batch(n: int, channels: int, bytes_per_batch_elem: int,
                      max_block_bytes: int, multi_core: bool) -> int:
    """Pick the batch-block size B (a divisor of n).

    Single-TC parts: just the largest fitting block (grid==1 is fine).
    2-TC parts: prefer an even grid >= 2 so both TensorCores get equal work.
    Among candidates, prefer B*C a multiple of 128 (full MXU row passes).
    """
    divisors = [d for d in range(1, n + 1) if n % d == 0]
    fitting = [d for d in divisors if d * bytes_per_batch_elem <= max_block_bytes] or [1]
    if multi_core:
        even = [d for d in fitting if (n // d) >= 2 and (n // d) % 2 == 0]
        multi = [d for d in fitting if (n // d) >= 2]
        pool = even or multi or fitting
    else:
        pool = fitting
    return max(pool, key=lambda d: ((d * channels) % 128 == 0, d))


def ca_kernel(x_ref, p_ref, eh_ref, ew_ref,
              w1t_ref, b1_ref, wht_ref, bh_ref, wwt_ref, bw_ref, o_ref):
    # x_ref: (B, C, S) lane-dense block (S = padded H*W, multiple of 128).
    Bb, C, S = x_ref.shape
    H = eh_ref.shape[0]
    W = ew_ref.shape[0]
    mip = w1t_ref.shape[1]
    T = H + W

    f32 = jnp.float32
    hi = jax.lax.Precision.HIGHEST

    # Rows are (batch, channel) pairs; lanes are the flat padded spatial map.
    x2 = x_ref[...].reshape(Bb * C, S)

    # --- Stage 1: coordinate pooling (mean over W | mean over H) as ONE wide MXU matmul.
    pooled = jnp.dot(x2, p_ref[...], preferred_element_type=f32, precision=hi)   # (Bb*C, T)

    # --- Stage 2: the three 1x1 convs with the batch folded into the matmul rows
    # (one fused matmul per conv; no per-batch unroll, no stack).
    pooled_btc = jnp.swapaxes(pooled.reshape(Bb, C, T), 1, 2)                    # (Bb, T, C)
    pooled2 = pooled_btc.reshape(Bb * T, C)                                      # (Bb*T, C)
    z = _hardswish(jnp.dot(pooled2, w1t_ref[...], preferred_element_type=f32,
                           precision=hi) + b1_ref[...])                          # (Bb*T, mip)
    z3 = z.reshape(Bb, T, mip)
    zh = z3[:, :H, :].reshape(Bb * H, mip)
    zw = z3[:, H:, :].reshape(Bb * W, mip)
    ah_t = jax.nn.sigmoid(jnp.dot(zh, wht_ref[...], preferred_element_type=f32,
                                  precision=hi) + bh_ref[...])                   # (Bb*H, C)
    aw_t = jax.nn.sigmoid(jnp.dot(zw, wwt_ref[...], preferred_element_type=f32,
                                  precision=hi) + bw_ref[...])                   # (Bb*W, C)
    # Back to the (batch, channel)-row layout used by x2 (small batched transposes).
    ah = jnp.swapaxes(ah_t.reshape(Bb, H, C), 1, 2).reshape(Bb * C, H)           # (Bb*C, H)
    aw = jnp.swapaxes(aw_t.reshape(Bb, W, C), 1, 2).reshape(Bb * C, W)           # (Bb*C, W)

    # --- Stage 3: expand the gates back onto the lane-dense spatial map on the MXU.
    gate = (jnp.dot(ah, eh_ref[...], preferred_element_type=f32, precision=hi) *
            jnp.dot(aw, ew_ref[...], preferred_element_type=f32, precision=hi))  # (Bb*C, S)

    # --- Epilogue: full-lane elementwise gating + unmasked lane-dense store.
    if o_ref.dtype == jnp.float32:
        out = x2 * gate
    else:
        out = x2 * gate.astype(o_ref.dtype)   # keep bf16 epilogue in bf16
    o_ref[...] = out.reshape(Bb, C, S).astype(o_ref.dtype)


def ca_forward(x, w1f, b1f, wh, bh, ww, bw, *, max_block_bytes=4 << 20):
    """x: (N, C, H, W); w1f/b1f: BN-folded conv1 (mip,C)/(mip,); wh/bh, ww/bw: (C,mip)/(C,)."""
    N, C, H, W = x.shape
    S_real = H * W
    S = ((S_real + 127) // 128) * 128          # pad lanes -> always unmasked stores
    T = H + W
    mip = w1f.shape[0]
    dtype = x.dtype
    itemsize = jnp.dtype(dtype).itemsize

    # Lane-dense layout: last dim = padded H*W (multiple of 128).
    x_flat = x.reshape(N, C, S_real)
    if S != S_real:
        x_flat = jnp.pad(x_flat, ((0, 0), (0, 0), (0, S - S_real)))

    # Constant pooling / expansion matrices (pad lanes map to nothing -> exact means).
    s_idx = jnp.arange(S, dtype=jnp.int32)
    valid = s_idx < S_real
    h_of = jnp.where(valid, s_idx // W, -1)
    w_of = jnp.where(valid, s_idx % W, -1)
    h_ids = jnp.arange(H, dtype=jnp.int32)
    w_ids = jnp.arange(W, dtype=jnp.int32)
    pool_h = (h_of[:, None] == h_ids[None, :]).astype(jnp.float32) / W
    pool_w = (w_of[:, None] == w_ids[None, :]).astype(jnp.float32) / H
    P = jnp.concatenate([pool_h, pool_w], axis=1)                       # (S, T)
    E_h = (h_ids[:, None] == h_of[None, :]).astype(jnp.float32)         # (H, S)
    E_w = (w_ids[:, None] == w_of[None, :]).astype(jnp.float32)         # (W, S)

    # Generation-aware block / grid policy.
    num_tc, vmem_cap = _tpu_target()
    bytes_per_elem = C * S * itemsize
    B = _pick_block_batch(N, C, bytes_per_elem, max_block_bytes, num_tc >= 2)
    grid = (N // B,)
    block_bytes = B * bytes_per_elem
    block_f32_bytes = B * C * S * 4
    const_bytes = (S * T + (H + W) * S) * 4 + (3 * C * mip + mip + 2 * C) * 4

    # Explicit VMEM budget: double-buffered in + out blocks, ~3 f32 block-sized
    # temporaries (x2 / gate / matmul results), constants, and headroom.
    vmem_needed = 4 * block_bytes + 3 * block_f32_bytes + const_bytes + (2 << 20)
    vmem_limit = int(min(vmem_cap, max(16 << 20, vmem_needed)))

    cost = pl.CostEstimate(
        flops=int(4 * N * C * S * T + 4 * N * C * mip * T + 3 * N * C * S),
        transcendentals=int(N * C * T + N * mip * T),
        bytes_accessed=int(2 * N * C * S * itemsize + const_bytes),
    )

    out_flat = pl.pallas_call(
        ca_kernel,
        out_shape=jax.ShapeDtypeStruct((N, C, S), dtype),
        grid_spec=pltpu.PrefetchScalarGridSpec(
            num_scalar_prefetch=0,
            grid=grid,
            in_specs=[
                pl.BlockSpec((B, C, S), lambda n: (n, 0, 0)),   # x block (batched)
                pl.BlockSpec((S, T), lambda n: (0, 0)),          # pooling matrix P
                pl.BlockSpec((H, S), lambda n: (0, 0)),          # expansion E_h
                pl.BlockSpec((W, S), lambda n: (0, 0)),          # expansion E_w
                pl.BlockSpec((C, mip), lambda n: (0, 0)),        # conv1 weight^T (BN-folded)
                pl.BlockSpec((1, mip), lambda n: (0, 0)),        # conv1 bias     (BN-folded)
                pl.BlockSpec((mip, C), lambda n: (0, 0)),        # conv_h weight^T
                pl.BlockSpec((1, C), lambda n: (0, 0)),          # conv_h bias
                pl.BlockSpec((mip, C), lambda n: (0, 0)),        # conv_w weight^T
                pl.BlockSpec((1, C), lambda n: (0, 0)),          # conv_w bias
            ],
            out_specs=pl.BlockSpec((B, C, S), lambda n: (n, 0, 0)),
        ),
        compiler_params=pltpu.CompilerParams(
            dimension_semantics=("parallel",),
            vmem_limit_bytes=vmem_limit,
        ),
        cost_estimate=cost,
    )(
        x_flat, P, E_h, E_w,
        jnp.transpose(w1f).astype(jnp.float32),       # (C, mip)
        b1f.reshape(1, mip).astype(jnp.float32),
        jnp.transpose(wh).astype(jnp.float32),        # (mip, C)
        bh.reshape(1, C).astype(jnp.float32),
        jnp.transpose(ww).astype(jnp.float32),        # (mip, C)
        bw.reshape(1, C).astype(jnp.float32),
    )
    if S != S_real:
        out_flat = out_flat[:, :, :S_real]
    return out_flat.reshape(N, C, H, W)


def ca_reference(x, w1f, b1f, wh, bh, ww, bw):
    """Pure-JAX reference mirroring the PyTorch forward (BN already folded)."""
    N, C, H, W = x.shape
    hi = jax.lax.Precision.HIGHEST
    xh = jnp.mean(x, axis=3)                      # (N, C, H)
    xw = jnp.mean(x, axis=2)                      # (N, C, W)
    y = jnp.concatenate([xh, xw], axis=2)         # (N, C, H+W)
    z = jnp.einsum("mc,nck->nmk", w1f, y, precision=hi) + b1f[None, :, None]
    z = _hardswish(z)
    zh, zw = z[:, :, :H], z[:, :, H:]
    a_h = jax.nn.sigmoid(jnp.einsum("cm,nmk->nck", wh, zh, precision=hi) + bh[None, :, None])
    a_w = jax.nn.sigmoid(jnp.einsum("cm,nmk->nck", ww, zw, precision=hi) + bw[None, :, None])
    return x * a_h[:, :, :, None] * a_w[:, :, None, :]


if __name__ == "__main__":
    # Shapes consistent with the module: inp channels=32, reduction=16 -> mip=8
    N, C, H, W = 8, 32, 16, 16
    reduction = 16
    mip = _make_divisible(C // reduction, 8)  # = 8

    key = jax.random.PRNGKey(0)
    keys = jax.random.split(key, 12)

    x = jax.random.normal(keys[0], (N, C, H, W), dtype=jnp.float32)

    # conv1: (mip, C) 1x1 conv weight + bias
    w1 = 0.1 * jax.random.normal(keys[1], (mip, C), dtype=jnp.float32)
    b1 = 0.1 * jax.random.normal(keys[2], (mip,), dtype=jnp.float32)

    # BatchNorm2d(mip) eval-mode parameters
    gamma = 1.0 + 0.1 * jax.random.normal(keys[3], (mip,), dtype=jnp.float32)
    beta = 0.1 * jax.random.normal(keys[4], (mip,), dtype=jnp.float32)
    running_mean = 0.1 * jax.random.normal(keys[5], (mip,), dtype=jnp.float32)
    running_var = 1.0 + 0.05 * jax.random.uniform(keys[6], (mip,), dtype=jnp.float32)
    eps = 1e-5

    # Fold BN into conv1 (eval mode; plain JAX glue)
    bn_scale = gamma / jnp.sqrt(running_var + eps)
    w1_folded = w1 * bn_scale[:, None]                   # (mip, C)
    b1_folded = (b1 - running_mean) * bn_scale + beta    # (mip,)

    # conv_h / conv_w: (C, mip) 1x1 conv weights + biases
    wh = 0.1 * jax.random.normal(keys[7], (C, mip), dtype=jnp.float32)
    bh = 0.1 * jax.random.normal(keys[8], (C,), dtype=jnp.float32)
    ww = 0.1 * jax.random.normal(keys[9], (C, mip), dtype=jnp.float32)
    bw = 0.1 * jax.random.normal(keys[10], (C,), dtype=jnp.float32)

    ca = jax.jit(ca_forward)
    out = jax.block_until_ready(ca(x, w1_folded, b1_folded, wh, bh, ww, bw))

    ref = ca_reference(x, w1_folded, b1_folded, wh, bh, ww, bw)
    assert out.shape == (N, C, H, W)
    assert jnp.allclose(out, ref, atol=1e-4, rtol=1e-4), "Pallas output mismatch vs JAX reference"

    print("KERNEL_OK")
</pallas_src>

<mosaic_0001>
module attributes {stable_mosaic.version = 11 : i64} {
  func.func @ca_kernel(%arg0: i32, %arg1: memref<8x32x256xf32, #tpu.memory_space<vmem>>, %arg2: memref<256x32xf32, #tpu.memory_space<vmem>>, %arg3: memref<16x256xf32, #tpu.memory_space<vmem>>, %arg4: memref<16x256xf32, #tpu.memory_space<vmem>>, %arg5: memref<32x8xf32, #tpu.memory_space<vmem>>, %arg6: memref<1x8xf32, #tpu.memory_space<vmem>>, %arg7: memref<8x32xf32, #tpu.memory_space<vmem>>, %arg8: memref<1x32xf32, #tpu.memory_space<vmem>>, %arg9: memref<8x32xf32, #tpu.memory_space<vmem>>, %arg10: memref<1x32xf32, #tpu.memory_space<vmem>>, %arg11: memref<8x32x256xf32, #tpu.memory_space<vmem>>) attributes {dimension_semantics = [#tpu.dimension_semantics<parallel>], iteration_bounds = array<i64: 1>, scalar_prefetch = 0 : i64, scratch_operands = 0 : i64, tpu.core_type = #tpu.core_type<tc>, window_params = [{transform_indices = @transform_0, window_bounds = array<i64: 8, 32, 256>}, {pipeline_mode = #tpu.pipeline_mode<synchronous>, transform_indices = @transform_1, window_bounds = array<i64: 256, 32>}, {pipeline_mode = #tpu.pipeline_mode<synchronous>, transform_indices = @transform_2, window_bounds = array<i64: 16, 256>}, {pipeline_mode = #tpu.pipeline_mode<synchronous>, transform_indices = @transform_3, window_bounds = array<i64: 16, 256>}, {pipeline_mode = #tpu.pipeline_mode<synchronous>, transform_indices = @transform_4, window_bounds = array<i64: 32, 8>}, {pipeline_mode = #tpu.pipeline_mode<synchronous>, transform_indices = @transform_5, window_bounds = array<i64: 1, 8>}, {pipeline_mode = #tpu.pipeline_mode<synchronous>, transform_indices = @transform_6, window_bounds = array<i64: 8, 32>}, {pipeline_mode = #tpu.pipeline_mode<synchronous>, transform_indices = @transform_7, window_bounds = array<i64: 1, 32>}, {pipeline_mode = #tpu.pipeline_mode<synchronous>, transform_indices = @transform_8, window_bounds = array<i64: 8, 32>}, {pipeline_mode = #tpu.pipeline_mode<synchronous>, transform_indices = @transform_9, window_bounds = array<i64: 1, 32>}, {transform_indices = @transform_10, window_bounds = array<i64: 8, 32, 256>}]} {
    %c0 = arith.constant 0 : index
    %c0_0 = arith.constant 0 : index
    %c0_1 = arith.constant 0 : index
    %0 = vector.load %arg1[%c0, %c0_0, %c0_1] : memref<8x32x256xf32, #tpu.memory_space<vmem>>, vector<8x32x256xf32>
    %1 = vector.shape_cast %0 : vector<8x32x256xf32> to vector<256x256xf32>
    %c0_2 = arith.constant 0 : index
    %c0_3 = arith.constant 0 : index
    %2 = vector.load %arg2[%c0_2, %c0_3] : memref<256x32xf32, #tpu.memory_space<vmem>>, vector<256x32xf32>
    %cst = arith.constant dense<0.000000e+00> : vector<256x32xf32>
    %3 = tpu.matmul %1, %2, %cst {dimension_numbers = #tpu.dot_dimension_numbers<[1], [0], [0], [1], [0, 0, 1, 1], [], []>, precision = #tpu.contract_precision<fp32>} : vector<256x256xf32>, vector<256x32xf32>, vector<256x32xf32> -> vector<256x32xf32>
    %4 = vector.shape_cast %3 : vector<256x32xf32> to vector<8x32x32xf32>
    %5 = tpu.transpose %4, [0, 2, 1] : vector<8x32x32xf32> -> vector<8x32x32xf32>
    %6 = vector.shape_cast %5 : vector<8x32x32xf32> to vector<256x32xf32>
    %c0_4 = arith.constant 0 : index
    %c0_5 = arith.constant 0 : index
    %7 = vector.load %arg5[%c0_4, %c0_5] : memref<32x8xf32, #tpu.memory_space<vmem>>, vector<32x8xf32>
    %cst_6 = arith.constant dense<0.000000e+00> : vector<256x8xf32>
    %8 = tpu.matmul %6, %7, %cst_6 {dimension_numbers = #tpu.dot_dimension_numbers<[1], [0], [0], [1], [0, 0, 1, 1], [], []>, precision = #tpu.contract_precision<fp32>} : vector<256x32xf32>, vector<32x8xf32>, vector<256x8xf32> -> vector<256x8xf32>
    %c0_7 = arith.constant 0 : index
    %c0_8 = arith.constant 0 : index
    %9 = vector.load %arg6[%c0_7, %c0_8] : memref<1x8xf32, #tpu.memory_space<vmem>>, vector<1x8xf32>
    %10 = vector.broadcast %9 : vector<1x8xf32> to vector<256x8xf32>
    %11 = arith.addf %8, %10 : vector<256x8xf32>
    %cst_9 = arith.constant 3.000000e+00 : f32
    %12 = vector.broadcast %cst_9 : f32 to vector<256x8xf32>
    %13 = arith.addf %11, %12 : vector<256x8xf32>
    %cst_10 = arith.constant 0.000000e+00 : f32
    %cst_11 = arith.constant 6.000000e+00 : f32
    %14 = vector.broadcast %cst_10 : f32 to vector<256x8xf32>
    %15 = arith.maximumf %14, %13 : vector<256x8xf32>
    %16 = vector.broadcast %cst_11 : f32 to vector<256x8xf32>
    %17 = arith.minimumf %16, %15 : vector<256x8xf32>
    %18 = arith.mulf %11, %17 : vector<256x8xf32>
    %cst_12 = arith.constant 0.166666672 : f32
    %19 = vector.broadcast %cst_12 : f32 to vector<256x8xf32>
    %20 = arith.mulf %18, %19 : vector<256x8xf32>
    %21 = vector.shape_cast %20 : vector<256x8xf32> to vector<8x32x8xf32>
    %22 = vector.extract_strided_slice %21 {offsets = [0, 0, 0], sizes = [8, 16, 8], strides = [1, 1, 1]} : vector<8x32x8xf32> to vector<8x16x8xf32>
    %23 = vector.shape_cast %22 : vector<8x16x8xf32> to vector<128x8xf32>
    %24 = vector.extract_strided_slice %21 {offsets = [0, 16, 0], sizes = [8, 16, 8], strides = [1, 1, 1]} : vector<8x32x8xf32> to vector<8x16x8xf32>
    %25 = vector.shape_cast %24 : vector<8x16x8xf32> to vector<128x8xf32>
    %c0_13 = arith.constant 0 : index
    %c0_14 = arith.constant 0 : index
    %26 = vector.load %arg7[%c0_13, %c0_14] : memref<8x32xf32, #tpu.memory_space<vmem>>, vector<8x32xf32>
    %cst_15 = arith.constant dense<0.000000e+00> : vector<128x32xf32>
    %27 = tpu.matmul %23, %26, %cst_15 {dimension_numbers = #tpu.dot_dimension_numbers<[1], [0], [0], [1], [0, 0, 1, 1], [], []>, precision = #tpu.contract_precision<fp32>} : vector<128x8xf32>, vector<8x32xf32>, vector<128x32xf32> -> vector<128x32xf32>
    %c0_16 = arith.constant 0 : index
    %c0_17 = arith.constant 0 : index
    %28 = vector.load %arg8[%c0_16, %c0_17] : memref<1x32xf32, #tpu.memory_space<vmem>>, vector<1x32xf32>
    %29 = vector.broadcast %28 : vector<1x32xf32> to vector<128x32xf32>
    %30 = arith.addf %27, %29 : vector<128x32xf32>
    %31 = arith.negf %30 : vector<128x32xf32>
    %32 = math.exp %31 : vector<128x32xf32>
    %cst_18 = arith.constant 1.000000e+00 : f32
    %33 = vector.broadcast %cst_18 : f32 to vector<128x32xf32>
    %34 = arith.addf %33, %32 : vector<128x32xf32>
    %35 = arith.divf %33, %34 : vector<128x32xf32>
    %c0_19 = arith.constant 0 : index
    %c0_20 = arith.constant 0 : index
    %36 = vector.load %arg9[%c0_19, %c0_20] : memref<8x32xf32, #tpu.memory_space<vmem>>, vector<8x32xf32>
    %cst_21 = arith.constant dense<0.000000e+00> : vector<128x32xf32>
    %37 = tpu.matmul %25, %36, %cst_21 {dimension_numbers = #tpu.dot_dimension_numbers<[1], [0], [0], [1], [0, 0, 1, 1], [], []>, precision = #tpu.contract_precision<fp32>} : vector<128x8xf32>, vector<8x32xf32>, vector<128x32xf32> -> vector<128x32xf32>
    %c0_22 = arith.constant 0 : index
    %c0_23 = arith.constant 0 : index
    %38 = vector.load %arg10[%c0_22, %c0_23] : memref<1x32xf32, #tpu.memory_space<vmem>>, vector<1x32xf32>
    %39 = vector.broadcast %38 : vector<1x32xf32> to vector<128x32xf32>
    %40 = arith.addf %37, %39 : vector<128x32xf32>
    %41 = arith.negf %40 : vector<128x32xf32>
    %42 = math.exp %41 : vector<128x32xf32>
    %cst_24 = arith.constant 1.000000e+00 : f32
    %43 = vector.broadcast %cst_24 : f32 to vector<128x32xf32>
    %44 = arith.addf %43, %42 : vector<128x32xf32>
    %45 = arith.divf %43, %44 : vector<128x32xf32>
    %46 = vector.shape_cast %35 : vector<128x32xf32> to vector<8x16x32xf32>
    %47 = tpu.transpose %46, [0, 2, 1] : vector<8x16x32xf32> -> vector<8x32x16xf32>
    %48 = vector.shape_cast %47 : vector<8x32x16xf32> to vector<256x16xf32>
    %49 = vector.shape_cast %45 : vector<128x32xf32> to vector<8x16x32xf32>
    %50 = tpu.transpose %49, [0, 2, 1] : vector<8x16x32xf32> -> vector<8x32x16xf32>
    %51 = vector.shape_cast %50 : vector<8x32x16xf32> to vector<256x16xf32>
    %c0_25 = arith.constant 0 : index
    %c0_26 = arith.constant 0 : index
    %52 = vector.load %arg3[%c0_25, %c0_26] : memref<16x256xf32, #tpu.memory_space<vmem>>, vector<16x256xf32>
    %cst_27 = arith.constant dense<0.000000e+00> : vector<256x256xf32>
    %53 = tpu.matmul %48, %52, %cst_27 {dimension_numbers = #tpu.dot_dimension_numbers<[1], [0], [0], [1], [0, 0, 1, 1], [], []>, precision = #tpu.contract_precision<fp32>} : vector<256x16xf32>, vector<16x256xf32>, vector<256x256xf32> -> vector<256x256xf32>
    %c0_28 = arith.constant 0 : index
    %c0_29 = arith.constant 0 : index
    %54 = vector.load %arg4[%c0_28, %c0_29] : memref<16x256xf32, #tpu.memory_space<vmem>>, vector<16x256xf32>
    %cst_30 = arith.constant dense<0.000000e+00> : vector<256x256xf32>
    %55 = tpu.matmul %51, %54, %cst_30 {dimension_numbers = #tpu.dot_dimension_numbers<[1], [0], [0], [1], [0, 0, 1, 1], [], []>, precision = #tpu.contract_precision<fp32>} : vector<256x16xf32>, vector<16x256xf32>, vector<256x256xf32> -> vector<256x256xf32>
    %56 = arith.mulf %53, %55 : vector<256x256xf32>
    %57 = arith.mulf %1, %56 : vector<256x256xf32>
    %58 = vector.shape_cast %57 : vector<256x256xf32> to vector<8x32x256xf32>
    %c0_31 = arith.constant 0 : index
    %c0_32 = arith.constant 0 : index
    %c0_33 = arith.constant 0 : index
    %59 = vector.load %arg11[%c0_31, %c0_32, %c0_33] : memref<8x32x256xf32, #tpu.memory_space<vmem>>, vector<8x32x256xf32>
    tpu.vector_store %arg11[%c0_31, %c0_32, %c0_33], %58 {strides = array<i32>} : memref<8x32x256xf32, #tpu.memory_space<vmem>>, vector<8x32x256xf32>,
    return
  }
  func.func @transform_0(%arg0: i32) -> (i32, i32, i32) {
    %c0_i32 = arith.constant 0 : i32
    %c0_i32_0 = arith.constant 0 : i32
    %c0_i32_1 = arith.constant 0 : i32
    return %arg0, %c0_i32, %c0_i32_0 : i32, i32, i32
  }
  func.func @transform_1(%arg0: i32) -> (i32, i32) {
    %c0_i32 = arith.constant 0 : i32
    %c0_i32_0 = arith.constant 0 : i32
    %c0_i32_1 = arith.constant 0 : i32
    return %c0_i32, %c0_i32_0 : i32, i32
  }
  func.func @transform_2(%arg0: i32) -> (i32, i32) {
    %c0_i32 = arith.constant 0 : i32
    %c0_i32_0 = arith.constant 0 : i32
    %c0_i32_1 = arith.constant 0 : i32
    return %c0_i32, %c0_i32_0 : i32, i32
  }
  func.func @transform_3(%arg0: i32) -> (i32, i32) {
    %c0_i32 = arith.constant 0 : i32
    %c0_i32_0 = arith.constant 0 : i32
    %c0_i32_1 = arith.constant 0 : i32
    return %c0_i32, %c0_i32_0 : i32, i32
  }
  func.func @transform_4(%arg0: i32) -> (i32, i32) {
    %c0_i32 = arith.constant 0 : i32
    %c0_i32_0 = arith.constant 0 : i32
    %c0_i32_1 = arith.constant 0 : i32
    return %c0_i32, %c0_i32_0 : i32, i32
  }
  func.func @transform_5(%arg0: i32) -> (i32, i32) {
    %c0_i32 = arith.constant 0 : i32
    %c0_i32_0 = arith.constant 0 : i32
    %c0_i32_1 = arith.constant 0 : i32
    return %c0_i32, %c0_i32_0 : i32, i32
  }
  func.func @transform_6(%arg0: i32) -> (i32, i32) {
    %c0_i32 = arith.constant 0 : i32
    %c0_i32_0 = arith.constant 0 : i32
    %c0_i32_1 = arith.constant 0 : i32
    return %c0_i32, %c0_i32_0 : i32, i32
  }
  func.func @transform_7(%arg0: i32) -> (i32, i32) {
    %c0_i32 = arith.constant 0 : i32
    %c0_i32_0 = arith.constant 0 : i32
    %c0_i32_1 = arith.constant 0 : i32
    return %c0_i32, %c0_i32_0 : i32, i32
  }
  func.func @transform_8(%arg0: i32) -> (i32, i32) {
    %c0_i32 = arith.constant 0 : i32
    %c0_i32_0 = arith.constant 0 : i32
    %c0_i32_1 = arith.constant 0 : i32
    return %c0_i32, %c0_i32_0 : i32, i32
  }
  func.func @transform_9(%arg0: i32) -> (i32, i32) {
    %c0_i32 = arith.constant 0 : i32
    %c0_i32_0 = arith.constant 0 : i32
    %c0_i32_1 = arith.constant 0 : i32
    return %c0_i32, %c0_i32_0 : i32, i32
  }
  func.func @transform_10(%arg0: i32) -> (i32, i32, i32) {
    %c0_i32 = arith.constant 0 : i32
    %c0_i32_0 = arith.constant 0 : i32
    %c0_i32_1 = arith.constant 0 : i32
    return %arg0, %c0_i32, %c0_i32_0 : i32, i32, i32
  }
}

</mosaic_0001>

<llo_original>
// kernel: ca_forward.1
$region0: #{ca_forward.1}
  #allocation0 [shape = 'u32[]', space=smem, size = 0x4, offset = 0x4, fixed_abs, tag = 'smem constant byte address 0x4 - core index']
  #allocation1 [shape = 'u32[144,128]{1,0:T(1,128)}', space=vmem, size = 0x12000, scoped, tag = 'internal scratch']
  %s0 = inlined_call_operand.vmem [shape: f32[8,32,256], index: 0, kind: input, shape index: {}]
  %s1 = inlined_call_operand.vmem [shape: f32[256,32], index: 1, kind: input, shape index: {}]
  %s2 = inlined_call_operand.vmem [shape: f32[16,256], index: 2, kind: input, shape index: {}]
  %s3 = inlined_call_operand.vmem [shape: f32[16,256], index: 3, kind: input, shape index: {}]
  %s4 = inlined_call_operand.vmem [shape: f32[32,8], index: 4, kind: input, shape index: {}]
  %s5 = inlined_call_operand.vmem [shape: f32[1,8], index: 5, kind: input, shape index: {}]
  %s6 = inlined_call_operand.vmem [shape: f32[8,32], index: 6, kind: input, shape index: {}]
  %s7 = inlined_call_operand.vmem [shape: f32[1,32], index: 7, kind: input, shape index: {}]
  %s8 = inlined_call_operand.vmem [shape: f32[8,32], index: 8, kind: input, shape index: {}]
  %s9 = inlined_call_operand.vmem [shape: f32[1,32], index: 9, kind: input, shape index: {}]
  %s10 = inlined_call_operand.vmem [shape: f32[8,32,256], index: 10, kind: output, shape index: {}]
  %s11 = sld [smem:[#allocation0]]
  $region50: #{ca_forward.1} parent=0
    _
  %s13 = ssub.s32 1, %s11
  %s14 = scalar_select 0, %s13, %s11
  // Predicated region
  $region2: #{ca_forward.1} parent=0 // pred_check
    _
  $region3: #{ca_forward.1} parent=0 // pred_check_branch
    %16 = sbr.rel (0) target = $region5
  $region4: #{ca_forward.1} parent=0 // pred_region
    _
  $region5: #{ca_forward.1} parent=0 // pred_fallthru
    _
  // Predicated region
  $region6: #{ca_forward.1} parent=0 // pred_check
    _
  $region7: #{ca_forward.1} parent=0 // pred_check_branch
    %18 = sbr.rel (0) target = $region9
  $region8: #{ca_forward.1} parent=0 // pred_region
    _
  $region9: #{ca_forward.1} parent=0 // pred_fallthru
    _
  // Predicated region
  $region10: #{ca_forward.1} parent=0 // pred_check
    _
  $region11: #{ca_forward.1} parent=0 // pred_check_branch
    %20 = sbr.rel (0) target = $region13
  $region12: #{ca_forward.1} parent=0 // pred_region
    _
  $region13: #{ca_forward.1} parent=0 // pred_fallthru
    _
  // Predicated region
  $region14: #{ca_forward.1} parent=0 // pred_check
    _
  $region15: #{ca_forward.1} parent=0 // pred_check_branch
    %22 = sbr.rel (0) target = $region17
  $region16: #{ca_forward.1} parent=0 // pred_region
    _
  $region17: #{ca_forward.1} parent=0 // pred_fallthru
    _
  // Predicated region
  $region18: #{ca_forward.1} parent=0 // pred_check
    _
  $region19: #{ca_forward.1} parent=0 // pred_check_branch
    %24 = sbr.rel (0) target = $region21
  $region20: #{ca_forward.1} parent=0 // pred_region
    _
  $region21: #{ca_forward.1} parent=0 // pred_fallthru
    _
  // Predicated region
  $region22: #{ca_forward.1} parent=0 // pred_check
    _
  $region23: #{ca_forward.1} parent=0 // pred_check_branch
    %26 = sbr.rel (0) target = $region25
  $region24: #{ca_forward.1} parent=0 // pred_region
    _
  $region25: #{ca_forward.1} parent=0 // pred_fallthru
    _
  // Predicated region
  $region26: #{ca_forward.1} parent=0 // pred_check
    _
  $region27: #{ca_forward.1} parent=0 // pred_check_branch
    %28 = sbr.rel (0) target = $region29
  $region28: #{ca_forward.1} parent=0 // pred_region
    _
  $region29: #{ca_forward.1} parent=0 // pred_fallthru
    _
  // Predicated region
  $region30: #{ca_forward.1} parent=0 // pred_check
    _
  $region31: #{ca_forward.1} parent=0 // pred_check_branch
    %30 = sbr.rel (0) target = $region33
  $region32: #{ca_forward.1} parent=0 // pred_region
    _
  $region33: #{ca_forward.1} parent=0 // pred_fallthru
    _
  // Predicated region
  $region34: #{ca_forward.1} parent=0 // pred_check
    _
  $region35: #{ca_forward.1} parent=0 // pred_check_branch
    %32 = sbr.rel (0) target = $region37
  $region36: #{ca_forward.1} parent=0 // pred_region
    _
  $region37: #{ca_forward.1} parent=0 // pred_fallthru
    _
  // Predicated region
  $region38: #{ca_forward.1} parent=0 // pred_check
    _
  $region39: #{ca_forward.1} parent=0 // pred_check_branch
    %34 = sbr.rel (0) target = $region41
  $region40: #{ca_forward.1} parent=0 // pred_region
    _
  $region41: #{ca_forward.1} parent=0 // pred_fallthru
    _
  %v35 = vld [vmem:[%s0] sm:$0xff]
  %v36 = vld [vmem:[%s0 + $0x8] sm:$0xff]
  %v37 = vld [vmem:[%s0 + $0x10] sm:$0xff]
  %v38 = vld [vmem:[%s0 + $0x18] sm:$0xff]
  %v39 = vld [vmem:[%s0 + $0x20] sm:$0xff]
  %v40 = vld [vmem:[%s0 + $0x28] sm:$0xff]
  %v41 = vld [vmem:[%s0 + $0x30] sm:$0xff]
  %v42 = vld [vmem:[%s0 + $0x38] sm:$0xff]
  %v43 = vld [vmem:[%s0 + $0x40] sm:$0xff]
  %v44 = vld [vmem:[%s0 + $0x48] sm:$0xff]
  %v45 = vld [vmem:[%s0 + $0x50] sm:$0xff]
  %v46 = vld [vmem:[%s0 + $0x58] sm:$0xff]
  %v47 = vld [vmem:[%s0 + $0x60] sm:$0xff]
  %v48 = vld [vmem:[%s0 + $0x68] sm:$0xff]
  %v49 = vld [vmem:[%s0 + $0x70] sm:$0xff]
  %v50 = vld [vmem:[%s0 + $0x78] sm:$0xff]
  %v51 = vld [vmem:[%s0 + $0x80] sm:$0xff]
  %v52 = vld [vmem:[%s0 + $0x88] sm:$0xff]
  %v53 = vld [vmem:[%s0 + $0x90] sm:$0xff]
  %v54 = vld [vmem:[%s0 + $0x98] sm:$0xff]
  %v55 = vld [vmem:[%s0 + $0xa0] sm:$0xff]
  %v56 = vld [vmem:[%s0 + $0xa8] sm:$0xff]
  %v57 = vld [vmem:[%s0 + $0xb0] sm:$0xff]
  %v58 = vld [vmem:[%s0 + $0xb8] sm:$0xff]
  %v59 = vld [vmem:[%s0 + $0xc0] sm:$0xff]
  %v60 = vld [vmem:[%s0 + $0xc8] sm:$0xff]
  %v61 = vld [vmem:[%s0 + $0xd0] sm:$0xff]
  %v62 = vld [vmem:[%s0 + $0xd8] sm:$0xff]
  %v63 = vld [vmem:[%s0 + $0xe0] sm:$0xff]
  %v64 = vld [vmem:[%s0 + $0xe8] sm:$0xff]
  %v65 = vld [vmem:[%s0 + $0xf0] sm:$0xff]
  %v66 = vld [vmem:[%s0 + $0xf8] sm:$0xff]
  %v67 = vld [vmem:[%s0 + $0x100] sm:$0xff]
  %v68 = vld [vmem:[%s0 + $0x108] sm:$0xff]
  %v69 = vld [vmem:[%s0 + $0x110] sm:$0xff]
  %v70 = vld [vmem:[%s0 + $0x118] sm:$0xff]
  %v71 = vld [vmem:[%s0 + $0x120] sm:$0xff]
  %v72 = vld [vmem:[%s0 + $0x128] sm:$0xff]
  %v73 = vld [vmem:[%s0 + $0x130] sm:$0xff]
  %v74 = vld [vmem:[%s0 + $0x138] sm:$0xff]
  %v75 = vld [vmem:[%s0 + $0x140] sm:$0xff]
  %v76 = vld [vmem:[%s0 + $0x148] sm:$0xff]
  %v77 = vld [vmem:[%s0 + $0x150] sm:$0xff]
  %v78 = vld [vmem:[%s0 + $0x158] sm:$0xff]
  %v79 = vld [vmem:[%s0 + $0x160] sm:$0xff]
  %v80 = vld [vmem:[%s0 + $0x168] sm:$0xff]
  %v81 = vld [vmem:[%s0 + $0x170] sm:$0xff]
  %v82 = vld [vmem:[%s0 + $0x178] sm:$0xff]
  %v83 = vld [vmem:[%s0 + $0x180] sm:$0xff]
  %v84 = vld [vmem:[%s0 + $0x188] sm:$0xff]
  %v85 = vld [vmem:[%s0 + $0x190] sm:$0xff]
  %v86 = vld [vmem:[%s0 + $0x198] sm:$0xff]
  %v87 = vld [vmem:[%s0 + $0x1a0] sm:$0xff]
  %v88 = vld [vmem:[%s0 + $0x1a8] sm:$0xff]
  %v89 = vld [vmem:[%s0 + $0x1b0] sm:$0xff]
  %v90 = vld [vmem:[%s0 + $0x1b8] sm:$0xff]
  %v91 = vld [vmem:[%s0 + $0x1c0] sm:$0xff]
  %v92 = vld [vmem:[%s0 + $0x1c8] sm:$0xff]
  %v93 = vld [vmem:[%s0 + $0x1d0] sm:$0xff]
  %v94 = vld [vmem:[%s0 + $0x1d8] sm:$0xff]
  %v95 = vld [vmem:[%s0 + $0x1e0] sm:$0xff]
  %v96 = vld [vmem:[%s0 + $0x1e8] sm:$0xff]
  %v97 = vld [vmem:[%s0 + $0x1f0] sm:$0xff]
  %v98 = vld [vmem:[%s0 + $0x1f8] sm:$0xff]
  %v99 = vld [vmem:[%s1] sm:$0xff]
  %v100 = vld [vmem:[%s1 + $0x8] sm:$0xff]
  %v101 = vld [vmem:[%s1 + $0x10] sm:$0xff]
  %v102 = vld [vmem:[%s1 + $0x18] sm:$0xff]
  %v103 = vld [vmem:[%s1 + $0x20] sm:$0xff]
  %v104 = vld [vmem:[%s1 + $0x28] sm:$0xff]
  %v105 = vld [vmem:[%s1 + $0x30] sm:$0xff]
  %v106 = vld [vmem:[%s1 + $0x38] sm:$0xff]
  %v107 = vld [vmem:[%s1 + $0x40] sm:$0xff]
  %v108 = vld [vmem:[%s1 + $0x48] sm:$0xff]
  %v109 = vld [vmem:[%s1 + $0x50] sm:$0xff]
  %v110 = vld [vmem:[%s1 + $0x58] sm:$0xff]
  %v111 = vld [vmem:[%s1 + $0x60] sm:$0xff]
  %v112 = vld [vmem:[%s1 + $0x68] sm:$0xff]
  %v113 = vld [vmem:[%s1 + $0x70] sm:$0xff]
  %v114 = vld [vmem:[%s1 + $0x78] sm:$0xff]
  %v115 = vld [vmem:[%s1 + $0x80] sm:$0xff]
  %v116 = vld [vmem:[%s1 + $0x88] sm:$0xff]
  %v117 = vld [vmem:[%s1 + $0x90] sm:$0xff]
  %v118 = vld [vmem:[%s1 + $0x98] sm:$0xff]
  %v119 = vld [vmem:[%s1 + $0xa0] sm:$0xff]
  %v120 = vld [vmem:[%s1 + $0xa8] sm:$0xff]
  %v121 = vld [vmem:[%s1 + $0xb0] sm:$0xff]
  %v122 = vld [vmem:[%s1 + $0xb8] sm:$0xff]
  %v123 = vld [vmem:[%s1 + $0xc0] sm:$0xff]
  %v124 = vld [vmem:[%s1 + $0xc8] sm:$0xff]
  %v125 = vld [vmem:[%s1 + $0xd0] sm:$0xff]
  %v126 = vld [vmem:[%s1 + $0xd8] sm:$0xff]
  %v127 = vld [vmem:[%s1 + $0xe0] sm:$0xff]
  %v128 = vld [vmem:[%s1 + $0xe8] sm:$0xff]
  %v129 = vld [vmem:[%s1 + $0xf0] sm:$0xff]
  %v130 = vld [vmem:[%s1 + $0xf8] sm:$0xff]
  %131 = vmatprep.subr.mxu0 0.0
  %v132 = vand.u32 %v99, 4294901760
  %133 = vmatpush1.msra.mxu0 %v132
  %134 = vmatprep.subr.mxu0 0.0
  %v135 = vand.u32 %v100, 4294901760
  %136 = vmatpush1.msra.mxu0 %v135
  %137 = vmatprep.subr.mxu0 0.0
  %v138 = vand.u32 %v101, 4294901760
  %139 = vmatpush1.msra.mxu0 %v138
  %140 = vmatprep.subr.mxu0 0.0
  %v141 = vand.u32 %v102, 4294901760
  %142 = vmatpush1.msra.mxu0 %v141
  %143 = vmatprep.subr.mxu0 0.0
  %v144 = vand.u32 %v103, 4294901760
  %145 = vmatpush1.msra.mxu0 %v144
  %146 = vmatprep.subr.mxu0 0.0
  %v147 = vand.u32 %v104, 4294901760
  %148 = vmatpush1.msra.mxu0 %v147
  %149 = vmatprep.subr.mxu0 0.0
  %v150 = vand.u32 %v105, 4294901760
  %151 = vmatpush1.msra.mxu0 %v150
  %152 = vmatprep.subr.mxu0 0.0
  %v153 = vand.u32 %v106, 4294901760
  %154 = vmatpush1.msra.mxu0 %v153
  %155 = vmatprep.subr.mxu0 0.0
  %v156 = vand.u32 %v107, 4294901760
  %157 = vmatpush1.msra.mxu0 %v156
  %158 = vmatprep.subr.mxu0 0.0
  %v159 = vand.u32 %v108, 4294901760
  %160 = vmatpush1.msra.mxu0 %v159
  %161 = vmatprep.subr.mxu0 0.0
  %v162 = vand.u32 %v109, 4294901760
  %163 = vmatpush1.msra.mxu0 %v162
  %164 = vmatprep.subr.mxu0 0.0
  %v165 = vand.u32 %v110, 4294901760
  %166 = vmatpush1.msra.mxu0 %v165
  %167 = vmatprep.subr.mxu0 0.0
  %v168 = vand.u32 %v111, 4294901760
  %169 = vmatpush1.msra.mxu0 %v168
  %170 = vmatprep.subr.mxu0 0.0
  %v171 = vand.u32 %v112, 4294901760
  %172 = vmatpush1.msra.mxu0 %v171
  %173 = vmatprep.subr.mxu0 0.0
  %v174 = vand.u32 %v113, 4294901760
  %175 = vmatpush1.msra.mxu0 %v174
  %176 = vmatprep.subr.mxu0 0.0
  %v177 = vand.u32 %v114, 4294901760
  %178 = vmatpush1.msra.mxu0 %v177
  %179 = vmatprep.subr.mxu0 0.0
  %v180 = vand.u32 %v115, 4294901760
  %181 = vmatpush1.msra.mxu0 %v180
  %182 = vmatprep.subr.mxu0 0.0
  %v183 = vand.u32 %v116, 4294901760
  %184 = vmatpush1.msra.mxu0 %v183
  %185 = vmatprep.subr.mxu0 0.0
  %v186 = vand.u32 %v117, 4294901760
  %187 = vmatpush1.msra.mxu0 %v186
  %188 = vmatprep.subr.mxu0 0.0
  %v189 = vand.u32 %v118, 4294901760
  %190 = vmatpush1.msra.mxu0 %v189
  %191 = vmatprep.subr.mxu0 0.0
  %v192 = vand.u32 %v119, 4294901760
  %193 = vmatpush1.msra.mxu0 %v192
  %194 = vmatprep.subr.mxu0 0.0
  %v195 = vand.u32 %v120, 4294901760
  %196 = vmatpush1.msra.mxu0 %v195
  %197 = vmatprep.subr.mxu0 0.0
  %v198 = vand.u32 %v121, 4294901760
  %199 = vmatpush1.msra.mxu0 %v198
  %200 = vmatprep.subr.mxu0 0.0
  %v201 = vand.u32 %v122, 4294901760
  %202 = vmatpush1.msra.mxu0 %v201
  %203 = vmatprep.subr.mxu0 0.0
  %v204 = vand.u32 %v123, 4294901760
  %205 = vmatpush1.msra.mxu0 %v204
  %206 = vmatprep.subr.mxu0 0.0
  %v207 = vand.u32 %v124, 4294901760
  %208 = vmatpush1.msra.mxu0 %v207
  %209 = vmatprep.subr.mxu0 0.0
  %v210 = vand.u32 %v125, 4294901760
  %211 = vmatpush1.msra.mxu0 %v210
  %212 = vmatprep.subr.mxu0 0.0
  %v213 = vand.u32 %v126, 4294901760
  %214 = vmatpush1.msra.mxu0 %v213
  %215 = vmatprep.subr.mxu0 0.0
  %v216 = vand.u32 %v127, 4294901760
  %217 = vmatpush1.msra.mxu0 %v216
  %218 = vmatprep.subr.mxu0 0.0
  %v219 = vand.u32 %v128, 4294901760
  %220 = vmatpush1.msra.mxu0 %v219
  %221 = vmatprep.subr.mxu0 0.0
  %v222 = vand.u32 %v129, 4294901760
  %223 = vmatpush1.msra.mxu0 %v222
  %224 = vmatprep.subr.mxu0 0.0
  %v225 = vand.u32 %v130, 4294901760
  %226 = vmatpush1.msra.mxu0 %v225
  %v227 = vand.u32 %v36, 4294901760
  %v228 = vsub.f32 %v36, %v227
  %v229 = vand.u32 %v228, 4294901760
  %v230 = vsub.f32 %v228, %v229
  %v231 = vand.u32 %v230, 4294901760
  %232 = vmatprep.mubr.f32.mxu0 %v231
  %v233 = vand.u32 %v35, 4294901760
  %v234 = vsub.f32 %v35, %v233
  %v235 = vand.u32 %v234, 4294901760
  %v236 = vsub.f32 %v234, %v235
  %v237 = vand.u32 %v236, 4294901760
  %238 = vmatmul.mubr.f32.gmra.mrb[0].mxu0 %v237
  %v239 = vpop.f32.mrb[0].mxu0
  %v240 = vadd.f32 0.0, %v239
  %v241 = vpop.f32.mrb[0].mxu0
  %v242 = vand.u32 %v38, 4294901760
  %v243 = vsub.f32 %v38, %v242
  %v244 = vand.u32 %v243, 4294901760
  %v245 = vsub.f32 %v243, %v244
  %v246 = vand.u32 %v245, 4294901760
  %247 = vmatprep.mubr.f32.mxu0 %v246
  %v248 = vand.u32 %v37, 4294901760
  %v249 = vsub.f32 %v37, %v248
  %v250 = vand.u32 %v249, 4294901760
  %v251 = vsub.f32 %v249, %v250
  %v252 = vand.u32 %v251, 4294901760
  %253 = vmatmul.mubr.f32.gmra.mrb[0].mxu0 %v252
  %v254 = vpop.f32.mrb[0].mxu0
  %v255 = vadd.f32 0.0, %v254
  %v256 = vpop.f32.mrb[0].mxu0
  %v257 = vand.u32 %v40, 4294901760
  %v258 = vsub.f32 %v40, %v257
  %v259 = vand.u32 %v258, 4294901760
  %v260 = vsub.f32 %v258, %v259
  %v261 = vand.u32 %v260, 4294901760
  %262 = vmatprep.mubr.f32.mxu0 %v261
  %v263 = vand.u32 %v39, 4294901760
  %v264 = vsub.f32 %v39, %v263
  %v265 = vand.u32 %v264, 4294901760
  %v266 = vsub.f32 %v264, %v265
  %v267 = vand.u32 %v266, 4294901760
  %268 = vmatmul.mubr.f32.gmra.mrb[0].mxu0 %v267
  %v269 = vpop.f32.mrb[0].mxu0
  %v270 = vadd.f32 0.0, %v269
  %v271 = vpop.f32.mrb[0].mxu0
  %v272 = vand.u32 %v42, 4294901760
  %v273 = vsub.f32 %v42, %v272
  %v274 = vand.u32 %v273, 4294901760
  %v275 = vsub.f32 %v273, %v274
  %v276 = vand.u32 %v275, 4294901760
  %277 = vmatprep.mubr.f32.mxu0 %v276
  %v278 = vand.u32 %v41, 4294901760
  %v279 = vsub.f32 %v41, %v278
  %v280 = vand.u32 %v279, 4294901760
  %v281 = vsub.f32 %v279, %v280
  %v282 = vand.u32 %v281, 4294901760
  %283 = vmatmul.mubr.f32.gmra.mrb[0].mxu0 %v282
  %v284 = vpop.f32.mrb[0].mxu0
  %v285 = vadd.f32 0.0, %v284
  %v286 = vpop.f32.mrb[0].mxu0
  %v287 = vand.u32 %v44, 4294901760
  %v288 = vsub.f32 %v44, %v287
  %v289 = vand.u32 %v288, 4294901760
  %v290 = vsub.f32 %v288, %v289
  %v291 = vand.u32 %v290, 4294901760
  %292 = vmatprep.mubr.f32.mxu0 %v291
  %v293 = vand.u32 %v43, 4294901760
  %v294 = vsub.f32 %v43, %v293
  %v295 = vand.u32 %v294, 4294901760
  %v296 = vsub.f32 %v294, %v295
  %v297 = vand.u32 %v296, 4294901760
  %298 = vmatmul.mubr.f32.gmra.mrb[0].mxu0 %v297
  %v299 = vpop.f32.mrb[0].mxu0
  %v300 = vadd.f32 0.0, %v299
  %v301 = vpop.f32.mrb[0].mxu0
  %v302 = vand.u32 %v46, 4294901760
  %v303 = vsub.f32 %v46, %v302
  %v304 = vand.u32 %v303, 4294901760
  %v305 = vsub.f32 %v303, %v304
  %v306 = vand.u32 %v305, 4294901760
  %307 = vmatprep.mubr.f32.mxu0 %v306
  %v308 = vand.u32 %v45, 4294901760
  %v309 = vsub.f32 %v45, %v308
  %v310 = vand.u32 %v309, 4294901760
  %v311 = vsub.f32 %v309, %v310
  %v312 = vand.u32 %v311, 4294901760
  %313 = vmatmul.mubr.f32.gmra.mrb[0].mxu0 %v312
  %v314 = vpop.f32.mrb[0].mxu0
  %v315 = vadd.f32 0.0, %v314
  %v316 = vpop.f32.mrb[0].mxu0
  %v317 = vand.u32 %v48, 4294901760
  %v318 = vsub.f32 %v48, %v317
  %v319 = vand.u32 %v318, 4294901760
  %v320 = vsub.f32 %v318, %v319
  %v321 = vand.u32 %v320, 4294901760
  %322 = vmatprep.mubr.f32.mxu0 %v321
  %v323 = vand.u32 %v47, 4294901760
  %v324 = vsub.f32 %v47, %v323
  %v325 = vand.u32 %v324, 4294901760
  %v326 = vsub.f32 %v324, %v325
  %v327 = vand.u32 %v326, 4294901760
  %328 = vmatmul.mubr.f32.gmra.mrb[0].mxu0 %v327
  %v329 = vpop.f32.mrb[0].mxu0
  %v330 = vadd.f32 0.0, %v329
  %v331 = vpop.f32.mrb[0].mxu0
  %v332 = vand.u32 %v50, 4294901760
  %v333 = vsub.f32 %v50, %v332
  %v334 = vand.u32 %v333, 4294901760
  %v335 = vsub.f32 %v333, %v334
  %v336 = vand.u32 %v335, 4294901760
  %337 = vmatprep.mubr.f32.mxu0 %v336
  %v338 = vand.u32 %v49, 4294901760
  %v339 = vsub.f32 %v49, %v338
  %v340 = vand.u32 %v339, 4294901760
  %v341 = vsub.f32 %v339, %v340
  %v342 = vand.u32 %v341, 4294901760
  %343 = vmatmul.mubr.f32.gmra.mrb[0].mxu0 %v342
  %v344 = vpop.f32.mrb[0].mxu0
  %v345 = vadd.f32 0.0, %v344
  %v346 = vpop.f32.mrb[0].mxu0
  %v347 = vand.u32 %v52, 4294901760
  %v348 = vsub.f32 %v52, %v347
  %v349 = vand.u32 %v348, 4294901760
  %v350 = vsub.f32 %v348, %v349
  %v351 = vand.u32 %v350, 4294901760
  %352 = vmatprep.mubr.f32.mxu0 %v351
  %v353 = vand.u32 %v51, 4294901760
  %v354 = vsub.f32 %v51, %v353
  %v355 = vand.u32 %v354, 4294901760
  %v356 = vsub.f32 %v354, %v355
  %v357 = vand.u32 %v356, 4294901760
  %358 = vmatmul.mubr.f32.gmra.mrb[0].mxu0 %v357
  %v359 = vpop.f32.mrb[0].mxu0
  %v360 = vadd.f32 0.0, %v359
  %v361 = vpop.f32.mrb[0].mxu0
  %v362 = vand.u32 %v54, 4294901760
  %v363 = vsub.f32 %v54, %v362
  %v364 = vand.u32 %v363, 4294901760
  %v365 = vsub.f32 %v363, %v364
  %v366 = vand.u32 %v365, 4294901760
  %367 = vmatprep.mubr.f32.mxu0 %v366
  %v368 = vand.u32 %v53, 4294901760
  %v369 = vsub.f32 %v53, %v368
  %v370 = vand.u32 %v369, 4294901760
  %v371 = vsub.f32 %v369, %v370
  %v372 = vand.u32 %v371, 4294901760
  %373 = vmatmul.mubr.f32.gmra.mrb[0].mxu0 %v372
  %v374 = vpop.f32.mrb[0].mxu0
  %v375 = vadd.f32 0.0, %v374
  %v376 = vpop.f32.mrb[0].mxu0
  %v377 = vand.u32 %v56, 4294901760
  %v378 = vsub.f32 %v56, %v377
  %v379 = vand.u32 %v378, 4294901760
  %v380 = vsub.f32 %v378, %v379
  %v381 = vand.u32 %v380, 4294901760
  %382 = vmatprep.mubr.f32.mxu0 %v381
  %v383 = vand.u32 %v55, 4294901760
  %v384 = vsub.f32 %v55, %v383
  %v385 = vand.u32 %v384, 4294901760
  %v386 = vsub.f32 %v384, %v385
  %v387 = vand.u32 %v386, 4294901760
  %388 = vmatmul.mubr.f32.gmra.mrb[0].mxu0 %v387
  %v389 = vpop.f32.mrb[0].mxu0
  %v390 = vadd.f32 0.0, %v389
  %v391 = vpop.f32.mrb[0].mxu0
  %v392 = vand.u32 %v58, 4294901760
  %v393 = vsub.f32 %v58, %v392
  %v394 = vand.u32 %v393, 4294901760
  %v395 = vsub.f32 %v393, %v394
  %v396 = vand.u32 %v395, 4294901760
  %397 = vmatprep.mubr.f32.mxu0 %v396
  %v398 = vand.u32 %v57, 4294901760
  %v399 = vsub.f32 %v57, %v398
  %v400 = vand.u32 %v399, 4294901760
  %v401 = vsub.f32 %v399, %v400
  %v402 = vand.u32 %v401, 4294901760
  %403 = vmatmul.mubr.f32.gmra.mrb[0].mxu0 %v402
  %v404 = vpop.f32.mrb[0].mxu0
  %v405 = vadd.f32 0.0, %v404
  %v406 = vpop.f32.mrb[0].mxu0
  %v407 = vand.u32 %v60, 4294901760
  %v408 = vsub.f32 %v60, %v407
  %v409 = vand.u32 %v408, 4294901760
  %v410 = vsub.f32 %v408, %v409
  %v411 = vand.u32 %v410, 4294901760
  %412 = vmatprep.mubr.f32.mxu0 %v411
  %v413 = vand.u32 %v59, 4294901760
  %v414 = vsub.f32 %v59, %v413
  %v415 = vand.u32 %v414, 4294901760
  %v416 = vsub.f32 %v414, %v415
  %v417 = vand.u32 %v416, 4294901760
  %418 = vmatmul.mubr.f32.gmra.mrb[0].mxu0 %v417
  %v419 = vpop.f32.mrb[0].mxu0
  %v420 = vadd.f32 0.0, %v419
  %v421 = vpop.f32.mrb[0].mxu0
  %v422 = vand.u32 %v62, 4294901760
  %v423 = vsub.f32 %v62, %v422
  %v424 = vand.u32 %v423, 4294901760
  %v425 = vsub.f32 %v423, %v424
  %v426 = vand.u32 %v425, 4294901760
  %427 = vmatprep.mubr.f32.mxu0 %v426
  %v428 = vand.u32 %v61, 4294901760
  %v429 = vsub.f32 %v61, %v428
  %v430 = vand.u32 %v429, 4294901760
  %v431 = vsub.f32 %v429, %v430
  %v432 = vand.u32 %v431, 4294901760
  %433 = vmatmul.mubr.f32.gmra.mrb[0].mxu0 %v432
  %v434 = vpop.f32.mrb[0].mxu0
  %v435 = vadd.f32 0.0, %v434
  %v436 = vpop.f32.mrb[0].mxu0
  %v437 = vand.u32 %v64, 4294901760
  %v438 = vsub.f32 %v64, %v437
  %v439 = vand.u32 %v438, 4294901760
  %v440 = vsub.f32 %v438, %v439
  %v441 = vand.u32 %v440, 4294901760
  %442 = vmatprep.mubr.f32.mxu0 %v441
  %v443 = vand.u32 %v63, 4294901760
  %v444 = vsub.f32 %v63, %v443
  %v445 = vand.u32 %v444, 4294901760
  %v446 = vsub.f32 %v444, %v445
  %v447 = vand.u32 %v446, 4294901760
  %448 = vmatmul.mubr.f32.gmra.mrb[0].mxu0 %v447
  %v449 = vpop.f32.mrb[0].mxu0
  %v450 = vadd.f32 0.0, %v449
  %v451 = vpop.f32.mrb[0].mxu0
  %v452 = vand.u32 %v66, 4294901760
  %v453 = vsub.f32 %v66, %v452
  %v454 = vand.u32 %v453, 4294901760
  %v455 = vsub.f32 %v453, %v454
  %v456 = vand.u32 %v455, 4294901760
  %457 = vmatprep.mubr.f32.mxu0 %v456
  %v458 = vand.u32 %v65, 4294901760
  %v459 = vsub.f32 %v65, %v458
  %v460 = vand.u32 %v459, 4294901760
  %v461 = vsub.f32 %v459, %v460
  %v462 = vand.u32 %v461, 4294901760
  %463 = vmatmul.mubr.f32.gmra.mrb[0].mxu0 %v462
  %v464 = vpop.f32.mrb[0].mxu0
  %v465 = vadd.f32 0.0, %v464
  %v466 = vpop.f32.mrb[0].mxu0
  %v467 = vand.u32 %v68, 4294901760
  %v468 = vsub.f32 %v68, %v467
  %v469 = vand.u32 %v468, 4294901760
  %v470 = vsub.f32 %v468, %v469
  %v471 = vand.u32 %v470, 4294901760
  %472 = vmatprep.mubr.f32.mxu0 %v471
  %v473 = vand.u32 %v67, 4294901760
  %v474 = vsub.f32 %v67, %v473
  %v475 = vand.u32 %v474, 4294901760
  %v476 = vsub.f32 %v474, %v475
  %v477 = vand.u32 %v476, 4294901760
  %478 = vmatmul.mubr.f32.gmra.mrb[0].mxu0 %v477
  %v479 = vpop.f32.mrb[0].mxu0
  %v480 = vadd.f32 0.0, %v479
  %v481 = vpop.f32.mrb[0].mxu0
  %v482 = vand.u32 %v70, 4294901760
  %v483 = vsub.f32 %v70, %v482
  %v484 = vand.u32 %v483, 4294901760
  %v485 = vsub.f32 %v483, %v484
  %v486 = vand.u32 %v485, 4294901760
  %487 = vmatprep.mubr.f32.mxu0 %v486
  %v488 = vand.u32 %v69, 4294901760
  %v489 = vsub.f32 %v69, %v488
  %v490 = vand.u32 %v489, 4294901760
  %v491 = vsub.f32 %v489, %v490
  %v492 = vand.u32 %v491, 4294901760
  %493 = vmatmul.mubr.f32.gmra.mrb[0].mxu0 %v492
  %v494 = vpop.f32.mrb[0].mxu0
  %v495 = vadd.f32 0.0, %v494
  %v496 = vpop.f32.mrb[0].mxu0
  %v497 = vand.u32 %v72, 4294901760
  %v498 = vsub.f32 %v72, %v497
  %v499 = vand.u32 %v498, 4294901760
  %v500 = vsub.f32 %v498, %v499
  %v501 = vand.u32 %v500, 4294901760
  %502 = vmatprep.mubr.f32.mxu0 %v501
  %v503 = vand.u32 %v71, 4294901760
  %v504 = vsub.f32 %v71, %v503
  %v505 = vand.u32 %v504, 4294901760
  %v506 = vsub.f32 %v504, %v505
  %v507 = vand.u32 %v506, 4294901760
  %508 = vmatmul.mubr.f32.gmra.mrb[0].mxu0 %v507
  %v509 = vpop.f32.mrb[0].mxu0
  %v510 = vadd.f32 0.0, %v509
  %v511 = vpop.f32.mrb[0].mxu0
  %v512 = vand.u32 %v74, 4294901760
  %v513 = vsub.f32 %v74, %v512
  %v514 = vand.u32 %v513, 4294901760
  %v515 = vsub.f32 %v513, %v514
  %v516 = vand.u32 %v515, 4294901760
  %517 = vmatprep.mubr.f32.mxu0 %v516
  %v518 = vand.u32 %v73, 4294901760
  %v519 = vsub.f32 %v73, %v518
  %v520 = vand.u32 %v519, 4294901760
  %v521 = vsub.f32 %v519, %v520
  %v522 = vand.u32 %v521, 4294901760
  %523 = vmatmul.mubr.f32.gmra.mrb[0].mxu0 %v522
  %v524 = vpop.f32.mrb[0].mxu0
  %v525 = vadd.f32 0.0, %v524
  %v526 = vpop.f32.mrb[0].mxu0
  %v527 = vand.u32 %v76, 4294901760
  %v528 = vsub.f32 %v76, %v527
  %v529 = vand.u32 %v528, 4294901760
  %v530 = vsub.f32 %v528, %v529
  %v531 = vand.u32 %v530, 4294901760
  %532 = vmatprep.mubr.f32.mxu0 %v531
  %v533 = vand.u32 %v75, 4294901760
  %v534 = vsub.f32 %v75, %v533
  %v535 = vand.u32 %v534, 4294901760
  %v536 = vsub.f32 %v534, %v535
  %v537 = vand.u32 %v536, 4294901760
  %538 = vmatmul.mubr.f32.gmra.mrb[0].mxu0 %v537
  %v539 = vpop.f32.mrb[0].mxu0
  %v540 = vadd.f32 0.0, %v539
  %v541 = vpop.f32.mrb[0].mxu0
  %v542 = vand.u32 %v78, 4294901760
  %v543 = vsub.f32 %v78, %v542
  %v544 = vand.u32 %v543, 4294901760
  %v545 = vsub.f32 %v543, %v544
  %v546 = vand.u32 %v545, 4294901760
  %547 = vmatprep.mubr.f32.mxu0 %v546
  %v548 = vand.u32 %v77, 4294901760
  %v549 = vsub.f32 %v77, %v548
  %v550 = vand.u32 %v549, 4294901760
  %v551 = vsub.f32 %v549, %v550
  %v552 = vand.u32 %v551, 4294901760
  %553 = vmatmul.mubr.f32.gmra.mrb[0].mxu0 %v552
  %v554 = vpop.f32.mrb[0].mxu0
  %v555 = vadd.f32 0.0, %v554
  %v556 = vpop.f32.mrb[0].mxu0
  %v557 = vand.u32 %v80, 4294901760
  %v558 = vsub.f32 %v80, %v557
  %v559 = vand.u32 %v558, 4294901760
  %v560 = vsub.f32 %v558, %v559
  %v561 = vand.u32 %v560, 4294901760
  %562 = vmatprep.mubr.f32.mxu0 %v561
  %v563 = vand.u32 %v79, 4294901760
  %v564 = vsub.f32 %v79, %v563
  %v565 = vand.u32 %v564, 4294901760
  %v566 = vsub.f32 %v564, %v565
  %v567 = vand.u32 %v566, 4294901760
  %568 = vmatmul.mubr.f32.gmra.mrb[0].mxu0 %v567
  %v569 = vpop.f32.mrb[0].mxu0
  %v570 = vadd.f32 0.0, %v569
  %v571 = vpop.f32.mrb[0].mxu0
  %v572 = vand.u32 %v82, 4294901760
  %v573 = vsub.f32 %v82, %v572
  %v574 = vand.u32 %v573, 4294901760
  %v575 = vsub.f32 %v573, %v574
  %v576 = vand.u32 %v575, 4294901760
  %577 = vmatprep.mubr.f32.mxu0 %v576
  %v578 = vand.u32 %v81, 4294901760
  %v579 = vsub.f32 %v81, %v578
  %v580 = vand.u32 %v579, 4294901760
  %v581 = vsub.f32 %v579, %v580
  %v582 = vand.u32 %v581, 4294901760
  %583 = vmatmul.mubr.f32.gmra.mrb[0].mxu0 %v582
  %v584 = vpop.f32.mrb[0].mxu0
  %v585 = vadd.f32 0.0, %v584
  %v586 = vpop.f32.mrb[0].mxu0
  %v587 = vand.u32 %v84, 4294901760
  %v588 = vsub.f32 %v84, %v587
  %v589 = vand.u32 %v588, 4294901760
  %v590 = vsub.f32 %v588, %v589
  %v591 = vand.u32 %v590, 4294901760
  %592 = vmatprep.mubr.f32.mxu0 %v591
  %v593 = vand.u32 %v83, 4294901760
  %v594 = vsub.f32 %v83, %v593
  %v595 = vand.u32 %v594, 4294901760
  %v596 = vsub.f32 %v594, %v595
  %v597 = vand.u32 %v596, 4294901760
  %598 = vmatmul.mubr.f32.gmra.mrb[0].mxu0 %v597
  %v599 = vpop.f32.mrb[0].mxu0
  %v600 = vadd.f32 0.0, %v599
  %v601 = vpop.f32.mrb[0].mxu0
  %v602 = vand.u32 %v86, 4294901760
  %v603 = vsub.f32 %v86, %v602
  %v604 = vand.u32 %v603, 4294901760
  %v605 = vsub.f32 %v603, %v604
  %v606 = vand.u32 %v605, 4294901760
  %607 = vmatprep.mubr.f32.mxu0 %v606
  %v608 = vand.u32 %v85, 4294901760
  %v609 = vsub.f32 %v85, %v608
  %v610 = vand.u32 %v609, 4294901760
  %v611 = vsub.f32 %v609, %v610
  %v612 = vand.u32 %v611, 4294901760
  %613 = vmatmul.mubr.f32.gmra.mrb[0].mxu0 %v612
  %v614 = vpop.f32.mrb[0].mxu0
  %v615 = vadd.f32 0.0, %v614
  %v616 = vpop.f32.mrb[0].mxu0
  %v617 = vand.u32 %v88, 4294901760
  %v618 = vsub.f32 %v88, %v617
  %v619 = vand.u32 %v618, 4294901760
  %v620 = vsub.f32 %v618, %v619
  %v621 = vand.u32 %v620, 4294901760
  %622 = vmatprep.mubr.f32.mxu0 %v621
  %v623 = vand.u32 %v87, 4294901760
  %v624 = vsub.f32 %v87, %v623
  %v625 = vand.u32 %v624, 4294901760
  %v626 = vsub.f32 %v624, %v625
  %v627 = vand.u32 %v626, 4294901760
  %628 = vmatmul.mubr.f32.gmra.mrb[0].mxu0 %v627
  %v629 = vpop.f32.mrb[0].mxu0
  %v630 = vadd.f32 0.0, %v629
  %v631 = vpop.f32.mrb[0].mxu0
  %v632 = vand.u32 %v90, 4294901760
  %v633 = vsub.f32 %v90, %v632
  %v634 = vand.u32 %v633, 4294901760
  %v635 = vsub.f32 %v633, %v634
  %v636 = vand.u32 %v635, 4294901760
  %637 = vmatprep.mubr.f32.mxu0 %v636
  %v638 = vand.u32 %v89, 4294901760
  %v639 = vsub.f32 %v89, %v638
  %v640 = vand.u32 %v639, 4294901760
  %v641 = vsub.f32 %v639, %v640
  %v642 = vand.u32 %v641, 4294901760
  %643 = vmatmul.mubr.f32.gmra.mrb[0].mxu0 %v642
  %v644 = vpop.f32.mrb[0].mxu0
  %v645 = vadd.f32 0.0, %v644
  %v646 = vpop.f32.mrb[0].mxu0
  %v647 = vand.u32 %v92, 4294901760
  %v648 = vsub.f32 %v92, %v647
  %v649 = vand.u32 %v648, 4294901760
  %v650 = vsub.f32 %v648, %v649
  %v651 = vand.u32 %v650, 4294901760
  %652 = vmatprep.mubr.f32.mxu0 %v651
  %v653 = vand.u32 %v91, 4294901760
  %v654 = vsub.f32 %v91, %v653
  %v655 = vand.u32 %v654, 4294901760
  %v656 = vsub.f32 %v654, %v655
  %v657 = vand.u32 %v656, 4294901760
  %658 = vmatmul.mubr.f32.gmra.mrb[0].mxu0 %v657
  %v659 = vpop.f32.mrb[0].mxu0
  %v660 = vadd.f32 0.0, %v659
  %v661 = vpop.f32.mrb[0].mxu0
  %v662 = vand.u32 %v94, 4294901760
  %v663 = vsub.f32 %v94, %v662
  %v664 = vand.u32 %v663, 4294901760
  %v665 = vsub.f32 %v663, %v664
  %v666 = vand.u32 %v665, 4294901760
  %667 = vmatprep.mubr.f32.mxu0 %v666
  %v668 = vand.u32 %v93, 4294901760
  %v669 = vsub.f32 %v93, %v668
  %v670 = vand.u32 %v669, 4294901760
  %v671 = vsub.f32 %v669, %v670
  %v672 = vand.u32 %v671, 4294901760
  %673 = vmatmul.mubr.f32.gmra.mrb[0].mxu0 %v672
  %v674 = vpop.f32.mrb[0].mxu0
  %v675 = vadd.f32 0.0, %v674
  %v676 = vpop.f32.mrb[0].mxu0
  %v677 = vand.u32 %v96, 4294901760
  %v678 = vsub.f32 %v96, %v677
  %v679 = vand.u32 %v678, 4294901760
  %v680 = vsub.f32 %v678, %v679
  %v681 = vand.u32 %v680, 4294901760
  %682 = vmatprep.mubr.f32.mxu0 %v681
  %v683 = vand.u32 %v95, 4294901760
  %v684 = vsub.f32 %v95, %v683
  %v685 = vand.u32 %v684, 4294901760
  %v686 = vsub.f32 %v684, %v685
  %v687 = vand.u32 %v686, 4294901760
  %688 = vmatmul.mubr.f32.gmra.mrb[0].mxu0 %v687
  %v689 = vpop.f32.mrb[0].mxu0
  %v690 = vadd.f32 0.0, %v689
  %v691 = vpop.f32.mrb[0].mxu0
  %v692 = vand.u32 %v98, 4294901760
  %v693 = vsub.f32 %v98, %v692
  %v694 = vand.u32 %v693, 4294901760
  %v695 = vsub.f32 %v693, %v694
  %v696 = vand.u32 %v695, 4294901760
  %697 = vmatprep.mubr.f32.mxu0 %v696
  %v698 = vand.u32 %v97, 4294901760
  %v699 = vsub.f32 %v97, %v698
  %v700 = vand.u32 %v699, 4294901760
  %v701 = vsub.f32 %v699, %v700
  %v702 = vand.u32 %v701, 4294901760
  %703 = vmatmul.mubr.f32.gmra.mrb[0].mxu0 %v702
  %v704 = vpop.f32.mrb[0].mxu0
  %v705 = vadd.f32 0.0, %v704
  %v706 = vpop.f32.mrb[0].mxu0
  %707 = vdwg.mxu0
  %708 = vmatprep.subr.mxu0 0.0
  %v709 = vand.u32 %v99, 4294901760
  %v710 = vsub.f32 %v99, %v709
  %v711 = vand.u32 %v710, 4294901760
  %v712 = vsub.f32 %v710, %v711
  %v713 = vand.u32 %v712, 4294901760
  %714 = vmatpush1.msra.mxu0 %v713
  %715 = vmatprep.subr.mxu0 0.0
  %v716 = vand.u32 %v100, 4294901760
  %v717 = vsub.f32 %v100, %v716
  %v718 = vand.u32 %v717, 4294901760
  %v719 = vsub.f32 %v717, %v718
  %v720 = vand.u32 %v719, 4294901760
  %721 = vmatpush1.msra.mxu0 %v720
  %722 = vmatprep.subr.mxu0 0.0
  %v723 = vand.u32 %v101, 4294901760
  %v724 = vsub.f32 %v101, %v723
  %v725 = vand.u32 %v724, 4294901760
  %v726 = vsub.f32 %v724, %v725
  %v727 = vand.u32 %v726, 4294901760
  %728 = vmatpush1.msra.mxu0 %v727
  %729 = vmatprep.subr.mxu0 0.0
  %v730 = vand.u32 %v102, 4294901760
  %v731 = vsub.f32 %v102, %v730
  %v732 = vand.u32 %v731, 4294901760
  %v733 = vsub.f32 %v731, %v732
  %v734 = vand.u32 %v733, 4294901760
  %735 = vmatpush1.msra.mxu0 %v734
  %736 = vmatprep.subr.mxu0 0.0
  %v737 = vand.u32 %v103, 4294901760
  %v738 = vsub.f32 %v103, %v737
  %v739 = vand.u32 %v738, 4294901760
  %v740 = vsub.f32 %v738, %v739
  %v741 = vand.u32 %v740, 4294901760
  %742 = vmatpush1.msra.mxu0 %v741
  %743 = vmatprep.subr.mxu0 0.0
  %v744 = vand.u32 %v104, 4294901760
  %v745 = vsub.f32 %v104, %v744
  %v746 = vand.u32 %v745, 4294901760
  %v747 = vsub.f32 %v745, %v746
  %v748 = vand.u32 %v747, 4294901760
  %749 = vmatpush1.msra.mxu0 %v748
  %750 = vmatprep.subr.mxu0 0.0
  %v751 = vand.u32 %v105, 4294901760
  %v752 = vsub.f32 %v105, %v751
  %v753 = vand.u32 %v752, 4294901760
  %v754 = vsub.f32 %v752, %v753
  %v755 = vand.u32 %v754, 4294901760
  %756 = vmatpush1.msra.mxu0 %v755
  %757 = vmatprep.subr.mxu0 0.0
  %v758 = vand.u32 %v106, 4294901760
  %v759 = vsub.f32 %v106, %v758
  %v760 = vand.u32 %v759, 4294901760
  %v761 = vsub.f32 %v759, %v760
  %v762 = vand.u32 %v761, 4294901760
  %763 = vmatpush1.msra.mxu0 %v762
  %764 = vmatprep.subr.mxu0 0.0
  %v765 = vand.u32 %v107, 4294901760
  %v766 = vsub.f32 %v107, %v765
  %v767 = vand.u32 %v766, 4294901760
  %v768 = vsub.f32 %v766, %v767
  %v769 = vand.u32 %v768, 4294901760
  %770 = vmatpush1.msra.mxu0 %v769
  %771 = vmatprep.subr.mxu0 0.0
  %v772 = vand.u32 %v108, 4294901760
  %v773 = vsub.f32 %v108, %v772
  %v774 = vand.u32 %v773, 4294901760
  %v775 = vsub.f32 %v773, %v774
  %v776 = vand.u32 %v775, 4294901760
  %777 = vmatpush1.msra.mxu0 %v776
  %778 = vmatprep.subr.mxu0 0.0
  %v779 = vand.u32 %v109, 4294901760
  %v780 = vsub.f32 %v109, %v779
  %v781 = vand.u32 %v780, 4294901760
  %v782 = vsub.f32 %v780, %v781
  %v783 = vand.u32 %v782, 4294901760
  %784 = vmatpush1.msra.mxu0 %v783
  %785 = vmatprep.subr.mxu0 0.0
  %v786 = vand.u32 %v110, 4294901760
  %v787 = vsub.f32 %v110, %v786
  %v788 = vand.u32 %v787, 4294901760
  %v789 = vsub.f32 %v787, %v788
  %v790 = vand.u32 %v789, 4294901760
  %791 = vmatpush1.msra.mxu0 %v790
  %792 = vmatprep.subr.mxu0 0.0
  %v793 = vand.u32 %v111, 4294901760
  %v794 = vsub.f32 %v111, %v793
  %v795 = vand.u32 %v794, 4294901760
  %v796 = vsub.f32 %v794, %v795
  %v797 = vand.u32 %v796, 4294901760
  %798 = vmatpush1.msra.mxu0 %v797
  %799 = vmatprep.subr.mxu0 0.0
  %v800 = vand.u32 %v112, 4294901760
  %v801 = vsub.f32 %v112, %v800
  %v802 = vand.u32 %v801, 4294901760
  %v803 = vsub.f32 %v801, %v802
  %v804 = vand.u32 %v803, 4294901760
  %805 = vmatpush1.msra.mxu0 %v804
  %806 = vmatprep.subr.mxu0 0.0
  %v807 = vand.u32 %v113, 4294901760
  %v808 = vsub.f32 %v113, %v807
  %v809 = vand.u32 %v808, 4294901760
  %v810 = vsub.f32 %v808, %v809
  %v811 = vand.u32 %v810, 4294901760
  %812 = vmatpush1.msra.mxu0 %v811
  %813 = vmatprep.subr.mxu0 0.0
  %v814 = vand.u32 %v114, 4294901760
  %v815 = vsub.f32 %v114, %v814
  %v816 = vand.u32 %v815, 4294901760
  %v817 = vsub.f32 %v815, %v816
  %v818 = vand.u32 %v817, 4294901760
  %819 = vmatpush1.msra.mxu0 %v818
  %820 = vmatprep.subr.mxu0 0.0
  %v821 = vand.u32 %v115, 4294901760
  %v822 = vsub.f32 %v115, %v821
  %v823 = vand.u32 %v822, 4294901760
  %v824 = vsub.f32 %v822, %v823
  %v825 = vand.u32 %v824, 4294901760
  %826 = vmatpush1.msra.mxu0 %v825
  %827 = vmatprep.subr.mxu0 0.0
  %v828 = vand.u32 %v116, 4294901760
  %v829 = vsub.f32 %v116, %v828
  %v830 = vand.u32 %v829, 4294901760
  %v831 = vsub.f32 %v829, %v830
  %v832 = vand.u32 %v831, 4294901760
  %833 = vmatpush1.msra.mxu0 %v832
  %834 = vmatprep.subr.mxu0 0.0
  %v835 = vand.u32 %v117, 4294901760
  %v836 = vsub.f32 %v117, %v835
  %v837 = vand.u32 %v836, 4294901760
  %v838 = vsub.f32 %v836, %v837
  %v839 = vand.u32 %v838, 4294901760
  %840 = vmatpush1.msra.mxu0 %v839
  %841 = vmatprep.subr.mxu0 0.0
  %v842 = vand.u32 %v118, 4294901760
  %v843 = vsub.f32 %v118, %v842
  %v844 = vand.u32 %v843, 4294901760
  %v845 = vsub.f32 %v843, %v844
  %v846 = vand.u32 %v845, 4294901760
  %847 = vmatpush1.msra.mxu0 %v846
  %848 = vmatprep.subr.mxu0 0.0
  %v849 = vand.u32 %v119, 4294901760
  %v850 = vsub.f32 %v119, %v849
  %v851 = vand.u32 %v850, 4294901760
  %v852 = vsub.f32 %v850, %v851
  %v853 = vand.u32 %v852, 4294901760
  %854 = vmatpush1.msra.mxu0 %v853
  %855 = vmatprep.subr.mxu0 0.0
  %v856 = vand.u32 %v120, 4294901760
  %v857 = vsub.f32 %v120, %v856
  %v858 = vand.u32 %v857, 4294901760
  %v859 = vsub.f32 %v857, %v858
  %v860 = vand.u32 %v859, 4294901760
  %861 = vmatpush1.msra.mxu0 %v860
  %862 = vmatprep.subr.mxu0 0.0
  %v863 = vand.u32 %v121, 4294901760
  %v864 = vsub.f32 %v121, %v863
  %v865 = vand.u32 %v864, 4294901760
  %v866 = vsub.f32 %v864, %v865
  %v867 = vand.u32 %v866, 4294901760
  %868 = vmatpush1.msra.mxu0 %v867
  %869 = vmatprep.subr.mxu0 0.0
  %v870 = vand.u32 %v122, 4294901760
  %v871 = vsub.f32 %v122, %v870
  %v872 = vand.u32 %v871, 4294901760
  %v873 = vsub.f32 %v871, %v872
  %v874 = vand.u32 %v873, 4294901760
  %875 = vmatpush1.msra.mxu0 %v874
  %876 = vmatprep.subr.mxu0 0.0
  %v877 = vand.u32 %v123, 4294901760
  %v878 = vsub.f32 %v123, %v877
  %v879 = vand.u32 %v878, 4294901760
  %v880 = vsub.f32 %v878, %v879
  %v881 = vand.u32 %v880, 4294901760
  %882 = vmatpush1.msra.mxu0 %v881
  %883 = vmatprep.subr.mxu0 0.0
  %v884 = vand.u32 %v124, 4294901760
  %v885 = vsub.f32 %v124, %v884
  %v886 = vand.u32 %v885, 4294901760
  %v887 = vsub.f32 %v885, %v886
  %v888 = vand.u32 %v887, 4294901760
  %889 = vmatpush1.msra.mxu0 %v888
  %890 = vmatprep.subr.mxu0 0.0
  %v891 = vand.u32 %v125, 4294901760
  %v892 = vsub.f32 %v125, %v891
  %v893 = vand.u32 %v892, 4294901760
  %v894 = vsub.f32 %v892, %v893
  %v895 = vand.u32 %v894, 4294901760
  %896 = vmatpush1.msra.mxu0 %v895
  %897 = vmatprep.subr.mxu0 0.0
  %v898 = vand.u32 %v126, 4294901760
  %v899 = vsub.f32 %v126, %v898
  %v900 = vand.u32 %v899, 4294901760
  %v901 = vsub.f32 %v899, %v900
  %v902 = vand.u32 %v901, 4294901760
  %903 = vmatpush1.msra.mxu0 %v902
  %904 = vmatprep.subr.mxu0 0.0
  %v905 = vand.u32 %v127, 4294901760
  %v906 = vsub.f32 %v127, %v905
  %v907 = vand.u32 %v906, 4294901760
  %v908 = vsub.f32 %v906, %v907
  %v909 = vand.u32 %v908, 4294901760
  %910 = vmatpush1.msra.mxu0 %v909
  %911 = vmatprep.subr.mxu0 0.0
  %v912 = vand.u32 %v128, 4294901760
  %v913 = vsub.f32 %v128, %v912
  %v914 = vand.u32 %v913, 4294901760
  %v915 = vsub.f32 %v913, %v914
  %v916 = vand.u32 %v915, 4294901760
  %917 = vmatpush1.msra.mxu0 %v916
  %918 = vmatprep.subr.mxu0 0.0
  %v919 = vand.u32 %v129, 4294901760
  %v920 = vsub.f32 %v129, %v919
  %v921 = vand.u32 %v920, 4294901760
  %v922 = vsub.f32 %v920, %v921
  %v923 = vand.u32 %v922, 4294901760
  %924 = vmatpush1.msra.mxu0 %v923
  %925 = vmatprep.subr.mxu0 0.0
  %v926 = vand.u32 %v130, 4294901760
  %v927 = vsub.f32 %v130, %v926
  %v928 = vand.u32 %v927, 4294901760
  %v929 = vsub.f32 %v927, %v928
  %v930 = vand.u32 %v929, 4294901760
  %931 = vmatpush1.msra.mxu0 %v930
  %v932 = vand.u32 %v36, 4294901760
  %933 = vmatprep.mubr.f32.mxu0 %v932
  %v934 = vand.u32 %v35, 4294901760
  %935 = vmatmul.mubr.f32.gmra.mrb[0].mxu0 %v934
  %v936 = vpop.f32.mrb[0].mxu0
  %v937 = vadd.f32 %v240, %v936
  %v938 = vpop.f32.mrb[0].mxu0
  %v939 = vand.u32 %v38, 4294901760
  %940 = vmatprep.mubr.f32.mxu0 %v939
  %v941 = vand.u32 %v37, 4294901760
  %942 = vmatmul.mubr.f32.gmra.mrb[0].mxu0 %v941
  %v943 = vpop.f32.mrb[0].mxu0
  %v944 = vadd.f32 %v255, %v943
  %v945 = vpop.f32.mrb[0].mxu0
  %v946 = vand.u32 %v40, 4294901760
  %947 = vmatprep.mubr.f32.mxu0 %v946
  %v948 = vand.u32 %v39, 4294901760
  %949 = vmatmul.mubr.f32.gmra.mrb[0].mxu0 %v948
  %v950 = vpop.f32.mrb[0].mxu0
  %v951 = vadd.f32 %v270, %v950
  %v952 = vpop.f32.mrb[0].mxu0
  %v953 = vand.u32 %v42, 4294901760
  %954 = vmatprep.mubr.f32.mxu0 %v953
  %v955 = vand.u32 %v41, 4294901760
  %956 = vmatmul.mubr.f32.gmra.mrb[0].mxu0 %v955
  %v957 = vpop.f32.mrb[0].mxu0
  %v958 = vadd.f32 %v285, %v957
  %v959 = vpop.f32.mrb[0].mxu0
  %v960 = vand.u32 %v44, 4294901760
  %961 = vmatprep.mubr.f32.mxu0 %v960
  %v962 = vand.u32 %v43, 4294901760
  %963 = vmatmul.mubr.f32.gmra.mrb[0].mxu0 %v962
  %v964 = vpop.f32.mrb[0].mxu0
  %v965 = vadd.f32 %v300, %v964
  %v966 = vpop.f32.mrb[0].mxu0
  %v967 = vand.u32 %v46, 4294901760
  %968 = vmatprep.mubr.f32.mxu0 %v967
  %v969 = vand.u32 %v45, 4294901760
  %970 = vmatmul.mubr.f32.gmra.mrb[0].mxu0 %v969
  %v971 = vpop.f32.mrb[0].mxu0
  %v972 = vadd.f32 %v315, %v971
  %v973 = vpop.f32.mrb[0].mxu0
  %v974 = vand.u32 %v48, 4294901760
  %975 = vmatprep.mubr.f32.mxu0 %v974
  %v976 = vand.u32 %v47, 4294901760
  %977 = vmatmul.mubr.f32.gmra.mrb[0].mxu0 %v976
  %v978 = vpop.f32.mrb[0].mxu0
  %v979 = vadd.f32 %v330, %v978
  %v980 = vpop.f32.mrb[0].mxu0
  %v981 = vand.u32 %v50, 4294901760
  %982 = vmatprep.mubr.f32.mxu0 %v981
  %v983 = vand.u32 %v49, 4294901760
  %984 = vmatmul.mubr.f32.gmra.mrb[0].mxu0 %v983
  %v985 = vpop.f32.mrb[0].mxu0
  %v986 = vadd.f32 %v345, %v985
  %v987 = vpop.f32.mrb[0].mxu0
  %v988 = vand.u32 %v52, 4294901760
  %989 = vmatprep.mubr.f32.mxu0 %v988
  %v990 = vand.u32 %v51, 4294901760
  %991 = vmatmul.mubr.f32.gmra.mrb[0].mxu0 %v990
  %v992 = vpop.f32.mrb[0].mxu0
  %v993 = vadd.f32 %v360, %v992
  %v994 = vpop.f32.mrb[0].mxu0
  %v995 = vand.u32 %v54, 4294901760
  %996 = vmatprep.mubr.f32.mxu0 %v995
  %v997 = vand.u32 %v53, 4294901760
  %998 = vmatmul.mubr.f32.gmra.mrb[0].mxu0 %v997
  %v999 = vpop.f32.mrb[0].mxu0
  %v1000 = vadd.f32 %v375, %v999
  %v1001 = vpop.f32.mrb[0].mxu0
  %v1002 = vand.u32 %v56, 4294901760
  %1003 = vmatprep.mubr.f32.mxu0 %v1002
  %v1004 = vand.u32 %v55, 4294901760
  %1005 = vmatmul.mubr.f32.gmra.mrb[0].mxu0 %v1004
  %v1006 = vpop.f32.mrb[0].mxu0
  %v1007 = vadd.f32 %v390, %v1006
  %v1008 = vpop.f32.mrb[0].mxu0
  %v1009 = vand.u32 %v58, 4294901760
  %1010 = vmatprep.mubr.f32.mxu0 %v1009
  %v1011 = vand.u32 %v57, 4294901760
  %1012 = vmatmul.mubr.f32.gmra.mrb[0].mxu0 %v1011
  %v1013 = vpop.f32.mrb[0].mxu0
  %v1014 = vadd.f32 %v405, %v1013
  %v1015 = vpop.f32.mrb[0].mxu0
  %v1016 = vand.u32 %v60, 4294901760
  %1017 = vmatprep.mubr.f32.mxu0 %v1016
  %v1018 = vand.u32 %v59, 4294901760
  %1019 = vmatmul.mubr.f32.gmra.mrb[0].mxu0 %v1018
  %v1020 = vpop.f32.mrb[0].mxu0
  %v1021 = vadd.f32 %v420, %v1020
  %v1022 = vpop.f32.mrb[0].mxu0
  %v1023 = vand.u32 %v62, 4294901760
  %1024 = vmatprep.mubr.f32.mxu0 %v1023
  %v1025 = vand.u32 %v61, 4294901760
  %1026 = vmatmul.mubr.f32.gmra.mrb[0].mxu0 %v1025
  %v1027 = vpop.f32.mrb[0].mxu0
  %v1028 = vadd.f32 %v435, %v1027
  %v1029 = vpop.f32.mrb[0].mxu0
  %v1030 = vand.u32 %v64, 4294901760
  %1031 = vmatprep.mubr.f32.mxu0 %v1030
  %v1032 = vand.u32 %v63, 4294901760
  %1033 = vmatmul.mubr.f32.gmra.mrb[0].mxu0 %v1032
  %v1034 = vpop.f32.mrb[0].mxu0
  %v1035 = vadd.f32 %v450, %v1034
  %v1036 = vpop.f32.mrb[0].mxu0
  %v1037 = vand.u32 %v66, 4294901760
  %1038 = vmatprep.mubr.f32.mxu0 %v1037
  %v1039 = vand.u32 %v65, 4294901760
  %1040 = vmatmul.mubr.f32.gmra.mrb[0].mxu0 %v1039
  %v1041 = vpop.f32.mrb[0].mxu0
  %v1042 = vadd.f32 %v465, %v1041
  %v1043 = vpop.f32.mrb[0].mxu0
  %v1044 = vand.u32 %v68, 4294901760
  %1045 = vmatprep.mubr.f32.mxu0 %v1044
  %v1046 = vand.u32 %v67, 4294901760
  %1047 = vmatmul.mubr.f32.gmra.mrb[0].mxu0 %v1046
  %v1048 = vpop.f32.mrb[0].mxu0
  %v1049 = vadd.f32 %v480, %v1048
  %v1050 = vpop.f32.mrb[0].mxu0
  %v1051 = vand.u32 %v70, 4294901760
  %1052 = vmatprep.mubr.f32.mxu0 %v1051
  %v1053 = vand.u32 %v69, 4294901760
  %1054 = vmatmul.mubr.f32.gmra.mrb[0].mxu0 %v1053
  %v1055 = vpop.f32.mrb[0].mxu0
  %v1056 = vadd.f32 %v495, %v1055
  %v1057 = vpop.f32.mrb[0].mxu0
  %v1058 = vand.u32 %v72, 4294901760
  %1059 = vmatprep.mubr.f32.mxu0 %v1058
  %v1060 = vand.u32 %v71, 4294901760
  %1061 = vmatmul.mubr.f32.gmra.mrb[0].mxu0 %v1060
  %v1062 = vpop.f32.mrb[0].mxu0
  %v1063 = vadd.f32 %v510, %v1062
  %v1064 = vpop.f32.mrb[0].mxu0
  %v1065 = vand.u32 %v74, 4294901760
  %1066 = vmatprep.mubr.f32.mxu0 %v1065
  %v1067 = vand.u32 %v73, 4294901760
  %1068 = vmatmul.mubr.f32.gmra.mrb[0].mxu0 %v1067
  %v1069 = vpop.f32.mrb[0].mxu0
  %v1070 = vadd.f32 %v525, %v1069
  %v1071 = vpop.f32.mrb[0].mxu0
  %v1072 = vand.u32 %v76, 4294901760
  %1073 = vmatprep.mubr.f32.mxu0 %v1072
  %v1074 = vand.u32 %v75, 4294901760
  %1075 = vmatmul.mubr.f32.gmra.mrb[0].mxu0 %v1074
  %v1076 = vpop.f32.mrb[0].mxu0
  %v1077 = vadd.f32 %v540, %v1076
  %v1078 = vpop.f32.mrb[0].mxu0
  %v1079 = vand.u32 %v78, 4294901760
  %1080 = vmatprep.mubr.f32.mxu0 %v1079
  %v1081 = vand.u32 %v77, 4294901760
  %1082 = vmatmul.mubr.f32.gmra.mrb[0].mxu0 %v1081
  %v1083 = vpop.f32.mrb[0].mxu0
  %v1084 = vadd.f32 %v555, %v1083
  %v1085 = vpop.f32.mrb[0].mxu0
  %v1086 = vand.u32 %v80, 4294901760
  %1087 = vmatprep.mubr.f32.mxu0 %v1086
  %v1088 = vand.u32 %v79, 4294901760
  %1089 = vmatmul.mubr.f32.gmra.mrb[0].mxu0 %v1088
  %v1090 = vpop.f32.mrb[0].mxu0
  %v1091 = vadd.f32 %v570, %v1090
  %v1092 = vpop.f32.mrb[0].mxu0
  %v1093 = vand.u32 %v82, 4294901760
  %1094 = vmatprep.mubr.f32.mxu0 %v1093
  %v1095 = vand.u32 %v81, 4294901760
  %1096 = vmatmul.mubr.f32.gmra.mrb[0].mxu0 %v1095
  %v1097 = vpop.f32.mrb[0].mxu0
  %v1098 = vadd.f32 %v585, %v1097
  %v1099 = vpop.f32.mrb[0].mxu0
  %v1100 = vand.u32 %v84, 4294901760
  %1101 = vmatprep.mubr.f32.mxu0 %v1100
  %v1102 = vand.u32 %v83, 4294901760
  %1103 = vmatmul.mubr.f32.gmra.mrb[0].mxu0 %v1102
  %v1104 = vpop.f32.mrb[0].mxu0
  %v1105 = vadd.f32 %v600, %v1104
  %v1106 = vpop.f32.mrb[0].mxu0
  %v1107 = vand.u32 %v86, 4294901760
  %1108 = vmatprep.mubr.f32.mxu0 %v1107
  %v1109 = vand.u32 %v85, 4294901760
  %1110 = vmatmul.mubr.f32.gmra.mrb[0].mxu0 %v1109
  %v1111 = vpop.f32.mrb[0].mxu0
  %v1112 = vadd.f32 %v615, %v1111
  %v1113 = vpop.f32.mrb[0].mxu0
  %v1114 = vand.u32 %v88, 4294901760
  %1115 = vmatprep.mubr.f32.mxu0 %v1114
  %v1116 = vand.u32 %v87, 4294901760
  %1117 = vmatmul.mubr.f32.gmra.mrb[0].mxu0 %v1116
  %v1118 = vpop.f32.mrb[0].mxu0
  %v1119 = vadd.f32 %v630, %v1118
  %v1120 = vpop.f32.mrb[0].mxu0
  %v1121 = vand.u32 %v90, 4294901760
  %1122 = vmatprep.mubr.f32.mxu0 %v1121
  %v1123 = vand.u32 %v89, 4294901760
  %1124 = vmatmul.mubr.f32.gmra.mrb[0].mxu0 %v1123
  %v1125 = vpop.f32.mrb[0].mxu0
  %v1126 = vadd.f32 %v645, %v1125
  %v1127 = vpop.f32.mrb[0].mxu0
  %v1128 = vand.u32 %v92, 4294901760
  %1129 = vmatprep.mubr.f32.mxu0 %v1128
  %v1130 = vand.u32 %v91, 4294901760
  %1131 = vmatmul.mubr.f32.gmra.mrb[0].mxu0 %v1130
  %v1132 = vpop.f32.mrb[0].mxu0
  %v1133 = vadd.f32 %v660, %v1132
  %v1134 = vpop.f32.mrb[0].mxu0
  %v1135 = vand.u32 %v94, 4294901760
  %1136 = vmatprep.mubr.f32.mxu0 %v1135
  %v1137 = vand.u32 %v93, 4294901760
  %1138 = vmatmul.mubr.f32.gmra.mrb[0].mxu0 %v1137
  %v1139 = vpop.f32.mrb[0].mxu0
  %v1140 = vadd.f32 %v675, %v1139
  %v1141 = vpop.f32.mrb[0].mxu0
  %v1142 = vand.u32 %v96, 4294901760
  %1143 = vmatprep.mubr.f32.mxu0 %v1142
  %v1144 = vand.u32 %v95, 4294901760
  %1145 = vmatmul.mubr.f32.gmra.mrb[0].mxu0 %v1144
  %v1146 = vpop.f32.mrb[0].mxu0
  %v1147 = vadd.f32 %v690, %v1146
  %v1148 = vpop.f32.mrb[0].mxu0
  %v1149 = vand.u32 %v98, 4294901760
  %1150 = vmatprep.mubr.f32.mxu0 %v1149
  %v1151 = vand.u32 %v97, 4294901760
  %1152 = vmatmul.mubr.f32.gmra.mrb[0].mxu0 %v1151
  %v1153 = vpop.f32.mrb[0].mxu0
  %v1154 = vadd.f32 %v705, %v1153
  %v1155 = vpop.f32.mrb[0].mxu0
  %1156 = vdwg.mxu0
  %1157 = vmatprep.subr.mxu0 0.0
  %v1158 = vand.u32 %v99, 4294901760
  %v1159 = vsub.f32 %v99, %v1158
  %1160 = vmatpush1.msra.mxu0 %v1159
  %1161 = vmatprep.subr.mxu0 0.0
  %v1162 = vand.u32 %v100, 4294901760
  %v1163 = vsub.f32 %v100, %v1162
  %1164 = vmatpush1.msra.mxu0 %v1163
  %1165 = vmatprep.subr.mxu0 0.0
  %v1166 = vand.u32 %v101, 4294901760
  %v1167 = vsub.f32 %v101, %v1166
  %1168 = vmatpush1.msra.mxu0 %v1167
  %1169 = vmatprep.subr.mxu0 0.0
  %v1170 = vand.u32 %v102, 4294901760
  %v1171 = vsub.f32 %v102, %v1170
  %1172 = vmatpush1.msra.mxu0 %v1171
  %1173 = vmatprep.subr.mxu0 0.0
  %v1174 = vand.u32 %v103, 4294901760
  %v1175 = vsub.f32 %v103, %v1174
  %1176 = vmatpush1.msra.mxu0 %v1175
  %1177 = vmatprep.subr.mxu0 0.0
  %v1178 = vand.u32 %v104, 4294901760
  %v1179 = vsub.f32 %v104, %v1178
  %1180 = vmatpush1.msra.mxu0 %v1179
  %1181 = vmatprep.subr.mxu0 0.0
  %v1182 = vand.u32 %v105, 4294901760
  %v1183 = vsub.f32 %v105, %v1182
  %1184 = vmatpush1.msra.mxu0 %v1183
  %1185 = vmatprep.subr.mxu0 0.0
  %v1186 = vand.u32 %v106, 4294901760
  %v1187 = vsub.f32 %v106, %v1186
  %1188 = vmatpush1.msra.mxu0 %v1187
  %1189 = vmatprep.subr.mxu0 0.0
  %v1190 = vand.u32 %v107, 4294901760
  %v1191 = vsub.f32 %v107, %v1190
  %1192 = vmatpush1.msra.mxu0 %v1191
  %1193 = vmatprep.subr.mxu0 0.0
  %v1194 = vand.u32 %v108, 4294901760
  %v1195 = vsub.f32 %v108, %v1194
  %1196 = vmatpush1.msra.mxu0 %v1195
  %1197 = vmatprep.subr.mxu0 0.0
  %v1198 = vand.u32 %v109, 4294901760
  %v1199 = vsub.f32 %v109, %v1198
  %1200 = vmatpush1.msra.mxu0 %v1199
  %1201 = vmatprep.subr.mxu0 0.0
  %v1202 = vand.u32 %v110, 4294901760
  %v1203 = vsub.f32 %v110, %v1202
  %1204 = vmatpush1.msra.mxu0 %v1203
  %1205 = vmatprep.subr.mxu0 0.0
  %v1206 = vand.u32 %v111, 4294901760
  %v1207 = vsub.f32 %v111, %v1206
  %1208 = vmatpush1.msra.mxu0 %v1207
  %1209 = vmatprep.subr.mxu0 0.0
  %v1210 = vand.u32 %v112, 4294901760
  %v1211 = vsub.f32 %v112, %v1210
  %1212 = vmatpush1.msra.mxu0 %v1211
  %1213 = vmatprep.subr.mxu0 0.0
  %v1214 = vand.u32 %v113, 4294901760
  %v1215 = vsub.f32 %v113, %v1214
  %1216 = vmatpush1.msra.mxu0 %v1215
  %1217 = vmatprep.subr.mxu0 0.0
  %v1218 = vand.u32 %v114, 4294901760
  %v1219 = vsub.f32 %v114, %v1218
  %1220 = vmatpush1.msra.mxu0 %v1219
  %1221 = vmatprep.subr.mxu0 0.0
  %v1222 = vand.u32 %v115, 4294901760
  %v1223 = vsub.f32 %v115, %v1222
  %1224 = vmatpush1.msra.mxu0 %v1223
  %1225 = vmatprep.subr.mxu0 0.0
  %v1226 = vand.u32 %v116, 4294901760
  %v1227 = vsub.f32 %v116, %v1226
  %1228 = vmatpush1.msra.mxu0 %v1227
  %1229 = vmatprep.subr.mxu0 0.0
  %v1230 = vand.u32 %v117, 4294901760
  %v1231 = vsub.f32 %v117, %v1230
  %1232 = vmatpush1.msra.mxu0 %v1231
  %1233 = vmatprep.subr.mxu0 0.0
  %v1234 = vand.u32 %v118, 4294901760
  %v1235 = vsub.f32 %v118, %v1234
  %1236 = vmatpush1.msra.mxu0 %v1235
  %1237 = vmatprep.subr.mxu0 0.0
  %v1238 = vand.u32 %v119, 4294901760
  %v1239 = vsub.f32 %v119, %v1238
  %1240 = vmatpush1.msra.mxu0 %v1239
  %1241 = vmatprep.subr.mxu0 0.0
  %v1242 = vand.u32 %v120, 4294901760
  %v1243 = vsub.f32 %v120, %v1242
  %1244 = vmatpush1.msra.mxu0 %v1243
  %1245 = vmatprep.subr.mxu0 0.0
  %v1246 = vand.u32 %v121, 4294901760
  %v1247 = vsub.f32 %v121, %v1246
  %1248 = vmatpush1.msra.mxu0 %v1247
  %1249 = vmatprep.subr.mxu0 0.0
  %v1250 = vand.u32 %v122, 4294901760
  %v1251 = vsub.f32 %v122, %v1250
  %1252 = vmatpush1.msra.mxu0 %v1251
  %1253 = vmatprep.subr.mxu0 0.0
  %v1254 = vand.u32 %v123, 4294901760
  %v1255 = vsub.f32 %v123, %v1254
  %1256 = vmatpush1.msra.mxu0 %v1255
  %1257 = vmatprep.subr.mxu0 0.0
  %v1258 = vand.u32 %v124, 4294901760
  %v1259 = vsub.f32 %v124, %v1258
  %1260 = vmatpush1.msra.mxu0 %v1259
  %1261 = vmatprep.subr.mxu0 0.0
  %v1262 = vand.u32 %v125, 4294901760
  %v1263 = vsub.f32 %v125, %v1262
  %1264 = vmatpush1.msra.mxu0 %v1263
  %1265 = vmatprep.subr.mxu0 0.0
  %v1266 = vand.u32 %v126, 4294901760
  %v1267 = vsub.f32 %v126, %v1266
  %1268 = vmatpush1.msra.mxu0 %v1267
  %1269 = vmatprep.subr.mxu0 0.0
  %v1270 = vand.u32 %v127, 4294901760
  %v1271 = vsub.f32 %v127, %v1270
  %1272 = vmatpush1.msra.mxu0 %v1271
  %1273 = vmatprep.subr.mxu0 0.0
  %v1274 = vand.u32 %v128, 4294901760
  %v1275 = vsub.f32 %v128, %v1274
  %1276 = vmatpush1.msra.mxu0 %v1275
  %1277 = vmatprep.subr.mxu0 0.0
  %v1278 = vand.u32 %v129, 4294901760
  %v1279 = vsub.f32 %v129, %v1278
  %1280 = vmatpush1.msra.mxu0 %v1279
  %1281 = vmatprep.subr.mxu0 0.0
  %v1282 = vand.u32 %v130, 4294901760
  %v1283 = vsub.f32 %v130, %v1282
  %1284 = vmatpush1.msra.mxu0 %v1283
  %v1285 = vand.u32 %v36, 4294901760
  %v1286 = vsub.f32 %v36, %v1285
  %1287 = vmatprep.mubr.f32.mxu0 %v1286
  %v1288 = vand.u32 %v35, 4294901760
  %v1289 = vsub.f32 %v35, %v1288
  %1290 = vmatmul.mubr.f32.gmra.mrb[0].mxu0 %v1289
  %v1291 = vpop.f32.mrb[0].mxu0
  %v1292 = vadd.f32 %v937, %v1291
  %v1293 = vpop.f32.mrb[0].mxu0
  %v1294 = vand.u32 %v38, 4294901760
  %v1295 = vsub.f32 %v38, %v1294
  %1296 = vmatprep.mubr.f32.mxu0 %v1295
  %v1297 = vand.u32 %v37, 4294901760
  %v1298 = vsub.f32 %v37, %v1297
  %1299 = vmatmul.mubr.f32.gmra.mrb[0].mxu0 %v1298
  %v1300 = vpop.f32.mrb[0].mxu0
  %v1301 = vadd.f32 %v944, %v1300
  %v1302 = vpop.f32.mrb[0].mxu0
  %v1303 = vand.u32 %v40, 4294901760
  %v1304 = vsub.f32 %v40, %v1303
  %1305 = vmatprep.mubr.f32.mxu0 %v1304
  %v1306 = vand.u32 %v39, 4294901760
  %v1307 = vsub.f32 %v39, %v1306
  %1308 = vmatmul.mubr.f32.gmra.mrb[0].mxu0 %v1307
  %v1309 = vpop.f32.mrb[0].mxu0
  %v1310 = vadd.f32 %v951, %v1309
  %v1311 = vpop.f32.mrb[0].mxu0
  %v1312 = vand.u32 %v42, 4294901760
  %v1313 = vsub.f32 %v42, %v1312
  %1314 = vmatprep.mubr.f32.mxu0 %v1313
  %v1315 = vand.u32 %v41, 4294901760
  %v1316 = vsub.f32 %v41, %v1315
  %1317 = vmatmul.mubr.f32.gmra.mrb[0].mxu0 %v1316
  %v1318 = vpop.f32.mrb[0].mxu0
  %v1319 = vadd.f32 %v958, %v1318
  %v1320 = vpop.f32.mrb[0].mxu0
  %v1321 = vand.u32 %v44, 4294901760
  %v1322 = vsub.f32 %v44, %v1321
  %1323 = vmatprep.mubr.f32.mxu0 %v1322
  %v1324 = vand.u32 %v43, 4294901760
  %v1325 = vsub.f32 %v43, %v1324
  %1326 = vmatmul.mubr.f32.gmra.mrb[0].mxu0 %v1325
  %v1327 = vpop.f32.mrb[0].mxu0
  %v1328 = vadd.f32 %v965, %v1327
  %v1329 = vpop.f32.mrb[0].mxu0
  %v1330 = vand.u32 %v46, 4294901760
  %v1331 = vsub.f32 %v46, %v1330
  %1332 = vmatprep.mubr.f32.mxu0 %v1331
  %v1333 = vand.u32 %v45, 4294901760
  %v1334 = vsub.f32 %v45, %v1333
  %1335 = vmatmul.mubr.f32.gmra.mrb[0].mxu0 %v1334
  %v1336 = vpop.f32.mrb[0].mxu0
  %v1337 = vadd.f32 %v972, %v1336
  %v1338 = vpop.f32.mrb[0].mxu0
  %v1339 = vand.u32 %v48, 4294901760
  %v1340 = vsub.f32 %v48, %v1339
  %1341 = vmatprep.mubr.f32.mxu0 %v1340
  %v1342 = vand.u32 %v47, 4294901760
  %v1343 = vsub.f32 %v47, %v1342
  %1344 = vmatmul.mubr.f32.gmra.mrb[0].mxu0 %v1343
  %v1345 = vpop.f32.mrb[0].mxu0
  %v1346 = vadd.f32 %v979, %v1345
  %v1347 = vpop.f32.mrb[0].mxu0
  %v1348 = vand.u32 %v50, 4294901760
  %v1349 = vsub.f32 %v50, %v1348
  %1350 = vmatprep.mubr.f32.mxu0 %v1349
  %v1351 = vand.u32 %v49, 4294901760
  %v1352 = vsub.f32 %v49, %v1351
  %1353 = vmatmul.mubr.f32.gmra.mrb[0].mxu0 %v1352
  %v1354 = vpop.f32.mrb[0].mxu0
  %v1355 = vadd.f32 %v986, %v1354
  %v1356 = vpop.f32.mrb[0].mxu0
  %v1357 = vand.u32 %v52, 4294901760
  %v1358 = vsub.f32 %v52, %v1357
  %1359 = vmatprep.mubr.f32.mxu0 %v1358
  %v1360 = vand.u32 %v51, 4294901760
  %v1361 = vsub.f32 %v51, %v1360
  %1362 = vmatmul.mubr.f32.gmra.mrb[0].mxu0 %v1361
  %v1363 = vpop.f32.mrb[0].mxu0
  %v1364 = vadd.f32 %v993, %v1363
  %v1365 = vpop.f32.mrb[0].mxu0
  %v1366 = vand.u32 %v54, 4294901760
  %v1367 = vsub.f32 %v54, %v1366
  %1368 = vmatprep.mubr.f32.mxu0 %v1367
  %v1369 = vand.u32 %v53, 4294901760
  %v1370 = vsub.f32 %v53, %v1369
  %1371 = vmatmul.mubr.f32.gmra.mrb[0].mxu0 %v1370
  %v1372 = vpop.f32.mrb[0].mxu0
  %v1373 = vadd.f32 %v1000, %v1372
  %v1374 = vpop.f32.mrb[0].mxu0
  %v1375 = vand.u32 %v56, 4294901760
  %v1376 = vsub.f32 %v56, %v1375
  %1377 = vmatprep.mubr.f32.mxu0 %v1376
  %v1378 = vand.u32 %v55, 4294901760
  %v1379 = vsub.f32 %v55, %v1378
  %1380 = vmatmul.mubr.f32.gmra.mrb[0].mxu0 %v1379
  %v1381 = vpop.f32.mrb[0].mxu0
  %v1382 = vadd.f32 %v1007, %v1381
  %v1383 = vpop.f32.mrb[0].mxu0
  %v1384 = vand.u32 %v58, 4294901760
  %v1385 = vsub.f32 %v58, %v1384
  %1386 = vmatprep.mubr.f32.mxu0 %v1385
  %v1387 = vand.u32 %v57, 4294901760
  %v1388 = vsub.f32 %v57, %v1387
  %1389 = vmatmul.mubr.f32.gmra.mrb[0].mxu0 %v1388
  %v1390 = vpop.f32.mrb[0].mxu0
  %v1391 = vadd.f32 %v1014, %v1390
  %v1392 = vpop.f32.mrb[0].mxu0
  %v1393 = vand.u32 %v60, 4294901760
  %v1394 = vsub.f32 %v60, %v1393
  %1395 = vmatprep.mubr.f32.mxu0 %v1394
  %v1396 = vand.u32 %v59, 4294901760
  %v1397 = vsub.f32 %v59, %v1396
  %1398 = vmatmul.mubr.f32.gmra.mrb[0].mxu0 %v1397
  %v1399 = vpop.f32.mrb[0].mxu0
  %v1400 = vadd.f32 %v1021, %v1399
  %v1401 = vpop.f32.mrb[0].mxu0
  %v1402 = vand.u32 %v62, 4294901760
  %v1403 = vsub.f32 %v62, %v1402
  %1404 = vmatprep.mubr.f32.mxu0 %v1403
  %v1405 = vand.u32 %v61, 4294901760
  %v1406 = vsub.f32 %v61, %v1405
  %1407 = vmatmul.mubr.f32.gmra.mrb[0].mxu0 %v1406
  %v1408 = vpop.f32.mrb[0].mxu0
  %v1409 = vadd.f32 %v1028, %v1408
  %v1410 = vpop.f32.mrb[0].mxu0
  %v1411 = vand.u32 %v64, 4294901760
  %v1412 = vsub.f32 %v64, %v1411
  %1413 = vmatprep.mubr.f32.mxu0 %v1412
  %v1414 = vand.u32 %v63, 4294901760
  %v1415 = vsub.f32 %v63, %v1414
  %1416 = vmatmul.mubr.f32.gmra.mrb[0].mxu0 %v1415
  %v1417 = vpop.f32.mrb[0].mxu0
  %v1418 = vadd.f32 %v1035, %v1417
  %v1419 = vpop.f32.mrb[0].mxu0
  %v1420 = vand.u32 %v66, 4294901760
  %v1421 = vsub.f32 %v66, %v1420
  %1422 = vmatprep.mubr.f32.mxu0 %v1421
  %v1423 = vand.u32 %v65, 4294901760
  %v1424 = vsub.f32 %v65, %v1423
  %1425 = vmatmul.mubr.f32.gmra.mrb[0].mxu0 %v1424
  %v1426 = vpop.f32.mrb[0].mxu0
  %v1427 = vadd.f32 %v1042, %v1426
  %v1428 = vpop.f32.mrb[0].mxu0
  %v1429 = vand.u32 %v68, 4294901760
  %v1430 = vsub.f32 %v68, %v1429
  %1431 = vmatprep.mubr.f32.mxu0 %v1430
  %v1432 = vand.u32 %v67, 4294901760
  %v1433 = vsub.f32 %v67, %v1432
  %1434 = vmatmul.mubr.f32.gmra.mrb[0].mxu0 %v1433
  %v1435 = vpop.f32.mrb[0].mxu0
  %v1436 = vadd.f32 %v1049, %v1435
  %v1437 = vpop.f32.mrb[0].mxu0
  %v1438 = vand.u32 %v70, 4294901760
  %v1439 = vsub.f32 %v70, %v1438
  %1440 = vmatprep.mubr.f32.mxu0 %v1439
  %v1441 = vand.u32 %v69, 4294901760
  %v1442 = vsub.f32 %v69, %v1441
  %1443 = vmatmul.mubr.f32.gmra.mrb[0].mxu0 %v1442
  %v1444 = vpop.f32.mrb[0].mxu0
  %v1445 = vadd.f32 %v1056, %v1444
  %v1446 = vpop.f32.mrb[0].mxu0
  %v1447 = vand.u32 %v72, 4294901760
  %v1448 = vsub.f32 %v72, %v1447
  %1449 = vmatprep.mubr.f32.mxu0 %v1448
  %v1450 = vand.u32 %v71, 4294901760
  %v1451 = vsub.f32 %v71, %v1450
  %1452 = vmatmul.mubr.f32.gmra.mrb[0].mxu0 %v1451
  %v1453 = vpop.f32.mrb[0].mxu0
  %v1454 = vadd.f32 %v1063, %v1453
  %v1455 = vpop.f32.mrb[0].mxu0
  %v1456 = vand.u32 %v74, 4294901760
  %v1457 = vsub.f32 %v74, %v1456
  %1458 = vmatprep.mubr.f32.mxu0 %v1457
  %v1459 = vand.u32 %v73, 4294901760
  %v1460 = vsub.f32 %v73, %v1459
  %1461 = vmatmul.mubr.f32.gmra.mrb[0].mxu0 %v1460
  %v1462 = vpop.f32.mrb[0].mxu0
  %v1463 = vadd.f32 %v1070, %v1462
  %v1464 = vpop.f32.mrb[0].mxu0
  %v1465 = vand.u32 %v76, 4294901760
  %v1466 = vsub.f32 %v76, %v1465
  %1467 = vmatprep.mubr.f32.mxu0 %v1466
  %v1468 = vand.u32 %v75, 4294901760
  %v1469 = vsub.f32 %v75, %v1468
  %1470 = vmatmul.mubr.f32.gmra.mrb[0].mxu0 %v1469
  %v1471 = vpop.f32.mrb[0].mxu0
  %v1472 = vadd.f32 %v1077, %v1471
  %v1473 = vpop.f32.mrb[0].mxu0
  %v1474 = vand.u32 %v78, 4294901760
  %v1475 = vsub.f32 %v78, %v1474
  %1476 = vmatprep.mubr.f32.mxu0 %v1475
  %v1477 = vand.u32 %v77, 4294901760
  %v1478 = vsub.f32 %v77, %v1477
  %1479 = vmatmul.mubr.f32.gmra.mrb[0].mxu0 %v1478
  %v1480 = vpop.f32.mrb[0].mxu0
  %v1481 = vadd.f32 %v1084, %v1480
  %v1482 = vpop.f32.mrb[0].mxu0
  %v1483 = vand.u32 %v80, 4294901760
  %v1484 = vsub.f32 %v80, %v1483
  %1485 = vmatprep.mubr.f32.mxu0 %v1484
  %v1486 = vand.u32 %v79, 4294901760
  %v1487 = vsub.f32 %v79, %v1486
  %1488 = vmatmul.mubr.f32.gmra.mrb[0].mxu0 %v1487
  %v1489 = vpop.f32.mrb[0].mxu0
  %v1490 = vadd.f32 %v1091, %v1489
  %v1491 = vpop.f32.mrb[0].mxu0
  %v1492 = vand.u32 %v82, 4294901760
  %v1493 = vsub.f32 %v82, %v1492
  %1494 = vmatprep.mubr.f32.mxu0 %v1493
  %v1495 = vand.u32 %v81, 4294901760
  %v1496 = vsub.f32 %v81, %v1495
  %1497 = vmatmul.mubr.f32.gmra.mrb[0].mxu0 %v1496
  %v1498 = vpop.f32.mrb[0].mxu0
  %v1499 = vadd.f32 %v1098, %v1498
  %v1500 = vpop.f32.mrb[0].mxu0
  %v1501 = vand.u32 %v84, 4294901760
  %v1502 = vsub.f32 %v84, %v1501
  %1503 = vmatprep.mubr.f32.mxu0 %v1502
  %v1504 = vand.u32 %v83, 4294901760
  %v1505 = vsub.f32 %v83, %v1504
  %1506 = vmatmul.mubr.f32.gmra.mrb[0].mxu0 %v1505
  %v1507 = vpop.f32.mrb[0].mxu0
  %v1508 = vadd.f32 %v1105, %v1507
  %v1509 = vpop.f32.mrb[0].mxu0
  %v1510 = vand.u32 %v86, 4294901760
  %v1511 = vsub.f32 %v86, %v1510
  %1512 = vmatprep.mubr.f32.mxu0 %v1511
  %v1513 = vand.u32 %v85, 4294901760
  %v1514 = vsub.f32 %v85, %v1513
  %1515 = vmatmul.mubr.f32.gmra.mrb[0].mxu0 %v1514
  %v1516 = vpop.f32.mrb[0].mxu0
  %v1517 = vadd.f32 %v1112, %v1516
  %v1518 = vpop.f32.mrb[0].mxu0
  %v1519 = vand.u32 %v88, 4294901760
  %v1520 = vsub.f32 %v88, %v1519
  %1521 = vmatprep.mubr.f32.mxu0 %v1520
  %v1522 = vand.u32 %v87, 4294901760
  %v1523 = vsub.f32 %v87, %v1522
  %1524 = vmatmul.mubr.f32.gmra.mrb[0].mxu0 %v1523
  %v1525 = vpop.f32.mrb[0].mxu0
  %v1526 = vadd.f32 %v1119, %v1525
  %v1527 = vpop.f32.mrb[0].mxu0
  %v1528 = vand.u32 %v90, 4294901760
  %v1529 = vsub.f32 %v90, %v1528
  %1530 = vmatprep.mubr.f32.mxu0 %v1529
  %v1531 = vand.u32 %v89, 4294901760
  %v1532 = vsub.f32 %v89, %v1531
  %1533 = vmatmul.mubr.f32.gmra.mrb[0].mxu0 %v1532
  %v1534 = vpop.f32.mrb[0].mxu0
  %v1535 = vadd.f32 %v1126, %v1534
  %v1536 = vpop.f32.mrb[0].mxu0
  %v1537 = vand.u32 %v92, 4294901760
  %v1538 = vsub.f32 %v92, %v1537
  %1539 = vmatprep.mubr.f32.mxu0 %v1538
  %v1540 = vand.u32 %v91, 4294901760
  %v1541 = vsub.f32 %v91, %v1540
  %1542 = vmatmul.mubr.f32.gmra.mrb[0].mxu0 %v1541
  %v1543 = vpop.f32.mrb[0].mxu0
  %v1544 = vadd.f32 %v1133, %v1543
  %v1545 = vpop.f32.mrb[0].mxu0
  %v1546 = vand.u32 %v94, 4294901760
  %v1547 = vsub.f32 %v94, %v1546
  %1548 = vmatprep.mubr.f32.mxu0 %v1547
  %v1549 = vand.u32 %v93, 4294901760
  %v1550 = vsub.f32 %v93, %v1549
  %1551 = vmatmul.mubr.f32.gmra.mrb[0].mxu0 %v1550
  %v1552 = vpop.f32.mrb[0].mxu0
  %v1553 = vadd.f32 %v1140, %v1552
  %v1554 = vpop.f32.mrb[0].mxu0
  %v1555 = vand.u32 %v96, 4294901760
  %v1556 = vsub.f32 %v96, %v1555
  %1557 = vmatprep.mubr.f32.mxu0 %v1556
  %v1558 = vand.u32 %v95, 4294901760
  %v1559 = vsub.f32 %v95, %v1558
  %1560 = vmatmul.mubr.f32.gmra.mrb[0].mxu0 %v1559
  %v1561 = vpop.f32.mrb[0].mxu0
  %v1562 = vadd.f32 %v1147, %v1561
  %v1563 = vpop.f32.mrb[0].mxu0
  %v1564 = vand.u32 %v98, 4294901760
  %v1565 = vsub.f32 %v98, %v1564
  %1566 = vmatprep.mubr.f32.mxu0 %v1565
  %v1567 = vand.u32 %v97, 4294901760
  %v1568 = vsub.f32 %v97, %v1567
  %1569 = vmatmul.mubr.f32.gmra.mrb[0].mxu0 %v1568
  %v1570 = vpop.f32.mrb[0].mxu0
  %v1571 = vadd.f32 %v1154, %v1570
  %v1572 = vpop.f32.mrb[0].mxu0
  %1573 = vdwg.mxu0
  %1574 = vmatprep.subr.mxu0 0.0
  %v1575 = vand.u32 %v99, 4294901760
  %1576 = vmatpush1.msra.mxu0 %v1575
  %1577 = vmatprep.subr.mxu0 0.0
  %v1578 = vand.u32 %v100, 4294901760
  %1579 = vmatpush1.msra.mxu0 %v1578
  %1580 = vmatprep.subr.mxu0 0.0
  %v1581 = vand.u32 %v101, 4294901760
  %1582 = vmatpush1.msra.mxu0 %v1581
  %1583 = vmatprep.subr.mxu0 0.0
  %v1584 = vand.u32 %v102, 4294901760
  %1585 = vmatpush1.msra.mxu0 %v1584
  %1586 = vmatprep.subr.mxu0 0.0
  %v1587 = vand.u32 %v103, 4294901760
  %1588 = vmatpush1.msra.mxu0 %v1587
  %1589 = vmatprep.subr.mxu0 0.0
  %v1590 = vand.u32 %v104, 4294901760
  %1591 = vmatpush1.msra.mxu0 %v1590
  %1592 = vmatprep.subr.mxu0 0.0
  %v1593 = vand.u32 %v105, 4294901760
  %1594 = vmatpush1.msra.mxu0 %v1593
  %1595 = vmatprep.subr.mxu0 0.0
  %v1596 = vand.u32 %v106, 4294901760
  %1597 = vmatpush1.msra.mxu0 %v1596
  %1598 = vmatprep.subr.mxu0 0.0
  %v1599 = vand.u32 %v107, 4294901760
  %1600 = vmatpush1.msra.mxu0 %v1599
  %1601 = vmatprep.subr.mxu0 0.0
  %v1602 = vand.u32 %v108, 4294901760
  %1603 = vmatpush1.msra.mxu0 %v1602
  %1604 = vmatprep.subr.mxu0 0.0
  %v1605 = vand.u32 %v109, 4294901760
  %1606 = vmatpush1.msra.mxu0 %v1605
  %1607 = vmatprep.subr.mxu0 0.0
  %v1608 = vand.u32 %v110, 4294901760
  %1609 = vmatpush1.msra.mxu0 %v1608
  %1610 = vmatprep.subr.mxu0 0.0
  %v1611 = vand.u32 %v111, 4294901760
  %1612 = vmatpush1.msra.mxu0 %v1611
  %1613 = vmatprep.subr.mxu0 0.0
  %v1614 = vand.u32 %v112, 4294901760
  %1615 = vmatpush1.msra.mxu0 %v1614
  %1616 = vmatprep.subr.mxu0 0.0
  %v1617 = vand.u32 %v113, 4294901760
  %1618 = vmatpush1.msra.mxu0 %v1617
  %1619 = vmatprep.subr.mxu0 0.0
  %v1620 = vand.u32 %v114, 4294901760
  %1621 = vmatpush1.msra.mxu0 %v1620
  %1622 = vmatprep.subr.mxu0 0.0
  %v1623 = vand.u32 %v115, 4294901760
  %1624 = vmatpush1.msra.mxu0 %v1623
  %1625 = vmatprep.subr.mxu0 0.0
  %v1626 = vand.u32 %v116, 4294901760
  %1627 = vmatpush1.msra.mxu0 %v1626
  %1628 = vmatprep.subr.mxu0 0.0
  %v1629 = vand.u32 %v117, 4294901760
  %1630 = vmatpush1.msra.mxu0 %v1629
  %1631 = vmatprep.subr.mxu0 0.0
  %v1632 = vand.u32 %v118, 4294901760
  %1633 = vmatpush1.msra.mxu0 %v1632
  %1634 = vmatprep.subr.mxu0 0.0
  %v1635 = vand.u32 %v119, 4294901760
  %1636 = vmatpush1.msra.mxu0 %v1635
  %1637 = vmatprep.subr.mxu0 0.0
  %v1638 = vand.u32 %v120, 4294901760
  %1639 = vmatpush1.msra.mxu0 %v1638
  %1640 = vmatprep.subr.mxu0 0.0
  %v1641 = vand.u32 %v121, 4294901760
  %1642 = vmatpush1.msra.mxu0 %v1641
  %1643 = vmatprep.subr.mxu0 0.0
  %v1644 = vand.u32 %v122, 4294901760
  %1645 = vmatpush1.msra.mxu0 %v1644
  %1646 = vmatprep.subr.mxu0 0.0
  %v1647 = vand.u32 %v123, 4294901760
  %1648 = vmatpush1.msra.mxu0 %v1647
  %1649 = vmatprep.subr.mxu0 0.0
  %v1650 = vand.u32 %v124, 4294901760
  %1651 = vmatpush1.msra.mxu0 %v1650
  %1652 = vmatprep.subr.mxu0 0.0
  %v1653 = vand.u32 %v125, 4294901760
  %1654 = vmatpush1.msra.mxu0 %v1653
  %1655 = vmatprep.subr.mxu0 0.0
  %v1656 = vand.u32 %v126, 4294901760
  %1657 = vmatpush1.msra.mxu0 %v1656
  %1658 = vmatprep.subr.mxu0 0.0
  %v1659 = vand.u32 %v127, 4294901760
  %1660 = vmatpush1.msra.mxu0 %v1659
  %1661 = vmatprep.subr.mxu0 0.0
  %v1662 = vand.u32 %v128, 4294901760
  %1663 = vmatpush1.msra.mxu0 %v1662
  %1664 = vmatprep.subr.mxu0 0.0
  %v1665 = vand.u32 %v129, 4294901760
  %1666 = vmatpush1.msra.mxu0 %v1665
  %1667 = vmatprep.subr.mxu0 0.0
  %v1668 = vand.u32 %v130, 4294901760
  %1669 = vmatpush1.msra.mxu0 %v1668
  %v1670 = vand.u32 %v36, 4294901760
  %v1671 = vsub.f32 %v36, %v1670
  %v1672 = vand.u32 %v1671, 4294901760
  %1673 = vmatprep.mubr.f32.mxu0 %v1672
  %v1674 = vand.u32 %v35, 4294901760
  %v1675 = vsub.f32 %v35, %v1674
  %v1676 = vand.u32 %v1675, 4294901760
  %1677 = vmatmul.mubr.f32.gmra.mrb[0].mxu0 %v1676
  %v1678 = vpop.f32.mrb[0].mxu0
  %v1679 = vadd.f32 %v1292, %v1678
  %v1680 = vpop.f32.mrb[0].mxu0
  %v1681 = vand.u32 %v38, 4294901760
  %v1682 = vsub.f32 %v38, %v1681
  %v1683 = vand.u32 %v1682, 4294901760
  %1684 = vmatprep.mubr.f32.mxu0 %v1683
  %v1685 = vand.u32 %v37, 4294901760
  %v1686 = vsub.f32 %v37, %v1685
  %v1687 = vand.u32 %v1686, 4294901760
  %1688 = vmatmul.mubr.f32.gmra.mrb[0].mxu0 %v1687
  %v1689 = vpop.f32.mrb[0].mxu0
  %v1690 = vadd.f32 %v1301, %v1689
  %v1691 = vpop.f32.mrb[0].mxu0
  %v1692 = vand.u32 %v40, 4294901760
  %v1693 = vsub.f32 %v40, %v1692
  %v1694 = vand.u32 %v1693, 4294901760
  %1695 = vmatprep.mubr.f32.mxu0 %v1694
  %v1696 = vand.u32 %v39, 4294901760
  %v1697 = vsub.f32 %v39, %v1696
  %v1698 = vand.u32 %v1697, 4294901760
  %1699 = vmatmul.mubr.f32.gmra.mrb[0].mxu0 %v1698
  %v1700 = vpop.f32.mrb[0].mxu0
  %v1701 = vadd.f32 %v1310, %v1700
  %v1702 = vpop.f32.mrb[0].mxu0
  %v1703 = vand.u32 %v42, 4294901760
  %v1704 = vsub.f32 %v42, %v1703
  %v1705 = vand.u32 %v1704, 4294901760
  %1706 = vmatprep.mubr.f32.mxu0 %v1705
  %v1707 = vand.u32 %v41, 4294901760
  %v1708 = vsub.f32 %v41, %v1707
  %v1709 = vand.u32 %v1708, 4294901760
  %1710 = vmatmul.mubr.f32.gmra.mrb[0].mxu0 %v1709
  %v1711 = vpop.f32.mrb[0].mxu0
  %v1712 = vadd.f32 %v1319, %v1711
  %v1713 = vpop.f32.mrb[0].mxu0
  %v1714 = vand.u32 %v44, 4294901760
  %v1715 = vsub.f32 %v44, %v1714
  %v1716 = vand.u32 %v1715, 4294901760
  %1717 = vmatprep.mubr.f32.mxu0 %v1716
  %v1718 = vand.u32 %v43, 4294901760
  %v1719 = vsub.f32 %v43, %v1718
  %v1720 = vand.u32 %v1719, 4294901760
  %1721 = vmatmul.mubr.f32.gmra.mrb[0].mxu0 %v1720
  %v1722 = vpop.f32.mrb[0].mxu0
  %v1723 = vadd.f32 %v1328, %v1722
  %v1724 = vpop.f32.mrb[0].mxu0
  %v1725 = vand.u32 %v46, 4294901760
  %v1726 = vsub.f32 %v46, %v1725
  %v1727 = vand.u32 %v1726, 4294901760
  %1728 = vmatprep.mubr.f32.mxu0 %v1727
  %v1729 = vand.u32 %v45, 4294901760
  %v1730 = vsub.f32 %v45, %v1729
  %v1731 = vand.u32 %v1730, 4294901760
  %1732 = vmatmul.mubr.f32.gmra.mrb[0].mxu0 %v1731
  %v1733 = vpop.f32.mrb[0].mxu0
  %v1734 = vadd.f32 %v1337, %v1733
  %v1735 = vpop.f32.mrb[0].mxu0
  %v1736 = vand.u32 %v48, 4294901760
  %v1737 = vsub.f32 %v48, %v1736
  %v1738 = vand.u32 %v1737, 4294901760
  %1739 = vmatprep.mubr.f32.mxu0 %v1738
  %v1740 = vand.u32 %v47, 4294901760
  %v1741 = vsub.f32 %v47, %v1740
  %v1742 = vand.u32 %v1741, 4294901760
  %1743 = vmatmul.mubr.f32.gmra.mrb[0].mxu0 %v1742
  %v1744 = vpop.f32.mrb[0].mxu0
  %v1745 = vadd.f32 %v1346, %v1744
  %v1746 = vpop.f32.mrb[0].mxu0
  %v1747 = vand.u32 %v50, 4294901760
  %v1748 = vsub.f32 %v50, %v1747
  %v1749 = vand.u32 %v1748, 4294901760
  %1750 = vmatprep.mubr.f32.mxu0 %v1749
  %v1751 = vand.u32 %v49, 4294901760
  %v1752 = vsub.f32 %v49, %v1751
  %v1753 = vand.u32 %v1752, 4294901760
  %1754 = vmatmul.mubr.f32.gmra.mrb[0].mxu0 %v1753
  %v1755 = vpop.f32.mrb[0].mxu0
  %v1756 = vadd.f32 %v1355, %v1755
  %v1757 = vpop.f32.mrb[0].mxu0
  %v1758 = vand.u32 %v52, 4294901760
  %v1759 = vsub.f32 %v52, %v1758
  %v1760 = vand.u32 %v1759, 4294901760
  %1761 = vmatprep.mubr.f32.mxu0 %v1760
  %v1762 = vand.u32 %v51, 4294901760
  %v1763 = vsub.f32 %v51, %v1762
  %v1764 = vand.u32 %v1763, 4294901760
  %1765 = vmatmul.mubr.f32.gmra.mrb[0].mxu0 %v1764
  %v1766 = vpop.f32.mrb[0].mxu0
  %v1767 = vadd.f32 %v1364, %v1766
  %v1768 = vpop.f32.mrb[0].mxu0
  %v1769 = vand.u32 %v54, 4294901760
  %v1770 = vsub.f32 %v54, %v1769
  %v1771 = vand.u32 %v1770, 4294901760
  %1772 = vmatprep.mubr.f32.mxu0 %v1771
  %v1773 = vand.u32 %v53, 4294901760
  %v1774 = vsub.f32 %v53, %v1773
  %v1775 = vand.u32 %v1774, 4294901760
  %1776 = vmatmul.mubr.f32.gmra.mrb[0].mxu0 %v1775
  %v1777 = vpop.f32.mrb[0].mxu0
  %v1778 = vadd.f32 %v1373, %v1777
  %v1779 = vpop.f32.mrb[0].mxu0
  %v1780 = vand.u32 %v56, 4294901760
  %v1781 = vsub.f32 %v56, %v1780
  %v1782 = vand.u32 %v1781, 4294901760
  %1783 = vmatprep.mubr.f32.mxu0 %v1782
  %v1784 = vand.u32 %v55, 4294901760
  %v1785 = vsub.f32 %v55, %v1784
  %v1786 = vand.u32 %v1785, 4294901760
  %1787 = vmatmul.mubr.f32.gmra.mrb[0].mxu0 %v1786
  %v1788 = vpop.f32.mrb[0].mxu0
  %v1789 = vadd.f32 %v1382, %v1788
  %v1790 = vpop.f32.mrb[0].mxu0
  %v1791 = vand.u32 %v58, 4294901760
  %v1792 = vsub.f32 %v58, %v1791
  %v1793 = vand.u32 %v1792, 4294901760
  %1794 = vmatprep.mubr.f32.mxu0 %v1793
  %v1795 = vand.u32 %v57, 4294901760
  %v1796 = vsub.f32 %v57, %v1795
  %v1797 = vand.u32 %v1796, 4294901760
  %1798 = vmatmul.mubr.f32.gmra.mrb[0].mxu0 %v1797
  %v1799 = vpop.f32.mrb[0].mxu0
  %v1800 = vadd.f32 %v1391, %v1799
  %v1801 = vpop.f32.mrb[0].mxu0
  %v1802 = vand.u32 %v60, 4294901760
  %v1803 = vsub.f32 %v60, %v1802
  %v1804 = vand.u32 %v1803, 4294901760
  %1805 = vmatprep.mubr.f32.mxu0 %v1804
  %v1806 = vand.u32 %v59, 4294901760
  %v1807 = vsub.f32 %v59, %v1806
  %v1808 = vand.u32 %v1807, 4294901760
  %1809 = vmatmul.mubr.f32.gmra.mrb[0].mxu0 %v1808
  %v1810 = vpop.f32.mrb[0].mxu0
  %v1811 = vadd.f32 %v1400, %v1810
  %v1812 = vpop.f32.mrb[0].mxu0
  %v1813 = vand.u32 %v62, 4294901760
  %v1814 = vsub.f32 %v62, %v1813
  %v1815 = vand.u32 %v1814, 4294901760
  %1816 = vmatprep.mubr.f32.mxu0 %v1815
  %v1817 = vand.u32 %v61, 4294901760
  %v1818 = vsub.f32 %v61, %v1817
  %v1819 = vand.u32 %v1818, 4294901760
  %1820 = vmatmul.mubr.f32.gmra.mrb[0].mxu0 %v1819
  %v1821 = vpop.f32.mrb[0].mxu0
  %v1822 = vadd.f32 %v1409, %v1821
  %v1823 = vpop.f32.mrb[0].mxu0
  %v1824 = vand.u32 %v64, 4294901760
  %v1825 = vsub.f32 %v64, %v1824
  %v1826 = vand.u32 %v1825, 4294901760
  %1827 = vmatprep.mubr.f32.mxu0 %v1826
  %v1828 = vand.u32 %v63, 4294901760
  %v1829 = vsub.f32 %v63, %v1828
  %v1830 = vand.u32 %v1829, 4294901760
  %1831 = vmatmul.mubr.f32.gmra.mrb[0].mxu0 %v1830
  %v1832 = vpop.f32.mrb[0].mxu0
  %v1833 = vadd.f32 %v1418, %v1832
  %v1834 = vpop.f32.mrb[0].mxu0
  %v1835 = vand.u32 %v66, 4294901760
  %v1836 = vsub.f32 %v66, %v1835
  %v1837 = vand.u32 %v1836, 4294901760
  %1838 = vmatprep.mubr.f32.mxu0 %v1837
  %v1839 = vand.u32 %v65, 4294901760
  %v1840 = vsub.f32 %v65, %v1839
  %v1841 = vand.u32 %v1840, 4294901760
  %1842 = vmatmul.mubr.f32.gmra.mrb[0].mxu0 %v1841
  %v1843 = vpop.f32.mrb[0].mxu0
  %v1844 = vadd.f32 %v1427, %v1843
  %v1845 = vpop.f32.mrb[0].mxu0
  %v1846 = vand.u32 %v68, 4294901760
  %v1847 = vsub.f32 %v68, %v1846
  %v1848 = vand.u32 %v1847, 4294901760
  %1849 = vmatprep.mubr.f32.mxu0 %v1848
  %v1850 = vand.u32 %v67, 4294901760
  %v1851 = vsub.f32 %v67, %v1850
  %v1852 = vand.u32 %v1851, 4294901760
  %1853 = vmatmul.mubr.f32.gmra.mrb[0].mxu0 %v1852
  %v1854 = vpop.f32.mrb[0].mxu0
  %v1855 = vadd.f32 %v1436, %v1854
  %v1856 = vpop.f32.mrb[0].mxu0
  %v1857 = vand.u32 %v70, 4294901760
  %v1858 = vsub.f32 %v70, %v1857
  %v1859 = vand.u32 %v1858, 4294901760
  %1860 = vmatprep.mubr.f32.mxu0 %v1859
  %v1861 = vand.u32 %v69, 4294901760
  %v1862 = vsub.f32 %v69, %v1861
  %v1863 = vand.u32 %v1862, 4294901760
  %1864 = vmatmul.mubr.f32.gmra.mrb[0].mxu0 %v1863
  %v1865 = vpop.f32.mrb[0].mxu0
  %v1866 = vadd.f32 %v1445, %v1865
  %v1867 = vpop.f32.mrb[0].mxu0
  %v1868 = vand.u32 %v72, 4294901760
  %v1869 = vsub.f32 %v72, %v1868
  %v1870 = vand.u32 %v1869, 4294901760
  %1871 = vmatprep.mubr.f32.mxu0 %v1870
  %v1872 = vand.u32 %v71, 4294901760
  %v1873 = vsub.f32 %v71, %v1872
  %v1874 = vand.u32 %v1873, 4294901760
  %1875 = vmatmul.mubr.f32.gmra.mrb[0].mxu0 %v1874
  %v1876 = vpop.f32.mrb[0].mxu0
  %v1877 = vadd.f32 %v1454, %v1876
  %v1878 = vpop.f32.mrb[0].mxu0
  %v1879 = vand.u32 %v74, 4294901760
  %v1880 = vsub.f32 %v74, %v1879
  %v1881 = vand.u32 %v1880, 4294901760
  %1882 = vmatprep.mubr.f32.mxu0 %v1881
  %v1883 = vand.u32 %v73, 4294901760
  %v1884 = vsub.f32 %v73, %v1883
  %v1885 = vand.u32 %v1884, 4294901760
  %1886 = vmatmul.mubr.f32.gmra.mrb[0].mxu0 %v1885
  %v1887 = vpop.f32.mrb[0].mxu0
  %v1888 = vadd.f32 %v1463, %v1887
  %v1889 = vpop.f32.mrb[0].mxu0
  %v1890 = vand.u32 %v76, 4294901760
  %v1891 = vsub.f32 %v76, %v1890
  %v1892 = vand.u32 %v1891, 4294901760
  %1893 = vmatprep.mubr.f32.mxu0 %v1892
  %v1894 = vand.u32 %v75, 4294901760
  %v1895 = vsub.f32 %v75, %v1894
  %v1896 = vand.u32 %v1895, 4294901760
  %1897 = vmatmul.mubr.f32.gmra.mrb[0].mxu0 %v1896
  %v1898 = vpop.f32.mrb[0].mxu0
  %v1899 = vadd.f32 %v1472, %v1898
  %v1900 = vpop.f32.mrb[0].mxu0
  %v1901 = vand.u32 %v78, 4294901760
  %v1902 = vsub.f32 %v78, %v1901
  %v1903 = vand.u32 %v1902, 4294901760
  %1904 = vmatprep.mubr.f32.mxu0 %v1903
  %v1905 = vand.u32 %v77, 4294901760
  %v1906 = vsub.f32 %v77, %v1905
  %v1907 = vand.u32 %v1906, 4294901760
  %1908 = vmatmul.mubr.f32.gmra.mrb[0].mxu0 %v1907
  %v1909 = vpop.f32.mrb[0].mxu0
  %v1910 = vadd.f32 %v1481, %v1909
  %v1911 = vpop.f32.mrb[0].mxu0
  %v1912 = vand.u32 %v80, 4294901760
  %v1913 = vsub.f32 %v80, %v1912
  %v1914 = vand.u32 %v1913, 4294901760
  %1915 = vmatprep.mubr.f32.mxu0 %v1914
  %v1916 = vand.u32 %v79, 4294901760
  %v1917 = vsub.f32 %v79, %v1916
  %v1918 = vand.u32 %v1917, 4294901760
  %1919 = vmatmul.mubr.f32.gmra.mrb[0].mxu0 %v1918
  %v1920 = vpop.f32.mrb[0].mxu0
  %v1921 = vadd.f32 %v1490, %v1920
  %v1922 = vpop.f32.mrb[0].mxu0
  %v1923 = vand.u32 %v82, 4294901760
  %v1924 = vsub.f32 %v82, %v1923
  %v1925 = vand.u32 %v1924, 4294901760
  %1926 = vmatprep.mubr.f32.mxu0 %v1925
  %v1927 = vand.u32 %v81, 4294901760
  %v1928 = vsub.f32 %v81, %v1927
  %v1929 = vand.u32 %v1928, 4294901760
  %1930 = vmatmul.mubr.f32.gmra.mrb[0].mxu0 %v1929
  %v1931 = vpop.f32.mrb[0].mxu0
  %v1932 = vadd.f32 %v1499, %v1931
  %v1933 = vpop.f32.mrb[0].mxu0
  %v1934 = vand.u32 %v84, 4294901760
  %v1935 = vsub.f32 %v84, %v1934
  %v1936 = vand.u32 %v1935, 4294901760
  %1937 = vmatprep.mubr.f32.mxu0 %v1936
  %v1938 = vand.u32 %v83, 4294901760
  %v1939 = vsub.f32 %v83, %v1938
  %v1940 = vand.u32 %v1939, 4294901760
  %1941 = vmatmul.mubr.f32.gmra.mrb[0].mxu0 %v1940
  %v1942 = vpop.f32.mrb[0].mxu0
  %v1943 = vadd.f32 %v1508, %v1942
  %v1944 = vpop.f32.mrb[0].mxu0
  %v1945 = vand.u32 %v86, 4294901760
  %v1946 = vsub.f32 %v86, %v1945
  %v1947 = vand.u32 %v1946, 4294901760
  %1948 = vmatprep.mubr.f32.mxu0 %v1947
  %v1949 = vand.u32 %v85, 4294901760
  %v1950 = vsub.f32 %v85, %v1949
  %v1951 = vand.u32 %v1950, 4294901760
  %1952 = vmatmul.mubr.f32.gmra.mrb[0].mxu0 %v1951
  %v1953 = vpop.f32.mrb[0].mxu0
  %v1954 = vadd.f32 %v1517, %v1953
  %v1955 = vpop.f32.mrb[0].mxu0
  %v1956 = vand.u32 %v88, 4294901760
  %v1957 = vsub.f32 %v88, %v1956
  %v1958 = vand.u32 %v1957, 4294901760
  %1959 = vmatprep.mubr.f32.mxu0 %v1958
  %v1960 = vand.u32 %v87, 4294901760
  %v1961 = vsub.f32 %v87, %v1960
  %v1962 = vand.u32 %v1961, 4294901760
  %1963 = vmatmul.mubr.f32.gmra.mrb[0].mxu0 %v1962
  %v1964 = vpop.f32.mrb[0].mxu0
  %v1965 = vadd.f32 %v1526, %v1964
  %v1966 = vpop.f32.mrb[0].mxu0
  %v1967 = vand.u32 %v90, 4294901760
  %v1968 = vsub.f32 %v90, %v1967
  %v1969 = vand.u32 %v1968, 4294901760
  %1970 = vmatprep.mubr.f32.mxu0 %v1969
  %v1971 = vand.u32 %v89, 4294901760
  %v1972 = vsub.f32 %v89, %v1971
  %v1973 = vand.u32 %v1972, 4294901760
  %1974 = vmatmul.mubr.f32.gmra.mrb[0].mxu0 %v1973
  %v1975 = vpop.f32.mrb[0].mxu0
  %v1976 = vadd.f32 %v1535, %v1975
  %v1977 = vpop.f32.mrb[0].mxu0
  %v1978 = vand.u32 %v92, 4294901760
  %v1979 = vsub.f32 %v92, %v1978
  %v1980 = vand.u32 %v1979, 4294901760
  %1981 = vmatprep.mubr.f32.mxu0 %v1980
  %v1982 = vand.u32 %v91, 4294901760
  %v1983 = vsub.f32 %v91, %v1982
  %v1984 = vand.u32 %v1983, 4294901760
  %1985 = vmatmul.mubr.f32.gmra.mrb[0].mxu0 %v1984
  %v1986 = vpop.f32.mrb[0].mxu0
  %v1987 = vadd.f32 %v1544, %v1986
  %v1988 = vpop.f32.mrb[0].mxu0
  %v1989 = vand.u32 %v94, 4294901760
  %v1990 = vsub.f32 %v94, %v1989
  %v1991 = vand.u32 %v1990, 4294901760
  %1992 = vmatprep.mubr.f32.mxu0 %v1991
  %v1993 = vand.u32 %v93, 4294901760
  %v1994 = vsub.f32 %v93, %v1993
  %v1995 = vand.u32 %v1994, 4294901760
  %1996 = vmatmul.mubr.f32.gmra.mrb[0].mxu0 %v1995
  %v1997 = vpop.f32.mrb[0].mxu0
  %v1998 = vadd.f32 %v1553, %v1997
  %v1999 = vpop.f32.mrb[0].mxu0
  %v2000 = vand.u32 %v96, 4294901760
  %v2001 = vsub.f32 %v96, %v2000
  %v2002 = vand.u32 %v2001, 4294901760
  %2003 = vmatprep.mubr.f32.mxu0 %v2002
  %v2004 = vand.u32 %v95, 4294901760
  %v2005 = vsub.f32 %v95, %v2004
  %v2006 = vand.u32 %v2005, 4294901760
  %2007 = vmatmul.mubr.f32.gmra.mrb[0].mxu0 %v2006
  %v2008 = vpop.f32.mrb[0].mxu0
  %v2009 = vadd.f32 %v1562, %v2008
  %v2010 = vpop.f32.mrb[0].mxu0
  %v2011 = vand.u32 %v98, 4294901760
  %v2012 = vsub.f32 %v98, %v2011
  %v2013 = vand.u32 %v2012, 4294901760
  %2014 = vmatprep.mubr.f32.mxu0 %v2013
  %v2015 = vand.u32 %v97, 4294901760
  %v2016 = vsub.f32 %v97, %v2015
  %v2017 = vand.u32 %v2016, 4294901760
  %2018 = vmatmul.mubr.f32.gmra.mrb[0].mxu0 %v2017
  %v2019 = vpop.f32.mrb[0].mxu0
  %v2020 = vadd.f32 %v1571, %v2019
  %v2021 = vpop.f32.mrb[0].mxu0
  %2022 = vdwg.mxu0
  %2023 = vmatprep.subr.mxu0 0.0
  %v2024 = vand.u32 %v99, 4294901760
  %v2025 = vsub.f32 %v99, %v2024
  %v2026 = vand.u32 %v2025, 4294901760
  %2027 = vmatpush1.msra.mxu0 %v2026
  %2028 = vmatprep.subr.mxu0 0.0
  %v2029 = vand.u32 %v100, 4294901760
  %v2030 = vsub.f32 %v100, %v2029
  %v2031 = vand.u32 %v2030, 4294901760
  %2032 = vmatpush1.msra.mxu0 %v2031
  %2033 = vmatprep.subr.mxu0 0.0
  %v2034 = vand.u32 %v101, 4294901760
  %v2035 = vsub.f32 %v101, %v2034
  %v2036 = vand.u32 %v2035, 4294901760
  %2037 = vmatpush1.msra.mxu0 %v2036
  %2038 = vmatprep.subr.mxu0 0.0
  %v2039 = vand.u32 %v102, 4294901760
  %v2040 = vsub.f32 %v102, %v2039
  %v2041 = vand.u32 %v2040, 4294901760
  %2042 = vmatpush1.msra.mxu0 %v2041
  %2043 = vmatprep.subr.mxu0 0.0
  %v2044 = vand.u32 %v103, 4294901760
  %v2045 = vsub.f32 %v103, %v2044
  %v2046 = vand.u32 %v2045, 4294901760
  %2047 = vmatpush1.msra.mxu0 %v2046
  %2048 = vmatprep.subr.mxu0 0.0
  %v2049 = vand.u32 %v104, 4294901760
  %v2050 = vsub.f32 %v104, %v2049
  %v2051 = vand.u32 %v2050, 4294901760
  %2052 = vmatpush1.msra.mxu0 %v2051
  %2053 = vmatprep.subr.mxu0 0.0
  %v2054 = vand.u32 %v105, 4294901760
  %v2055 = vsub.f32 %v105, %v2054
  %v2056 = vand.u32 %v2055, 4294901760
  %2057 = vmatpush1.msra.mxu0 %v2056
  %2058 = vmatprep.subr.mxu0 0.0
  %v2059 = vand.u32 %v106, 4294901760
  %v2060 = vsub.f32 %v106, %v2059
  %v2061 = vand.u32 %v2060, 4294901760
  %2062 = vmatpush1.msra.mxu0 %v2061
  %2063 = vmatprep.subr.mxu0 0.0
  %v2064 = vand.u32 %v107, 4294901760
  %v2065 = vsub.f32 %v107, %v2064
  %v2066 = vand.u32 %v2065, 4294901760
  %2067 = vmatpush1.msra.mxu0 %v2066
  %2068 = vmatprep.subr.mxu0 0.0
  %v2069 = vand.u32 %v108, 4294901760
  %v2070 = vsub.f32 %v108, %v2069
  %v2071 = vand.u32 %v2070, 4294901760
  %2072 = vmatpush1.msra.mxu0 %v2071
  %2073 = vmatprep.subr.mxu0 0.0
  %v2074 = vand.u32 %v109, 4294901760
  %v2075 = vsub.f32 %v109, %v2074
  %v2076 = vand.u32 %v2075, 4294901760
  %2077 = vmatpush1.msra.mxu0 %v2076
  %2078 = vmatprep.subr.mxu0 0.0
  %v2079 = vand.u32 %v110, 4294901760
  %v2080 = vsub.f32 %v110, %v2079
  %v2081 = vand.u32 %v2080, 4294901760
  %2082 = vmatpush1.msra.mxu0 %v2081
  %2083 = vmatprep.subr.mxu0 0.0
  %v2084 = vand.u32 %v111, 4294901760
  %v2085 = vsub.f32 %v111, %v2084
  %v2086 = vand.u32 %v2085, 4294901760
  %2087 = vmatpush1.msra.mxu0 %v2086
  %2088 = vmatprep.subr.mxu0 0.0
  %v2089 = vand.u32 %v112, 4294901760
  %v2090 = vsub.f32 %v112, %v2089
  %v2091 = vand.u32 %v2090, 4294901760
  %2092 = vmatpush1.msra.mxu0 %v2091
  %2093 = vmatprep.subr.mxu0 0.0
  %v2094 = vand.u32 %v113, 4294901760
  %v2095 = vsub.f32 %v113, %v2094
  %v2096 = vand.u32 %v2095, 4294901760
  %2097 = vmatpush1.msra.mxu0 %v2096
  %2098 = vmatprep.subr.mxu0 0.0
  %v2099 = vand.u32 %v114, 4294901760
  %v2100 = vsub.f32 %v114, %v2099
  %v2101 = vand.u32 %v2100, 4294901760
  %2102 = vmatpush1.msra.mxu0 %v2101
  %2103 = vmatprep.subr.mxu0 0.0
  %v2104 = vand.u32 %v115, 4294901760
  %v2105 = vsub.f32 %v115, %v2104
  %v2106 = vand.u32 %v2105, 4294901760
  %2107 = vmatpush1.msra.mxu0 %v2106
  %2108 = vmatprep.subr.mxu0 0.0
  %v2109 = vand.u32 %v116, 4294901760
  %v2110 = vsub.f32 %v116, %v2109
  %v2111 = vand.u32 %v2110, 4294901760
  %2112 = vmatpush1.msra.mxu0 %v2111
  %2113 = vmatprep.subr.mxu0 0.0
  %v2114 = vand.u32 %v117, 4294901760
  %v2115 = vsub.f32 %v117, %v2114
  %v2116 = vand.u32 %v2115, 4294901760
  %2117 = vmatpush1.msra.mxu0 %v2116
  %2118 = vmatprep.subr.mxu0 0.0
  %v2119 = vand.u32 %v118, 4294901760
  %v2120 = vsub.f32 %v118, %v2119
  %v2121 = vand.u32 %v2120, 4294901760
  %2122 = vmatpush1.msra.mxu0 %v2121
  %2123 = vmatprep.subr.mxu0 0.0
  %v2124 = vand.u32 %v119, 4294901760
  %v2125 = vsub.f32 %v119, %v2124
  %v2126 = vand.u32 %v2125, 4294901760
  %2127 = vmatpush1.msra.mxu0 %v2126
  %2128 = vmatprep.subr.mxu0 0.0
  %v2129 = vand.u32 %v120, 4294901760
  %v2130 = vsub.f32 %v120, %v2129
  %v2131 = vand.u32 %v2130, 4294901760
  %2132 = vmatpush1.msra.mxu0 %v2131
  %2133 = vmatprep.subr.mxu0 0.0
  %v2134 = vand.u32 %v121, 4294901760
  %v2135 = vsub.f32 %v121, %v2134
  %v2136 = vand.u32 %v2135, 4294901760
  %2137 = vmatpush1.msra.mxu0 %v2136
  %2138 = vmatprep.subr.mxu0 0.0
  %v2139 = vand.u32 %v122, 4294901760
  %v2140 = vsub.f32 %v122, %v2139
  %v2141 = vand.u32 %v2140, 4294901760
  %2142 = vmatpush1.msra.mxu0 %v2141
  %2143 = vmatprep.subr.mxu0 0.0
  %v2144 = vand.u32 %v123, 4294901760
  %v2145 = vsub.f32 %v123, %v2144
  %v2146 = vand.u32 %v2145, 4294901760
  %2147 = vmatpush1.msra.mxu0 %v2146
  %2148 = vmatprep.subr.mxu0 0.0
  %v2149 = vand.u32 %v124, 4294901760
  %v2150 = vsub.f32 %v124, %v2149
  %v2151 = vand.u32 %v2150, 4294901760
  %2152 = vmatpush1.msra.mxu0 %v2151
  %2153 = vmatprep.subr.mxu0 0.0
  %v2154 = vand.u32 %v125, 4294901760
  %v2155 = vsub.f32 %v125, %v2154
  %v2156 = vand.u32 %v2155, 4294901760
  %2157 = vmatpush1.msra.mxu0 %v2156
  %2158 = vmatprep.subr.mxu0 0.0
  %v2159 = vand.u32 %v126, 4294901760
  %v2160 = vsub.f32 %v126, %v2159
  %v2161 = vand.u32 %v2160, 4294901760
  %2162 = vmatpush1.msra.mxu0 %v2161
  %2163 = vmatprep.subr.mxu0 0.0
  %v2164 = vand.u32 %v127, 4294901760
  %v2165 = vsub.f32 %v127, %v2164
  %v2166 = vand.u32 %v2165, 4294901760
  %2167 = vmatpush1.msra.mxu0 %v2166
  %2168 = vmatprep.subr.mxu0 0.0
  %v2169 = vand.u32 %v128, 4294901760
  %v2170 = vsub.f32 %v128, %v2169
  %v2171 = vand.u32 %v2170, 4294901760
  %2172 = vmatpush1.msra.mxu0 %v2171
  %2173 = vmatprep.subr.mxu0 0.0
  %v2174 = vand.u32 %v129, 4294901760
  %v2175 = vsub.f32 %v129, %v2174
  %v2176 = vand.u32 %v2175, 4294901760
  %2177 = vmatpush1.msra.mxu0 %v2176
  %2178 = vmatprep.subr.mxu0 0.0
  %v2179 = vand.u32 %v130, 4294901760
  %v2180 = vsub.f32 %v130, %v2179
  %v2181 = vand.u32 %v2180, 4294901760
  %2182 = vmatpush1.msra.mxu0 %v2181
  %v2183 = vand.u32 %v36, 4294901760
  %2184 = vmatprep.mubr.f32.mxu0 %v2183
  %v2185 = vand.u32 %v35, 4294901760
  %2186 = vmatmul.mubr.f32.gmra.mrb[0].mxu0 %v2185
  %v2187 = vpop.f32.mrb[0].mxu0
  %v2188 = vadd.f32 %v1679, %v2187
  %v2189 = vpop.f32.mrb[0].mxu0
  %v2190 = vand.u32 %v38, 4294901760
  %2191 = vmatprep.mubr.f32.mxu0 %v2190
  %v2192 = vand.u32 %v37, 4294901760
  %2193 = vmatmul.mubr.f32.gmra.mrb[0].mxu0 %v2192
  %v2194 = vpop.f32.mrb[0].mxu0
  %v2195 = vadd.f32 %v1690, %v2194
  %v2196 = vpop.f32.mrb[0].mxu0
  %v2197 = vand.u32 %v40, 4294901760
  %2198 = vmatprep.mubr.f32.mxu0 %v2197
  %v2199 = vand.u32 %v39, 4294901760
  %2200 = vmatmul.mubr.f32.gmra.mrb[0].mxu0 %v2199
  %v2201 = vpop.f32.mrb[0].mxu0
  %v2202 = vadd.f32 %v1701, %v2201
  %v2203 = vpop.f32.mrb[0].mxu0
  %v2204 = vand.u32 %v42, 4294901760
  %2205 = vmatprep.mubr.f32.mxu0 %v2204
  %v2206 = vand.u32 %v41, 4294901760
  %2207 = vmatmul.mubr.f32.gmra.mrb[0].mxu0 %v2206
  %v2208 = vpop.f32.mrb[0].mxu0
  %v2209 = vadd.f32 %v1712, %v2208
  %v2210 = vpop.f32.mrb[0].mxu0
  %v2211 = vand.u32 %v44, 4294901760
  %2212 = vmatprep.mubr.f32.mxu0 %v2211
  %v2213 = vand.u32 %v43, 4294901760
  %2214 = vmatmul.mubr.f32.gmra.mrb[0].mxu0 %v2213
  %v2215 = vpop.f32.mrb[0].mxu0
  %v2216 = vadd.f32 %v1723, %v2215
  %v2217 = vpop.f32.mrb[0].mxu0
  %v2218 = vand.u32 %v46, 4294901760
  %2219 = vmatprep.mubr.f32.mxu0 %v2218
  %v2220 = vand.u32 %v45, 4294901760
  %2221 = vmatmul.mubr.f32.gmra.mrb[0].mxu0 %v2220
  %v2222 = vpop.f32.mrb[0].mxu0
  %v2223 = vadd.f32 %v1734, %v2222
  %v2224 = vpop.f32.mrb[0].mxu0
  %v2225 = vand.u32 %v48, 4294901760
  %2226 = vmatprep.mubr.f32.mxu0 %v2225
  %v2227 = vand.u32 %v47, 4294901760
  %2228 = vmatmul.mubr.f32.gmra.mrb[0].mxu0 %v2227
  %v2229 = vpop.f32.mrb[0].mxu0
  %v2230 = vadd.f32 %v1745, %v2229
  %v2231 = vpop.f32.mrb[0].mxu0
  %v2232 = vand.u32 %v50, 4294901760
  %2233 = vmatprep.mubr.f32.mxu0 %v2232
  %v2234 = vand.u32 %v49, 4294901760
  %2235 = vmatmul.mubr.f32.gmra.mrb[0].mxu0 %v2234
  %v2236 = vpop.f32.mrb[0].mxu0
  %v2237 = vadd.f32 %v1756, %v2236
  %v2238 = vpop.f32.mrb[0].mxu0
  %v2239 = vand.u32 %v52, 4294901760
  %2240 = vmatprep.mubr.f32.mxu0 %v2239
  %v2241 = vand.u32 %v51, 4294901760
  %2242 = vmatmul.mubr.f32.gmra.mrb[0].mxu0 %v2241
  %v2243 = vpop.f32.mrb[0].mxu0
  %v2244 = vadd.f32 %v1767, %v2243
  %v2245 = vpop.f32.mrb[0].mxu0
  %v2246 = vand.u32 %v54, 4294901760
  %2247 = vmatprep.mubr.f32.mxu0 %v2246
  %v2248 = vand.u32 %v53, 4294901760
  %2249 = vmatmul.mubr.f32.gmra.mrb[0].mxu0 %v2248
  %v2250 = vpop.f32.mrb[0].mxu0
  %v2251 = vadd.f32 %v1778, %v2250
  %v2252 = vpop.f32.mrb[0].mxu0
  %v2253 = vand.u32 %v56, 4294901760
  %2254 = vmatprep.mubr.f32.mxu0 %v2253
  %v2255 = vand.u32 %v55, 4294901760
  %2256 = vmatmul.mubr.f32.gmra.mrb[0].mxu0 %v2255
  %v2257 = vpop.f32.mrb[0].mxu0
  %v2258 = vadd.f32 %v1789, %v2257
  %v2259 = vpop.f32.mrb[0].mxu0
  %v2260 = vand.u32 %v58, 4294901760
  %2261 = vmatprep.mubr.f32.mxu0 %v2260
  %v2262 = vand.u32 %v57, 4294901760
  %2263 = vmatmul.mubr.f32.gmra.mrb[0].mxu0 %v2262
  %v2264 = vpop.f32.mrb[0].mxu0
  %v2265 = vadd.f32 %v1800, %v2264
  %v2266 = vpop.f32.mrb[0].mxu0
  %v2267 = vand.u32 %v60, 4294901760
  %2268 = vmatprep.mubr.f32.mxu0 %v2267
  %v2269 = vand.u32 %v59, 4294901760
  %2270 = vmatmul.mubr.f32.gmra.mrb[0].mxu0 %v2269
  %v2271 = vpop.f32.mrb[0].mxu0
  %v2272 = vadd.f32 %v1811, %v2271
  %v2273 = vpop.f32.mrb[0].mxu0
  %v2274 = vand.u32 %v62, 4294901760
  %2275 = vmatprep.mubr.f32.mxu0 %v2274
  %v2276 = vand.u32 %v61, 4294901760
  %2277 = vmatmul.mubr.f32.gmra.mrb[0].mxu0 %v2276
  %v2278 = vpop.f32.mrb[0].mxu0
  %v2279 = vadd.f32 %v1822, %v2278
  %v2280 = vpop.f32.mrb[0].mxu0
  %v2281 = vand.u32 %v64, 4294901760
  %2282 = vmatprep.mubr.f32.mxu0 %v2281
  %v2283 = vand.u32 %v63, 4294901760
  %2284 = vmatmul.mubr.f32.gmra.mrb[0].mxu0 %v2283
  %v2285 = vpop.f32.mrb[0].mxu0
  %v2286 = vadd.f32 %v1833, %v2285
  %v2287 = vpop.f32.mrb[0].mxu0
  %v2288 = vand.u32 %v66, 4294901760
  %2289 = vmatprep.mubr.f32.mxu0 %v2288
  %v2290 = vand.u32 %v65, 4294901760
  %2291 = vmatmul.mubr.f32.gmra.mrb[0].mxu0 %v2290
  %v2292 = vpop.f32.mrb[0].mxu0
  %v2293 = vadd.f32 %v1844, %v2292
  %v2294 = vpop.f32.mrb[0].mxu0
  %v2295 = vand.u32 %v68, 4294901760
  %2296 = vmatprep.mubr.f32.mxu0 %v2295
  %v2297 = vand.u32 %v67, 4294901760
  %2298 = vmatmul.mubr.f32.gmra.mrb[0].mxu0 %v2297
  %v2299 = vpop.f32.mrb[0].mxu0
  %v2300 = vadd.f32 %v1855, %v2299
  %v2301 = vpop.f32.mrb[0].mxu0
  %v2302 = vand.u32 %v70, 4294901760
  %2303 = vmatprep.mubr.f32.mxu0 %v2302
  %v2304 = vand.u32 %v69, 4294901760
  %2305 = vmatmul.mubr.f32.gmra.mrb[0].mxu0 %v2304
  %v2306 = vpop.f32.mrb[0].mxu0
  %v2307 = vadd.f32 %v1866, %v2306
  %v2308 = vpop.f32.mrb[0].mxu0
  %v2309 = vand.u32 %v72, 4294901760
  %2310 = vmatprep.mubr.f32.mxu0 %v2309
  %v2311 = vand.u32 %v71, 4294901760
  %2312 = vmatmul.mubr.f32.gmra.mrb[0].mxu0 %v2311
  %v2313 = vpop.f32.mrb[0].mxu0
  %v2314 = vadd.f32 %v1877, %v2313
  %v2315 = vpop.f32.mrb[0].mxu0
  %v2316 = vand.u32 %v74, 4294901760
  %2317 = vmatprep.mubr.f32.mxu0 %v2316
  %v2318 = vand.u32 %v73, 4294901760
  %2319 = vmatmul.mubr.f32.gmra.mrb[0].mxu0 %v2318
  %v2320 = vpop.f32.mrb[0].mxu0
  %v2321 = vadd.f32 %v1888, %v2320
  %v2322 = vpop.f32.mrb[0].mxu0
  %v2323 = vand.u32 %v76, 4294901760
  %2324 = vmatprep.mubr.f32.mxu0 %v2323
  %v2325 = vand.u32 %v75, 4294901760
  %2326 = vmatmul.mubr.f32.gmra.mrb[0].mxu0 %v2325
  %v2327 = vpop.f32.mrb[0].mxu0
  %v2328 = vadd.f32 %v1899, %v2327
  %v2329 = vpop.f32.mrb[0].mxu0
  %v2330 = vand.u32 %v78, 4294901760
  %2331 = vmatprep.mubr.f32.mxu0 %v2330
  %v2332 = vand.u32 %v77, 4294901760
  %2333 = vmatmul.mubr.f32.gmra.mrb[0].mxu0 %v2332
  %v2334 = vpop.f32.mrb[0].mxu0
  %v2335 = vadd.f32 %v1910, %v2334
  %v2336 = vpop.f32.mrb[0].mxu0
  %v2337 = vand.u32 %v80, 4294901760
  %2338 = vmatprep.mubr.f32.mxu0 %v2337
  %v2339 = vand.u32 %v79, 4294901760
  %2340 = vmatmul.mubr.f32.gmra.mrb[0].mxu0 %v2339
  %v2341 = vpop.f32.mrb[0].mxu0
  %v2342 = vadd.f32 %v1921, %v2341
  %v2343 = vpop.f32.mrb[0].mxu0
  %v2344 = vand.u32 %v82, 4294901760
  %2345 = vmatprep.mubr.f32.mxu0 %v2344
  %v2346 = vand.u32 %v81, 4294901760
  %2347 = vmatmul.mubr.f32.gmra.mrb[0].mxu0 %v2346
  %v2348 = vpop.f32.mrb[0].mxu0
  %v2349 = vadd.f32 %v1932, %v2348
  %v2350 = vpop.f32.mrb[0].mxu0
  %v2351 = vand.u32 %v84, 4294901760
  %2352 = vmatprep.mubr.f32.mxu0 %v2351
  %v2353 = vand.u32 %v83, 4294901760
  %2354 = vmatmul.mubr.f32.gmra.mrb[0].mxu0 %v2353
  %v2355 = vpop.f32.mrb[0].mxu0
  %v2356 = vadd.f32 %v1943, %v2355
  %v2357 = vpop.f32.mrb[0].mxu0
  %v2358 = vand.u32 %v86, 4294901760
  %2359 = vmatprep.mubr.f32.mxu0 %v2358
  %v2360 = vand.u32 %v85, 4294901760
  %2361 = vmatmul.mubr.f32.gmra.mrb[0].mxu0 %v2360
  %v2362 = vpop.f32.mrb[0].mxu0
  %v2363 = vadd.f32 %v1954, %v2362
  %v2364 = vpop.f32.mrb[0].mxu0
  %v2365 = vand.u32 %v88, 4294901760
  %2366 = vmatprep.mubr.f32.mxu0 %v2365
  %v2367 = vand.u32 %v87, 4294901760
  %2368 = vmatmul.mubr.f32.gmra.mrb[0].mxu0 %v2367
  %v2369 = vpop.f32.mrb[0].mxu0
  %v2370 = vadd.f32 %v1965, %v2369
  %v2371 = vpop.f32.mrb[0].mxu0
  %v2372 = vand.u32 %v90, 4294901760
  %2373 = vmatprep.mubr.f32.mxu0 %v2372
  %v2374 = vand.u32 %v89, 4294901760
  %2375 = vmatmul.mubr.f32.gmra.mrb[0].mxu0 %v2374
  %v2376 = vpop.f32.mrb[0].mxu0
  %v2377 = vadd.f32 %v1976, %v2376
  %v2378 = vpop.f32.mrb[0].mxu0
  %v2379 = vand.u32 %v92, 4294901760
  %2380 = vmatprep.mubr.f32.mxu0 %v2379
  %v2381 = vand.u32 %v91, 4294901760
  %2382 = vmatmul.mubr.f32.gmra.mrb[0].mxu0 %v2381
  %v2383 = vpop.f32.mrb[0].mxu0
  %v2384 = vadd.f32 %v1987, %v2383
  %v2385 = vpop.f32.mrb[0].mxu0
  %v2386 = vand.u32 %v94, 4294901760
  %2387 = vmatprep.mubr.f32.mxu0 %v2386
  %v2388 = vand.u32 %v93, 4294901760
  %2389 = vmatmul.mubr.f32.gmra.mrb[0].mxu0 %v2388
  %v2390 = vpop.f32.mrb[0].mxu0
  %v2391 = vadd.f32 %v1998, %v2390
  %v2392 = vpop.f32.mrb[0].mxu0
  %v2393 = vand.u32 %v96, 4294901760
  %2394 = vmatprep.mubr.f32.mxu0 %v2393
  %v2395 = vand.u32 %v95, 4294901760
  %2396 = vmatmul.mubr.f32.gmra.mrb[0].mxu0 %v2395
  %v2397 = vpop.f32.mrb[0].mxu0
  %v2398 = vadd.f32 %v2009, %v2397
  %v2399 = vpop.f32.mrb[0].mxu0
  %v2400 = vand.u32 %v98, 4294901760
  %2401 = vmatprep.mubr.f32.mxu0 %v2400
  %v2402 = vand.u32 %v97, 4294901760
  %2403 = vmatmul.mubr.f32.gmra.mrb[0].mxu0 %v2402
  %v2404 = vpop.f32.mrb[0].mxu0
  %v2405 = vadd.f32 %v2020, %v2404
  %v2406 = vpop.f32.mrb[0].mxu0
  %2407 = vdwg.mxu0
  %2408 = vmatprep.subr.mxu0 0.0
  %v2409 = vand.u32 %v99, 4294901760
  %2410 = vmatpush1.msra.mxu0 %v2409
  %2411 = vmatprep.subr.mxu0 0.0
  %v2412 = vand.u32 %v100, 4294901760
  %2413 = vmatpush1.msra.mxu0 %v2412
  %2414 = vmatprep.subr.mxu0 0.0
  %v2415 = vand.u32 %v101, 4294901760
  %2416 = vmatpush1.msra.mxu0 %v2415
  %2417 = vmatprep.subr.mxu0 0.0
  %v2418 = vand.u32 %v102, 4294901760
  %2419 = vmatpush1.msra.mxu0 %v2418
  %2420 = vmatprep.subr.mxu0 0.0
  %v2421 = vand.u32 %v103, 4294901760
  %2422 = vmatpush1.msra.mxu0 %v2421
  %2423 = vmatprep.subr.mxu0 0.0
  %v2424 = vand.u32 %v104, 4294901760
  %2425 = vmatpush1.msra.mxu0 %v2424
  %2426 = vmatprep.subr.mxu0 0.0
  %v2427 = vand.u32 %v105, 4294901760
  %2428 = vmatpush1.msra.mxu0 %v2427
  %2429 = vmatprep.subr.mxu0 0.0
  %v2430 = vand.u32 %v106, 4294901760
  %2431 = vmatpush1.msra.mxu0 %v2430
  %2432 = vmatprep.subr.mxu0 0.0
  %v2433 = vand.u32 %v107, 4294901760
  %2434 = vmatpush1.msra.mxu0 %v2433
  %2435 = vmatprep.subr.mxu0 0.0
  %v2436 = vand.u32 %v108, 4294901760
  %2437 = vmatpush1.msra.mxu0 %v2436
  %2438 = vmatprep.subr.mxu0 0.0
  %v2439 = vand.u32 %v109, 4294901760
  %2440 = vmatpush1.msra.mxu0 %v2439
  %2441 = vmatprep.subr.mxu0 0.0
  %v2442 = vand.u32 %v110, 4294901760
  %2443 = vmatpush1.msra.mxu0 %v2442
  %2444 = vmatprep.subr.mxu0 0.0
  %v2445 = vand.u32 %v111, 4294901760
  %2446 = vmatpush1.msra.mxu0 %v2445
  %2447 = vmatprep.subr.mxu0 0.0
  %v2448 = vand.u32 %v112, 4294901760
  %2449 = vmatpush1.msra.mxu0 %v2448
  %2450 = vmatprep.subr.mxu0 0.0
  %v2451 = vand.u32 %v113, 4294901760
  %2452 = vmatpush1.msra.mxu0 %v2451
  %2453 = vmatprep.subr.mxu0 0.0
  %v2454 = vand.u32 %v114, 4294901760
  %2455 = vmatpush1.msra.mxu0 %v2454
  %2456 = vmatprep.subr.mxu0 0.0
  %v2457 = vand.u32 %v115, 4294901760
  %2458 = vmatpush1.msra.mxu0 %v2457
  %2459 = vmatprep.subr.mxu0 0.0
  %v2460 = vand.u32 %v116, 4294901760
  %2461 = vmatpush1.msra.mxu0 %v2460
  %2462 = vmatprep.subr.mxu0 0.0
  %v2463 = vand.u32 %v117, 4294901760
  %2464 = vmatpush1.msra.mxu0 %v2463
  %2465 = vmatprep.subr.mxu0 0.0
  %v2466 = vand.u32 %v118, 4294901760
  %2467 = vmatpush1.msra.mxu0 %v2466
  %2468 = vmatprep.subr.mxu0 0.0
  %v2469 = vand.u32 %v119, 4294901760
  %2470 = vmatpush1.msra.mxu0 %v2469
  %2471 = vmatprep.subr.mxu0 0.0
  %v2472 = vand.u32 %v120, 4294901760
  %2473 = vmatpush1.msra.mxu0 %v2472
  %2474 = vmatprep.subr.mxu0 0.0
  %v2475 = vand.u32 %v121, 4294901760
  %2476 = vmatpush1.msra.mxu0 %v2475
  %2477 = vmatprep.subr.mxu0 0.0
  %v2478 = vand.u32 %v122, 4294901760
  %2479 = vmatpush1.msra.mxu0 %v2478
  %2480 = vmatprep.subr.mxu0 0.0
  %v2481 = vand.u32 %v123, 4294901760
  %2482 = vmatpush1.msra.mxu0 %v2481
  %2483 = vmatprep.subr.mxu0 0.0
  %v2484 = vand.u32 %v124, 4294901760
  %2485 = vmatpush1.msra.mxu0 %v2484
  %2486 = vmatprep.subr.mxu0 0.0
  %v2487 = vand.u32 %v125, 4294901760
  %2488 = vmatpush1.msra.mxu0 %v2487
  %2489 = vmatprep.subr.mxu0 0.0
  %v2490 = vand.u32 %v126, 4294901760
  %2491 = vmatpush1.msra.mxu0 %v2490
  %2492 = vmatprep.subr.mxu0 0.0
  %v2493 = vand.u32 %v127, 4294901760
  %2494 = vmatpush1.msra.mxu0 %v2493
  %2495 = vmatprep.subr.mxu0 0.0
  %v2496 = vand.u32 %v128, 4294901760
  %2497 = vmatpush1.msra.mxu0 %v2496
  %2498 = vmatprep.subr.mxu0 0.0
  %v2499 = vand.u32 %v129, 4294901760
  %2500 = vmatpush1.msra.mxu0 %v2499
  %2501 = vmatprep.subr.mxu0 0.0
  %v2502 = vand.u32 %v130, 4294901760
  %2503 = vmatpush1.msra.mxu0 %v2502
  %v2504 = vand.u32 %v36, 4294901760
  %2505 = vmatprep.mubr.f32.mxu0 %v2504
  %v2506 = vand.u32 %v35, 4294901760
  %2507 = vmatmul.mubr.f32.gmra.mrb[0].mxu0 %v2506
  %v2508 = vpop.f32.mrb[0].mxu0
  %v2509 = vadd.f32 %v2188, %v2508
  %v2510 = vpop.f32.mrb[0].mxu0
  %v2511 = vand.u32 %v38, 4294901760
  %2512 = vmatprep.mubr.f32.mxu0 %v2511
  %v2513 = vand.u32 %v37, 4294901760
  %2514 = vmatmul.mubr.f32.gmra.mrb[0].mxu0 %v2513
  %v2515 = vpop.f32.mrb[0].mxu0
  %v2516 = vadd.f32 %v2195, %v2515
  %v2517 = vpop.f32.mrb[0].mxu0
  %v2518 = vand.u32 %v40, 4294901760
  %2519 = vmatprep.mubr.f32.mxu0 %v2518
  %v2520 = vand.u32 %v39, 4294901760
  %2521 = vmatmul.mubr.f32.gmra.mrb[0].mxu0 %v2520
  %v2522 = vpop.f32.mrb[0].mxu0
  %v2523 = vadd.f32 %v2202, %v2522
  %v2524 = vpop.f32.mrb[0].mxu0
  %v2525 = vand.u32 %v42, 4294901760
  %2526 = vmatprep.mubr.f32.mxu0 %v2525
  %v2527 = vand.u32 %v41, 4294901760
  %2528 = vmatmul.mubr.f32.gmra.mrb[0].mxu0 %v2527
  %v2529 = vpop.f32.mrb[0].mxu0
  %v2530 = vadd.f32 %v2209, %v2529
  %v2531 = vpop.f32.mrb[0].mxu0
  %v2532 = vand.u32 %v44, 4294901760
  %2533 = vmatprep.mubr.f32.mxu0 %v2532
  %v2534 = vand.u32 %v43, 4294901760
  %2535 = vmatmul.mubr.f32.gmra.mrb[0].mxu0 %v2534
  %v2536 = vpop.f32.mrb[0].mxu0
  %v2537 = vadd.f32 %v2216, %v2536
  %v2538 = vpop.f32.mrb[0].mxu0
  %v2539 = vand.u32 %v46, 4294901760
  %2540 = vmatprep.mubr.f32.mxu0 %v2539
  %v2541 = vand.u32 %v45, 4294901760
  %2542 = vmatmul.mubr.f32.gmra.mrb[0].mxu0 %v2541
  %v2543 = vpop.f32.mrb[0].mxu0
  %v2544 = vadd.f32 %v2223, %v2543
  %v2545 = vpop.f32.mrb[0].mxu0
  %v2546 = vand.u32 %v48, 4294901760
  %2547 = vmatprep.mubr.f32.mxu0 %v2546
  %v2548 = vand.u32 %v47, 4294901760
  %2549 = vmatmul.mubr.f32.gmra.mrb[0].mxu0 %v2548
  %v2550 = vpop.f32.mrb[0].mxu0
  %v2551 = vadd.f32 %v2230, %v2550
  %v2552 = vpop.f32.mrb[0].mxu0
  %v2553 = vand.u32 %v50, 4294901760
  %2554 = vmatprep.mubr.f32.mxu0 %v2553
  %v2555 = vand.u32 %v49, 4294901760
  %2556 = vmatmul.mubr.f32.gmra.mrb[0].mxu0 %v2555
  %v2557 = vpop.f32.mrb[0].mxu0
  %v2558 = vadd.f32 %v2237, %v2557
  %v2559 = vpop.f32.mrb[0].mxu0
  %v2560 = vand.u32 %v52, 4294901760
  %2561 = vmatprep.mubr.f32.mxu0 %v2560
  %v2562 = vand.u32 %v51, 4294901760
  %2563 = vmatmul.mubr.f32.gmra.mrb[0].mxu0 %v2562
  %v2564 = vpop.f32.mrb[0].mxu0
  %v2565 = vadd.f32 %v2244, %v2564
  %v2566 = vpop.f32.mrb[0].mxu0
  %v2567 = vand.u32 %v54, 4294901760
  %2568 = vmatprep.mubr.f32.mxu0 %v2567
  %v2569 = vand.u32 %v53, 4294901760
  %2570 = vmatmul.mubr.f32.gmra.mrb[0].mxu0 %v2569
  %v2571 = vpop.f32.mrb[0].mxu0
  %v2572 = vadd.f32 %v2251, %v2571
  %v2573 = vpop.f32.mrb[0].mxu0
  %v2574 = vand.u32 %v56, 4294901760
  %2575 = vmatprep.mubr.f32.mxu0 %v2574
  %v2576 = vand.u32 %v55, 4294901760
  %2577 = vmatmul.mubr.f32.gmra.mrb[0].mxu0 %v2576
  %v2578 = vpop.f32.mrb[0].mxu0
  %v2579 = vadd.f32 %v2258, %v2578
  %v2580 = vpop.f32.mrb[0].mxu0
  %v2581 = vand.u32 %v58, 4294901760
  %2582 = vmatprep.mubr.f32.mxu0 %v2581
  %v2583 = vand.u32 %v57, 4294901760
  %2584 = vmatmul.mubr.f32.gmra.mrb[0].mxu0 %v2583
  %v2585 = vpop.f32.mrb[0].mxu0
  %v2586 = vadd.f32 %v2265, %v2585
  %v2587 = vpop.f32.mrb[0].mxu0
  %v2588 = vand.u32 %v60, 4294901760
  %2589 = vmatprep.mubr.f32.mxu0 %v2588
  %v2590 = vand.u32 %v59, 4294901760
  %2591 = vmatmul.mubr.f32.gmra.mrb[0].mxu0 %v2590
  %v2592 = vpop.f32.mrb[0].mxu0
  %v2593 = vadd.f32 %v2272, %v2592
  %v2594 = vpop.f32.mrb[0].mxu0
  %v2595 = vand.u32 %v62, 4294901760
  %2596 = vmatprep.mubr.f32.mxu0 %v2595
  %v2597 = vand.u32 %v61, 4294901760
  %2598 = vmatmul.mubr.f32.gmra.mrb[0].mxu0 %v2597
  %v2599 = vpop.f32.mrb[0].mxu0
  %v2600 = vadd.f32 %v2279, %v2599
  %v2601 = vpop.f32.mrb[0].mxu0
  %v2602 = vand.u32 %v64, 4294901760
  %2603 = vmatprep.mubr.f32.mxu0 %v2602
  %v2604 = vand.u32 %v63, 4294901760
  %2605 = vmatmul.mubr.f32.gmra.mrb[0].mxu0 %v2604
  %v2606 = vpop.f32.mrb[0].mxu0
  %v2607 = vadd.f32 %v2286, %v2606
  %v2608 = vpop.f32.mrb[0].mxu0
  %v2609 = vand.u32 %v66, 4294901760
  %2610 = vmatprep.mubr.f32.mxu0 %v2609
  %v2611 = vand.u32 %v65, 4294901760
  %2612 = vmatmul.mubr.f32.gmra.mrb[0].mxu0 %v2611
  %v2613 = vpop.f32.mrb[0].mxu0
  %v2614 = vadd.f32 %v2293, %v2613
  %v2615 = vpop.f32.mrb[0].mxu0
  %v2616 = vand.u32 %v68, 4294901760
  %2617 = vmatprep.mubr.f32.mxu0 %v2616
  %v2618 = vand.u32 %v67, 4294901760
  %2619 = vmatmul.mubr.f32.gmra.mrb[0].mxu0 %v2618
  %v2620 = vpop.f32.mrb[0].mxu0
  %v2621 = vadd.f32 %v2300, %v2620
  %v2622 = vpop.f32.mrb[0].mxu0
  %v2623 = vand.u32 %v70, 4294901760
  %2624 = vmatprep.mubr.f32.mxu0 %v2623
  %v2625 = vand.u32 %v69, 4294901760
  %2626 = vmatmul.mubr.f32.gmra.mrb[0].mxu0 %v2625
  %v2627 = vpop.f32.mrb[0].mxu0
  %v2628 = vadd.f32 %v2307, %v2627
  %v2629 = vpop.f32.mrb[0].mxu0
  %v2630 = vand.u32 %v72, 4294901760
  %2631 = vmatprep.mubr.f32.mxu0 %v2630
  %v2632 = vand.u32 %v71, 4294901760
  %2633 = vmatmul.mubr.f32.gmra.mrb[0].mxu0 %v2632
  %v2634 = vpop.f32.mrb[0].mxu0
  %v2635 = vadd.f32 %v2314, %v2634
  %v2636 = vpop.f32.mrb[0].mxu0
  %v2637 = vand.u32 %v74, 4294901760
  %2638 = vmatprep.mubr.f32.mxu0 %v2637
  %v2639 = vand.u32 %v73, 4294901760
  %2640 = vmatmul.mubr.f32.gmra.mrb[0].mxu0 %v2639
  %v2641 = vpop.f32.mrb[0].mxu0
  %v2642 = vadd.f32 %v2321, %v2641
  %v2643 = vpop.f32.mrb[0].mxu0
  %v2644 = vand.u32 %v76, 4294901760
  %2645 = vmatprep.mubr.f32.mxu0 %v2644
  %v2646 = vand.u32 %v75, 4294901760
  %2647 = vmatmul.mubr.f32.gmra.mrb[0].mxu0 %v2646
  %v2648 = vpop.f32.mrb[0].mxu0
  %v2649 = vadd.f32 %v2328, %v2648
  %v2650 = vpop.f32.mrb[0].mxu0
  %v2651 = vand.u32 %v78, 4294901760
  %2652 = vmatprep.mubr.f32.mxu0 %v2651
  %v2653 = vand.u32 %v77, 4294901760
  %2654 = vmatmul.mubr.f32.gmra.mrb[0].mxu0 %v2653
  %v2655 = vpop.f32.mrb[0].mxu0
  %v2656 = vadd.f32 %v2335, %v2655
  %v2657 = vpop.f32.mrb[0].mxu0
  %v2658 = vand.u32 %v80, 4294901760
  %2659 = vmatprep.mubr.f32.mxu0 %v2658
  %v2660 = vand.u32 %v79, 4294901760
  %2661 = vmatmul.mubr.f32.gmra.mrb[0].mxu0 %v2660
  %v2662 = vpop.f32.mrb[0].mxu0
  %v2663 = vadd.f32 %v2342, %v2662
  %v2664 = vpop.f32.mrb[0].mxu0
  %v2665 = vand.u32 %v82, 4294901760
  %2666 = vmatprep.mubr.f32.mxu0 %v2665
  %v2667 = vand.u32 %v81, 4294901760
  %2668 = vmatmul.mubr.f32.gmra.mrb[0].mxu0 %v2667
  %v2669 = vpop.f32.mrb[0].mxu0
  %v2670 = vadd.f32 %v2349, %v2669
  %v2671 = vpop.f32.mrb[0].mxu0
  %v2672 = vand.u32 %v84, 4294901760
  %2673 = vmatprep.mubr.f32.mxu0 %v2672
  %v2674 = vand.u32 %v83, 4294901760
  %2675 = vmatmul.mubr.f32.gmra.mrb[0].mxu0 %v2674
  %v2676 = vpop.f32.mrb[0].mxu0
  %v2677 = vadd.f32 %v2356, %v2676
  %v2678 = vpop.f32.mrb[0].mxu0
  %v2679 = vand.u32 %v86, 4294901760
  %2680 = vmatprep.mubr.f32.mxu0 %v2679
  %v2681 = vand.u32 %v85, 4294901760
  %2682 = vmatmul.mubr.f32.gmra.mrb[0].mxu0 %v2681
  %v2683 = vpop.f32.mrb[0].mxu0
  %v2684 = vadd.f32 %v2363, %v2683
  %v2685 = vpop.f32.mrb[0].mxu0
  %v2686 = vand.u32 %v88, 4294901760
  %2687 = vmatprep.mubr.f32.mxu0 %v2686
  %v2688 = vand.u32 %v87, 4294901760
  %2689 = vmatmul.mubr.f32.gmra.mrb[0].mxu0 %v2688
  %v2690 = vpop.f32.mrb[0].mxu0
  %v2691 = vadd.f32 %v2370, %v2690
  %v2692 = vpop.f32.mrb[0].mxu0
  %v2693 = vand.u32 %v90, 4294901760
  %2694 = vmatprep.mubr.f32.mxu0 %v2693
  %v2695 = vand.u32 %v89, 4294901760
  %2696 = vmatmul.mubr.f32.gmra.mrb[0].mxu0 %v2695
  %v2697 = vpop.f32.mrb[0].mxu0
  %v2698 = vadd.f32 %v2377, %v2697
  %v2699 = vpop.f32.mrb[0].mxu0
  %v2700 = vand.u32 %v92, 4294901760
  %2701 = vmatprep.mubr.f32.mxu0 %v2700
  %v2702 = vand.u32 %v91, 4294901760
  %2703 = vmatmul.mubr.f32.gmra.mrb[0].mxu0 %v2702
  %v2704 = vpop.f32.mrb[0].mxu0
  %v2705 = vadd.f32 %v2384, %v2704
  %v2706 = vpop.f32.mrb[0].mxu0
  %v2707 = vand.u32 %v94, 4294901760
  %2708 = vmatprep.mubr.f32.mxu0 %v2707
  %v2709 = vand.u32 %v93, 4294901760
  %2710 = vmatmul.mubr.f32.gmra.mrb[0].mxu0 %v2709
  %v2711 = vpop.f32.mrb[0].mxu0
  %v2712 = vadd.f32 %v2391, %v2711
  %v2713 = vpop.f32.mrb[0].mxu0
  %v2714 = vand.u32 %v96, 4294901760
  %2715 = vmatprep.mubr.f32.mxu0 %v2714
  %v2716 = vand.u32 %v95, 4294901760
  %2717 = vmatmul.mubr.f32.gmra.mrb[0].mxu0 %v2716
  %v2718 = vpop.f32.mrb[0].mxu0
  %v2719 = vadd.f32 %v2398, %v2718
  %v2720 = vpop.f32.mrb[0].mxu0
  %v2721 = vand.u32 %v98, 4294901760
  %2722 = vmatprep.mubr.f32.mxu0 %v2721
  %v2723 = vand.u32 %v97, 4294901760
  %2724 = vmatmul.mubr.f32.gmra.mrb[0].mxu0 %v2723
  %v2725 = vpop.f32.mrb[0].mxu0
  %v2726 = vadd.f32 %v2405, %v2725
  %v2727 = vpop.f32.mrb[0].mxu0
  %2728 = vdwg.mxu0
  %2729 = vxpose.xlu0.b32.start [1/16] %v2509, 128
  %2730 = vxpose.xlu0.b32.cont [2/16] %v2516, 128
  %2731 = vxpose.xlu0.b32.cont [3/16] %v2523, 128
  %2732 = vxpose.xlu0.b32.cont [4/16] %v2530, 128
  %2733 = vxpose.xlu0.b32.cont [5/16] 0.0, 128
  %2734 = vxpose.xlu0.b32.cont [6/16] 0.0, 128
  %2735 = vxpose.xlu0.b32.cont [7/16] 0.0, 128
  %2736 = vxpose.xlu0.b32.cont [8/16] 0.0, 128
  %2737 = vxpose.xlu0.b32.cont [9/16] 0.0, 128
  %2738 = vxpose.xlu0.b32.cont [10/16] 0.0, 128
  %2739 = vxpose.xlu0.b32.cont [11/16] 0.0, 128
  %2740 = vxpose.xlu0.b32.cont [12/16] 0.0, 128
  %2741 = vxpose.xlu0.b32.cont [13/16] 0.0, 128
  %2742 = vxpose.xlu0.b32.cont [14/16] 0.0, 128
  %2743 = vxpose.xlu0.b32.cont [15/16] 0.0, 128
  %2744 = vxpose.xlu0.b32.end [16/16] 0.0, 128
  %v2745 = vpop.trf.xlu0
  %v2746 = vpop.trf.xlu0
  %v2747 = vpop.trf.xlu0
  %v2748 = vpop.trf.xlu0
  %v2749 = vpop.trf.xlu0
  %v2750 = vpop.trf.xlu0
  %v2751 = vpop.trf.xlu0
  %v2752 = vpop.trf.xlu0
  %v2753 = vpop.trf.xlu0
  %v2754 = vpop.trf.xlu0
  %v2755 = vpop.trf.xlu0
  %v2756 = vpop.trf.xlu0
  %v2757 = vpop.trf.xlu0
  %v2758 = vpop.trf.xlu0
  %v2759 = vpop.trf.xlu0
  %v2760 = vpop.trf.xlu0
  %2761 = vxpose.xlu0.b32.start [1/16] %v2537, 128
  %2762 = vxpose.xlu0.b32.cont [2/16] %v2544, 128
  %2763 = vxpose.xlu0.b32.cont [3/16] %v2551, 128
  %2764 = vxpose.xlu0.b32.cont [4/16] %v2558, 128
  %2765 = vxpose.xlu0.b32.cont [5/16] 0.0, 128
  %2766 = vxpose.xlu0.b32.cont [6/16] 0.0, 128
  %2767 = vxpose.xlu0.b32.cont [7/16] 0.0, 128
  %2768 = vxpose.xlu0.b32.cont [8/16] 0.0, 128
  %2769 = vxpose.xlu0.b32.cont [9/16] 0.0, 128
  %2770 = vxpose.xlu0.b32.cont [10/16] 0.0, 128
  %2771 = vxpose.xlu0.b32.cont [11/16] 0.0, 128
  %2772 = vxpose.xlu0.b32.cont [12/16] 0.0, 128
  %2773 = vxpose.xlu0.b32.cont [13/16] 0.0, 128
  %2774 = vxpose.xlu0.b32.cont [14/16] 0.0, 128
  %2775 = vxpose.xlu0.b32.cont [15/16] 0.0, 128
  %2776 = vxpose.xlu0.b32.end [16/16] 0.0, 128
  %v2777 = vpop.trf.xlu0
  %v2778 = vpop.trf.xlu0
  %v2779 = vpop.trf.xlu0
  %v2780 = vpop.trf.xlu0
  %v2781 = vpop.trf.xlu0
  %v2782 = vpop.trf.xlu0
  %v2783 = vpop.trf.xlu0
  %v2784 = vpop.trf.xlu0
  %v2785 = vpop.trf.xlu0
  %v2786 = vpop.trf.xlu0
  %v2787 = vpop.trf.xlu0
  %v2788 = vpop.trf.xlu0
  %v2789 = vpop.trf.xlu0
  %v2790 = vpop.trf.xlu0
  %v2791 = vpop.trf.xlu0
  %v2792 = vpop.trf.xlu0
  %2793 = vxpose.xlu0.b32.start [1/16] %v2565, 128
  %2794 = vxpose.xlu0.b32.cont [2/16] %v2572, 128
  %2795 = vxpose.xlu0.b32.cont [3/16] %v2579, 128
  %2796 = vxpose.xlu0.b32.cont [4/16] %v2586, 128
  %2797 = vxpose.xlu0.b32.cont [5/16] 0.0, 128
  %2798 = vxpose.xlu0.b32.cont [6/16] 0.0, 128
  %2799 = vxpose.xlu0.b32.cont [7/16] 0.0, 128
  %2800 = vxpose.xlu0.b32.cont [8/16] 0.0, 128
  %2801 = vxpose.xlu0.b32.cont [9/16] 0.0, 128
  %2802 = vxpose.xlu0.b32.cont [10/16] 0.0, 128
  %2803 = vxpose.xlu0.b32.cont [11/16] 0.0, 128
  %2804 = vxpose.xlu0.b32.cont [12/16] 0.0, 128
  %2805 = vxpose.xlu0.b32.cont [13/16] 0.0, 128
  %2806 = vxpose.xlu0.b32.cont [14/16] 0.0, 128
  %2807 = vxpose.xlu0.b32.cont [15/16] 0.0, 128
  %2808 = vxpose.xlu0.b32.end [16/16] 0.0, 128
  %v2809 = vpop.trf.xlu0
  %v2810 = vpop.trf.xlu0
  %v2811 = vpop.trf.xlu0
  %v2812 = vpop.trf.xlu0
  %v2813 = vpop.trf.xlu0
  %v2814 = vpop.trf.xlu0
  %v2815 = vpop.trf.xlu0
  %v2816 = vpop.trf.xlu0
  %v2817 = vpop.trf.xlu0
  %v2818 = vpop.trf.xlu0
  %v2819 = vpop.trf.xlu0
  %v2820 = vpop.trf.xlu0
  %v2821 = vpop.trf.xlu0
  %v2822 = vpop.trf.xlu0
  %v2823 = vpop.trf.xlu0
  %v2824 = vpop.trf.xlu0
  %2825 = vxpose.xlu0.b32.start [1/16] %v2593, 128
  %2826 = vxpose.xlu0.b32.cont [2/16] %v2600, 128
  %2827 = vxpose.xlu0.b32.cont [3/16] %v2607, 128
  %2828 = vxpose.xlu0.b32.cont [4/16] %v2614, 128
  %2829 = vxpose.xlu0.b32.cont [5/16] 0.0, 128
  %2830 = vxpose.xlu0.b32.cont [6/16] 0.0, 128
  %2831 = vxpose.xlu0.b32.cont [7/16] 0.0, 128
  %2832 = vxpose.xlu0.b32.cont [8/16] 0.0, 128
  %2833 = vxpose.xlu0.b32.cont [9/16] 0.0, 128
  %2834 = vxpose.xlu0.b32.cont [10/16] 0.0, 128
  %2835 = vxpose.xlu0.b32.cont [11/16] 0.0, 128
  %2836 = vxpose.xlu0.b32.cont [12/16] 0.0, 128
  %2837 = vxpose.xlu0.b32.cont [13/16] 0.0, 128
  %2838 = vxpose.xlu0.b32.cont [14/16] 0.0, 128
  %2839 = vxpose.xlu0.b32.cont [15/16] 0.0, 128
  %2840 = vxpose.xlu0.b32.end [16/16] 0.0, 128
  %v2841 = vpop.trf.xlu0
  %v2842 = vpop.trf.xlu0
  %v2843 = vpop.trf.xlu0
  %v2844 = vpop.trf.xlu0
  %v2845 = vpop.trf.xlu0
  %v2846 = vpop.trf.xlu0
  %v2847 = vpop.trf.xlu0
  %v2848 = vpop.trf.xlu0
  %v2849 = vpop.trf.xlu0
  %v2850 = vpop.trf.xlu0
  %v2851 = vpop.trf.xlu0
  %v2852 = vpop.trf.xlu0
  %v2853 = vpop.trf.xlu0
  %v2854 = vpop.trf.xlu0
  %v2855 = vpop.trf.xlu0
  %v2856 = vpop.trf.xlu0
  %2857 = vxpose.xlu0.b32.start [1/16] %v2621, 128
  %2858 = vxpose.xlu0.b32.cont [2/16] %v2628, 128
  %2859 = vxpose.xlu0.b32.cont [3/16] %v2635, 128
  %2860 = vxpose.xlu0.b32.cont [4/16] %v2642, 128
  %2861 = vxpose.xlu0.b32.cont [5/16] 0.0, 128
  %2862 = vxpose.xlu0.b32.cont [6/16] 0.0, 128
  %2863 = vxpose.xlu0.b32.cont [7/16] 0.0, 128
  %2864 = vxpose.xlu0.b32.cont [8/16] 0.0, 128
  %2865 = vxpose.xlu0.b32.cont [9/16] 0.0, 128
  %2866 = vxpose.xlu0.b32.cont [10/16] 0.0, 128
  %2867 = vxpose.xlu0.b32.cont [11/16] 0.0, 128
  %2868 = vxpose.xlu0.b32.cont [12/16] 0.0, 128
  %2869 = vxpose.xlu0.b32.cont [13/16] 0.0, 128
  %2870 = vxpose.xlu0.b32.cont [14/16] 0.0, 128
  %2871 = vxpose.xlu0.b32.cont [15/16] 0.0, 128
  %2872 = vxpose.xlu0.b32.end [16/16] 0.0, 128
  %v2873 = vpop.trf.xlu0
  %v2874 = vpop.trf.xlu0
  %v2875 = vpop.trf.xlu0
  %v2876 = vpop.trf.xlu0
  %v2877 = vpop.trf.xlu0
  %v2878 = vpop.trf.xlu0
  %v2879 = vpop.trf.xlu0
  %v2880 = vpop.trf.xlu0
  %v2881 = vpop.trf.xlu0
  %v2882 = vpop.trf.xlu0
  %v2883 = vpop.trf.xlu0
  %v2884 = vpop.trf.xlu0
  %v2885 = vpop.trf.xlu0
  %v2886 = vpop.trf.xlu0
  %v2887 = vpop.trf.xlu0
  %v2888 = vpop.trf.xlu0
  %2889 = vxpose.xlu0.b32.start [1/16] %v2649, 128
  %2890 = vxpose.xlu0.b32.cont [2/16] %v2656, 128
  %2891 = vxpose.xlu0.b32.cont [3/16] %v2663, 128
  %2892 = vxpose.xlu0.b32.cont [4/16] %v2670, 128
  %2893 = vxpose.xlu0.b32.cont [5/16] 0.0, 128
  %2894 = vxpose.xlu0.b32.cont [6/16] 0.0, 128
  %2895 = vxpose.xlu0.b32.cont [7/16] 0.0, 128
  %2896 = vxpose.xlu0.b32.cont [8/16] 0.0, 128
  %2897 = vxpose.xlu0.b32.cont [9/16] 0.0, 128
  %2898 = vxpose.xlu0.b32.cont [10/16] 0.0, 128
  %2899 = vxpose.xlu0.b32.cont [11/16] 0.0, 128
  %2900 = vxpose.xlu0.b32.cont [12/16] 0.0, 128
  %2901 = vxpose.xlu0.b32.cont [13/16] 0.0, 128
  %2902 = vxpose.xlu0.b32.cont [14/16] 0.0, 128
  %2903 = vxpose.xlu0.b32.cont [15/16] 0.0, 128
  %2904 = vxpose.xlu0.b32.end [16/16] 0.0, 128
  %v2905 = vpop.trf.xlu0
  %v2906 = vpop.trf.xlu0
  %v2907 = vpop.trf.xlu0
  %v2908 = vpop.trf.xlu0
  %v2909 = vpop.trf.xlu0
  %v2910 = vpop.trf.xlu0
  %v2911 = vpop.trf.xlu0
  %v2912 = vpop.trf.xlu0
  %v2913 = vpop.trf.xlu0
  %v2914 = vpop.trf.xlu0
  %v2915 = vpop.trf.xlu0
  %v2916 = vpop.trf.xlu0
  %v2917 = vpop.trf.xlu0
  %v2918 = vpop.trf.xlu0
  %v2919 = vpop.trf.xlu0
  %v2920 = vpop.trf.xlu0
  %2921 = vxpose.xlu0.b32.start [1/16] %v2677, 128
  %2922 = vxpose.xlu0.b32.cont [2/16] %v2684, 128
  %2923 = vxpose.xlu0.b32.cont [3/16] %v2691, 128
  %2924 = vxpose.xlu0.b32.cont [4/16] %v2698, 128
  %2925 = vxpose.xlu0.b32.cont [5/16] 0.0, 128
  %2926 = vxpose.xlu0.b32.cont [6/16] 0.0, 128
  %2927 = vxpose.xlu0.b32.cont [7/16] 0.0, 128
  %2928 = vxpose.xlu0.b32.cont [8/16] 0.0, 128
  %2929 = vxpose.xlu0.b32.cont [9/16] 0.0, 128
  %2930 = vxpose.xlu0.b32.cont [10/16] 0.0, 128
  %2931 = vxpose.xlu0.b32.cont [11/16] 0.0, 128
  %2932 = vxpose.xlu0.b32.cont [12/16] 0.0, 128
  %2933 = vxpose.xlu0.b32.cont [13/16] 0.0, 128
  %2934 = vxpose.xlu0.b32.cont [14/16] 0.0, 128
  %2935 = vxpose.xlu0.b32.cont [15/16] 0.0, 128
  %2936 = vxpose.xlu0.b32.end [16/16] 0.0, 128
  %v2937 = vpop.trf.xlu0
  %v2938 = vpop.trf.xlu0
  %v2939 = vpop.trf.xlu0
  %v2940 = vpop.trf.xlu0
  %v2941 = vpop.trf.xlu0
  %v2942 = vpop.trf.xlu0
  %v2943 = vpop.trf.xlu0
  %v2944 = vpop.trf.xlu0
  %v2945 = vpop.trf.xlu0
  %v2946 = vpop.trf.xlu0
  %v2947 = vpop.trf.xlu0
  %v2948 = vpop.trf.xlu0
  %v2949 = vpop.trf.xlu0
  %v2950 = vpop.trf.xlu0
  %v2951 = vpop.trf.xlu0
  %v2952 = vpop.trf.xlu0
  %2953 = vxpose.xlu0.b32.start [1/16] %v2705, 128
  %2954 = vxpose.xlu0.b32.cont [2/16] %v2712, 128
  %2955 = vxpose.xlu0.b32.cont [3/16] %v2719, 128
  %2956 = vxpose.xlu0.b32.cont [4/16] %v2726, 128
  %2957 = vxpose.xlu0.b32.cont [5/16] 0.0, 128
  %2958 = vxpose.xlu0.b32.cont [6/16] 0.0, 128
  %2959 = vxpose.xlu0.b32.cont [7/16] 0.0, 128
  %2960 = vxpose.xlu0.b32.cont [8/16] 0.0, 128
  %2961 = vxpose.xlu0.b32.cont [9/16] 0.0, 128
  %2962 = vxpose.xlu0.b32.cont [10/16] 0.0, 128
  %2963 = vxpose.xlu0.b32.cont [11/16] 0.0, 128
  %2964 = vxpose.xlu0.b32.cont [12/16] 0.0, 128
  %2965 = vxpose.xlu0.b32.cont [13/16] 0.0, 128
  %2966 = vxpose.xlu0.b32.cont [14/16] 0.0, 128
  %2967 = vxpose.xlu0.b32.cont [15/16] 0.0, 128
  %2968 = vxpose.xlu0.b32.end [16/16] 0.0, 128
  %v2969 = vpop.trf.xlu0
  %v2970 = vpop.trf.xlu0
  %v2971 = vpop.trf.xlu0
  %v2972 = vpop.trf.xlu0
  %v2973 = vpop.trf.xlu0
  %v2974 = vpop.trf.xlu0
  %v2975 = vpop.trf.xlu0
  %v2976 = vpop.trf.xlu0
  %v2977 = vpop.trf.xlu0
  %v2978 = vpop.trf.xlu0
  %v2979 = vpop.trf.xlu0
  %v2980 = vpop.trf.xlu0
  %v2981 = vpop.trf.xlu0
  %v2982 = vpop.trf.xlu0
  %v2983 = vpop.trf.xlu0
  %v2984 = vpop.trf.xlu0
  %v2985 = vld [vmem:[%s4] sm:$0xff]
  %v2986 = vld [vmem:[%s4 + $0x8] sm:$0xff]
  %v2987 = vld [vmem:[%s4 + $0x10] sm:$0xff]
  %v2988 = vld [vmem:[%s4 + $0x18] sm:$0xff]
  %v2989 = vld [vmem:[%s5] sm:$0x1]
  %v2991 = vlaneseq
  %v2992 = vshrl.u32 %v2991, 7
  %v2993 = vsub.s32 0, %v2992
  %v2994 = vrot.slane %v2989, %v2993
  %vm2996 = vcmask 261120
  %v2998 = vsel %vm2996, %v2745, 0
  %v3001 = vsel %vm2996, %v2746, 0
  %v3004 = vsel %vm2996, %v2747, 0
  %v3007 = vsel %vm2996, %v2748, 0
  %v3010 = vsel %vm2996, %v2777, 0
  %v3013 = vsel %vm2996, %v2778, 0
  %v3016 = vsel %vm2996, %v2779, 0
  %v3019 = vsel %vm2996, %v2780, 0
  %v3022 = vsel %vm2996, %v2809, 0
  %v3025 = vsel %vm2996, %v2810, 0
  %v3028 = vsel %vm2996, %v2811, 0
  %v3031 = vsel %vm2996, %v2812, 0
  %v3034 = vsel %vm2996, %v2841, 0
  %v3037 = vsel %vm2996, %v2842, 0
  %v3040 = vsel %vm2996, %v2843, 0
  %v3043 = vsel %vm2996, %v2844, 0
  %v3046 = vsel %vm2996, %v2873, 0
  %v3049 = vsel %vm2996, %v2874, 0
  %v3052 = vsel %vm2996, %v2875, 0
  %v3055 = vsel %vm2996, %v2876, 0
  %v3058 = vsel %vm2996, %v2905, 0
  %v3061 = vsel %vm2996, %v2906, 0
  %v3064 = vsel %vm2996, %v2907, 0
  %v3067 = vsel %vm2996, %v2908, 0
  %v3070 = vsel %vm2996, %v2937, 0
  %v3073 = vsel %vm2996, %v2938, 0
  %v3076 = vsel %vm2996, %v2939, 0
  %v3079 = vsel %vm2996, %v2940, 0
  %v3082 = vsel %vm2996, %v2969, 0
  %v3085 = vsel %vm2996, %v2970, 0
  %v3088 = vsel %vm2996, %v2971, 0
  %v3091 = vsel %vm2996, %v2972, 0
  %3093 = vmatprep.subr.mxu0 0.0
  %v3094 = vand.u32 %v2985, 4294901760
  %3095 = vmatpush1.msra.mxu0 %v3094
  %3096 = vmatprep.subr.mxu0 0.0
  %v3097 = vand.u32 %v2986, 4294901760
  %3098 = vmatpush1.msra.mxu0 %v3097
  %3099 = vmatprep.subr.mxu0 0.0
  %v3100 = vand.u32 %v2987, 4294901760
  %3101 = vmatpush1.msra.mxu0 %v3100
  %3102 = vmatprep.subr.mxu0 0.0
  %v3103 = vand.u32 %v2988, 4294901760
  %3104 = vmatpush1.msra.mxu0 %v3103
  %3105 = vmatprep.subr.mxu0 0.0
  %3106 = vmatpush1.msra.mxu0 0.0
  %3107 = vmatprep.subr.mxu0 0.0
  %3108 = vmatpush1.msra.mxu0 0.0
  %3109 = vmatprep.subr.mxu0 0.0
  %3110 = vmatpush1.msra.mxu0 0.0
  %3111 = vmatprep.subr.mxu0 0.0
  %3112 = vmatpush1.msra.mxu0 0.0
  %3113 = vmatprep.subr.mxu0 0.0
  %3114 = vmatpush1.msra.mxu0 0.0
  %3115 = vmatprep.subr.mxu0 0.0
  %3116 = vmatpush1.msra.mxu0 0.0
  %3117 = vmatprep.subr.mxu0 0.0
  %3118 = vmatpush1.msra.mxu0 0.0
  %3119 = vmatprep.subr.mxu0 0.0
  %3120 = vmatpush1.msra.mxu0 0.0
  %3121 = vmatprep.subr.mxu0 0.0
  %3122 = vmatpush1.msra.mxu0 0.0
  %3123 = vmatprep.subr.mxu0 0.0
  %3124 = vmatpush1.msra.mxu0 0.0
  %3125 = vmatprep.subr.mxu0 0.0
  %3126 = vmatpush1.msra.mxu0 0.0
  %3127 = vmatprep.subr.mxu0 0.0
  %3128 = vmatpush1.msra.mxu0 0.0
  %3129 = vmatprep.subr.mxu0 0.0
  %3130 = vmatpush1.msra.mxu0 0.0
  %3131 = vmatprep.subr.mxu0 0.0
  %3132 = vmatpush1.msra.mxu0 0.0
  %3133 = vmatprep.subr.mxu0 0.0
  %3134 = vmatpush1.msra.mxu0 0.0
  %3135 = vmatprep.subr.mxu0 0.0
  %3136 = vmatpush1.msra.mxu0 0.0
  %3137 = vmatprep.subr.mxu0 0.0
  %3138 = vmatpush1.msra.mxu0 0.0
  %3139 = vmatprep.subr.mxu0 0.0
  %3140 = vmatpush1.msra.mxu0 0.0
  %3141 = vmatprep.subr.mxu0 0.0
  %3142 = vmatpush1.msra.mxu0 0.0
  %3143 = vmatprep.subr.mxu0 0.0
  %3144 = vmatpush1.msra.mxu0 0.0
  %3145 = vmatprep.subr.mxu0 0.0
  %3146 = vmatpush1.msra.mxu0 0.0
  %3147 = vmatprep.subr.mxu0 0.0
  %3148 = vmatpush1.msra.mxu0 0.0
  %3149 = vmatprep.subr.mxu0 0.0
  %3150 = vmatpush1.msra.mxu0 0.0
  %3151 = vmatprep.subr.mxu0 0.0
  %3152 = vmatpush1.msra.mxu0 0.0
  %3153 = vmatprep.subr.mxu0 0.0
  %3154 = vmatpush1.msra.mxu0 0.0
  %3155 = vmatprep.subr.mxu0 0.0
  %3156 = vmatpush1.msra.mxu0 0.0
  %3157 = vmatprep.subr.mxu0 0.0
  %3158 = vmatpush1.msra.mxu0 0.0
  %3159 = vmatprep.subr.mxu0 0.0
  %3160 = vmatpush1.msra.mxu0 0.0
  %3161 = vmatprep.mubr.f32.mxu0 0.0
  %v3162 = vand.u32 %v2998, 4294901760
  %v3163 = vsub.f32 %v2998, %v3162
  %v3164 = vand.u32 %v3163, 4294901760
  %v3165 = vsub.f32 %v3163, %v3164
  %v3166 = vand.u32 %v3165, 4294901760
  %3167 = vmatmul.mubr.f32.gmra.mrb[0].mxu0 %v3166
  %v3168 = vpop.f32.mrb[0].mxu0
  %v3169 = vadd.f32 %v2994, %v3168
  %v3170 = vpop.f32.mrb[0].mxu0
  %3171 = vmatprep.mubr.f32.mxu0 0.0
  %v3172 = vand.u32 %v3001, 4294901760
  %v3173 = vsub.f32 %v3001, %v3172
  %v3174 = vand.u32 %v3173, 4294901760
  %v3175 = vsub.f32 %v3173, %v3174
  %v3176 = vand.u32 %v3175, 4294901760
  %3177 = vmatmul.mubr.f32.gmra.mrb[0].mxu0 %v3176
  %v3178 = vpop.f32.mrb[0].mxu0
  %v3179 = vadd.f32 %v2994, %v3178
  %v3180 = vpop.f32.mrb[0].mxu0
  %3181 = vmatprep.mubr.f32.mxu0 0.0
  %v3182 = vand.u32 %v3004, 4294901760
  %v3183 = vsub.f32 %v3004, %v3182
  %v3184 = vand.u32 %v3183, 4294901760
  %v3185 = vsub.f32 %v3183, %v3184
  %v3186 = vand.u32 %v3185, 4294901760
  %3187 = vmatmul.mubr.f32.gmra.mrb[0].mxu0 %v3186
  %v3188 = vpop.f32.mrb[0].mxu0
  %v3189 = vadd.f32 %v2994, %v3188
  %v3190 = vpop.f32.mrb[0].mxu0
  %3191 = vmatprep.mubr.f32.mxu0 0.0
  %v3192 = vand.u32 %v3007, 4294901760
  %v3193 = vsub.f32 %v3007, %v3192
  %v3194 = vand.u32 %v3193, 4294901760
  %v3195 = vsub.f32 %v3193, %v3194
  %v3196 = vand.u32 %v3195, 4294901760
  %3197 = vmatmul.mubr.f32.gmra.mrb[0].mxu0 %v3196
  %v3198 = vpop.f32.mrb[0].mxu0
  %v3199 = vadd.f32 %v2994, %v3198
  %v3200 = vpop.f32.mrb[0].mxu0
  %3201 = vmatprep.mubr.f32.mxu0 0.0
  %v3202 = vand.u32 %v3010, 4294901760
  %v3203 = vsub.f32 %v3010, %v3202
  %v3204 = vand.u32 %v3203, 4294901760
  %v3205 = vsub.f32 %v3203, %v3204
  %v3206 = vand.u32 %v3205, 4294901760
  %3207 = vmatmul.mubr.f32.gmra.mrb[0].mxu0 %v3206
  %v3208 = vpop.f32.mrb[0].mxu0
  %v3209 = vadd.f32 %v2994, %v3208
  %v3210 = vpop.f32.mrb[0].mxu0
  %3211 = vmatprep.mubr.f32.mxu0 0.0
  %v3212 = vand.u32 %v3013, 4294901760
  %v3213 = vsub.f32 %v3013, %v3212
  %v3214 = vand.u32 %v3213, 4294901760
  %v3215 = vsub.f32 %v3213, %v3214
  %v3216 = vand.u32 %v3215, 4294901760
  %3217 = vmatmul.mubr.f32.gmra.mrb[0].mxu0 %v3216
  %v3218 = vpop.f32.mrb[0].mxu0
  %v3219 = vadd.f32 %v2994, %v3218
  %v3220 = vpop.f32.mrb[0].mxu0
  %3221 = vmatprep.mubr.f32.mxu0 0.0
  %v3222 = vand.u32 %v3016, 4294901760
  %v3223 = vsub.f32 %v3016, %v3222
  %v3224 = vand.u32 %v3223, 4294901760
  %v3225 = vsub.f32 %v3223, %v3224
  %v3226 = vand.u32 %v3225, 4294901760
  %3227 = vmatmul.mubr.f32.gmra.mrb[0].mxu0 %v3226
  %v3228 = vpop.f32.mrb[0].mxu0
  %v3229 = vadd.f32 %v2994, %v3228
  %v3230 = vpop.f32.mrb[0].mxu0
  %3231 = vmatprep.mubr.f32.mxu0 0.0
  %v3232 = vand.u32 %v3019, 4294901760
  %v3233 = vsub.f32 %v3019, %v3232
  %v3234 = vand.u32 %v3233, 4294901760
  %v3235 = vsub.f32 %v3233, %v3234
  %v3236 = vand.u32 %v3235, 4294901760
  %3237 = vmatmul.mubr.f32.gmra.mrb[0].mxu0 %v3236
  %v3238 = vpop.f32.mrb[0].mxu0
  %v3239 = vadd.f32 %v2994, %v3238
  %v3240 = vpop.f32.mrb[0].mxu0
  %3241 = vmatprep.mubr.f32.mxu0 0.0
  %v3242 = vand.u32 %v3022, 4294901760
  %v3243 = vsub.f32 %v3022, %v3242
  %v3244 = vand.u32 %v3243, 4294901760
  %v3245 = vsub.f32 %v3243, %v3244
  %v3246 = vand.u32 %v3245, 4294901760
  %3247 = vmatmul.mubr.f32.gmra.mrb[0].mxu0 %v3246
  %v3248 = vpop.f32.mrb[0].mxu0
  %v3249 = vadd.f32 %v2994, %v3248
  %v3250 = vpop.f32.mrb[0].mxu0
  %3251 = vmatprep.mubr.f32.mxu0 0.0
  %v3252 = vand.u32 %v3025, 4294901760
  %v3253 = vsub.f32 %v3025, %v3252
  %v3254 = vand.u32 %v3253, 4294901760
  %v3255 = vsub.f32 %v3253, %v3254
  %v3256 = vand.u32 %v3255, 4294901760
  %3257 = vmatmul.mubr.f32.gmra.mrb[0].mxu0 %v3256
  %v3258 = vpop.f32.mrb[0].mxu0
  %v3259 = vadd.f32 %v2994, %v3258
  %v3260 = vpop.f32.mrb[0].mxu0
  %3261 = vmatprep.mubr.f32.mxu0 0.0
  %v3262 = vand.u32 %v3028, 4294901760
  %v3263 = vsub.f32 %v3028, %v3262
  %v3264 = vand.u32 %v3263, 4294901760
  %v3265 = vsub.f32 %v3263, %v3264
  %v3266 = vand.u32 %v3265, 4294901760
  %3267 = vmatmul.mubr.f32.gmra.mrb[0].mxu0 %v3266
  %v3268 = vpop.f32.mrb[0].mxu0
  %v3269 = vadd.f32 %v2994, %v3268
  %v3270 = vpop.f32.mrb[0].mxu0
  %3271 = vmatprep.mubr.f32.mxu0 0.0
  %v3272 = vand.u32 %v3031, 4294901760
  %v3273 = vsub.f32 %v3031, %v3272
  %v3274 = vand.u32 %v3273, 4294901760
  %v3275 = vsub.f32 %v3273, %v3274
  %v3276 = vand.u32 %v3275, 4294901760
  %3277 = vmatmul.mubr.f32.gmra.mrb[0].mxu0 %v3276
  %v3278 = vpop.f32.mrb[0].mxu0
  %v3279 = vadd.f32 %v2994, %v3278
  %v3280 = vpop.f32.mrb[0].mxu0
  %3281 = vmatprep.mubr.f32.mxu0 0.0
  %v3282 = vand.u32 %v3034, 4294901760
  %v3283 = vsub.f32 %v3034, %v3282
  %v3284 = vand.u32 %v3283, 4294901760
  %v3285 = vsub.f32 %v3283, %v3284
  %v3286 = vand.u32 %v3285, 4294901760
  %3287 = vmatmul.mubr.f32.gmra.mrb[0].mxu0 %v3286
  %v3288 = vpop.f32.mrb[0].mxu0
  %v3289 = vadd.f32 %v2994, %v3288
  %v3290 = vpop.f32.mrb[0].mxu0
  %3291 = vmatprep.mubr.f32.mxu0 0.0
  %v3292 = vand.u32 %v3037, 4294901760
  %v3293 = vsub.f32 %v3037, %v3292
  %v3294 = vand.u32 %v3293, 4294901760
  %v3295 = vsub.f32 %v3293, %v3294
  %v3296 = vand.u32 %v3295, 4294901760
  %3297 = vmatmul.mubr.f32.gmra.mrb[0].mxu0 %v3296
  %v3298 = vpop.f32.mrb[0].mxu0
  %v3299 = vadd.f32 %v2994, %v3298
  %v3300 = vpop.f32.mrb[0].mxu0
  %3301 = vmatprep.mubr.f32.mxu0 0.0
  %v3302 = vand.u32 %v3040, 4294901760
  %v3303 = vsub.f32 %v3040, %v3302
  %v3304 = vand.u32 %v3303, 4294901760
  %v3305 = vsub.f32 %v3303, %v3304
  %v3306 = vand.u32 %v3305, 4294901760
  %3307 = vmatmul.mubr.f32.gmra.mrb[0].mxu0 %v3306
  %v3308 = vpop.f32.mrb[0].mxu0
  %v3309 = vadd.f32 %v2994, %v3308
  %v3310 = vpop.f32.mrb[0].mxu0
  %3311 = vmatprep.mubr.f32.mxu0 0.0
  %v3312 = vand.u32 %v3043, 4294901760
  %v3313 = vsub.f32 %v3043, %v3312
  %v3314 = vand.u32 %v3313, 4294901760
  %v3315 = vsub.f32 %v3313, %v3314
  %v3316 = vand.u32 %v3315, 4294901760
  %3317 = vmatmul.mubr.f32.gmra.mrb[0].mxu0 %v3316
  %v3318 = vpop.f32.mrb[0].mxu0
  %v3319 = vadd.f32 %v2994, %v3318
  %v3320 = vpop.f32.mrb[0].mxu0
  %3321 = vmatprep.mubr.f32.mxu0 0.0
  %v3322 = vand.u32 %v3046, 4294901760
  %v3323 = vsub.f32 %v3046, %v3322
  %v3324 = vand.u32 %v3323, 4294901760
  %v3325 = vsub.f32 %v3323, %v3324
  %v3326 = vand.u32 %v3325, 4294901760
  %3327 = vmatmul.mubr.f32.gmra.mrb[0].mxu0 %v3326
  %v3328 = vpop.f32.mrb[0].mxu0
  %v3329 = vadd.f32 %v2994, %v3328
  %v3330 = vpop.f32.mrb[0].mxu0
  %3331 = vmatprep.mubr.f32.mxu0 0.0
  %v3332 = vand.u32 %v3049, 4294901760
  %v3333 = vsub.f32 %v3049, %v3332
  %v3334 = vand.u32 %v3333, 4294901760
  %v3335 = vsub.f32 %v3333, %v3334
  %v3336 = vand.u32 %v3335, 4294901760
  %3337 = vmatmul.mubr.f32.gmra.mrb[0].mxu0 %v3336
  %v3338 = vpop.f32.mrb[0].mxu0
  %v3339 = vadd.f32 %v2994, %v3338
  %v3340 = vpop.f32.mrb[0].mxu0
  %3341 = vmatprep.mubr.f32.mxu0 0.0
  %v3342 = vand.u32 %v3052, 4294901760
  %v3343 = vsub.f32 %v3052, %v3342
  %v3344 = vand.u32 %v3343, 4294901760
  %v3345 = vsub.f32 %v3343, %v3344
  %v3346 = vand.u32 %v3345, 4294901760
  %3347 = vmatmul.mubr.f32.gmra.mrb[0].mxu0 %v3346
  %v3348 = vpop.f32.mrb[0].mxu0
  %v3349 = vadd.f32 %v2994, %v3348
  %v3350 = vpop.f32.mrb[0].mxu0
  %3351 = vmatprep.mubr.f32.mxu0 0.0
  %v3352 = vand.u32 %v3055, 4294901760
  %v3353 = vsub.f32 %v3055, %v3352
  %v3354 = vand.u32 %v3353, 4294901760
  %v3355 = vsub.f32 %v3353, %v3354
  %v3356 = vand.u32 %v3355, 4294901760
  %3357 = vmatmul.mubr.f32.gmra.mrb[0].mxu0 %v3356
  %v3358 = vpop.f32.mrb[0].mxu0
  %v3359 = vadd.f32 %v2994, %v3358
  %v3360 = vpop.f32.mrb[0].mxu0
  %3361 = vmatprep.mubr.f32.mxu0 0.0
  %v3362 = vand.u32 %v3058, 4294901760
  %v3363 = vsub.f32 %v3058, %v3362
  %v3364 = vand.u32 %v3363, 4294901760
  %v3365 = vsub.f32 %v3363, %v3364
  %v3366 = vand.u32 %v3365, 4294901760
  %3367 = vmatmul.mubr.f32.gmra.mrb[0].mxu0 %v3366
  %v3368 = vpop.f32.mrb[0].mxu0
  %v3369 = vadd.f32 %v2994, %v3368
  %v3370 = vpop.f32.mrb[0].mxu0
  %3371 = vmatprep.mubr.f32.mxu0 0.0
  %v3372 = vand.u32 %v3061, 4294901760
  %v3373 = vsub.f32 %v3061, %v3372
  %v3374 = vand.u32 %v3373, 4294901760
  %v3375 = vsub.f32 %v3373, %v3374
  %v3376 = vand.u32 %v3375, 4294901760
  %3377 = vmatmul.mubr.f32.gmra.mrb[0].mxu0 %v3376
  %v3378 = vpop.f32.mrb[0].mxu0
  %v3379 = vadd.f32 %v2994, %v3378
  %v3380 = vpop.f32.mrb[0].mxu0
  %3381 = vmatprep.mubr.f32.mxu0 0.0
  %v3382 = vand.u32 %v3064, 4294901760
  %v3383 = vsub.f32 %v3064, %v3382
  %v3384 = vand.u32 %v3383, 4294901760
  %v3385 = vsub.f32 %v3383, %v3384
  %v3386 = vand.u32 %v3385, 4294901760
  %3387 = vmatmul.mubr.f32.gmra.mrb[0].mxu0 %v3386
  %v3388 = vpop.f32.mrb[0].mxu0
  %v3389 = vadd.f32 %v2994, %v3388
  %v3390 = vpop.f32.mrb[0].mxu0
  %3391 = vmatprep.mubr.f32.mxu0 0.0
  %v3392 = vand.u32 %v3067, 4294901760
  %v3393 = vsub.f32 %v3067, %v3392
  %v3394 = vand.u32 %v3393, 4294901760
  %v3395 = vsub.f32 %v3393, %v3394
  %v3396 = vand.u32 %v3395, 4294901760
  %3397 = vmatmul.mubr.f32.gmra.mrb[0].mxu0 %v3396
  %v3398 = vpop.f32.mrb[0].mxu0
  %v3399 = vadd.f32 %v2994, %v3398
  %v3400 = vpop.f32.mrb[0].mxu0
  %3401 = vmatprep.mubr.f32.mxu0 0.0
  %v3402 = vand.u32 %v3070, 4294901760
  %v3403 = vsub.f32 %v3070, %v3402
  %v3404 = vand.u32 %v3403, 4294901760
  %v3405 = vsub.f32 %v3403, %v3404
  %v3406 = vand.u32 %v3405, 4294901760
  %3407 = vmatmul.mubr.f32.gmra.mrb[0].mxu0 %v3406
  %v3408 = vpop.f32.mrb[0].mxu0
  %v3409 = vadd.f32 %v2994, %v3408
  %v3410 = vpop.f32.mrb[0].mxu0
  %3411 = vmatprep.mubr.f32.mxu0 0.0
  %v3412 = vand.u32 %v3073, 4294901760
  %v3413 = vsub.f32 %v3073, %v3412
  %v3414 = vand.u32 %v3413, 4294901760
  %v3415 = vsub.f32 %v3413, %v3414
  %v3416 = vand.u32 %v3415, 4294901760
  %3417 = vmatmul.mubr.f32.gmra.mrb[0].mxu0 %v3416
  %v3418 = vpop.f32.mrb[0].mxu0
  %v3419 = vadd.f32 %v2994, %v3418
  %v3420 = vpop.f32.mrb[0].mxu0
  %3421 = vmatprep.mubr.f32.mxu0 0.0
  %v3422 = vand.u32 %v3076, 4294901760
  %v3423 = vsub.f32 %v3076, %v3422
  %v3424 = vand.u32 %v3423, 4294901760
  %v3425 = vsub.f32 %v3423, %v3424
  %v3426 = vand.u32 %v3425, 4294901760
  %3427 = vmatmul.mubr.f32.gmra.mrb[0].mxu0 %v3426
  %v3428 = vpop.f32.mrb[0].mxu0
  %v3429 = vadd.f32 %v2994, %v3428
  %v3430 = vpop.f32.mrb[0].mxu0
  %3431 = vmatprep.mubr.f32.mxu0 0.0
  %v3432 = vand.u32 %v3079, 4294901760
  %v3433 = vsub.f32 %v3079, %v3432
  %v3434 = vand.u32 %v3433, 4294901760
  %v3435 = vsub.f32 %v3433, %v3434
  %v3436 = vand.u32 %v3435, 4294901760
  %3437 = vmatmul.mubr.f32.gmra.mrb[0].mxu0 %v3436
  %v3438 = vpop.f32.mrb[0].mxu0
  %v3439 = vadd.f32 %v2994, %v3438
  %v3440 = vpop.f32.mrb[0].mxu0
  %3441 = vmatprep.mubr.f32.mxu0 0.0
  %v3442 = vand.u32 %v3082, 4294901760
  %v3443 = vsub.f32 %v3082, %v3442
  %v3444 = vand.u32 %v3443, 4294901760
  %v3445 = vsub.f32 %v3443, %v3444
  %v3446 = vand.u32 %v3445, 4294901760
  %3447 = vmatmul.mubr.f32.gmra.mrb[0].mxu0 %v3446
  %v3448 = vpop.f32.mrb[0].mxu0
  %v3449 = vadd.f32 %v2994, %v3448
  %v3450 = vpop.f32.mrb[0].mxu0
  %3451 = vmatprep.mubr.f32.mxu0 0.0
  %v3452 = vand.u32 %v3085, 4294901760
  %v3453 = vsub.f32 %v3085, %v3452
  %v3454 = vand.u32 %v3453, 4294901760
  %v3455 = vsub.f32 %v3453, %v3454
  %v3456 = vand.u32 %v3455, 4294901760
  %3457 = vmatmul.mubr.f32.gmra.mrb[0].mxu0 %v3456
  %v3458 = vpop.f32.mrb[0].mxu0
  %v3459 = vadd.f32 %v2994, %v3458
  %v3460 = vpop.f32.mrb[0].mxu0
  %3461 = vmatprep.mubr.f32.mxu0 0.0
  %v3462 = vand.u32 %v3088, 4294901760
  %v3463 = vsub.f32 %v3088, %v3462
  %v3464 = vand.u32 %v3463, 4294901760
  %v3465 = vsub.f32 %v3463, %v3464
  %v3466 = vand.u32 %v3465, 4294901760
  %3467 = vmatmul.mubr.f32.gmra.mrb[0].mxu0 %v3466
  %v3468 = vpop.f32.mrb[0].mxu0
  %v3469 = vadd.f32 %v2994, %v3468
  %v3470 = vpop.f32.mrb[0].mxu0
  %3471 = vmatprep.mubr.f32.mxu0 0.0
  %v3472 = vand.u32 %v3091, 4294901760
  %v3473 = vsub.f32 %v3091, %v3472
  %v3474 = vand.u32 %v3473, 4294901760
  %v3475 = vsub.f32 %v3473, %v3474
  %v3476 = vand.u32 %v3475, 4294901760
  %3477 = vmatmul.mubr.f32.gmra.mrb[0].mxu0 %v3476
  %v3478 = vpop.f32.mrb[0].mxu0
  %v3479 = vadd.f32 %v2994, %v3478
  %v3480 = vpop.f32.mrb[0].mxu0
  %3481 = vdwg.mxu0
  %3482 = vmatprep.subr.mxu0 0.0
  %v3483 = vand.u32 %v2985, 4294901760
  %v3484 = vsub.f32 %v2985, %v3483
  %v3485 = vand.u32 %v3484, 4294901760
  %v3486 = vsub.f32 %v3484, %v3485
  %v3487 = vand.u32 %v3486, 4294901760
  %3488 = vmatpush1.msra.mxu0 %v3487
  %3489 = vmatprep.subr.mxu0 0.0
  %v3490 = vand.u32 %v2986, 4294901760
  %v3491 = vsub.f32 %v2986, %v3490
  %v3492 = vand.u32 %v3491, 4294901760
  %v3493 = vsub.f32 %v3491, %v3492
  %v3494 = vand.u32 %v3493, 4294901760
  %3495 = vmatpush1.msra.mxu0 %v3494
  %3496 = vmatprep.subr.mxu0 0.0
  %v3497 = vand.u32 %v2987, 4294901760
  %v3498 = vsub.f32 %v2987, %v3497
  %v3499 = vand.u32 %v3498, 4294901760
  %v3500 = vsub.f32 %v3498, %v3499
  %v3501 = vand.u32 %v3500, 4294901760
  %3502 = vmatpush1.msra.mxu0 %v3501
  %3503 = vmatprep.subr.mxu0 0.0
  %v3504 = vand.u32 %v2988, 4294901760
  %v3505 = vsub.f32 %v2988, %v3504
  %v3506 = vand.u32 %v3505, 4294901760
  %v3507 = vsub.f32 %v3505, %v3506
  %v3508 = vand.u32 %v3507, 4294901760
  %3509 = vmatpush1.msra.mxu0 %v3508
  %3510 = vmatprep.subr.mxu0 0.0
  %3511 = vmatpush1.msra.mxu0 0.0
  %3512 = vmatprep.subr.mxu0 0.0
  %3513 = vmatpush1.msra.mxu0 0.0
  %3514 = vmatprep.subr.mxu0 0.0
  %3515 = vmatpush1.msra.mxu0 0.0
  %3516 = vmatprep.subr.mxu0 0.0
  %3517 = vmatpush1.msra.mxu0 0.0
  %3518 = vmatprep.subr.mxu0 0.0
  %3519 = vmatpush1.msra.mxu0 0.0
  %3520 = vmatprep.subr.mxu0 0.0
  %3521 = vmatpush1.msra.mxu0 0.0
  %3522 = vmatprep.subr.mxu0 0.0
  %3523 = vmatpush1.msra.mxu0 0.0
  %3524 = vmatprep.subr.mxu0 0.0
  %3525 = vmatpush1.msra.mxu0 0.0
  %3526 = vmatprep.subr.mxu0 0.0
  %3527 = vmatpush1.msra.mxu0 0.0
  %3528 = vmatprep.subr.mxu0 0.0
  %3529 = vmatpush1.msra.mxu0 0.0
  %3530 = vmatprep.subr.mxu0 0.0
  %3531 = vmatpush1.msra.mxu0 0.0
  %3532 = vmatprep.subr.mxu0 0.0
  %3533 = vmatpush1.msra.mxu0 0.0
  %3534 = vmatprep.subr.mxu0 0.0
  %3535 = vmatpush1.msra.mxu0 0.0
  %3536 = vmatprep.subr.mxu0 0.0
  %3537 = vmatpush1.msra.mxu0 0.0
  %3538 = vmatprep.subr.mxu0 0.0
  %3539 = vmatpush1.msra.mxu0 0.0
  %3540 = vmatprep.subr.mxu0 0.0
  %3541 = vmatpush1.msra.mxu0 0.0
  %3542 = vmatprep.subr.mxu0 0.0
  %3543 = vmatpush1.msra.mxu0 0.0
  %3544 = vmatprep.subr.mxu0 0.0
  %3545 = vmatpush1.msra.mxu0 0.0
  %3546 = vmatprep.subr.mxu0 0.0
  %3547 = vmatpush1.msra.mxu0 0.0
  %3548 = vmatprep.subr.mxu0 0.0
  %3549 = vmatpush1.msra.mxu0 0.0
  %3550 = vmatprep.subr.mxu0 0.0
  %3551 = vmatpush1.msra.mxu0 0.0
  %3552 = vmatprep.subr.mxu0 0.0
  %3553 = vmatpush1.msra.mxu0 0.0
  %3554 = vmatprep.subr.mxu0 0.0
  %3555 = vmatpush1.msra.mxu0 0.0
  %3556 = vmatprep.subr.mxu0 0.0
  %3557 = vmatpush1.msra.mxu0 0.0
  %3558 = vmatprep.subr.mxu0 0.0
  %3559 = vmatpush1.msra.mxu0 0.0
  %3560 = vmatprep.subr.mxu0 0.0
  %3561 = vmatpush1.msra.mxu0 0.0
  %3562 = vmatprep.subr.mxu0 0.0
  %3563 = vmatpush1.msra.mxu0 0.0
  %3564 = vmatprep.subr.mxu0 0.0
  %3565 = vmatpush1.msra.mxu0 0.0
  %3566 = vmatprep.mubr.f32.mxu0 0.0
  %v3567 = vand.u32 %v2998, 4294901760
  %3568 = vmatmul.mubr.f32.gmra.mrb[0].mxu0 %v3567
  %v3569 = vpop.f32.mrb[0].mxu0
  %v3570 = vadd.f32 %v3169, %v3569
  %v3571 = vpop.f32.mrb[0].mxu0
  %3572 = vmatprep.mubr.f32.mxu0 0.0
  %v3573 = vand.u32 %v3001, 4294901760
  %3574 = vmatmul.mubr.f32.gmra.mrb[0].mxu0 %v3573
  %v3575 = vpop.f32.mrb[0].mxu0
  %v3576 = vadd.f32 %v3179, %v3575
  %v3577 = vpop.f32.mrb[0].mxu0
  %3578 = vmatprep.mubr.f32.mxu0 0.0
  %v3579 = vand.u32 %v3004, 4294901760
  %3580 = vmatmul.mubr.f32.gmra.mrb[0].mxu0 %v3579
  %v3581 = vpop.f32.mrb[0].mxu0
  %v3582 = vadd.f32 %v3189, %v3581
  %v3583 = vpop.f32.mrb[0].mxu0
  %3584 = vmatprep.mubr.f32.mxu0 0.0
  %v3585 = vand.u32 %v3007, 4294901760
  %3586 = vmatmul.mubr.f32.gmra.mrb[0].mxu0 %v3585
  %v3587 = vpop.f32.mrb[0].mxu0
  %v3588 = vadd.f32 %v3199, %v3587
  %v3589 = vpop.f32.mrb[0].mxu0
  %3590 = vmatprep.mubr.f32.mxu0 0.0
  %v3591 = vand.u32 %v3010, 4294901760
  %3592 = vmatmul.mubr.f32.gmra.mrb[0].mxu0 %v3591
  %v3593 = vpop.f32.mrb[0].mxu0
  %v3594 = vadd.f32 %v3209, %v3593
  %v3595 = vpop.f32.mrb[0].mxu0
  %3596 = vmatprep.mubr.f32.mxu0 0.0
  %v3597 = vand.u32 %v3013, 4294901760
  %3598 = vmatmul.mubr.f32.gmra.mrb[0].mxu0 %v3597
  %v3599 = vpop.f32.mrb[0].mxu0
  %v3600 = vadd.f32 %v3219, %v3599
  %v3601 = vpop.f32.mrb[0].mxu0
  %3602 = vmatprep.mubr.f32.mxu0 0.0
  %v3603 = vand.u32 %v3016, 4294901760
  %3604 = vmatmul.mubr.f32.gmra.mrb[0].mxu0 %v3603
  %v3605 = vpop.f32.mrb[0].mxu0
  %v3606 = vadd.f32 %v3229, %v3605
  %v3607 = vpop.f32.mrb[0].mxu0
  %3608 = vmatprep.mubr.f32.mxu0 0.0
  %v3609 = vand.u32 %v3019, 4294901760
  %3610 = vmatmul.mubr.f32.gmra.mrb[0].mxu0 %v3609
  %v3611 = vpop.f32.mrb[0].mxu0
  %v3612 = vadd.f32 %v3239, %v3611
  %v3613 = vpop.f32.mrb[0].mxu0
  %3614 = vmatprep.mubr.f32.mxu0 0.0
  %v3615 = vand.u32 %v3022, 4294901760
  %3616 = vmatmul.mubr.f32.gmra.mrb[0].mxu0 %v3615
  %v3617 = vpop.f32.mrb[0].mxu0
  %v3618 = vadd.f32 %v3249, %v3617
  %v3619 = vpop.f32.mrb[0].mxu0
  %3620 = vmatprep.mubr.f32.mxu0 0.0
  %v3621 = vand.u32 %v3025, 4294901760
  %3622 = vmatmul.mubr.f32.gmra.mrb[0].mxu0 %v3621
  %v3623 = vpop.f32.mrb[0].mxu0
  %v3624 = vadd.f32 %v3259, %v3623
  %v3625 = vpop.f32.mrb[0].mxu0
  %3626 = vmatprep.mubr.f32.mxu0 0.0
  %v3627 = vand.u32 %v3028, 4294901760
  %3628 = vmatmul.mubr.f32.gmra.mrb[0].mxu0 %v3627
  %v3629 = vpop.f32.mrb[0].mxu0
  %v3630 = vadd.f32 %v3269, %v3629
  %v3631 = vpop.f32.mrb[0].mxu0
  %3632 = vmatprep.mubr.f32.mxu0 0.0
  %v3633 = vand.u32 %v3031, 4294901760
  %3634 = vmatmul.mubr.f32.gmra.mrb[0].mxu0 %v3633
  %v3635 = vpop.f32.mrb[0].mxu0
  %v3636 = vadd.f32 %v3279, %v3635
  %v3637 = vpop.f32.mrb[0].mxu0
  %3638 = vmatprep.mubr.f32.mxu0 0.0
  %v3639 = vand.u32 %v3034, 4294901760
  %3640 = vmatmul.mubr.f32.gmra.mrb[0].mxu0 %v3639
  %v3641 = vpop.f32.mrb[0].mxu0
  %v3642 = vadd.f32 %v3289, %v3641
  %v3643 = vpop.f32.mrb[0].mxu0
  %3644 = vmatprep.mubr.f32.mxu0 0.0
  %v3645 = vand.u32 %v3037, 4294901760
  %3646 = vmatmul.mubr.f32.gmra.mrb[0].mxu0 %v3645
  %v3647 = vpop.f32.mrb[0].mxu0
  %v3648 = vadd.f32 %v3299, %v3647
  %v3649 = vpop.f32.mrb[0].mxu0
  %3650 = vmatprep.mubr.f32.mxu0 0.0
  %v3651 = vand.u32 %v3040, 4294901760
  %3652 = vmatmul.mubr.f32.gmra.mrb[0].mxu0 %v3651
  %v3653 = vpop.f32.mrb[0].mxu0
  %v3654 = vadd.f32 %v3309, %v3653
  %v3655 = vpop.f32.mrb[0].mxu0
  %3656 = vmatprep.mubr.f32.mxu0 0.0
  %v3657 = vand.u32 %v3043, 4294901760
  %3658 = vmatmul.mubr.f32.gmra.mrb[0].mxu0 %v3657
  %v3659 = vpop.f32.mrb[0].mxu0
  %v3660 = vadd.f32 %v3319, %v3659
  %v3661 = vpop.f32.mrb[0].mxu0
  %3662 = vmatprep.mubr.f32.mxu0 0.0
  %v3663 = vand.u32 %v3046, 4294901760
  %3664 = vmatmul.mubr.f32.gmra.mrb[0].mxu0 %v3663
  %v3665 = vpop.f32.mrb[0].mxu0
  %v3666 = vadd.f32 %v3329, %v3665
  %v3667 = vpop.f32.mrb[0].mxu0
  %3668 = vmatprep.mubr.f32.mxu0 0.0
  %v3669 = vand.u32 %v3049, 4294901760
  %3670 = vmatmul.mubr.f32.gmra.mrb[0].mxu0 %v3669
  %v3671 = vpop.f32.mrb[0].mxu0
  %v3672 = vadd.f32 %v3339, %v3671
  %v3673 = vpop.f32.mrb[0].mxu0
  %3674 = vmatprep.mubr.f32.mxu0 0.0
  %v3675 = vand.u32 %v3052, 4294901760
  %3676 = vmatmul.mubr.f32.gmra.mrb[0].mxu0 %v3675
  %v3677 = vpop.f32.mrb[0].mxu0
  %v3678 = vadd.f32 %v3349, %v3677
  %v3679 = vpop.f32.mrb[0].mxu0
  %3680 = vmatprep.mubr.f32.mxu0 0.0
  %v3681 = vand.u32 %v3055, 4294901760
  %3682 = vmatmul.mubr.f32.gmra.mrb[0].mxu0 %v3681
  %v3683 = vpop.f32.mrb[0].mxu0
  %v3684 = vadd.f32 %v3359, %v3683
  %v3685 = vpop.f32.mrb[0].mxu0
  %3686 = vmatprep.mubr.f32.mxu0 0.0
  %v3687 = vand.u32 %v3058, 4294901760
  %3688 = vmatmul.mubr.f32.gmra.mrb[0].mxu0 %v3687
  %v3689 = vpop.f32.mrb[0].mxu0
  %v3690 = vadd.f32 %v3369, %v3689
  %v3691 = vpop.f32.mrb[0].mxu0
  %3692 = vmatprep.mubr.f32.mxu0 0.0
  %v3693 = vand.u32 %v3061, 4294901760
  %3694 = vmatmul.mubr.f32.gmra.mrb[0].mxu0 %v3693
  %v3695 = vpop.f32.mrb[0].mxu0
  %v3696 = vadd.f32 %v3379, %v3695
  %v3697 = vpop.f32.mrb[0].mxu0
  %3698 = vmatprep.mubr.f32.mxu0 0.0
  %v3699 = vand.u32 %v3064, 4294901760
  %3700 = vmatmul.mubr.f32.gmra.mrb[0].mxu0 %v3699
  %v3701 = vpop.f32.mrb[0].mxu0
  %v3702 = vadd.f32 %v3389, %v3701
  %v3703 = vpop.f32.mrb[0].mxu0
  %3704 = vmatprep.mubr.f32.mxu0 0.0
  %v3705 = vand.u32 %v3067, 4294901760
  %3706 = vmatmul.mubr.f32.gmra.mrb[0].mxu0 %v3705
  %v3707 = vpop.f32.mrb[0].mxu0
  %v3708 = vadd.f32 %v3399, %v3707
  %v3709 = vpop.f32.mrb[0].mxu0
  %3710 = vmatprep.mubr.f32.mxu0 0.0
  %v3711 = vand.u32 %v3070, 4294901760
  %3712 = vmatmul.mubr.f32.gmra.mrb[0].mxu0 %v3711
  %v3713 = vpop.f32.mrb[0].mxu0
  %v3714 = vadd.f32 %v3409, %v3713
  %v3715 = vpop.f32.mrb[0].mxu0
  %3716 = vmatprep.mubr.f32.mxu0 0.0
  %v3717 = vand.u32 %v3073, 4294901760
  %3718 = vmatmul.mubr.f32.gmra.mrb[0].mxu0 %v3717
  %v3719 = vpop.f32.mrb[0].mxu0
  %v3720 = vadd.f32 %v3419, %v3719
  %v3721 = vpop.f32.mrb[0].mxu0
  %3722 = vmatprep.mubr.f32.mxu0 0.0
  %v3723 = vand.u32 %v3076, 4294901760
  %3724 = vmatmul.mubr.f32.gmra.mrb[0].mxu0 %v3723
  %v3725 = vpop.f32.mrb[0].mxu0
  %v3726 = vadd.f32 %v3429, %v3725
  %v3727 = vpop.f32.mrb[0].mxu0
  %3728 = vmatprep.mubr.f32.mxu0 0.0
  %v3729 = vand.u32 %v3079, 4294901760
  %3730 = vmatmul.mubr.f32.gmra.mrb[0].mxu0 %v3729
  %v3731 = vpop.f32.mrb[0].mxu0
  %v3732 = vadd.f32 %v3439, %v3731
  %v3733 = vpop.f32.mrb[0].mxu0
  %3734 = vmatprep.mubr.f32.mxu0 0.0
  %v3735 = vand.u32 %v3082, 4294901760
  %3736 = vmatmul.mubr.f32.gmra.mrb[0].mxu0 %v3735
  %v3737 = vpop.f32.mrb[0].mxu0
  %v3738 = vadd.f32 %v3449, %v3737
  %v3739 = vpop.f32.mrb[0].mxu0
  %3740 = vmatprep.mubr.f32.mxu0 0.0
  %v3741 = vand.u32 %v3085, 4294901760
  %3742 = vmatmul.mubr.f32.gmra.mrb[0].mxu0 %v3741
  %v3743 = vpop.f32.mrb[0].mxu0
  %v3744 = vadd.f32 %v3459, %v3743
  %v3745 = vpop.f32.mrb[0].mxu0
  %3746 = vmatprep.mubr.f32.mxu0 0.0
  %v3747 = vand.u32 %v3088, 4294901760
  %3748 = vmatmul.mubr.f32.gmra.mrb[0].mxu0 %v3747
  %v3749 = vpop.f32.mrb[0].mxu0
  %v3750 = vadd.f32 %v3469, %v3749
  %v3751 = vpop.f32.mrb[0].mxu0
  %3752 = vmatprep.mubr.f32.mxu0 0.0
  %v3753 = vand.u32 %v3091, 4294901760
  %3754 = vmatmul.mubr.f32.gmra.mrb[0].mxu0 %v3753
  %v3755 = vpop.f32.mrb[0].mxu0
  %v3756 = vadd.f32 %v3479, %v3755
  %v3757 = vpop.f32.mrb[0].mxu0
  %3758 = vdwg.mxu0
  %3759 = vmatprep.subr.mxu0 0.0
  %v3760 = vand.u32 %v2985, 4294901760
  %v3761 = vsub.f32 %v2985, %v3760
  %3762 = vmatpush1.msra.mxu0 %v3761
  %3763 = vmatprep.subr.mxu0 0.0
  %v3764 = vand.u32 %v2986, 4294901760
  %v3765 = vsub.f32 %v2986, %v3764
  %3766 = vmatpush1.msra.mxu0 %v3765
  %3767 = vmatprep.subr.mxu0 0.0
  %v3768 = vand.u32 %v2987, 4294901760
  %v3769 = vsub.f32 %v2987, %v3768
  %3770 = vmatpush1.msra.mxu0 %v3769
  %3771 = vmatprep.subr.mxu0 0.0
  %v3772 = vand.u32 %v2988, 4294901760
  %v3773 = vsub.f32 %v2988, %v3772
  %3774 = vmatpush1.msra.mxu0 %v3773
  %3775 = vmatprep.subr.mxu0 0.0
  %3776 = vmatpush1.msra.mxu0 0.0
  %3777 = vmatprep.subr.mxu0 0.0
  %3778 = vmatpush1.msra.mxu0 0.0
  %3779 = vmatprep.subr.mxu0 0.0
  %3780 = vmatpush1.msra.mxu0 0.0
  %3781 = vmatprep.subr.mxu0 0.0
  %3782 = vmatpush1.msra.mxu0 0.0
  %3783 = vmatprep.subr.mxu0 0.0
  %3784 = vmatpush1.msra.mxu0 0.0
  %3785 = vmatprep.subr.mxu0 0.0
  %3786 = vmatpush1.msra.mxu0 0.0
  %3787 = vmatprep.subr.mxu0 0.0
  %3788 = vmatpush1.msra.mxu0 0.0
  %3789 = vmatprep.subr.mxu0 0.0
  %3790 = vmatpush1.msra.mxu0 0.0
  %3791 = vmatprep.subr.mxu0 0.0
  %3792 = vmatpush1.msra.mxu0 0.0
  %3793 = vmatprep.subr.mxu0 0.0
  %3794 = vmatpush1.msra.mxu0 0.0
  %3795 = vmatprep.subr.mxu0 0.0
  %3796 = vmatpush1.msra.mxu0 0.0
  %3797 = vmatprep.subr.mxu0 0.0
  %3798 = vmatpush1.msra.mxu0 0.0
  %3799 = vmatprep.subr.mxu0 0.0
  %3800 = vmatpush1.msra.mxu0 0.0
  %3801 = vmatprep.subr.mxu0 0.0
  %3802 = vmatpush1.msra.mxu0 0.0
  %3803 = vmatprep.subr.mxu0 0.0
  %3804 = vmatpush1.msra.mxu0 0.0
  %3805 = vmatprep.subr.mxu0 0.0
  %3806 = vmatpush1.msra.mxu0 0.0
  %3807 = vmatprep.subr.mxu0 0.0
  %3808 = vmatpush1.msra.mxu0 0.0
  %3809 = vmatprep.subr.mxu0 0.0
  %3810 = vmatpush1.msra.mxu0 0.0
  %3811 = vmatprep.subr.mxu0 0.0
  %3812 = vmatpush1.msra.mxu0 0.0
  %3813 = vmatprep.subr.mxu0 0.0
  %3814 = vmatpush1.msra.mxu0 0.0
  %3815 = vmatprep.subr.mxu0 0.0
  %3816 = vmatpush1.msra.mxu0 0.0
  %3817 = vmatprep.subr.mxu0 0.0
  %3818 = vmatpush1.msra.mxu0 0.0
  %3819 = vmatprep.subr.mxu0 0.0
  %3820 = vmatpush1.msra.mxu0 0.0
  %3821 = vmatprep.subr.mxu0 0.0
  %3822 = vmatpush1.msra.mxu0 0.0
  %3823 = vmatprep.subr.mxu0 0.0
  %3824 = vmatpush1.msra.mxu0 0.0
  %3825 = vmatprep.subr.mxu0 0.0
  %3826 = vmatpush1.msra.mxu0 0.0
  %3827 = vmatprep.subr.mxu0 0.0
  %3828 = vmatpush1.msra.mxu0 0.0
  %3829 = vmatprep.subr.mxu0 0.0
  %3830 = vmatpush1.msra.mxu0 0.0
  %3831 = vmatprep.mubr.f32.mxu0 0.0
  %v3832 = vand.u32 %v2998, 4294901760
  %v3833 = vsub.f32 %v2998, %v3832
  %3834 = vmatmul.mubr.f32.gmra.mrb[0].mxu0 %v3833
  %v3835 = vpop.f32.mrb[0].mxu0
  %v3836 = vadd.f32 %v3570, %v3835
  %v3837 = vpop.f32.mrb[0].mxu0
  %3838 = vmatprep.mubr.f32.mxu0 0.0
  %v3839 = vand.u32 %v3001, 4294901760
  %v3840 = vsub.f32 %v3001, %v3839
  %3841 = vmatmul.mubr.f32.gmra.mrb[0].mxu0 %v3840
  %v3842 = vpop.f32.mrb[0].mxu0
  %v3843 = vadd.f32 %v3576, %v3842
  %v3844 = vpop.f32.mrb[0].mxu0
  %3845 = vmatprep.mubr.f32.mxu0 0.0
  %v3846 = vand.u32 %v3004, 4294901760
  %v3847 = vsub.f32 %v3004, %v3846
  %3848 = vmatmul.mubr.f32.gmra.mrb[0].mxu0 %v3847
  %v3849 = vpop.f32.mrb[0].mxu0
  %v3850 = vadd.f32 %v3582, %v3849
  %v3851 = vpop.f32.mrb[0].mxu0
  %3852 = vmatprep.mubr.f32.mxu0 0.0
  %v3853 = vand.u32 %v3007, 4294901760
  %v3854 = vsub.f32 %v3007, %v3853
  %3855 = vmatmul.mubr.f32.gmra.mrb[0].mxu0 %v3854
  %v3856 = vpop.f32.mrb[0].mxu0
  %v3857 = vadd.f32 %v3588, %v3856
  %v3858 = vpop.f32.mrb[0].mxu0
  %3859 = vmatprep.mubr.f32.mxu0 0.0
  %v3860 = vand.u32 %v3010, 4294901760
  %v3861 = vsub.f32 %v3010, %v3860
  %3862 = vmatmul.mubr.f32.gmra.mrb[0].mxu0 %v3861
  %v3863 = vpop.f32.mrb[0].mxu0
  %v3864 = vadd.f32 %v3594, %v3863
  %v3865 = vpop.f32.mrb[0].mxu0
  %3866 = vmatprep.mubr.f32.mxu0 0.0
  %v3867 = vand.u32 %v3013, 4294901760
  %v3868 = vsub.f32 %v3013, %v3867
  %3869 = vmatmul.mubr.f32.gmra.mrb[0].mxu0 %v3868
  %v3870 = vpop.f32.mrb[0].mxu0
  %v3871 = vadd.f32 %v3600, %v3870
  %v3872 = vpop.f32.mrb[0].mxu0
  %3873 = vmatprep.mubr.f32.mxu0 0.0
  %v3874 = vand.u32 %v3016, 4294901760
  %v3875 = vsub.f32 %v3016, %v3874
  %3876 = vmatmul.mubr.f32.gmra.mrb[0].mxu0 %v3875
  %v3877 = vpop.f32.mrb[0].mxu0
  %v3878 = vadd.f32 %v3606, %v3877
  %v3879 = vpop.f32.mrb[0].mxu0
  %3880 = vmatprep.mubr.f32.mxu0 0.0
  %v3881 = vand.u32 %v3019, 4294901760
  %v3882 = vsub.f32 %v3019, %v3881
  %3883 = vmatmul.mubr.f32.gmra.mrb[0].mxu0 %v3882
  %v3884 = vpop.f32.mrb[0].mxu0
  %v3885 = vadd.f32 %v3612, %v3884
  %v3886 = vpop.f32.mrb[0].mxu0
  %3887 = vmatprep.mubr.f32.mxu0 0.0
  %v3888 = vand.u32 %v3022, 4294901760
  %v3889 = vsub.f32 %v3022, %v3888
  %3890 = vmatmul.mubr.f32.gmra.mrb[0].mxu0 %v3889
  %v3891 = vpop.f32.mrb[0].mxu0
  %v3892 = vadd.f32 %v3618, %v3891
  %v3893 = vpop.f32.mrb[0].mxu0
  %3894 = vmatprep.mubr.f32.mxu0 0.0
  %v3895 = vand.u32 %v3025, 4294901760
  %v3896 = vsub.f32 %v3025, %v3895
  %3897 = vmatmul.mubr.f32.gmra.mrb[0].mxu0 %v3896
  %v3898 = vpop.f32.mrb[0].mxu0
  %v3899 = vadd.f32 %v3624, %v3898
  %v3900 = vpop.f32.mrb[0].mxu0
  %3901 = vmatprep.mubr.f32.mxu0 0.0
  %v3902 = vand.u32 %v3028, 4294901760
  %v3903 = vsub.f32 %v3028, %v3902
  %3904 = vmatmul.mubr.f32.gmra.mrb[0].mxu0 %v3903
  %v3905 = vpop.f32.mrb[0].mxu0
  %v3906 = vadd.f32 %v3630, %v3905
  %v3907 = vpop.f32.mrb[0].mxu0
  %3908 = vmatprep.mubr.f32.mxu0 0.0
  %v3909 = vand.u32 %v3031, 4294901760
  %v3910 = vsub.f32 %v3031, %v3909
  %3911 = vmatmul.mubr.f32.gmra.mrb[0].mxu0 %v3910
  %v3912 = vpop.f32.mrb[0].mxu0
  %v3913 = vadd.f32 %v3636, %v3912
  %v3914 = vpop.f32.mrb[0].mxu0
  %3915 = vmatprep.mubr.f32.mxu0 0.0
  %v3916 = vand.u32 %v3034, 4294901760
  %v3917 = vsub.f32 %v3034, %v3916
  %3918 = vmatmul.mubr.f32.gmra.mrb[0].mxu0 %v3917
  %v3919 = vpop.f32.mrb[0].mxu0
  %v3920 = vadd.f32 %v3642, %v3919
  %v3921 = vpop.f32.mrb[0].mxu0
  %3922 = vmatprep.mubr.f32.mxu0 0.0
  %v3923 = vand.u32 %v3037, 4294901760
  %v3924 = vsub.f32 %v3037, %v3923
  %3925 = vmatmul.mubr.f32.gmra.mrb[0].mxu0 %v3924
  %v3926 = vpop.f32.mrb[0].mxu0
  %v3927 = vadd.f32 %v3648, %v3926
  %v3928 = vpop.f32.mrb[0].mxu0
  %3929 = vmatprep.mubr.f32.mxu0 0.0
  %v3930 = vand.u32 %v3040, 4294901760
  %v3931 = vsub.f32 %v3040, %v3930
  %3932 = vmatmul.mubr.f32.gmra.mrb[0].mxu0 %v3931
  %v3933 = vpop.f32.mrb[0].mxu0
  %v3934 = vadd.f32 %v3654, %v3933
  %v3935 = vpop.f32.mrb[0].mxu0
  %3936 = vmatprep.mubr.f32.mxu0 0.0
  %v3937 = vand.u32 %v3043, 4294901760
  %v3938 = vsub.f32 %v3043, %v3937
  %3939 = vmatmul.mubr.f32.gmra.mrb[0].mxu0 %v3938
  %v3940 = vpop.f32.mrb[0].mxu0
  %v3941 = vadd.f32 %v3660, %v3940
  %v3942 = vpop.f32.mrb[0].mxu0
  %3943 = vmatprep.mubr.f32.mxu0 0.0
  %v3944 = vand.u32 %v3046, 4294901760
  %v3945 = vsub.f32 %v3046, %v3944
  %3946 = vmatmul.mubr.f32.gmra.mrb[0].mxu0 %v3945
  %v3947 = vpop.f32.mrb[0].mxu0
  %v3948 = vadd.f32 %v3666, %v3947
  %v3949 = vpop.f32.mrb[0].mxu0
  %3950 = vmatprep.mubr.f32.mxu0 0.0
  %v3951 = vand.u32 %v3049, 4294901760
  %v3952 = vsub.f32 %v3049, %v3951
  %3953 = vmatmul.mubr.f32.gmra.mrb[0].mxu0 %v3952
  %v3954 = vpop.f32.mrb[0].mxu0
  %v3955 = vadd.f32 %v3672, %v3954
  %v3956 = vpop.f32.mrb[0].mxu0
  %3957 = vmatprep.mubr.f32.mxu0 0.0
  %v3958 = vand.u32 %v3052, 4294901760
  %v3959 = vsub.f32 %v3052, %v3958
  %3960 = vmatmul.mubr.f32.gmra.mrb[0].mxu0 %v3959
  %v3961 = vpop.f32.mrb[0].mxu0
  %v3962 = vadd.f32 %v3678, %v3961
  %v3963 = vpop.f32.mrb[0].mxu0
  %3964 = vmatprep.mubr.f32.mxu0 0.0
  %v3965 = vand.u32 %v3055, 4294901760
  %v3966 = vsub.f32 %v3055, %v3965
  %3967 = vmatmul.mubr.f32.gmra.mrb[0].mxu0 %v3966
  %v3968 = vpop.f32.mrb[0].mxu0
  %v3969 = vadd.f32 %v3684, %v3968
  %v3970 = vpop.f32.mrb[0].mxu0
  %3971 = vmatprep.mubr.f32.mxu0 0.0
  %v3972 = vand.u32 %v3058, 4294901760
  %v3973 = vsub.f32 %v3058, %v3972
  %3974 = vmatmul.mubr.f32.gmra.mrb[0].mxu0 %v3973
  %v3975 = vpop.f32.mrb[0].mxu0
  %v3976 = vadd.f32 %v3690, %v3975
  %v3977 = vpop.f32.mrb[0].mxu0
  %3978 = vmatprep.mubr.f32.mxu0 0.0
  %v3979 = vand.u32 %v3061, 4294901760
  %v3980 = vsub.f32 %v3061, %v3979
  %3981 = vmatmul.mubr.f32.gmra.mrb[0].mxu0 %v3980
  %v3982 = vpop.f32.mrb[0].mxu0
  %v3983 = vadd.f32 %v3696, %v3982
  %v3984 = vpop.f32.mrb[0].mxu0
  %3985 = vmatprep.mubr.f32.mxu0 0.0
  %v3986 = vand.u32 %v3064, 4294901760
  %v3987 = vsub.f32 %v3064, %v3986
  %3988 = vmatmul.mubr.f32.gmra.mrb[0].mxu0 %v3987
  %v3989 = vpop.f32.mrb[0].mxu0
  %v3990 = vadd.f32 %v3702, %v3989
  %v3991 = vpop.f32.mrb[0].mxu0
  %3992 = vmatprep.mubr.f32.mxu0 0.0
  %v3993 = vand.u32 %v3067, 4294901760
  %v3994 = vsub.f32 %v3067, %v3993
  %3995 = vmatmul.mubr.f32.gmra.mrb[0].mxu0 %v3994
  %v3996 = vpop.f32.mrb[0].mxu0
  %v3997 = vadd.f32 %v3708, %v3996
  %v3998 = vpop.f32.mrb[0].mxu0
  %3999 = vmatprep.mubr.f32.mxu0 0.0
  %v4000 = vand.u32 %v3070, 4294901760
  %v4001 = vsub.f32 %v3070, %v4000
  %4002 = vmatmul.mubr.f32.gmra.mrb[0].mxu0 %v4001
  %v4003 = vpop.f32.mrb[0].mxu0
  %v4004 = vadd.f32 %v3714, %v4003
  %v4005 = vpop.f32.mrb[0].mxu0
  %4006 = vmatprep.mubr.f32.mxu0 0.0
  %v4007 = vand.u32 %v3073, 4294901760
  %v4008 = vsub.f32 %v3073, %v4007
  %4009 = vmatmul.mubr.f32.gmra.mrb[0].mxu0 %v4008
  %v4010 = vpop.f32.mrb[0].mxu0
  %v4011 = vadd.f32 %v3720, %v4010
  %v4012 = vpop.f32.mrb[0].mxu0
  %4013 = vmatprep.mubr.f32.mxu0 0.0
  %v4014 = vand.u32 %v3076, 4294901760
  %v4015 = vsub.f32 %v3076, %v4014
  %4016 = vmatmul.mubr.f32.gmra.mrb[0].mxu0 %v4015
  %v4017 = vpop.f32.mrb[0].mxu0
  %v4018 = vadd.f32 %v3726, %v4017
  %v4019 = vpop.f32.mrb[0].mxu0
  %4020 = vmatprep.mubr.f32.mxu0 0.0
  %v4021 = vand.u32 %v3079, 4294901760
  %v4022 = vsub.f32 %v3079, %v4021
  %4023 = vmatmul.mubr.f32.gmra.mrb[0].mxu0 %v4022
  %v4024 = vpop.f32.mrb[0].mxu0
  %v4025 = vadd.f32 %v3732, %v4024
  %v4026 = vpop.f32.mrb[0].mxu0
  %4027 = vmatprep.mubr.f32.mxu0 0.0
  %v4028 = vand.u32 %v3082, 4294901760
  %v4029 = vsub.f32 %v3082, %v4028
  %4030 = vmatmul.mubr.f32.gmra.mrb[0].mxu0 %v4029
  %v4031 = vpop.f32.mrb[0].mxu0
  %v4032 = vadd.f32 %v3738, %v4031
  %v4033 = vpop.f32.mrb[0].mxu0
  %4034 = vmatprep.mubr.f32.mxu0 0.0
  %v4035 = vand.u32 %v3085, 4294901760
  %v4036 = vsub.f32 %v3085, %v4035
  %4037 = vmatmul.mubr.f32.gmra.mrb[0].mxu0 %v4036
  %v4038 = vpop.f32.mrb[0].mxu0
  %v4039 = vadd.f32 %v3744, %v4038
  %v4040 = vpop.f32.mrb[0].mxu0
  %4041 = vmatprep.mubr.f32.mxu0 0.0
  %v4042 = vand.u32 %v3088, 4294901760
  %v4043 = vsub.f32 %v3088, %v4042
  %4044 = vmatmul.mubr.f32.gmra.mrb[0].mxu0 %v4043
  %v4045 = vpop.f32.mrb[0].mxu0
  %v4046 = vadd.f32 %v3750, %v4045
  %v4047 = vpop.f32.mrb[0].mxu0
  %4048 = vmatprep.mubr.f32.mxu0 0.0
  %v4049 = vand.u32 %v3091, 4294901760
  %v4050 = vsub.f32 %v3091, %v4049
  %4051 = vmatmul.mubr.f32.gmra.mrb[0].mxu0 %v4050
  %v4052 = vpop.f32.mrb[0].mxu0
  %v4053 = vadd.f32 %v3756, %v4052
  %v4054 = vpop.f32.mrb[0].mxu0
  %4055 = vdwg.mxu0
  %4056 = vmatprep.subr.mxu0 0.0
  %v4057 = vand.u32 %v2985, 4294901760
  %4058 = vmatpush1.msra.mxu0 %v4057
  %4059 = vmatprep.subr.mxu0 0.0
  %v4060 = vand.u32 %v2986, 4294901760
  %4061 = vmatpush1.msra.mxu0 %v4060
  %4062 = vmatprep.subr.mxu0 0.0
  %v4063 = vand.u32 %v2987, 4294901760
  %4064 = vmatpush1.msra.mxu0 %v4063
  %4065 = vmatprep.subr.mxu0 0.0
  %v4066 = vand.u32 %v2988, 4294901760
  %4067 = vmatpush1.msra.mxu0 %v4066
  %4068 = vmatprep.subr.mxu0 0.0
  %4069 = vmatpush1.msra.mxu0 0.0
  %4070 = vmatprep.subr.mxu0 0.0
  %4071 = vmatpush1.msra.mxu0 0.0
  %4072 = vmatprep.subr.mxu0 0.0
  %4073 = vmatpush1.msra.mxu0 0.0
  %4074 = vmatprep.subr.mxu0 0.0
  %4075 = vmatpush1.msra.mxu0 0.0
  %4076 = vmatprep.subr.mxu0 0.0
  %4077 = vmatpush1.msra.mxu0 0.0
  %4078 = vmatprep.subr.mxu0 0.0
  %4079 = vmatpush1.msra.mxu0 0.0
  %4080 = vmatprep.subr.mxu0 0.0
  %4081 = vmatpush1.msra.mxu0 0.0
  %4082 = vmatprep.subr.mxu0 0.0
  %4083 = vmatpush1.msra.mxu0 0.0
  %4084 = vmatprep.subr.mxu0 0.0
  %4085 = vmatpush1.msra.mxu0 0.0
  %4086 = vmatprep.subr.mxu0 0.0
  %4087 = vmatpush1.msra.mxu0 0.0
  %4088 = vmatprep.subr.mxu0 0.0
  %4089 = vmatpush1.msra.mxu0 0.0
  %4090 = vmatprep.subr.mxu0 0.0
  %4091 = vmatpush1.msra.mxu0 0.0
  %4092 = vmatprep.subr.mxu0 0.0
  %4093 = vmatpush1.msra.mxu0 0.0
  %4094 = vmatprep.subr.mxu0 0.0
  %4095 = vmatpush1.msra.mxu0 0.0
  %4096 = vmatprep.subr.mxu0 0.0
  %4097 = vmatpush1.msra.mxu0 0.0
  %4098 = vmatprep.subr.mxu0 0.0
  %4099 = vmatpush1.msra.mxu0 0.0
  %4100 = vmatprep.subr.mxu0 0.0
  %4101 = vmatpush1.msra.mxu0 0.0
  %4102 = vmatprep.subr.mxu0 0.0
  %4103 = vmatpush1.msra.mxu0 0.0
  %4104 = vmatprep.subr.mxu0 0.0
  %4105 = vmatpush1.msra.mxu0 0.0
  %4106 = vmatprep.subr.mxu0 0.0
  %4107 = vmatpush1.msra.mxu0 0.0
  %4108 = vmatprep.subr.mxu0 0.0
  %4109 = vmatpush1.msra.mxu0 0.0
  %4110 = vmatprep.subr.mxu0 0.0
  %4111 = vmatpush1.msra.mxu0 0.0
  %4112 = vmatprep.subr.mxu0 0.0
  %4113 = vmatpush1.msra.mxu0 0.0
  %4114 = vmatprep.subr.mxu0 0.0
  %4115 = vmatpush1.msra.mxu0 0.0
  %4116 = vmatprep.subr.mxu0 0.0
  %4117 = vmatpush1.msra.mxu0 0.0
  %4118 = vmatprep.subr.mxu0 0.0
  %4119 = vmatpush1.msra.mxu0 0.0
  %4120 = vmatprep.subr.mxu0 0.0
  %4121 = vmatpush1.msra.mxu0 0.0
  %4122 = vmatprep.subr.mxu0 0.0
  %4123 = vmatpush1.msra.mxu0 0.0
  %4124 = vmatprep.mubr.f32.mxu0 0.0
  %v4125 = vand.u32 %v2998, 4294901760
  %v4126 = vsub.f32 %v2998, %v4125
  %v4127 = vand.u32 %v4126, 4294901760
  %4128 = vmatmul.mubr.f32.gmra.mrb[0].mxu0 %v4127
  %v4129 = vpop.f32.mrb[0].mxu0
  %v4130 = vadd.f32 %v3836, %v4129
  %v4131 = vpop.f32.mrb[0].mxu0
  %4132 = vmatprep.mubr.f32.mxu0 0.0
  %v4133 = vand.u32 %v3001, 4294901760
  %v4134 = vsub.f32 %v3001, %v4133
  %v4135 = vand.u32 %v4134, 4294901760
  %4136 = vmatmul.mubr.f32.gmra.mrb[0].mxu0 %v4135
  %v4137 = vpop.f32.mrb[0].mxu0
  %v4138 = vadd.f32 %v3843, %v4137
  %v4139 = vpop.f32.mrb[0].mxu0
  %4140 = vmatprep.mubr.f32.mxu0 0.0
  %v4141 = vand.u32 %v3004, 4294901760
  %v4142 = vsub.f32 %v3004, %v4141
  %v4143 = vand.u32 %v4142, 4294901760
  %4144 = vmatmul.mubr.f32.gmra.mrb[0].mxu0 %v4143
  %v4145 = vpop.f32.mrb[0].mxu0
  %v4146 = vadd.f32 %v3850, %v4145
  %v4147 = vpop.f32.mrb[0].mxu0
  %4148 = vmatprep.mubr.f32.mxu0 0.0
  %v4149 = vand.u32 %v3007, 4294901760
  %v4150 = vsub.f32 %v3007, %v4149
  %v4151 = vand.u32 %v4150, 4294901760
  %4152 = vmatmul.mubr.f32.gmra.mrb[0].mxu0 %v4151
  %v4153 = vpop.f32.mrb[0].mxu0
  %v4154 = vadd.f32 %v3857, %v4153
  %v4155 = vpop.f32.mrb[0].mxu0
  %4156 = vmatprep.mubr.f32.mxu0 0.0
  %v4157 = vand.u32 %v3010, 4294901760
  %v4158 = vsub.f32 %v3010, %v4157
  %v4159 = vand.u32 %v4158, 4294901760
  %4160 = vmatmul.mubr.f32.gmra.mrb[0].mxu0 %v4159
  %v4161 = vpop.f32.mrb[0].mxu0
  %v4162 = vadd.f32 %v3864, %v4161
  %v4163 = vpop.f32.mrb[0].mxu0
  %4164 = vmatprep.mubr.f32.mxu0 0.0
  %v4165 = vand.u32 %v3013, 4294901760
  %v4166 = vsub.f32 %v3013, %v4165
  %v4167 = vand.u32 %v4166, 4294901760
  %4168 = vmatmul.mubr.f32.gmra.mrb[0].mxu0 %v4167
  %v4169 = vpop.f32.mrb[0].mxu0
  %v4170 = vadd.f32 %v3871, %v4169
  %v4171 = vpop.f32.mrb[0].mxu0
  %4172 = vmatprep.mubr.f32.mxu0 0.0
  %v4173 = vand.u32 %v3016, 4294901760
  %v4174 = vsub.f32 %v3016, %v4173
  %v4175 = vand.u32 %v4174, 4294901760
  %4176 = vmatmul.mubr.f32.gmra.mrb[0].mxu0 %v4175
  %v4177 = vpop.f32.mrb[0].mxu0
  %v4178 = vadd.f32 %v3878, %v4177
  %v4179 = vpop.f32.mrb[0].mxu0
  %4180 = vmatprep.mubr.f32.mxu0 0.0
  %v4181 = vand.u32 %v3019, 4294901760
  %v4182 = vsub.f32 %v3019, %v4181
  %v4183 = vand.u32 %v4182, 4294901760
  %4184 = vmatmul.mubr.f32.gmra.mrb[0].mxu0 %v4183
  %v4185 = vpop.f32.mrb[0].mxu0
  %v4186 = vadd.f32 %v3885, %v4185
  %v4187 = vpop.f32.mrb[0].mxu0
  %4188 = vmatprep.mubr.f32.mxu0 0.0
  %v4189 = vand.u32 %v3022, 4294901760
  %v4190 = vsub.f32 %v3022, %v4189
  %v4191 = vand.u32 %v4190, 4294901760
  %4192 = vmatmul.mubr.f32.gmra.mrb[0].mxu0 %v4191
  %v4193 = vpop.f32.mrb[0].mxu0
  %v4194 = vadd.f32 %v3892, %v4193
  %v4195 = vpop.f32.mrb[0].mxu0
  %4196 = vmatprep.mubr.f32.mxu0 0.0
  %v4197 = vand.u32 %v3025, 4294901760
  %v4198 = vsub.f32 %v3025, %v4197
  %v4199 = vand.u32 %v4198, 4294901760
  %4200 = vmatmul.mubr.f32.gmra.mrb[0].mxu0 %v4199
  %v4201 = vpop.f32.mrb[0].mxu0
  %v4202 = vadd.f32 %v3899, %v4201
  %v4203 = vpop.f32.mrb[0].mxu0
  %4204 = vmatprep.mubr.f32.mxu0 0.0
  %v4205 = vand.u32 %v3028, 4294901760
  %v4206 = vsub.f32 %v3028, %v4205
  %v4207 = vand.u32 %v4206, 4294901760
  %4208 = vmatmul.mubr.f32.gmra.mrb[0].mxu0 %v4207
  %v4209 = vpop.f32.mrb[0].mxu0
  %v4210 = vadd.f32 %v3906, %v4209
  %v4211 = vpop.f32.mrb[0].mxu0
  %4212 = vmatprep.mubr.f32.mxu0 0.0
  %v4213 = vand.u32 %v3031, 4294901760
  %v4214 = vsub.f32 %v3031, %v4213
  %v4215 = vand.u32 %v4214, 4294901760
  %4216 = vmatmul.mubr.f32.gmra.mrb[0].mxu0 %v4215
  %v4217 = vpop.f32.mrb[0].mxu0
  %v4218 = vadd.f32 %v3913, %v4217
  %v4219 = vpop.f32.mrb[0].mxu0
  %4220 = vmatprep.mubr.f32.mxu0 0.0
  %v4221 = vand.u32 %v3034, 4294901760
  %v4222 = vsub.f32 %v3034, %v4221
  %v4223 = vand.u32 %v4222, 4294901760
  %4224 = vmatmul.mubr.f32.gmra.mrb[0].mxu0 %v4223
  %v4225 = vpop.f32.mrb[0].mxu0
  %v4226 = vadd.f32 %v3920, %v4225
  %v4227 = vpop.f32.mrb[0].mxu0
  %4228 = vmatprep.mubr.f32.mxu0 0.0
  %v4229 = vand.u32 %v3037, 4294901760
  %v4230 = vsub.f32 %v3037, %v4229
  %v4231 = vand.u32 %v4230, 4294901760
  %4232 = vmatmul.mubr.f32.gmra.mrb[0].mxu0 %v4231
  %v4233 = vpop.f32.mrb[0].mxu0
  %v4234 = vadd.f32 %v3927, %v4233
  %v4235 = vpop.f32.mrb[0].mxu0
  %4236 = vmatprep.mubr.f32.mxu0 0.0
  %v4237 = vand.u32 %v3040, 4294901760
  %v4238 = vsub.f32 %v3040, %v4237
  %v4239 = vand.u32 %v4238, 4294901760
  %4240 = vmatmul.mubr.f32.gmra.mrb[0].mxu0 %v4239
  %v4241 = vpop.f32.mrb[0].mxu0
  %v4242 = vadd.f32 %v3934, %v4241
  %v4243 = vpop.f32.mrb[0].mxu0
  %4244 = vmatprep.mubr.f32.mxu0 0.0
  %v4245 = vand.u32 %v3043, 4294901760
  %v4246 = vsub.f32 %v3043, %v4245
  %v4247 = vand.u32 %v4246, 4294901760
  %4248 = vmatmul.mubr.f32.gmra.mrb[0].mxu0 %v4247
  %v4249 = vpop.f32.mrb[0].mxu0
  %v4250 = vadd.f32 %v3941, %v4249
  %v4251 = vpop.f32.mrb[0].mxu0
  %4252 = vmatprep.mubr.f32.mxu0 0.0
  %v4253 = vand.u32 %v3046, 4294901760
  %v4254 = vsub.f32 %v3046, %v4253
  %v4255 = vand.u32 %v4254, 4294901760
  %4256 = vmatmul.mubr.f32.gmra.mrb[0].mxu0 %v4255
  %v4257 = vpop.f32.mrb[0].mxu0
  %v4258 = vadd.f32 %v3948, %v4257
  %v4259 = vpop.f32.mrb[0].mxu0
  %4260 = vmatprep.mubr.f32.mxu0 0.0
  %v4261 = vand.u32 %v3049, 4294901760
  %v4262 = vsub.f32 %v3049, %v4261
  %v4263 = vand.u32 %v4262, 4294901760
  %4264 = vmatmul.mubr.f32.gmra.mrb[0].mxu0 %v4263
  %v4265 = vpop.f32.mrb[0].mxu0
  %v4266 = vadd.f32 %v3955, %v4265
  %v4267 = vpop.f32.mrb[0].mxu0
  %4268 = vmatprep.mubr.f32.mxu0 0.0
  %v4269 = vand.u32 %v3052, 4294901760
  %v4270 = vsub.f32 %v3052, %v4269
  %v4271 = vand.u32 %v4270, 4294901760
  %4272 = vmatmul.mubr.f32.gmra.mrb[0].mxu0 %v4271
  %v4273 = vpop.f32.mrb[0].mxu0
  %v4274 = vadd.f32 %v3962, %v4273
  %v4275 = vpop.f32.mrb[0].mxu0
  %4276 = vmatprep.mubr.f32.mxu0 0.0
  %v4277 = vand.u32 %v3055, 4294901760
  %v4278 = vsub.f32 %v3055, %v4277
  %v4279 = vand.u32 %v4278, 4294901760
  %4280 = vmatmul.mubr.f32.gmra.mrb[0].mxu0 %v4279
  %v4281 = vpop.f32.mrb[0].mxu0
  %v4282 = vadd.f32 %v3969, %v4281
  %v4283 = vpop.f32.mrb[0].mxu0
  %4284 = vmatprep.mubr.f32.mxu0 0.0
  %v4285 = vand.u32 %v3058, 4294901760
  %v4286 = vsub.f32 %v3058, %v4285
  %v4287 = vand.u32 %v4286, 4294901760
  %4288 = vmatmul.mubr.f32.gmra.mrb[0].mxu0 %v4287
  %v4289 = vpop.f32.mrb[0].mxu0
  %v4290 = vadd.f32 %v3976, %v4289
  %v4291 = vpop.f32.mrb[0].mxu0
  %4292 = vmatprep.mubr.f32.mxu0 0.0
  %v4293 = vand.u32 %v3061, 4294901760
  %v4294 = vsub.f32 %v3061, %v4293
  %v4295 = vand.u32 %v4294, 4294901760
  %4296 = vmatmul.mubr.f32.gmra.mrb[0].mxu0 %v4295
  %v4297 = vpop.f32.mrb[0].mxu0
  %v4298 = vadd.f32 %v3983, %v4297
  %v4299 = vpop.f32.mrb[0].mxu0
  %4300 = vmatprep.mubr.f32.mxu0 0.0
  %v4301 = vand.u32 %v3064, 4294901760
  %v4302 = vsub.f32 %v3064, %v4301
  %v4303 = vand.u32 %v4302, 4294901760
  %4304 = vmatmul.mubr.f32.gmra.mrb[0].mxu0 %v4303
  %v4305 = vpop.f32.mrb[0].mxu0
  %v4306 = vadd.f32 %v3990, %v4305
  %v4307 = vpop.f32.mrb[0].mxu0
  %4308 = vmatprep.mubr.f32.mxu0 0.0
  %v4309 = vand.u32 %v3067, 4294901760
  %v4310 = vsub.f32 %v3067, %v4309
  %v4311 = vand.u32 %v4310, 4294901760
  %4312 = vmatmul.mubr.f32.gmra.mrb[0].mxu0 %v4311
  %v4313 = vpop.f32.mrb[0].mxu0
  %v4314 = vadd.f32 %v3997, %v4313
  %v4315 = vpop.f32.mrb[0].mxu0
  %4316 = vmatprep.mubr.f32.mxu0 0.0
  %v4317 = vand.u32 %v3070, 4294901760
  %v4318 = vsub.f32 %v3070, %v4317
  %v4319 = vand.u32 %v4318, 4294901760
  %4320 = vmatmul.mubr.f32.gmra.mrb[0].mxu0 %v4319
  %v4321 = vpop.f32.mrb[0].mxu0
  %v4322 = vadd.f32 %v4004, %v4321
  %v4323 = vpop.f32.mrb[0].mxu0
  %4324 = vmatprep.mubr.f32.mxu0 0.0
  %v4325 = vand.u32 %v3073, 4294901760
  %v4326 = vsub.f32 %v3073, %v4325
  %v4327 = vand.u32 %v4326, 4294901760
  %4328 = vmatmul.mubr.f32.gmra.mrb[0].mxu0 %v4327
  %v4329 = vpop.f32.mrb[0].mxu0
  %v4330 = vadd.f32 %v4011, %v4329
  %v4331 = vpop.f32.mrb[0].mxu0
  %4332 = vmatprep.mubr.f32.mxu0 0.0
  %v4333 = vand.u32 %v3076, 4294901760
  %v4334 = vsub.f32 %v3076, %v4333
  %v4335 = vand.u32 %v4334, 4294901760
  %4336 = vmatmul.mubr.f32.gmra.mrb[0].mxu0 %v4335
  %v4337 = vpop.f32.mrb[0].mxu0
  %v4338 = vadd.f32 %v4018, %v4337
  %v4339 = vpop.f32.mrb[0].mxu0
  %4340 = vmatprep.mubr.f32.mxu0 0.0
  %v4341 = vand.u32 %v3079, 4294901760
  %v4342 = vsub.f32 %v3079, %v4341
  %v4343 = vand.u32 %v4342, 4294901760
  %4344 = vmatmul.mubr.f32.gmra.mrb[0].mxu0 %v4343
  %v4345 = vpop.f32.mrb[0].mxu0
  %v4346 = vadd.f32 %v4025, %v4345
  %v4347 = vpop.f32.mrb[0].mxu0
  %4348 = vmatprep.mubr.f32.mxu0 0.0
  %v4349 = vand.u32 %v3082, 4294901760
  %v4350 = vsub.f32 %v3082, %v4349
  %v4351 = vand.u32 %v4350, 4294901760
  %4352 = vmatmul.mubr.f32.gmra.mrb[0].mxu0 %v4351
  %v4353 = vpop.f32.mrb[0].mxu0
  %v4354 = vadd.f32 %v4032, %v4353
  %v4355 = vpop.f32.mrb[0].mxu0
  %4356 = vmatprep.mubr.f32.mxu0 0.0
  %v4357 = vand.u32 %v3085, 4294901760
  %v4358 = vsub.f32 %v3085, %v4357
  %v4359 = vand.u32 %v4358, 4294901760
  %4360 = vmatmul.mubr.f32.gmra.mrb[0].mxu0 %v4359
  %v4361 = vpop.f32.mrb[0].mxu0
  %v4362 = vadd.f32 %v4039, %v4361
  %v4363 = vpop.f32.mrb[0].mxu0
  %4364 = vmatprep.mubr.f32.mxu0 0.0
  %v4365 = vand.u32 %v3088, 4294901760
  %v4366 = vsub.f32 %v3088, %v4365
  %v4367 = vand.u32 %v4366, 4294901760
  %4368 = vmatmul.mubr.f32.gmra.mrb[0].mxu0 %v4367
  %v4369 = vpop.f32.mrb[0].mxu0
  %v4370 = vadd.f32 %v4046, %v4369
  %v4371 = vpop.f32.mrb[0].mxu0
  %4372 = vmatprep.mubr.f32.mxu0 0.0
  %v4373 = vand.u32 %v3091, 4294901760
  %v4374 = vsub.f32 %v3091, %v4373
  %v4375 = vand.u32 %v4374, 4294901760
  %4376 = vmatmul.mubr.f32.gmra.mrb[0].mxu0 %v4375
  %v4377 = vpop.f32.mrb[0].mxu0
  %v4378 = vadd.f32 %v4053, %v4377
  %v4379 = vpop.f32.mrb[0].mxu0
  %4380 = vdwg.mxu0
  %4381 = vmatprep.subr.mxu0 0.0
  %v4382 = vand.u32 %v2985, 4294901760
  %v4383 = vsub.f32 %v2985, %v4382
  %v4384 = vand.u32 %v4383, 4294901760
  %4385 = vmatpush1.msra.mxu0 %v4384
  %4386 = vmatprep.subr.mxu0 0.0
  %v4387 = vand.u32 %v2986, 4294901760
  %v4388 = vsub.f32 %v2986, %v4387
  %v4389 = vand.u32 %v4388, 4294901760
  %4390 = vmatpush1.msra.mxu0 %v4389
  %4391 = vmatprep.subr.mxu0 0.0
  %v4392 = vand.u32 %v2987, 4294901760
  %v4393 = vsub.f32 %v2987, %v4392
  %v4394 = vand.u32 %v4393, 4294901760
  %4395 = vmatpush1.msra.mxu0 %v4394
  %4396 = vmatprep.subr.mxu0 0.0
  %v4397 = vand.u32 %v2988, 4294901760
  %v4398 = vsub.f32 %v2988, %v4397
  %v4399 = vand.u32 %v4398, 4294901760
  %4400 = vmatpush1.msra.mxu0 %v4399
  %4401 = vmatprep.subr.mxu0 0.0
  %4402 = vmatpush1.msra.mxu0 0.0
  %4403 = vmatprep.subr.mxu0 0.0
  %4404 = vmatpush1.msra.mxu0 0.0
  %4405 = vmatprep.subr.mxu0 0.0
  %4406 = vmatpush1.msra.mxu0 0.0
  %4407 = vmatprep.subr.mxu0 0.0
  %4408 = vmatpush1.msra.mxu0 0.0
  %4409 = vmatprep.subr.mxu0 0.0
  %4410 = vmatpush1.msra.mxu0 0.0
  %4411 = vmatprep.subr.mxu0 0.0
  %4412 = vmatpush1.msra.mxu0 0.0
  %4413 = vmatprep.subr.mxu0 0.0
  %4414 = vmatpush1.msra.mxu0 0.0
  %4415 = vmatprep.subr.mxu0 0.0
  %4416 = vmatpush1.msra.mxu0 0.0
  %4417 = vmatprep.subr.mxu0 0.0
  %4418 = vmatpush1.msra.mxu0 0.0
  %4419 = vmatprep.subr.mxu0 0.0
  %4420 = vmatpush1.msra.mxu0 0.0
  %4421 = vmatprep.subr.mxu0 0.0
  %4422 = vmatpush1.msra.mxu0 0.0
  %4423 = vmatprep.subr.mxu0 0.0
  %4424 = vmatpush1.msra.mxu0 0.0
  %4425 = vmatprep.subr.mxu0 0.0
  %4426 = vmatpush1.msra.mxu0 0.0
  %4427 = vmatprep.subr.mxu0 0.0
  %4428 = vmatpush1.msra.mxu0 0.0
  %4429 = vmatprep.subr.mxu0 0.0
  %4430 = vmatpush1.msra.mxu0 0.0
  %4431 = vmatprep.subr.mxu0 0.0
  %4432 = vmatpush1.msra.mxu0 0.0
  %4433 = vmatprep.subr.mxu0 0.0
  %4434 = vmatpush1.msra.mxu0 0.0
  %4435 = vmatprep.subr.mxu0 0.0
  %4436 = vmatpush1.msra.mxu0 0.0
  %4437 = vmatprep.subr.mxu0 0.0
  %4438 = vmatpush1.msra.mxu0 0.0
  %4439 = vmatprep.subr.mxu0 0.0
  %4440 = vmatpush1.msra.mxu0 0.0
  %4441 = vmatprep.subr.mxu0 0.0
  %4442 = vmatpush1.msra.mxu0 0.0
  %4443 = vmatprep.subr.mxu0 0.0
  %4444 = vmatpush1.msra.mxu0 0.0
  %4445 = vmatprep.subr.mxu0 0.0
  %4446 = vmatpush1.msra.mxu0 0.0
  %4447 = vmatprep.subr.mxu0 0.0
  %4448 = vmatpush1.msra.mxu0 0.0
  %4449 = vmatprep.subr.mxu0 0.0
  %4450 = vmatpush1.msra.mxu0 0.0
  %4451 = vmatprep.subr.mxu0 0.0
  %4452 = vmatpush1.msra.mxu0 0.0
  %4453 = vmatprep.subr.mxu0 0.0
  %4454 = vmatpush1.msra.mxu0 0.0
  %4455 = vmatprep.subr.mxu0 0.0
  %4456 = vmatpush1.msra.mxu0 0.0
  %4457 = vmatprep.mubr.f32.mxu0 0.0
  %v4458 = vand.u32 %v2998, 4294901760
  %4459 = vmatmul.mubr.f32.gmra.mrb[0].mxu0 %v4458
  %v4460 = vpop.f32.mrb[0].mxu0
  %v4461 = vadd.f32 %v4130, %v4460
  %v4462 = vpop.f32.mrb[0].mxu0
  %4463 = vmatprep.mubr.f32.mxu0 0.0
  %v4464 = vand.u32 %v3001, 4294901760
  %4465 = vmatmul.mubr.f32.gmra.mrb[0].mxu0 %v4464
  %v4466 = vpop.f32.mrb[0].mxu0
  %v4467 = vadd.f32 %v4138, %v4466
  %v4468 = vpop.f32.mrb[0].mxu0
  %4469 = vmatprep.mubr.f32.mxu0 0.0
  %v4470 = vand.u32 %v3004, 4294901760
  %4471 = vmatmul.mubr.f32.gmra.mrb[0].mxu0 %v4470
  %v4472 = vpop.f32.mrb[0].mxu0
  %v4473 = vadd.f32 %v4146, %v4472
  %v4474 = vpop.f32.mrb[0].mxu0
  %4475 = vmatprep.mubr.f32.mxu0 0.0
  %v4476 = vand.u32 %v3007, 4294901760
  %4477 = vmatmul.mubr.f32.gmra.mrb[0].mxu0 %v4476
  %v4478 = vpop.f32.mrb[0].mxu0
  %v4479 = vadd.f32 %v4154, %v4478
  %v4480 = vpop.f32.mrb[0].mxu0
  %4481 = vmatprep.mubr.f32.mxu0 0.0
  %v4482 = vand.u32 %v3010, 4294901760
  %4483 = vmatmul.mubr.f32.gmra.mrb[0].mxu0 %v4482
  %v4484 = vpop.f32.mrb[0].mxu0
  %v4485 = vadd.f32 %v4162, %v4484
  %v4486 = vpop.f32.mrb[0].mxu0
  %4487 = vmatprep.mubr.f32.mxu0 0.0
  %v4488 = vand.u32 %v3013, 4294901760
  %4489 = vmatmul.mubr.f32.gmra.mrb[0].mxu0 %v4488
  %v4490 = vpop.f32.mrb[0].mxu0
  %v4491 = vadd.f32 %v4170, %v4490
  %v4492 = vpop.f32.mrb[0].mxu0
  %4493 = vmatprep.mubr.f32.mxu0 0.0
  %v4494 = vand.u32 %v3016, 4294901760
  %4495 = vmatmul.mubr.f32.gmra.mrb[0].mxu0 %v4494
  %v4496 = vpop.f32.mrb[0].mxu0
  %v4497 = vadd.f32 %v4178, %v4496
  %v4498 = vpop.f32.mrb[0].mxu0
  %4499 = vmatprep.mubr.f32.mxu0 0.0
  %v4500 = vand.u32 %v3019, 4294901760
  %4501 = vmatmul.mubr.f32.gmra.mrb[0].mxu0 %v4500
  %v4502 = vpop.f32.mrb[0].mxu0
  %v4503 = vadd.f32 %v4186, %v4502
  %v4504 = vpop.f32.mrb[0].mxu0
  %4505 = vmatprep.mubr.f32.mxu0 0.0
  %v4506 = vand.u32 %v3022, 4294901760
  %4507 = vmatmul.mubr.f32.gmra.mrb[0].mxu0 %v4506
  %v4508 = vpop.f32.mrb[0].mxu0
  %v4509 = vadd.f32 %v4194, %v4508
  %v4510 = vpop.f32.mrb[0].mxu0
  %4511 = vmatprep.mubr.f32.mxu0 0.0
  %v4512 = vand.u32 %v3025, 4294901760
  %4513 = vmatmul.mubr.f32.gmra.mrb[0].mxu0 %v4512
  %v4514 = vpop.f32.mrb[0].mxu0
  %v4515 = vadd.f32 %v4202, %v4514
  %v4516 = vpop.f32.mrb[0].mxu0
  %4517 = vmatprep.mubr.f32.mxu0 0.0
  %v4518 = vand.u32 %v3028, 4294901760
  %4519 = vmatmul.mubr.f32.gmra.mrb[0].mxu0 %v4518
  %v4520 = vpop.f32.mrb[0].mxu0
  %v4521 = vadd.f32 %v4210, %v4520
  %v4522 = vpop.f32.mrb[0].mxu0
  %4523 = vmatprep.mubr.f32.mxu0 0.0
  %v4524 = vand.u32 %v3031, 4294901760
  %4525 = vmatmul.mubr.f32.gmra.mrb[0].mxu0 %v4524
  %v4526 = vpop.f32.mrb[0].mxu0
  %v4527 = vadd.f32 %v4218, %v4526
  %v4528 = vpop.f32.mrb[0].mxu0
  %4529 = vmatprep.mubr.f32.mxu0 0.0
  %v4530 = vand.u32 %v3034, 4294901760
  %4531 = vmatmul.mubr.f32.gmra.mrb[0].mxu0 %v4530
  %v4532 = vpop.f32.mrb[0].mxu0
  %v4533 = vadd.f32 %v4226, %v4532
  %v4534 = vpop.f32.mrb[0].mxu0
  %4535 = vmatprep.mubr.f32.mxu0 0.0
  %v4536 = vand.u32 %v3037, 4294901760
  %4537 = vmatmul.mubr.f32.gmra.mrb[0].mxu0 %v4536
  %v4538 = vpop.f32.mrb[0].mxu0
  %v4539 = vadd.f32 %v4234, %v4538
  %v4540 = vpop.f32.mrb[0].mxu0
  %4541 = vmatprep.mubr.f32.mxu0 0.0
  %v4542 = vand.u32 %v3040, 4294901760
  %4543 = vmatmul.mubr.f32.gmra.mrb[0].mxu0 %v4542
  %v4544 = vpop.f32.mrb[0].mxu0
  %v4545 = vadd.f32 %v4242, %v4544
  %v4546 = vpop.f32.mrb[0].mxu0
  %4547 = vmatprep.mubr.f32.mxu0 0.0
  %v4548 = vand.u32 %v3043, 4294901760
  %4549 = vmatmul.mubr.f32.gmra.mrb[0].mxu0 %v4548
  %v4550 = vpop.f32.mrb[0].mxu0
  %v4551 = vadd.f32 %v4250, %v4550
  %v4552 = vpop.f32.mrb[0].mxu0
  %4553 = vmatprep.mubr.f32.mxu0 0.0
  %v4554 = vand.u32 %v3046, 4294901760
  %4555 = vmatmul.mubr.f32.gmra.mrb[0].mxu0 %v4554
  %v4556 = vpop.f32.mrb[0].mxu0
  %v4557 = vadd.f32 %v4258, %v4556
  %v4558 = vpop.f32.mrb[0].mxu0
  %4559 = vmatprep.mubr.f32.mxu0 0.0
  %v4560 = vand.u32 %v3049, 4294901760
  %4561 = vmatmul.mubr.f32.gmra.mrb[0].mxu0 %v4560
  %v4562 = vpop.f32.mrb[0].mxu0
  %v4563 = vadd.f32 %v4266, %v4562
  %v4564 = vpop.f32.mrb[0].mxu0
  %4565 = vmatprep.mubr.f32.mxu0 0.0
  %v4566 = vand.u32 %v3052, 4294901760
  %4567 = vmatmul.mubr.f32.gmra.mrb[0].mxu0 %v4566
  %v4568 = vpop.f32.mrb[0].mxu0
  %v4569 = vadd.f32 %v4274, %v4568
  %v4570 = vpop.f32.mrb[0].mxu0
  %4571 = vmatprep.mubr.f32.mxu0 0.0
  %v4572 = vand.u32 %v3055, 4294901760
  %4573 = vmatmul.mubr.f32.gmra.mrb[0].mxu0 %v4572
  %v4574 = vpop.f32.mrb[0].mxu0
  %v4575 = vadd.f32 %v4282, %v4574
  %v4576 = vpop.f32.mrb[0].mxu0
  %4577 = vmatprep.mubr.f32.mxu0 0.0
  %v4578 = vand.u32 %v3058, 4294901760
  %4579 = vmatmul.mubr.f32.gmra.mrb[0].mxu0 %v4578
  %v4580 = vpop.f32.mrb[0].mxu0
  %v4581 = vadd.f32 %v4290, %v4580
  %v4582 = vpop.f32.mrb[0].mxu0
  %4583 = vmatprep.mubr.f32.mxu0 0.0
  %v4584 = vand.u32 %v3061, 4294901760
  %4585 = vmatmul.mubr.f32.gmra.mrb[0].mxu0 %v4584
  %v4586 = vpop.f32.mrb[0].mxu0
  %v4587 = vadd.f32 %v4298, %v4586
  %v4588 = vpop.f32.mrb[0].mxu0
  %4589 = vmatprep.mubr.f32.mxu0 0.0
  %v4590 = vand.u32 %v3064, 4294901760
  %4591 = vmatmul.mubr.f32.gmra.mrb[0].mxu0 %v4590
  %v4592 = vpop.f32.mrb[0].mxu0
  %v4593 = vadd.f32 %v4306, %v4592
  %v4594 = vpop.f32.mrb[0].mxu0
  %4595 = vmatprep.mubr.f32.mxu0 0.0
  %v4596 = vand.u32 %v3067, 4294901760
  %4597 = vmatmul.mubr.f32.gmra.mrb[0].mxu0 %v4596
  %v4598 = vpop.f32.mrb[0].mxu0
  %v4599 = vadd.f32 %v4314, %v4598
  %v4600 = vpop.f32.mrb[0].mxu0
  %4601 = vmatprep.mubr.f32.mxu0 0.0
  %v4602 = vand.u32 %v3070, 4294901760
  %4603 = vmatmul.mubr.f32.gmra.mrb[0].mxu0 %v4602
  %v4604 = vpop.f32.mrb[0].mxu0
  %v4605 = vadd.f32 %v4322, %v4604
  %v4606 = vpop.f32.mrb[0].mxu0
  %4607 = vmatprep.mubr.f32.mxu0 0.0
  %v4608 = vand.u32 %v3073, 4294901760
  %4609 = vmatmul.mubr.f32.gmra.mrb[0].mxu0 %v4608
  %v4610 = vpop.f32.mrb[0].mxu0
  %v4611 = vadd.f32 %v4330, %v4610
  %v4612 = vpop.f32.mrb[0].mxu0
  %4613 = vmatprep.mubr.f32.mxu0 0.0
  %v4614 = vand.u32 %v3076, 4294901760
  %4615 = vmatmul.mubr.f32.gmra.mrb[0].mxu0 %v4614
  %v4616 = vpop.f32.mrb[0].mxu0
  %v4617 = vadd.f32 %v4338, %v4616
  %v4618 = vpop.f32.mrb[0].mxu0
  %4619 = vmatprep.mubr.f32.mxu0 0.0
  %v4620 = vand.u32 %v3079, 4294901760
  %4621 = vmatmul.mubr.f32.gmra.mrb[0].mxu0 %v4620
  %v4622 = vpop.f32.mrb[0].mxu0
  %v4623 = vadd.f32 %v4346, %v4622
  %v4624 = vpop.f32.mrb[0].mxu0
  %4625 = vmatprep.mubr.f32.mxu0 0.0
  %v4626 = vand.u32 %v3082, 4294901760
  %4627 = vmatmul.mubr.f32.gmra.mrb[0].mxu0 %v4626
  %v4628 = vpop.f32.mrb[0].mxu0
  %v4629 = vadd.f32 %v4354, %v4628
  %v4630 = vpop.f32.mrb[0].mxu0
  %4631 = vmatprep.mubr.f32.mxu0 0.0
  %v4632 = vand.u32 %v3085, 4294901760
  %4633 = vmatmul.mubr.f32.gmra.mrb[0].mxu0 %v4632
  %v4634 = vpop.f32.mrb[0].mxu0
  %v4635 = vadd.f32 %v4362, %v4634
  %v4636 = vpop.f32.mrb[0].mxu0
  %4637 = vmatprep.mubr.f32.mxu0 0.0
  %v4638 = vand.u32 %v3088, 4294901760
  %4639 = vmatmul.mubr.f32.gmra.mrb[0].mxu0 %v4638
  %v4640 = vpop.f32.mrb[0].mxu0
  %v4641 = vadd.f32 %v4370, %v4640
  %v4642 = vpop.f32.mrb[0].mxu0
  %4643 = vmatprep.mubr.f32.mxu0 0.0
  %v4644 = vand.u32 %v3091, 4294901760
  %4645 = vmatmul.mubr.f32.gmra.mrb[0].mxu0 %v4644
  %v4646 = vpop.f32.mrb[0].mxu0
  %v4647 = vadd.f32 %v4378, %v4646
  %v4648 = vpop.f32.mrb[0].mxu0
  %4649 = vdwg.mxu0
  %4650 = vmatprep.subr.mxu0 0.0
  %v4651 = vand.u32 %v2985, 4294901760
  %4652 = vmatpush1.msra.mxu0 %v4651
  %4653 = vmatprep.subr.mxu0 0.0
  %v4654 = vand.u32 %v2986, 4294901760
  %4655 = vmatpush1.msra.mxu0 %v4654
  %4656 = vmatprep.subr.mxu0 0.0
  %v4657 = vand.u32 %v2987, 4294901760
  %4658 = vmatpush1.msra.mxu0 %v4657
  %4659 = vmatprep.subr.mxu0 0.0
  %v4660 = vand.u32 %v2988, 4294901760
  %4661 = vmatpush1.msra.mxu0 %v4660
  %4662 = vmatprep.subr.mxu0 0.0
  %4663 = vmatpush1.msra.mxu0 0.0
  %4664 = vmatprep.subr.mxu0 0.0
  %4665 = vmatpush1.msra.mxu0 0.0
  %4666 = vmatprep.subr.mxu0 0.0
  %4667 = vmatpush1.msra.mxu0 0.0
  %4668 = vmatprep.subr.mxu0 0.0
  %4669 = vmatpush1.msra.mxu0 0.0
  %4670 = vmatprep.subr.mxu0 0.0
  %4671 = vmatpush1.msra.mxu0 0.0
  %4672 = vmatprep.subr.mxu0 0.0
  %4673 = vmatpush1.msra.mxu0 0.0
  %4674 = vmatprep.subr.mxu0 0.0
  %4675 = vmatpush1.msra.mxu0 0.0
  %4676 = vmatprep.subr.mxu0 0.0
  %4677 = vmatpush1.msra.mxu0 0.0
  %4678 = vmatprep.subr.mxu0 0.0
  %4679 = vmatpush1.msra.mxu0 0.0
  %4680 = vmatprep.subr.mxu0 0.0
  %4681 = vmatpush1.msra.mxu0 0.0
  %4682 = vmatprep.subr.mxu0 0.0
  %4683 = vmatpush1.msra.mxu0 0.0
  %4684 = vmatprep.subr.mxu0 0.0
  %4685 = vmatpush1.msra.mxu0 0.0
  %4686 = vmatprep.subr.mxu0 0.0
  %4687 = vmatpush1.msra.mxu0 0.0
  %4688 = vmatprep.subr.mxu0 0.0
  %4689 = vmatpush1.msra.mxu0 0.0
  %4690 = vmatprep.subr.mxu0 0.0
  %4691 = vmatpush1.msra.mxu0 0.0
  %4692 = vmatprep.subr.mxu0 0.0
  %4693 = vmatpush1.msra.mxu0 0.0
  %4694 = vmatprep.subr.mxu0 0.0
  %4695 = vmatpush1.msra.mxu0 0.0
  %4696 = vmatprep.subr.mxu0 0.0
  %4697 = vmatpush1.msra.mxu0 0.0
  %4698 = vmatprep.subr.mxu0 0.0
  %4699 = vmatpush1.msra.mxu0 0.0
  %4700 = vmatprep.subr.mxu0 0.0
  %4701 = vmatpush1.msra.mxu0 0.0
  %4702 = vmatprep.subr.mxu0 0.0
  %4703 = vmatpush1.msra.mxu0 0.0
  %4704 = vmatprep.subr.mxu0 0.0
  %4705 = vmatpush1.msra.mxu0 0.0
  %4706 = vmatprep.subr.mxu0 0.0
  %4707 = vmatpush1.msra.mxu0 0.0
  %4708 = vmatprep.subr.mxu0 0.0
  %4709 = vmatpush1.msra.mxu0 0.0
  %4710 = vmatprep.subr.mxu0 0.0
  %4711 = vmatpush1.msra.mxu0 0.0
  %4712 = vmatprep.subr.mxu0 0.0
  %4713 = vmatpush1.msra.mxu0 0.0
  %4714 = vmatprep.subr.mxu0 0.0
  %4715 = vmatpush1.msra.mxu0 0.0
  %4716 = vmatprep.subr.mxu0 0.0
  %4717 = vmatpush1.msra.mxu0 0.0
  %4718 = vmatprep.mubr.f32.mxu0 0.0
  %v4719 = vand.u32 %v2998, 4294901760
  %4720 = vmatmul.mubr.f32.gmra.mrb[0].mxu0 %v4719
  %v4721 = vpop.f32.mrb[0].mxu0
  %v4722 = vadd.f32 %v4461, %v4721
  %v4723 = vpop.f32.mrb[0].mxu0
  %4724 = vmatprep.mubr.f32.mxu0 0.0
  %v4725 = vand.u32 %v3001, 4294901760
  %4726 = vmatmul.mubr.f32.gmra.mrb[0].mxu0 %v4725
  %v4727 = vpop.f32.mrb[0].mxu0
  %v4728 = vadd.f32 %v4467, %v4727
  %v4729 = vpop.f32.mrb[0].mxu0
  %4730 = vmatprep.mubr.f32.mxu0 0.0
  %v4731 = vand.u32 %v3004, 4294901760
  %4732 = vmatmul.mubr.f32.gmra.mrb[0].mxu0 %v4731
  %v4733 = vpop.f32.mrb[0].mxu0
  %v4734 = vadd.f32 %v4473, %v4733
  %v4735 = vpop.f32.mrb[0].mxu0
  %4736 = vmatprep.mubr.f32.mxu0 0.0
  %v4737 = vand.u32 %v3007, 4294901760
  %4738 = vmatmul.mubr.f32.gmra.mrb[0].mxu0 %v4737
  %v4739 = vpop.f32.mrb[0].mxu0
  %v4740 = vadd.f32 %v4479, %v4739
  %v4741 = vpop.f32.mrb[0].mxu0
  %4742 = vmatprep.mubr.f32.mxu0 0.0
  %v4743 = vand.u32 %v3010, 4294901760
  %4744 = vmatmul.mubr.f32.gmra.mrb[0].mxu0 %v4743
  %v4745 = vpop.f32.mrb[0].mxu0
  %v4746 = vadd.f32 %v4485, %v4745
  %v4747 = vpop.f32.mrb[0].mxu0
  %4748 = vmatprep.mubr.f32.mxu0 0.0
  %v4749 = vand.u32 %v3013, 4294901760
  %4750 = vmatmul.mubr.f32.gmra.mrb[0].mxu0 %v4749
  %v4751 = vpop.f32.mrb[0].mxu0
  %v4752 = vadd.f32 %v4491, %v4751
  %v4753 = vpop.f32.mrb[0].mxu0
  %4754 = vmatprep.mubr.f32.mxu0 0.0
  %v4755 = vand.u32 %v3016, 4294901760
  %4756 = vmatmul.mubr.f32.gmra.mrb[0].mxu0 %v4755
  %v4757 = vpop.f32.mrb[0].mxu0
  %v4758 = vadd.f32 %v4497, %v4757
  %v4759 = vpop.f32.mrb[0].mxu0
  %4760 = vmatprep.mubr.f32.mxu0 0.0
  %v4761 = vand.u32 %v3019, 4294901760
  %4762 = vmatmul.mubr.f32.gmra.mrb[0].mxu0 %v4761
  %v4763 = vpop.f32.mrb[0].mxu0
  %v4764 = vadd.f32 %v4503, %v4763
  %v4765 = vpop.f32.mrb[0].mxu0
  %4766 = vmatprep.mubr.f32.mxu0 0.0
  %v4767 = vand.u32 %v3022, 4294901760
  %4768 = vmatmul.mubr.f32.gmra.mrb[0].mxu0 %v4767
  %v4769 = vpop.f32.mrb[0].mxu0
  %v4770 = vadd.f32 %v4509, %v4769
  %v4771 = vpop.f32.mrb[0].mxu0
  %4772 = vmatprep.mubr.f32.mxu0 0.0
  %v4773 = vand.u32 %v3025, 4294901760
  %4774 = vmatmul.mubr.f32.gmra.mrb[0].mxu0 %v4773
  %v4775 = vpop.f32.mrb[0].mxu0
  %v4776 = vadd.f32 %v4515, %v4775
  %v4777 = vpop.f32.mrb[0].mxu0
  %4778 = vmatprep.mubr.f32.mxu0 0.0
  %v4779 = vand.u32 %v3028, 4294901760
  %4780 = vmatmul.mubr.f32.gmra.mrb[0].mxu0 %v4779
  %v4781 = vpop.f32.mrb[0].mxu0
  %v4782 = vadd.f32 %v4521, %v4781
  %v4783 = vpop.f32.mrb[0].mxu0
  %4784 = vmatprep.mubr.f32.mxu0 0.0
  %v4785 = vand.u32 %v3031, 4294901760
  %4786 = vmatmul.mubr.f32.gmra.mrb[0].mxu0 %v4785
  %v4787 = vpop.f32.mrb[0].mxu0
  %v4788 = vadd.f32 %v4527, %v4787
  %v4789 = vpop.f32.mrb[0].mxu0
  %4790 = vmatprep.mubr.f32.mxu0 0.0
  %v4791 = vand.u32 %v3034, 4294901760
  %4792 = vmatmul.mubr.f32.gmra.mrb[0].mxu0 %v4791
  %v4793 = vpop.f32.mrb[0].mxu0
  %v4794 = vadd.f32 %v4533, %v4793
  %v4795 = vpop.f32.mrb[0].mxu0
  %4796 = vmatprep.mubr.f32.mxu0 0.0
  %v4797 = vand.u32 %v3037, 4294901760
  %4798 = vmatmul.mubr.f32.gmra.mrb[0].mxu0 %v4797
  %v4799 = vpop.f32.mrb[0].mxu0
  %v4800 = vadd.f32 %v4539, %v4799
  %v4801 = vpop.f32.mrb[0].mxu0
  %4802 = vmatprep.mubr.f32.mxu0 0.0
  %v4803 = vand.u32 %v3040, 4294901760
  %4804 = vmatmul.mubr.f32.gmra.mrb[0].mxu0 %v4803
  %v4805 = vpop.f32.mrb[0].mxu0
  %v4806 = vadd.f32 %v4545, %v4805
  %v4807 = vpop.f32.mrb[0].mxu0
  %4808 = vmatprep.mubr.f32.mxu0 0.0
  %v4809 = vand.u32 %v3043, 4294901760
  %4810 = vmatmul.mubr.f32.gmra.mrb[0].mxu0 %v4809
  %v4811 = vpop.f32.mrb[0].mxu0
  %v4812 = vadd.f32 %v4551, %v4811
  %v4813 = vpop.f32.mrb[0].mxu0
  %4814 = vmatprep.mubr.f32.mxu0 0.0
  %v4815 = vand.u32 %v3046, 4294901760
  %4816 = vmatmul.mubr.f32.gmra.mrb[0].mxu0 %v4815
  %v4817 = vpop.f32.mrb[0].mxu0
  %v4818 = vadd.f32 %v4557, %v4817
  %v4819 = vpop.f32.mrb[0].mxu0
  %4820 = vmatprep.mubr.f32.mxu0 0.0
  %v4821 = vand.u32 %v3049, 4294901760
  %4822 = vmatmul.mubr.f32.gmra.mrb[0].mxu0 %v4821
  %v4823 = vpop.f32.mrb[0].mxu0
  %v4824 = vadd.f32 %v4563, %v4823
  %v4825 = vpop.f32.mrb[0].mxu0
  %4826 = vmatprep.mubr.f32.mxu0 0.0
  %v4827 = vand.u32 %v3052, 4294901760
  %4828 = vmatmul.mubr.f32.gmra.mrb[0].mxu0 %v4827
  %v4829 = vpop.f32.mrb[0].mxu0
  %v4830 = vadd.f32 %v4569, %v4829
  %v4831 = vpop.f32.mrb[0].mxu0
  %4832 = vmatprep.mubr.f32.mxu0 0.0
  %v4833 = vand.u32 %v3055, 4294901760
  %4834 = vmatmul.mubr.f32.gmra.mrb[0].mxu0 %v4833
  %v4835 = vpop.f32.mrb[0].mxu0
  %v4836 = vadd.f32 %v4575, %v4835
  %v4837 = vpop.f32.mrb[0].mxu0
  %4838 = vmatprep.mubr.f32.mxu0 0.0
  %v4839 = vand.u32 %v3058, 4294901760
  %4840 = vmatmul.mubr.f32.gmra.mrb[0].mxu0 %v4839
  %v4841 = vpop.f32.mrb[0].mxu0
  %v4842 = vadd.f32 %v4581, %v4841
  %v4843 = vpop.f32.mrb[0].mxu0
  %4844 = vmatprep.mubr.f32.mxu0 0.0
  %v4845 = vand.u32 %v3061, 4294901760
  %4846 = vmatmul.mubr.f32.gmra.mrb[0].mxu0 %v4845
  %v4847 = vpop.f32.mrb[0].mxu0
  %v4848 = vadd.f32 %v4587, %v4847
  %v4849 = vpop.f32.mrb[0].mxu0
  %4850 = vmatprep.mubr.f32.mxu0 0.0
  %v4851 = vand.u32 %v3064, 4294901760
  %4852 = vmatmul.mubr.f32.gmra.mrb[0].mxu0 %v4851
  %v4853 = vpop.f32.mrb[0].mxu0
  %v4854 = vadd.f32 %v4593, %v4853
  %v4855 = vpop.f32.mrb[0].mxu0
  %4856 = vmatprep.mubr.f32.mxu0 0.0
  %v4857 = vand.u32 %v3067, 4294901760
  %4858 = vmatmul.mubr.f32.gmra.mrb[0].mxu0 %v4857
  %v4859 = vpop.f32.mrb[0].mxu0
  %v4860 = vadd.f32 %v4599, %v4859
  %v4861 = vpop.f32.mrb[0].mxu0
  %4862 = vmatprep.mubr.f32.mxu0 0.0
  %v4863 = vand.u32 %v3070, 4294901760
  %4864 = vmatmul.mubr.f32.gmra.mrb[0].mxu0 %v4863
  %v4865 = vpop.f32.mrb[0].mxu0
  %v4866 = vadd.f32 %v4605, %v4865
  %v4867 = vpop.f32.mrb[0].mxu0
  %4868 = vmatprep.mubr.f32.mxu0 0.0
  %v4869 = vand.u32 %v3073, 4294901760
  %4870 = vmatmul.mubr.f32.gmra.mrb[0].mxu0 %v4869
  %v4871 = vpop.f32.mrb[0].mxu0
  %v4872 = vadd.f32 %v4611, %v4871
  %v4873 = vpop.f32.mrb[0].mxu0
  %4874 = vmatprep.mubr.f32.mxu0 0.0
  %v4875 = vand.u32 %v3076, 4294901760
  %4876 = vmatmul.mubr.f32.gmra.mrb[0].mxu0 %v4875
  %v4877 = vpop.f32.mrb[0].mxu0
  %v4878 = vadd.f32 %v4617, %v4877
  %v4879 = vpop.f32.mrb[0].mxu0
  %4880 = vmatprep.mubr.f32.mxu0 0.0
  %v4881 = vand.u32 %v3079, 4294901760
  %4882 = vmatmul.mubr.f32.gmra.mrb[0].mxu0 %v4881
  %v4883 = vpop.f32.mrb[0].mxu0
  %v4884 = vadd.f32 %v4623, %v4883
  %v4885 = vpop.f32.mrb[0].mxu0
  %4886 = vmatprep.mubr.f32.mxu0 0.0
  %v4887 = vand.u32 %v3082, 4294901760
  %4888 = vmatmul.mubr.f32.gmra.mrb[0].mxu0 %v4887
  %v4889 = vpop.f32.mrb[0].mxu0
  %v4890 = vadd.f32 %v4629, %v4889
  %v4891 = vpop.f32.mrb[0].mxu0
  %4892 = vmatprep.mubr.f32.mxu0 0.0
  %v4893 = vand.u32 %v3085, 4294901760
  %4894 = vmatmul.mubr.f32.gmra.mrb[0].mxu0 %v4893
  %v4895 = vpop.f32.mrb[0].mxu0
  %v4896 = vadd.f32 %v4635, %v4895
  %v4897 = vpop.f32.mrb[0].mxu0
  %4898 = vmatprep.mubr.f32.mxu0 0.0
  %v4899 = vand.u32 %v3088, 4294901760
  %4900 = vmatmul.mubr.f32.gmra.mrb[0].mxu0 %v4899
  %v4901 = vpop.f32.mrb[0].mxu0
  %v4902 = vadd.f32 %v4641, %v4901
  %v4903 = vpop.f32.mrb[0].mxu0
  %4904 = vmatprep.mubr.f32.mxu0 0.0
  %v4905 = vand.u32 %v3091, 4294901760
  %4906 = vmatmul.mubr.f32.gmra.mrb[0].mxu0 %v4905
  %v4907 = vpop.f32.mrb[0].mxu0
  %v4908 = vadd.f32 %v4647, %v4907
  %v4909 = vpop.f32.mrb[0].mxu0
  %4910 = vdwg.mxu0
  %v4911 = vadd.f32 %v4722, 3.0
  %v4912 = vadd.f32 %v4728, 3.0
  %v4913 = vadd.f32 %v4734, 3.0
  %v4914 = vadd.f32 %v4740, 3.0
  %v4915 = vadd.f32 %v4746, 3.0
  %v4916 = vadd.f32 %v4752, 3.0
  %v4917 = vadd.f32 %v4758, 3.0
  %v4918 = vadd.f32 %v4764, 3.0
  %v4919 = vadd.f32 %v4770, 3.0
  %v4920 = vadd.f32 %v4776, 3.0
  %v4921 = vadd.f32 %v4782, 3.0
  %v4922 = vadd.f32 %v4788, 3.0
  %v4923 = vadd.f32 %v4794, 3.0
  %v4924 = vadd.f32 %v4800, 3.0
  %v4925 = vadd.f32 %v4806, 3.0
  %v4926 = vadd.f32 %v4812, 3.0
  %v4927 = vadd.f32 %v4818, 3.0
  %v4928 = vadd.f32 %v4824, 3.0
  %v4929 = vadd.f32 %v4830, 3.0
  %v4930 = vadd.f32 %v4836, 3.0
  %v4931 = vadd.f32 %v4842, 3.0
  %v4932 = vadd.f32 %v4848, 3.0
  %v4933 = vadd.f32 %v4854, 3.0
  %v4934 = vadd.f32 %v4860, 3.0
  %v4935 = vadd.f32 %v4866, 3.0
  %v4936 = vadd.f32 %v4872, 3.0
  %v4937 = vadd.f32 %v4878, 3.0
  %v4938 = vadd.f32 %v4884, 3.0
  %v4939 = vadd.f32 %v4890, 3.0
  %v4940 = vadd.f32 %v4896, 3.0
  %v4941 = vadd.f32 %v4902, 3.0
  %v4942 = vadd.f32 %v4908, 3.0
  %v4943 = vmax.f32 %v4911, 0.0
  %v4944 = vmax.f32 %v4912, 0.0
  %v4945 = vmax.f32 %v4913, 0.0
  %v4946 = vmax.f32 %v4914, 0.0
  %v4947 = vmax.f32 %v4915, 0.0
  %v4948 = vmax.f32 %v4916, 0.0
  %v4949 = vmax.f32 %v4917, 0.0
  %v4950 = vmax.f32 %v4918, 0.0
  %v4951 = vmax.f32 %v4919, 0.0
  %v4952 = vmax.f32 %v4920, 0.0
  %v4953 = vmax.f32 %v4921, 0.0
  %v4954 = vmax.f32 %v4922, 0.0
  %v4955 = vmax.f32 %v4923, 0.0
  %v4956 = vmax.f32 %v4924, 0.0
  %v4957 = vmax.f32 %v4925, 0.0
  %v4958 = vmax.f32 %v4926, 0.0
  %v4959 = vmax.f32 %v4927, 0.0
  %v4960 = vmax.f32 %v4928, 0.0
  %v4961 = vmax.f32 %v4929, 0.0
  %v4962 = vmax.f32 %v4930, 0.0
  %v4963 = vmax.f32 %v4931, 0.0
  %v4964 = vmax.f32 %v4932, 0.0
  %v4965 = vmax.f32 %v4933, 0.0
  %v4966 = vmax.f32 %v4934, 0.0
  %v4967 = vmax.f32 %v4935, 0.0
  %v4968 = vmax.f32 %v4936, 0.0
  %v4969 = vmax.f32 %v4937, 0.0
  %v4970 = vmax.f32 %v4938, 0.0
  %v4971 = vmax.f32 %v4939, 0.0
  %v4972 = vmax.f32 %v4940, 0.0
  %v4973 = vmax.f32 %v4941, 0.0
  %v4974 = vmax.f32 %v4942, 0.0
  %v4975 = vmin.f32 %v4943, 6.0
  %v4976 = vmin.f32 %v4944, 6.0
  %v4977 = vmin.f32 %v4945, 6.0
  %v4978 = vmin.f32 %v4946, 6.0
  %v4979 = vmin.f32 %v4947, 6.0
  %v4980 = vmin.f32 %v4948, 6.0
  %v4981 = vmin.f32 %v4949, 6.0
  %v4982 = vmin.f32 %v4950, 6.0
  %v4983 = vmin.f32 %v4951, 6.0
  %v4984 = vmin.f32 %v4952, 6.0
  %v4985 = vmin.f32 %v4953, 6.0
  %v4986 = vmin.f32 %v4954, 6.0
  %v4987 = vmin.f32 %v4955, 6.0
  %v4988 = vmin.f32 %v4956, 6.0
  %v4989 = vmin.f32 %v4957, 6.0
  %v4990 = vmin.f32 %v4958, 6.0
  %v4991 = vmin.f32 %v4959, 6.0
  %v4992 = vmin.f32 %v4960, 6.0
  %v4993 = vmin.f32 %v4961, 6.0
  %v4994 = vmin.f32 %v4962, 6.0
  %v4995 = vmin.f32 %v4963, 6.0
  %v4996 = vmin.f32 %v4964, 6.0
  %v4997 = vmin.f32 %v4965, 6.0
  %v4998 = vmin.f32 %v4966, 6.0
  %v4999 = vmin.f32 %v4967, 6.0
  %v5000 = vmin.f32 %v4968, 6.0
  %v5001 = vmin.f32 %v4969, 6.0
  %v5002 = vmin.f32 %v4970, 6.0
  %v5003 = vmin.f32 %v4971, 6.0
  %v5004 = vmin.f32 %v4972, 6.0
  %v5005 = vmin.f32 %v4973, 6.0
  %v5006 = vmin.f32 %v4974, 6.0
  %v5007 = vmul.f32 %v4722, %v4975
  %v5008 = vmul.f32 %v4728, %v4976
  %v5009 = vmul.f32 %v4734, %v4977
  %v5010 = vmul.f32 %v4740, %v4978
  %v5011 = vmul.f32 %v4746, %v4979
  %v5012 = vmul.f32 %v4752, %v4980
  %v5013 = vmul.f32 %v4758, %v4981
  %v5014 = vmul.f32 %v4764, %v4982
  %v5015 = vmul.f32 %v4770, %v4983
  %v5016 = vmul.f32 %v4776, %v4984
  %v5017 = vmul.f32 %v4782, %v4985
  %v5018 = vmul.f32 %v4788, %v4986
  %v5019 = vmul.f32 %v4794, %v4987
  %v5020 = vmul.f32 %v4800, %v4988
  %v5021 = vmul.f32 %v4806, %v4989
  %v5022 = vmul.f32 %v4812, %v4990
  %v5023 = vmul.f32 %v4818, %v4991
  %v5024 = vmul.f32 %v4824, %v4992
  %v5025 = vmul.f32 %v4830, %v4993
  %v5026 = vmul.f32 %v4836, %v4994
  %v5027 = vmul.f32 %v4842, %v4995
  %v5028 = vmul.f32 %v4848, %v4996
  %v5029 = vmul.f32 %v4854, %v4997
  %v5030 = vmul.f32 %v4860, %v4998
  %v5031 = vmul.f32 %v4866, %v4999
  %v5032 = vmul.f32 %v4872, %v5000
  %v5033 = vmul.f32 %v4878, %v5001
  %v5034 = vmul.f32 %v4884, %v5002
  %v5035 = vmul.f32 %v4890, %v5003
  %v5036 = vmul.f32 %v4896, %v5004
  %v5037 = vmul.f32 %v4902, %v5005
  %v5038 = vmul.f32 %v4908, %v5006
  %v5039 = vmul.f32 %v5007, 0.16666667
  %v5040 = vmul.f32 %v5008, 0.16666667
  %v5041 = vmul.f32 %v5009, 0.16666667
  %v5042 = vmul.f32 %v5010, 0.16666667
  %v5043 = vmul.f32 %v5011, 0.16666667
  %v5044 = vmul.f32 %v5012, 0.16666667
  %v5045 = vmul.f32 %v5013, 0.16666667
  %v5046 = vmul.f32 %v5014, 0.16666667
  %v5047 = vmul.f32 %v5015, 0.16666667
  %v5048 = vmul.f32 %v5016, 0.16666667
  %v5049 = vmul.f32 %v5017, 0.16666667
  %v5050 = vmul.f32 %v5018, 0.16666667
  %v5051 = vmul.f32 %v5019, 0.16666667
  %v5052 = vmul.f32 %v5020, 0.16666667
  %v5053 = vmul.f32 %v5021, 0.16666667
  %v5054 = vmul.f32 %v5022, 0.16666667
  %v5055 = vmul.f32 %v5023, 0.16666667
  %v5056 = vmul.f32 %v5024, 0.16666667
  %v5057 = vmul.f32 %v5025, 0.16666667
  %v5058 = vmul.f32 %v5026, 0.16666667
  %v5059 = vmul.f32 %v5027, 0.16666667
  %v5060 = vmul.f32 %v5028, 0.16666667
  %v5061 = vmul.f32 %v5029, 0.16666667
  %v5062 = vmul.f32 %v5030, 0.16666667
  %v5063 = vmul.f32 %v5031, 0.16666667
  %v5064 = vmul.f32 %v5032, 0.16666667
  %v5065 = vmul.f32 %v5033, 0.16666667
  %v5066 = vmul.f32 %v5034, 0.16666667
  %v5067 = vmul.f32 %v5035, 0.16666667
  %v5068 = vmul.f32 %v5036, 0.16666667
  %v5069 = vmul.f32 %v5037, 0.16666667
  %v5070 = vmul.f32 %v5038, 0.16666667
  %v5071 = vld [vmem:[%s6] sm:$0xff]
  %v5072 = vld [vmem:[%s7] sm:$0x1]
  %v5074 = vlaneseq
  %v5075 = vshrl.u32 %v5074, 7
  %v5076 = vsub.s32 0, %v5075
  %v5077 = vrot.slane %v5072, %v5076
  %vm5079 = vcmask 64512
  %v5081 = vsel %vm5079, %v5039, 0
  %v5084 = vsel %vm5079, %v5040, 0
  %v5087 = vsel %vm5079, %v5043, 0
  %v5090 = vsel %vm5079, %v5044, 0
  %v5093 = vsel %vm5079, %v5047, 0
  %v5096 = vsel %vm5079, %v5048, 0
  %v5099 = vsel %vm5079, %v5051, 0
  %v5102 = vsel %vm5079, %v5052, 0
  %v5105 = vsel %vm5079, %v5055, 0
  %v5108 = vsel %vm5079, %v5056, 0
  %v5111 = vsel %vm5079, %v5059, 0
  %v5114 = vsel %vm5079, %v5060, 0
  %v5117 = vsel %vm5079, %v5063, 0
  %v5120 = vsel %vm5079, %v5064, 0
  %v5123 = vsel %vm5079, %v5067, 0
  %v5126 = vsel %vm5079, %v5068, 0
  %5128 = vmatprep.subr.mxu0 0.0
  %v5129 = vand.u32 %v5071, 4294901760
  %5130 = vmatpush1.msra.mxu0 %v5129
  %5131 = vmatprep.subr.mxu0 0.0
  %5132 = vmatpush1.msra.mxu0 0.0
  %5133 = vmatprep.subr.mxu0 0.0
  %5134 = vmatpush1.msra.mxu0 0.0
  %5135 = vmatprep.subr.mxu0 0.0
  %5136 = vmatpush1.msra.mxu0 0.0
  %5137 = vmatprep.subr.mxu0 0.0
  %5138 = vmatpush1.msra.mxu0 0.0
  %5139 = vmatprep.subr.mxu0 0.0
  %5140 = vmatpush1.msra.mxu0 0.0
  %5141 = vmatprep.subr.mxu0 0.0
  %5142 = vmatpush1.msra.mxu0 0.0
  %5143 = vmatprep.subr.mxu0 0.0
  %5144 = vmatpush1.msra.mxu0 0.0
  %5145 = vmatprep.subr.mxu0 0.0
  %5146 = vmatpush1.msra.mxu0 0.0
  %5147 = vmatprep.subr.mxu0 0.0
  %5148 = vmatpush1.msra.mxu0 0.0
  %5149 = vmatprep.subr.mxu0 0.0
  %5150 = vmatpush1.msra.mxu0 0.0
  %5151 = vmatprep.subr.mxu0 0.0
  %5152 = vmatpush1.msra.mxu0 0.0
  %5153 = vmatprep.subr.mxu0 0.0
  %5154 = vmatpush1.msra.mxu0 0.0
  %5155 = vmatprep.subr.mxu0 0.0
  %5156 = vmatpush1.msra.mxu0 0.0
  %5157 = vmatprep.subr.mxu0 0.0
  %5158 = vmatpush1.msra.mxu0 0.0
  %5159 = vmatprep.subr.mxu0 0.0
  %5160 = vmatpush1.msra.mxu0 0.0
  %5161 = vmatprep.subr.mxu0 0.0
  %5162 = vmatpush1.msra.mxu0 0.0
  %5163 = vmatprep.subr.mxu0 0.0
  %5164 = vmatpush1.msra.mxu0 0.0
  %5165 = vmatprep.subr.mxu0 0.0
  %5166 = vmatpush1.msra.mxu0 0.0
  %5167 = vmatprep.subr.mxu0 0.0
  %5168 = vmatpush1.msra.mxu0 0.0
  %5169 = vmatprep.subr.mxu0 0.0
  %5170 = vmatpush1.msra.mxu0 0.0
  %5171 = vmatprep.subr.mxu0 0.0
  %5172 = vmatpush1.msra.mxu0 0.0
  %5173 = vmatprep.subr.mxu0 0.0
  %5174 = vmatpush1.msra.mxu0 0.0
  %5175 = vmatprep.subr.mxu0 0.0
  %5176 = vmatpush1.msra.mxu0 0.0
  %5177 = vmatprep.subr.mxu0 0.0
  %5178 = vmatpush1.msra.mxu0 0.0
  %5179 = vmatprep.subr.mxu0 0.0
  %5180 = vmatpush1.msra.mxu0 0.0
  %5181 = vmatprep.subr.mxu0 0.0
  %5182 = vmatpush1.msra.mxu0 0.0
  %5183 = vmatprep.subr.mxu0 0.0
  %5184 = vmatpush1.msra.mxu0 0.0
  %5185 = vmatprep.subr.mxu0 0.0
  %5186 = vmatpush1.msra.mxu0 0.0
  %5187 = vmatprep.subr.mxu0 0.0
  %5188 = vmatpush1.msra.mxu0 0.0
  %5189 = vmatprep.subr.mxu0 0.0
  %5190 = vmatpush1.msra.mxu0 0.0
  %5191 = vmatprep.subr.mxu0 0.0
  %5192 = vmatpush1.msra.mxu0 0.0
  %5193 = vmatprep.mubr.f32.mxu0 0.0
  %v5194 = vand.u32 %v5081, 4294901760
  %v5195 = vsub.f32 %v5081, %v5194
  %v5196 = vand.u32 %v5195, 4294901760
  %v5197 = vsub.f32 %v5195, %v5196
  %v5198 = vand.u32 %v5197, 4294901760
  %5199 = vmatmul.mubr.f32.gmra.mrb[0].mxu0 %v5198
  %v5200 = vpop.f32.mrb[0].mxu0
  %v5201 = vadd.f32 %v5077, %v5200
  %v5202 = vpop.f32.mrb[0].mxu0
  %5203 = vmatprep.mubr.f32.mxu0 0.0
  %v5204 = vand.u32 %v5084, 4294901760
  %v5205 = vsub.f32 %v5084, %v5204
  %v5206 = vand.u32 %v5205, 4294901760
  %v5207 = vsub.f32 %v5205, %v5206
  %v5208 = vand.u32 %v5207, 4294901760
  %5209 = vmatmul.mubr.f32.gmra.mrb[0].mxu0 %v5208
  %v5210 = vpop.f32.mrb[0].mxu0
  %v5211 = vadd.f32 %v5077, %v5210
  %v5212 = vpop.f32.mrb[0].mxu0
  %5213 = vmatprep.mubr.f32.mxu0 0.0
  %v5214 = vand.u32 %v5087, 4294901760
  %v5215 = vsub.f32 %v5087, %v5214
  %v5216 = vand.u32 %v5215, 4294901760
  %v5217 = vsub.f32 %v5215, %v5216
  %v5218 = vand.u32 %v5217, 4294901760
  %5219 = vmatmul.mubr.f32.gmra.mrb[0].mxu0 %v5218
  %v5220 = vpop.f32.mrb[0].mxu0
  %v5221 = vadd.f32 %v5077, %v5220
  %v5222 = vpop.f32.mrb[0].mxu0
  %5223 = vmatprep.mubr.f32.mxu0 0.0
  %v5224 = vand.u32 %v5090, 4294901760
  %v5225 = vsub.f32 %v5090, %v5224
  %v5226 = vand.u32 %v5225, 4294901760
  %v5227 = vsub.f32 %v5225, %v5226
  %v5228 = vand.u32 %v5227, 4294901760
  %5229 = vmatmul.mubr.f32.gmra.mrb[0].mxu0 %v5228
  %v5230 = vpop.f32.mrb[0].mxu0
  %v5231 = vadd.f32 %v5077, %v5230
  %v5232 = vpop.f32.mrb[0].mxu0
  %5233 = vmatprep.mubr.f32.mxu0 0.0
  %v5234 = vand.u32 %v5093, 4294901760
  %v5235 = vsub.f32 %v5093, %v5234
  %v5236 = vand.u32 %v5235, 4294901760
  %v5237 = vsub.f32 %v5235, %v5236
  %v5238 = vand.u32 %v5237, 4294901760
  %5239 = vmatmul.mubr.f32.gmra.mrb[0].mxu0 %v5238
  %v5240 = vpop.f32.mrb[0].mxu0
  %v5241 = vadd.f32 %v5077, %v5240
  %v5242 = vpop.f32.mrb[0].mxu0
  %5243 = vmatprep.mubr.f32.mxu0 0.0
  %v5244 = vand.u32 %v5096, 4294901760
  %v5245 = vsub.f32 %v5096, %v5244
  %v5246 = vand.u32 %v5245, 4294901760
  %v5247 = vsub.f32 %v5245, %v5246
  %v5248 = vand.u32 %v5247, 4294901760
  %5249 = vmatmul.mubr.f32.gmra.mrb[0].mxu0 %v5248
  %v5250 = vpop.f32.mrb[0].mxu0
  %v5251 = vadd.f32 %v5077, %v5250
  %v5252 = vpop.f32.mrb[0].mxu0
  %5253 = vmatprep.mubr.f32.mxu0 0.0
  %v5254 = vand.u32 %v5099, 4294901760
  %v5255 = vsub.f32 %v5099, %v5254
  %v5256 = vand.u32 %v5255, 4294901760
  %v5257 = vsub.f32 %v5255, %v5256
  %v5258 = vand.u32 %v5257, 4294901760
  %5259 = vmatmul.mubr.f32.gmra.mrb[0].mxu0 %v5258
  %v5260 = vpop.f32.mrb[0].mxu0
  %v5261 = vadd.f32 %v5077, %v5260
  %v5262 = vpop.f32.mrb[0].mxu0
  %5263 = vmatprep.mubr.f32.mxu0 0.0
  %v5264 = vand.u32 %v5102, 4294901760
  %v5265 = vsub.f32 %v5102, %v5264
  %v5266 = vand.u32 %v5265, 4294901760
  %v5267 = vsub.f32 %v5265, %v5266
  %v5268 = vand.u32 %v5267, 4294901760
  %5269 = vmatmul.mubr.f32.gmra.mrb[0].mxu0 %v5268
  %v5270 = vpop.f32.mrb[0].mxu0
  %v5271 = vadd.f32 %v5077, %v5270
  %v5272 = vpop.f32.mrb[0].mxu0
  %5273 = vmatprep.mubr.f32.mxu0 0.0
  %v5274 = vand.u32 %v5105, 4294901760
  %v5275 = vsub.f32 %v5105, %v5274
  %v5276 = vand.u32 %v5275, 4294901760
  %v5277 = vsub.f32 %v5275, %v5276
  %v5278 = vand.u32 %v5277, 4294901760
  %5279 = vmatmul.mubr.f32.gmra.mrb[0].mxu0 %v5278
  %v5280 = vpop.f32.mrb[0].mxu0
  %v5281 = vadd.f32 %v5077, %v5280
  %v5282 = vpop.f32.mrb[0].mxu0
  %5283 = vmatprep.mubr.f32.mxu0 0.0
  %v5284 = vand.u32 %v5108, 4294901760
  %v5285 = vsub.f32 %v5108, %v5284
  %v5286 = vand.u32 %v5285, 4294901760
  %v5287 = vsub.f32 %v5285, %v5286
  %v5288 = vand.u32 %v5287, 4294901760
  %5289 = vmatmul.mubr.f32.gmra.mrb[0].mxu0 %v5288
  %v5290 = vpop.f32.mrb[0].mxu0
  %v5291 = vadd.f32 %v5077, %v5290
  %v5292 = vpop.f32.mrb[0].mxu0
  %5293 = vmatprep.mubr.f32.mxu0 0.0
  %v5294 = vand.u32 %v5111, 4294901760
  %v5295 = vsub.f32 %v5111, %v5294
  %v5296 = vand.u32 %v5295, 4294901760
  %v5297 = vsub.f32 %v5295, %v5296
  %v5298 = vand.u32 %v5297, 4294901760
  %5299 = vmatmul.mubr.f32.gmra.mrb[0].mxu0 %v5298
  %v5300 = vpop.f32.mrb[0].mxu0
  %v5301 = vadd.f32 %v5077, %v5300
  %v5302 = vpop.f32.mrb[0].mxu0
  %5303 = vmatprep.mubr.f32.mxu0 0.0
  %v5304 = vand.u32 %v5114, 4294901760
  %v5305 = vsub.f32 %v5114, %v5304
  %v5306 = vand.u32 %v5305, 4294901760
  %v5307 = vsub.f32 %v5305, %v5306
  %v5308 = vand.u32 %v5307, 4294901760
  %5309 = vmatmul.mubr.f32.gmra.mrb[0].mxu0 %v5308
  %v5310 = vpop.f32.mrb[0].mxu0
  %v5311 = vadd.f32 %v5077, %v5310
  %v5312 = vpop.f32.mrb[0].mxu0
  %5313 = vmatprep.mubr.f32.mxu0 0.0
  %v5314 = vand.u32 %v5117, 4294901760
  %v5315 = vsub.f32 %v5117, %v5314
  %v5316 = vand.u32 %v5315, 4294901760
  %v5317 = vsub.f32 %v5315, %v5316
  %v5318 = vand.u32 %v5317, 4294901760
  %5319 = vmatmul.mubr.f32.gmra.mrb[0].mxu0 %v5318
  %v5320 = vpop.f32.mrb[0].mxu0
  %v5321 = vadd.f32 %v5077, %v5320
  %v5322 = vpop.f32.mrb[0].mxu0
  %5323 = vmatprep.mubr.f32.mxu0 0.0
  %v5324 = vand.u32 %v5120, 4294901760
  %v5325 = vsub.f32 %v5120, %v5324
  %v5326 = vand.u32 %v5325, 4294901760
  %v5327 = vsub.f32 %v5325, %v5326
  %v5328 = vand.u32 %v5327, 4294901760
  %5329 = vmatmul.mubr.f32.gmra.mrb[0].mxu0 %v5328
  %v5330 = vpop.f32.mrb[0].mxu0
  %v5331 = vadd.f32 %v5077, %v5330
  %v5332 = vpop.f32.mrb[0].mxu0
  %5333 = vmatprep.mubr.f32.mxu0 0.0
  %v5334 = vand.u32 %v5123, 4294901760
  %v5335 = vsub.f32 %v5123, %v5334
  %v5336 = vand.u32 %v5335, 4294901760
  %v5337 = vsub.f32 %v5335, %v5336
  %v5338 = vand.u32 %v5337, 4294901760
  %5339 = vmatmul.mubr.f32.gmra.mrb[0].mxu0 %v5338
  %v5340 = vpop.f32.mrb[0].mxu0
  %v5341 = vadd.f32 %v5077, %v5340
  %v5342 = vpop.f32.mrb[0].mxu0
  %5343 = vmatprep.mubr.f32.mxu0 0.0
  %v5344 = vand.u32 %v5126, 4294901760
  %v5345 = vsub.f32 %v5126, %v5344
  %v5346 = vand.u32 %v5345, 4294901760
  %v5347 = vsub.f32 %v5345, %v5346
  %v5348 = vand.u32 %v5347, 4294901760
  %5349 = vmatmul.mubr.f32.gmra.mrb[0].mxu0 %v5348
  %v5350 = vpop.f32.mrb[0].mxu0
  %v5351 = vadd.f32 %v5077, %v5350
  %v5352 = vpop.f32.mrb[0].mxu0
  %5353 = vdwg.mxu0
  %5354 = vmatprep.subr.mxu0 0.0
  %v5355 = vand.u32 %v5071, 4294901760
  %v5356 = vsub.f32 %v5071, %v5355
  %v5357 = vand.u32 %v5356, 4294901760
  %v5358 = vsub.f32 %v5356, %v5357
  %v5359 = vand.u32 %v5358, 4294901760
  %5360 = vmatpush1.msra.mxu0 %v5359
  %5361 = vmatprep.subr.mxu0 0.0
  %5362 = vmatpush1.msra.mxu0 0.0
  %5363 = vmatprep.subr.mxu0 0.0
  %5364 = vmatpush1.msra.mxu0 0.0
  %5365 = vmatprep.subr.mxu0 0.0
  %5366 = vmatpush1.msra.mxu0 0.0
  %5367 = vmatprep.subr.mxu0 0.0
  %5368 = vmatpush1.msra.mxu0 0.0
  %5369 = vmatprep.subr.mxu0 0.0
  %5370 = vmatpush1.msra.mxu0 0.0
  %5371 = vmatprep.subr.mxu0 0.0
  %5372 = vmatpush1.msra.mxu0 0.0
  %5373 = vmatprep.subr.mxu0 0.0
  %5374 = vmatpush1.msra.mxu0 0.0
  %5375 = vmatprep.subr.mxu0 0.0
  %5376 = vmatpush1.msra.mxu0 0.0
  %5377 = vmatprep.subr.mxu0 0.0
  %5378 = vmatpush1.msra.mxu0 0.0
  %5379 = vmatprep.subr.mxu0 0.0
  %5380 = vmatpush1.msra.mxu0 0.0
  %5381 = vmatprep.subr.mxu0 0.0
  %5382 = vmatpush1.msra.mxu0 0.0
  %5383 = vmatprep.subr.mxu0 0.0
  %5384 = vmatpush1.msra.mxu0 0.0
  %5385 = vmatprep.subr.mxu0 0.0
  %5386 = vmatpush1.msra.mxu0 0.0
  %5387 = vmatprep.subr.mxu0 0.0
  %5388 = vmatpush1.msra.mxu0 0.0
  %5389 = vmatprep.subr.mxu0 0.0
  %5390 = vmatpush1.msra.mxu0 0.0
  %5391 = vmatprep.subr.mxu0 0.0
  %5392 = vmatpush1.msra.mxu0 0.0
  %5393 = vmatprep.subr.mxu0 0.0
  %5394 = vmatpush1.msra.mxu0 0.0
  %5395 = vmatprep.subr.mxu0 0.0
  %5396 = vmatpush1.msra.mxu0 0.0
  %5397 = vmatprep.subr.mxu0 0.0
  %5398 = vmatpush1.msra.mxu0 0.0
  %5399 = vmatprep.subr.mxu0 0.0
  %5400 = vmatpush1.msra.mxu0 0.0
  %5401 = vmatprep.subr.mxu0 0.0
  %5402 = vmatpush1.msra.mxu0 0.0
  %5403 = vmatprep.subr.mxu0 0.0
  %5404 = vmatpush1.msra.mxu0 0.0
  %5405 = vmatprep.subr.mxu0 0.0
  %5406 = vmatpush1.msra.mxu0 0.0
  %5407 = vmatprep.subr.mxu0 0.0
  %5408 = vmatpush1.msra.mxu0 0.0
  %5409 = vmatprep.subr.mxu0 0.0
  %5410 = vmatpush1.msra.mxu0 0.0
  %5411 = vmatprep.subr.mxu0 0.0
  %5412 = vmatpush1.msra.mxu0 0.0
  %5413 = vmatprep.subr.mxu0 0.0
  %5414 = vmatpush1.msra.mxu0 0.0
  %5415 = vmatprep.subr.mxu0 0.0
  %5416 = vmatpush1.msra.mxu0 0.0
  %5417 = vmatprep.subr.mxu0 0.0
  %5418 = vmatpush1.msra.mxu0 0.0
  %5419 = vmatprep.subr.mxu0 0.0
  %5420 = vmatpush1.msra.mxu0 0.0
  %5421 = vmatprep.subr.mxu0 0.0
  %5422 = vmatpush1.msra.mxu0 0.0
  %5423 = vmatprep.mubr.f32.mxu0 0.0
  %v5424 = vand.u32 %v5081, 4294901760
  %5425 = vmatmul.mubr.f32.gmra.mrb[0].mxu0 %v5424
  %v5426 = vpop.f32.mrb[0].mxu0
  %v5427 = vadd.f32 %v5201, %v5426
  %v5428 = vpop.f32.mrb[0].mxu0
  %5429 = vmatprep.mubr.f32.mxu0 0.0
  %v5430 = vand.u32 %v5084, 4294901760
  %5431 = vmatmul.mubr.f32.gmra.mrb[0].mxu0 %v5430
  %v5432 = vpop.f32.mrb[0].mxu0
  %v5433 = vadd.f32 %v5211, %v5432
  %v5434 = vpop.f32.mrb[0].mxu0
  %5435 = vmatprep.mubr.f32.mxu0 0.0
  %v5436 = vand.u32 %v5087, 4294901760
  %5437 = vmatmul.mubr.f32.gmra.mrb[0].mxu0 %v5436
  %v5438 = vpop.f32.mrb[0].mxu0
  %v5439 = vadd.f32 %v5221, %v5438
  %v5440 = vpop.f32.mrb[0].mxu0
  %5441 = vmatprep.mubr.f32.mxu0 0.0
  %v5442 = vand.u32 %v5090, 4294901760
  %5443 = vmatmul.mubr.f32.gmra.mrb[0].mxu0 %v5442
  %v5444 = vpop.f32.mrb[0].mxu0
  %v5445 = vadd.f32 %v5231, %v5444
  %v5446 = vpop.f32.mrb[0].mxu0
  %5447 = vmatprep.mubr.f32.mxu0 0.0
  %v5448 = vand.u32 %v5093, 4294901760
  %5449 = vmatmul.mubr.f32.gmra.mrb[0].mxu0 %v5448
  %v5450 = vpop.f32.mrb[0].mxu0
  %v5451 = vadd.f32 %v5241, %v5450
  %v5452 = vpop.f32.mrb[0].mxu0
  %5453 = vmatprep.mubr.f32.mxu0 0.0
  %v5454 = vand.u32 %v5096, 4294901760
  %5455 = vmatmul.mubr.f32.gmra.mrb[0].mxu0 %v5454
  %v5456 = vpop.f32.mrb[0].mxu0
  %v5457 = vadd.f32 %v5251, %v5456
  %v5458 = vpop.f32.mrb[0].mxu0
  %5459 = vmatprep.mubr.f32.mxu0 0.0
  %v5460 = vand.u32 %v5099, 4294901760
  %5461 = vmatmul.mubr.f32.gmra.mrb[0].mxu0 %v5460
  %v5462 = vpop.f32.mrb[0].mxu0
  %v5463 = vadd.f32 %v5261, %v5462
  %v5464 = vpop.f32.mrb[0].mxu0
  %5465 = vmatprep.mubr.f32.mxu0 0.0
  %v5466 = vand.u32 %v5102, 4294901760
  %5467 = vmatmul.mubr.f32.gmra.mrb[0].mxu0 %v5466
  %v5468 = vpop.f32.mrb[0].mxu0
  %v5469 = vadd.f32 %v5271, %v5468
  %v5470 = vpop.f32.mrb[0].mxu0
  %5471 = vmatprep.mubr.f32.mxu0 0.0
  %v5472 = vand.u32 %v5105, 4294901760
  %5473 = vmatmul.mubr.f32.gmra.mrb[0].mxu0 %v5472
  %v5474 = vpop.f32.mrb[0].mxu0
  %v5475 = vadd.f32 %v5281, %v5474
  %v5476 = vpop.f32.mrb[0].mxu0
  %5477 = vmatprep.mubr.f32.mxu0 0.0
  %v5478 = vand.u32 %v5108, 4294901760
  %5479 = vmatmul.mubr.f32.gmra.mrb[0].mxu0 %v5478
  %v5480 = vpop.f32.mrb[0].mxu0
  %v5481 = vadd.f32 %v5291, %v5480
  %v5482 = vpop.f32.mrb[0].mxu0
  %5483 = vmatprep.mubr.f32.mxu0 0.0
  %v5484 = vand.u32 %v5111, 4294901760
  %5485 = vmatmul.mubr.f32.gmra.mrb[0].mxu0 %v5484
  %v5486 = vpop.f32.mrb[0].mxu0
  %v5487 = vadd.f32 %v5301, %v5486
  %v5488 = vpop.f32.mrb[0].mxu0
  %5489 = vmatprep.mubr.f32.mxu0 0.0
  %v5490 = vand.u32 %v5114, 4294901760
  %5491 = vmatmul.mubr.f32.gmra.mrb[0].mxu0 %v5490
  %v5492 = vpop.f32.mrb[0].mxu0
  %v5493 = vadd.f32 %v5311, %v5492
  %v5494 = vpop.f32.mrb[0].mxu0
  %5495 = vmatprep.mubr.f32.mxu0 0.0
  %v5496 = vand.u32 %v5117, 4294901760
  %5497 = vmatmul.mubr.f32.gmra.mrb[0].mxu0 %v5496
  %v5498 = vpop.f32.mrb[0].mxu0
  %v5499 = vadd.f32 %v5321, %v5498
  %v5500 = vpop.f32.mrb[0].mxu0
  %5501 = vmatprep.mubr.f32.mxu0 0.0
  %v5502 = vand.u32 %v5120, 4294901760
  %5503 = vmatmul.mubr.f32.gmra.mrb[0].mxu0 %v5502
  %v5504 = vpop.f32.mrb[0].mxu0
  %v5505 = vadd.f32 %v5331, %v5504
  %v5506 = vpop.f32.mrb[0].mxu0
  %5507 = vmatprep.mubr.f32.mxu0 0.0
  %v5508 = vand.u32 %v5123, 4294901760
  %5509 = vmatmul.mubr.f32.gmra.mrb[0].mxu0 %v5508
  %v5510 = vpop.f32.mrb[0].mxu0
  %v5511 = vadd.f32 %v5341, %v5510
  %v5512 = vpop.f32.mrb[0].mxu0
  %5513 = vmatprep.mubr.f32.mxu0 0.0
  %v5514 = vand.u32 %v5126, 4294901760
  %5515 = vmatmul.mubr.f32.gmra.mrb[0].mxu0 %v5514
  %v5516 = vpop.f32.mrb[0].mxu0
  %v5517 = vadd.f32 %v5351, %v5516
  %v5518 = vpop.f32.mrb[0].mxu0
  %5519 = vdwg.mxu0
  %5520 = vmatprep.subr.mxu0 0.0
  %v5521 = vand.u32 %v5071, 4294901760
  %v5522 = vsub.f32 %v5071, %v5521
  %5523 = vmatpush1.msra.mxu0 %v5522
  %5524 = vmatprep.subr.mxu0 0.0
  %5525 = vmatpush1.msra.mxu0 0.0
  %5526 = vmatprep.subr.mxu0 0.0
  %5527 = vmatpush1.msra.mxu0 0.0
  %5528 = vmatprep.subr.mxu0 0.0
  %5529 = vmatpush1.msra.mxu0 0.0
  %5530 = vmatprep.subr.mxu0 0.0
  %5531 = vmatpush1.msra.mxu0 0.0
  %5532 = vmatprep.subr.mxu0 0.0
  %5533 = vmatpush1.msra.mxu0 0.0
  %5534 = vmatprep.subr.mxu0 0.0
  %5535 = vmatpush1.msra.mxu0 0.0
  %5536 = vmatprep.subr.mxu0 0.0
  %5537 = vmatpush1.msra.mxu0 0.0
  %5538 = vmatprep.subr.mxu0 0.0
  %5539 = vmatpush1.msra.mxu0 0.0
  %5540 = vmatprep.subr.mxu0 0.0
  %5541 = vmatpush1.msra.mxu0 0.0
  %5542 = vmatprep.subr.mxu0 0.0
  %5543 = vmatpush1.msra.mxu0 0.0
  %5544 = vmatprep.subr.mxu0 0.0
  %5545 = vmatpush1.msra.mxu0 0.0
  %5546 = vmatprep.subr.mxu0 0.0
  %5547 = vmatpush1.msra.mxu0 0.0
  %5548 = vmatprep.subr.mxu0 0.0
  %5549 = vmatpush1.msra.mxu0 0.0
  %5550 = vmatprep.subr.mxu0 0.0
  %5551 = vmatpush1.msra.mxu0 0.0
  %5552 = vmatprep.subr.mxu0 0.0
  %5553 = vmatpush1.msra.mxu0 0.0
  %5554 = vmatprep.subr.mxu0 0.0
  %5555 = vmatpush1.msra.mxu0 0.0
  %5556 = vmatprep.subr.mxu0 0.0
  %5557 = vmatpush1.msra.mxu0 0.0
  %5558 = vmatprep.subr.mxu0 0.0
  %5559 = vmatpush1.msra.mxu0 0.0
  %5560 = vmatprep.subr.mxu0 0.0
  %5561 = vmatpush1.msra.mxu0 0.0
  %5562 = vmatprep.subr.mxu0 0.0
  %5563 = vmatpush1.msra.mxu0 0.0
  %5564 = vmatprep.subr.mxu0 0.0
  %5565 = vmatpush1.msra.mxu0 0.0
  %5566 = vmatprep.subr.mxu0 0.0
  %5567 = vmatpush1.msra.mxu0 0.0
  %5568 = vmatprep.subr.mxu0 0.0
  %5569 = vmatpush1.msra.mxu0 0.0
  %5570 = vmatprep.subr.mxu0 0.0
  %5571 = vmatpush1.msra.mxu0 0.0
  %5572 = vmatprep.subr.mxu0 0.0
  %5573 = vmatpush1.msra.mxu0 0.0
  %5574 = vmatprep.subr.mxu0 0.0
  %5575 = vmatpush1.msra.mxu0 0.0
  %5576 = vmatprep.subr.mxu0 0.0
  %5577 = vmatpush1.msra.mxu0 0.0
  %5578 = vmatprep.subr.mxu0 0.0
  %5579 = vmatpush1.msra.mxu0 0.0
  %5580 = vmatprep.subr.mxu0 0.0
  %5581 = vmatpush1.msra.mxu0 0.0
  %5582 = vmatprep.subr.mxu0 0.0
  %5583 = vmatpush1.msra.mxu0 0.0
  %5584 = vmatprep.subr.mxu0 0.0
  %5585 = vmatpush1.msra.mxu0 0.0
  %5586 = vmatprep.mubr.f32.mxu0 0.0
  %v5587 = vand.u32 %v5081, 4294901760
  %v5588 = vsub.f32 %v5081, %v5587
  %5589 = vmatmul.mubr.f32.gmra.mrb[0].mxu0 %v5588
  %v5590 = vpop.f32.mrb[0].mxu0
  %v5591 = vadd.f32 %v5427, %v5590
  %v5592 = vpop.f32.mrb[0].mxu0
  %5593 = vmatprep.mubr.f32.mxu0 0.0
  %v5594 = vand.u32 %v5084, 4294901760
  %v5595 = vsub.f32 %v5084, %v5594
  %5596 = vmatmul.mubr.f32.gmra.mrb[0].mxu0 %v5595
  %v5597 = vpop.f32.mrb[0].mxu0
  %v5598 = vadd.f32 %v5433, %v5597
  %v5599 = vpop.f32.mrb[0].mxu0
  %5600 = vmatprep.mubr.f32.mxu0 0.0
  %v5601 = vand.u32 %v5087, 4294901760
  %v5602 = vsub.f32 %v5087, %v5601
  %5603 = vmatmul.mubr.f32.gmra.mrb[0].mxu0 %v5602
  %v5604 = vpop.f32.mrb[0].mxu0
  %v5605 = vadd.f32 %v5439, %v5604
  %v5606 = vpop.f32.mrb[0].mxu0
  %5607 = vmatprep.mubr.f32.mxu0 0.0
  %v5608 = vand.u32 %v5090, 4294901760
  %v5609 = vsub.f32 %v5090, %v5608
  %5610 = vmatmul.mubr.f32.gmra.mrb[0].mxu0 %v5609
  %v5611 = vpop.f32.mrb[0].mxu0
  %v5612 = vadd.f32 %v5445, %v5611
  %v5613 = vpop.f32.mrb[0].mxu0
  %5614 = vmatprep.mubr.f32.mxu0 0.0
  %v5615 = vand.u32 %v5093, 4294901760
  %v5616 = vsub.f32 %v5093, %v5615
  %5617 = vmatmul.mubr.f32.gmra.mrb[0].mxu0 %v5616
  %v5618 = vpop.f32.mrb[0].mxu0
  %v5619 = vadd.f32 %v5451, %v5618
  %v5620 = vpop.f32.mrb[0].mxu0
  %5621 = vmatprep.mubr.f32.mxu0 0.0
  %v5622 = vand.u32 %v5096, 4294901760
  %v5623 = vsub.f32 %v5096, %v5622
  %5624 = vmatmul.mubr.f32.gmra.mrb[0].mxu0 %v5623
  %v5625 = vpop.f32.mrb[0].mxu0
  %v5626 = vadd.f32 %v5457, %v5625
  %v5627 = vpop.f32.mrb[0].mxu0
  %5628 = vmatprep.mubr.f32.mxu0 0.0
  %v5629 = vand.u32 %v5099, 4294901760
  %v5630 = vsub.f32 %v5099, %v5629
  %5631 = vmatmul.mubr.f32.gmra.mrb[0].mxu0 %v5630
  %v5632 = vpop.f32.mrb[0].mxu0
  %v5633 = vadd.f32 %v5463, %v5632
  %v5634 = vpop.f32.mrb[0].mxu0
  %5635 = vmatprep.mubr.f32.mxu0 0.0
  %v5636 = vand.u32 %v5102, 4294901760
  %v5637 = vsub.f32 %v5102, %v5636
  %5638 = vmatmul.mubr.f32.gmra.mrb[0].mxu0 %v5637
  %v5639 = vpop.f32.mrb[0].mxu0
  %v5640 = vadd.f32 %v5469, %v5639
  %v5641 = vpop.f32.mrb[0].mxu0
  %5642 = vmatprep.mubr.f32.mxu0 0.0
  %v5643 = vand.u32 %v5105, 4294901760
  %v5644 = vsub.f32 %v5105, %v5643
  %5645 = vmatmul.mubr.f32.gmra.mrb[0].mxu0 %v5644
  %v5646 = vpop.f32.mrb[0].mxu0
  %v5647 = vadd.f32 %v5475, %v5646
  %v5648 = vpop.f32.mrb[0].mxu0
  %5649 = vmatprep.mubr.f32.mxu0 0.0
  %v5650 = vand.u32 %v5108, 4294901760
  %v5651 = vsub.f32 %v5108, %v5650
  %5652 = vmatmul.mubr.f32.gmra.mrb[0].mxu0 %v5651
  %v5653 = vpop.f32.mrb[0].mxu0
  %v5654 = vadd.f32 %v5481, %v5653
  %v5655 = vpop.f32.mrb[0].mxu0
  %5656 = vmatprep.mubr.f32.mxu0 0.0
  %v5657 = vand.u32 %v5111, 4294901760
  %v5658 = vsub.f32 %v5111, %v5657
  %5659 = vmatmul.mubr.f32.gmra.mrb[0].mxu0 %v5658
  %v5660 = vpop.f32.mrb[0].mxu0
  %v5661 = vadd.f32 %v5487, %v5660
  %v5662 = vpop.f32.mrb[0].mxu0
  %5663 = vmatprep.mubr.f32.mxu0 0.0
  %v5664 = vand.u32 %v5114, 4294901760
  %v5665 = vsub.f32 %v5114, %v5664
  %5666 = vmatmul.mubr.f32.gmra.mrb[0].mxu0 %v5665
  %v5667 = vpop.f32.mrb[0].mxu0
  %v5668 = vadd.f32 %v5493, %v5667
  %v5669 = vpop.f32.mrb[0].mxu0
  %5670 = vmatprep.mubr.f32.mxu0 0.0
  %v5671 = vand.u32 %v5117, 4294901760
  %v5672 = vsub.f32 %v5117, %v5671
  %5673 = vmatmul.mubr.f32.gmra.mrb[0].mxu0 %v5672
  %v5674 = vpop.f32.mrb[0].mxu0
  %v5675 = vadd.f32 %v5499, %v5674
  %v5676 = vpop.f32.mrb[0].mxu0
  %5677 = vmatprep.mubr.f32.mxu0 0.0
  %v5678 = vand.u32 %v5120, 4294901760
  %v5679 = vsub.f32 %v5120, %v5678
  %5680 = vmatmul.mubr.f32.gmra.mrb[0].mxu0 %v5679
  %v5681 = vpop.f32.mrb[0].mxu0
  %v5682 = vadd.f32 %v5505, %v5681
  %v5683 = vpop.f32.mrb[0].mxu0
  %5684 = vmatprep.mubr.f32.mxu0 0.0
  %v5685 = vand.u32 %v5123, 4294901760
  %v5686 = vsub.f32 %v5123, %v5685
  %5687 = vmatmul.mubr.f32.gmra.mrb[0].mxu0 %v5686
  %v5688 = vpop.f32.mrb[0].mxu0
  %v5689 = vadd.f32 %v5511, %v5688
  %v5690 = vpop.f32.mrb[0].mxu0
  %5691 = vmatprep.mubr.f32.mxu0 0.0
  %v5692 = vand.u32 %v5126, 4294901760
  %v5693 = vsub.f32 %v5126, %v5692
  %5694 = vmatmul.mubr.f32.gmra.mrb[0].mxu0 %v5693
  %v5695 = vpop.f32.mrb[0].mxu0
  %v5696 = vadd.f32 %v5517, %v5695
  %v5697 = vpop.f32.mrb[0].mxu0
  %5698 = vdwg.mxu0
  %5699 = vmatprep.subr.mxu0 0.0
  %v5700 = vand.u32 %v5071, 4294901760
  %5701 = vmatpush1.msra.mxu0 %v5700
  %5702 = vmatprep.subr.mxu0 0.0
  %5703 = vmatpush1.msra.mxu0 0.0
  %5704 = vmatprep.subr.mxu0 0.0
  %5705 = vmatpush1.msra.mxu0 0.0
  %5706 = vmatprep.subr.mxu0 0.0
  %5707 = vmatpush1.msra.mxu0 0.0
  %5708 = vmatprep.subr.mxu0 0.0
  %5709 = vmatpush1.msra.mxu0 0.0
  %5710 = vmatprep.subr.mxu0 0.0
  %5711 = vmatpush1.msra.mxu0 0.0
  %5712 = vmatprep.subr.mxu0 0.0
  %5713 = vmatpush1.msra.mxu0 0.0
  %5714 = vmatprep.subr.mxu0 0.0
  %5715 = vmatpush1.msra.mxu0 0.0
  %5716 = vmatprep.subr.mxu0 0.0
  %5717 = vmatpush1.msra.mxu0 0.0
  %5718 = vmatprep.subr.mxu0 0.0
  %5719 = vmatpush1.msra.mxu0 0.0
  %5720 = vmatprep.subr.mxu0 0.0
  %5721 = vmatpush1.msra.mxu0 0.0
  %5722 = vmatprep.subr.mxu0 0.0
  %5723 = vmatpush1.msra.mxu0 0.0
  %5724 = vmatprep.subr.mxu0 0.0
  %5725 = vmatpush1.msra.mxu0 0.0
  %5726 = vmatprep.subr.mxu0 0.0
  %5727 = vmatpush1.msra.mxu0 0.0
  %5728 = vmatprep.subr.mxu0 0.0
  %5729 = vmatpush1.msra.mxu0 0.0
  %5730 = vmatprep.subr.mxu0 0.0
  %5731 = vmatpush1.msra.mxu0 0.0
  %5732 = vmatprep.subr.mxu0 0.0
  %5733 = vmatpush1.msra.mxu0 0.0
  %5734 = vmatprep.subr.mxu0 0.0
  %5735 = vmatpush1.msra.mxu0 0.0
  %5736 = vmatprep.subr.mxu0 0.0
  %5737 = vmatpush1.msra.mxu0 0.0
  %5738 = vmatprep.subr.mxu0 0.0
  %5739 = vmatpush1.msra.mxu0 0.0
  %5740 = vmatprep.subr.mxu0 0.0
  %5741 = vmatpush1.msra.mxu0 0.0
  %5742 = vmatprep.subr.mxu0 0.0
  %5743 = vmatpush1.msra.mxu0 0.0
  %5744 = vmatprep.subr.mxu0 0.0
  %5745 = vmatpush1.msra.mxu0 0.0
  %5746 = vmatprep.subr.mxu0 0.0
  %5747 = vmatpush1.msra.mxu0 0.0
  %5748 = vmatprep.subr.mxu0 0.0
  %5749 = vmatpush1.msra.mxu0 0.0
  %5750 = vmatprep.subr.mxu0 0.0
  %5751 = vmatpush1.msra.mxu0 0.0
  %5752 = vmatprep.subr.mxu0 0.0
  %5753 = vmatpush1.msra.mxu0 0.0
  %5754 = vmatprep.subr.mxu0 0.0
  %5755 = vmatpush1.msra.mxu0 0.0
  %5756 = vmatprep.subr.mxu0 0.0
  %5757 = vmatpush1.msra.mxu0 0.0
  %5758 = vmatprep.subr.mxu0 0.0
  %5759 = vmatpush1.msra.mxu0 0.0
  %5760 = vmatprep.subr.mxu0 0.0
  %5761 = vmatpush1.msra.mxu0 0.0
  %5762 = vmatprep.subr.mxu0 0.0
  %5763 = vmatpush1.msra.mxu0 0.0
  %5764 = vmatprep.mubr.f32.mxu0 0.0
  %v5765 = vand.u32 %v5081, 4294901760
  %v5766 = vsub.f32 %v5081, %v5765
  %v5767 = vand.u32 %v5766, 4294901760
  %5768 = vmatmul.mubr.f32.gmra.mrb[0].mxu0 %v5767
  %v5769 = vpop.f32.mrb[0].mxu0
  %v5770 = vadd.f32 %v5591, %v5769
  %v5771 = vpop.f32.mrb[0].mxu0
  %5772 = vmatprep.mubr.f32.mxu0 0.0
  %v5773 = vand.u32 %v5084, 4294901760
  %v5774 = vsub.f32 %v5084, %v5773
  %v5775 = vand.u32 %v5774, 4294901760
  %5776 = vmatmul.mubr.f32.gmra.mrb[0].mxu0 %v5775
  %v5777 = vpop.f32.mrb[0].mxu0
  %v5778 = vadd.f32 %v5598, %v5777
  %v5779 = vpop.f32.mrb[0].mxu0
  %5780 = vmatprep.mubr.f32.mxu0 0.0
  %v5781 = vand.u32 %v5087, 4294901760
  %v5782 = vsub.f32 %v5087, %v5781
  %v5783 = vand.u32 %v5782, 4294901760
  %5784 = vmatmul.mubr.f32.gmra.mrb[0].mxu0 %v5783
  %v5785 = vpop.f32.mrb[0].mxu0
  %v5786 = vadd.f32 %v5605, %v5785
  %v5787 = vpop.f32.mrb[0].mxu0
  %5788 = vmatprep.mubr.f32.mxu0 0.0
  %v5789 = vand.u32 %v5090, 4294901760
  %v5790 = vsub.f32 %v5090, %v5789
  %v5791 = vand.u32 %v5790, 4294901760
  %5792 = vmatmul.mubr.f32.gmra.mrb[0].mxu0 %v5791
  %v5793 = vpop.f32.mrb[0].mxu0
  %v5794 = vadd.f32 %v5612, %v5793
  %v5795 = vpop.f32.mrb[0].mxu0
  %5796 = vmatprep.mubr.f32.mxu0 0.0
  %v5797 = vand.u32 %v5093, 4294901760
  %v5798 = vsub.f32 %v5093, %v5797
  %v5799 = vand.u32 %v5798, 4294901760
  %5800 = vmatmul.mubr.f32.gmra.mrb[0].mxu0 %v5799
  %v5801 = vpop.f32.mrb[0].mxu0
  %v5802 = vadd.f32 %v5619, %v5801
  %v5803 = vpop.f32.mrb[0].mxu0
  %5804 = vmatprep.mubr.f32.mxu0 0.0
  %v5805 = vand.u32 %v5096, 4294901760
  %v5806 = vsub.f32 %v5096, %v5805
  %v5807 = vand.u32 %v5806, 4294901760
  %5808 = vmatmul.mubr.f32.gmra.mrb[0].mxu0 %v5807
  %v5809 = vpop.f32.mrb[0].mxu0
  %v5810 = vadd.f32 %v5626, %v5809
  %v5811 = vpop.f32.mrb[0].mxu0
  %5812 = vmatprep.mubr.f32.mxu0 0.0
  %v5813 = vand.u32 %v5099, 4294901760
  %v5814 = vsub.f32 %v5099, %v5813
  %v5815 = vand.u32 %v5814, 4294901760
  %5816 = vmatmul.mubr.f32.gmra.mrb[0].mxu0 %v5815
  %v5817 = vpop.f32.mrb[0].mxu0
  %v5818 = vadd.f32 %v5633, %v5817
  %v5819 = vpop.f32.mrb[0].mxu0
  %5820 = vmatprep.mubr.f32.mxu0 0.0
  %v5821 = vand.u32 %v5102, 4294901760
  %v5822 = vsub.f32 %v5102, %v5821
  %v5823 = vand.u32 %v5822, 4294901760
  %5824 = vmatmul.mubr.f32.gmra.mrb[0].mxu0 %v5823
  %v5825 = vpop.f32.mrb[0].mxu0
  %v5826 = vadd.f32 %v5640, %v5825
  %v5827 = vpop.f32.mrb[0].mxu0
  %5828 = vmatprep.mubr.f32.mxu0 0.0
  %v5829 = vand.u32 %v5105, 4294901760
  %v5830 = vsub.f32 %v5105, %v5829
  %v5831 = vand.u32 %v5830, 4294901760
  %5832 = vmatmul.mubr.f32.gmra.mrb[0].mxu0 %v5831
  %v5833 = vpop.f32.mrb[0].mxu0
  %v5834 = vadd.f32 %v5647, %v5833
  %v5835 = vpop.f32.mrb[0].mxu0
  %5836 = vmatprep.mubr.f32.mxu0 0.0
  %v5837 = vand.u32 %v5108, 4294901760
  %v5838 = vsub.f32 %v5108, %v5837
  %v5839 = vand.u32 %v5838, 4294901760
  %5840 = vmatmul.mubr.f32.gmra.mrb[0].mxu0 %v5839
  %v5841 = vpop.f32.mrb[0].mxu0
  %v5842 = vadd.f32 %v5654, %v5841
  %v5843 = vpop.f32.mrb[0].mxu0
  %5844 = vmatprep.mubr.f32.mxu0 0.0
  %v5845 = vand.u32 %v5111, 4294901760
  %v5846 = vsub.f32 %v5111, %v5845
  %v5847 = vand.u32 %v5846, 4294901760
  %5848 = vmatmul.mubr.f32.gmra.mrb[0].mxu0 %v5847
  %v5849 = vpop.f32.mrb[0].mxu0
  %v5850 = vadd.f32 %v5661, %v5849
  %v5851 = vpop.f32.mrb[0].mxu0
  %5852 = vmatprep.mubr.f32.mxu0 0.0
  %v5853 = vand.u32 %v5114, 4294901760
  %v5854 = vsub.f32 %v5114, %v5853
  %v5855 = vand.u32 %v5854, 4294901760
  %5856 = vmatmul.mubr.f32.gmra.mrb[0].mxu0 %v5855
  %v5857 = vpop.f32.mrb[0].mxu0
  %v5858 = vadd.f32 %v5668, %v5857
  %v5859 = vpop.f32.mrb[0].mxu0
  %5860 = vmatprep.mubr.f32.mxu0 0.0
  %v5861 = vand.u32 %v5117, 4294901760
  %v5862 = vsub.f32 %v5117, %v5861
  %v5863 = vand.u32 %v5862, 4294901760
  %5864 = vmatmul.mubr.f32.gmra.mrb[0].mxu0 %v5863
  %v5865 = vpop.f32.mrb[0].mxu0
  %v5866 = vadd.f32 %v5675, %v5865
  %v5867 = vpop.f32.mrb[0].mxu0
  %5868 = vmatprep.mubr.f32.mxu0 0.0
  %v5869 = vand.u32 %v5120, 4294901760
  %v5870 = vsub.f32 %v5120, %v5869
  %v5871 = vand.u32 %v5870, 4294901760
  %5872 = vmatmul.mubr.f32.gmra.mrb[0].mxu0 %v5871
  %v5873 = vpop.f32.mrb[0].mxu0
  %v5874 = vadd.f32 %v5682, %v5873
  %v5875 = vpop.f32.mrb[0].mxu0
  %5876 = vmatprep.mubr.f32.mxu0 0.0
  %v5877 = vand.u32 %v5123, 4294901760
  %v5878 = vsub.f32 %v5123, %v5877
  %v5879 = vand.u32 %v5878, 4294901760
  %5880 = vmatmul.mubr.f32.gmra.mrb[0].mxu0 %v5879
  %v5881 = vpop.f32.mrb[0].mxu0
  %v5882 = vadd.f32 %v5689, %v5881
  %v5883 = vpop.f32.mrb[0].mxu0
  %5884 = vmatprep.mubr.f32.mxu0 0.0
  %v5885 = vand.u32 %v5126, 4294901760
  %v5886 = vsub.f32 %v5126, %v5885
  %v5887 = vand.u32 %v5886, 4294901760
  %5888 = vmatmul.mubr.f32.gmra.mrb[0].mxu0 %v5887
  %v5889 = vpop.f32.mrb[0].mxu0
  %v5890 = vadd.f32 %v5696, %v5889
  %v5891 = vpop.f32.mrb[0].mxu0
  %5892 = vdwg.mxu0
  %5893 = vmatprep.subr.mxu0 0.0
  %v5894 = vand.u32 %v5071, 4294901760
  %v5895 = vsub.f32 %v5071, %v5894
  %v5896 = vand.u32 %v5895, 4294901760
  %5897 = vmatpush1.msra.mxu0 %v5896
  %5898 = vmatprep.subr.mxu0 0.0
  %5899 = vmatpush1.msra.mxu0 0.0
  %5900 = vmatprep.subr.mxu0 0.0
  %5901 = vmatpush1.msra.mxu0 0.0
  %5902 = vmatprep.subr.mxu0 0.0
  %5903 = vmatpush1.msra.mxu0 0.0
  %5904 = vmatprep.subr.mxu0 0.0
  %5905 = vmatpush1.msra.mxu0 0.0
  %5906 = vmatprep.subr.mxu0 0.0
  %5907 = vmatpush1.msra.mxu0 0.0
  %5908 = vmatprep.subr.mxu0 0.0
  %5909 = vmatpush1.msra.mxu0 0.0
  %5910 = vmatprep.subr.mxu0 0.0
  %5911 = vmatpush1.msra.mxu0 0.0
  %5912 = vmatprep.subr.mxu0 0.0
  %5913 = vmatpush1.msra.mxu0 0.0
  %5914 = vmatprep.subr.mxu0 0.0
  %5915 = vmatpush1.msra.mxu0 0.0
  %5916 = vmatprep.subr.mxu0 0.0
  %5917 = vmatpush1.msra.mxu0 0.0
  %5918 = vmatprep.subr.mxu0 0.0
  %5919 = vmatpush1.msra.mxu0 0.0
  %5920 = vmatprep.subr.mxu0 0.0
  %5921 = vmatpush1.msra.mxu0 0.0
  %5922 = vmatprep.subr.mxu0 0.0
  %5923 = vmatpush1.msra.mxu0 0.0
  %5924 = vmatprep.subr.mxu0 0.0
  %5925 = vmatpush1.msra.mxu0 0.0
  %5926 = vmatprep.subr.mxu0 0.0
  %5927 = vmatpush1.msra.mxu0 0.0
  %5928 = vmatprep.subr.mxu0 0.0
  %5929 = vmatpush1.msra.mxu0 0.0
  %5930 = vmatprep.subr.mxu0 0.0
  %5931 = vmatpush1.msra.mxu0 0.0
  %5932 = vmatprep.subr.mxu0 0.0
  %5933 = vmatpush1.msra.mxu0 0.0
  %5934 = vmatprep.subr.mxu0 0.0
  %5935 = vmatpush1.msra.mxu0 0.0
  %5936 = vmatprep.subr.mxu0 0.0
  %5937 = vmatpush1.msra.mxu0 0.0
  %5938 = vmatprep.subr.mxu0 0.0
  %5939 = vmatpush1.msra.mxu0 0.0
  %5940 = vmatprep.subr.mxu0 0.0
  %5941 = vmatpush1.msra.mxu0 0.0
  %5942 = vmatprep.subr.mxu0 0.0
  %5943 = vmatpush1.msra.mxu0 0.0
  %5944 = vmatprep.subr.mxu0 0.0
  %5945 = vmatpush1.msra.mxu0 0.0
  %5946 = vmatprep.subr.mxu0 0.0
  %5947 = vmatpush1.msra.mxu0 0.0
  %5948 = vmatprep.subr.mxu0 0.0
  %5949 = vmatpush1.msra.mxu0 0.0
  %5950 = vmatprep.subr.mxu0 0.0
  %5951 = vmatpush1.msra.mxu0 0.0
  %5952 = vmatprep.subr.mxu0 0.0
  %5953 = vmatpush1.msra.mxu0 0.0
  %5954 = vmatprep.subr.mxu0 0.0
  %5955 = vmatpush1.msra.mxu0 0.0
  %5956 = vmatprep.subr.mxu0 0.0
  %5957 = vmatpush1.msra.mxu0 0.0
  %5958 = vmatprep.subr.mxu0 0.0
  %5959 = vmatpush1.msra.mxu0 0.0
  %5960 = vmatprep.mubr.f32.mxu0 0.0
  %v5961 = vand.u32 %v5081, 4294901760
  %5962 = vmatmul.mubr.f32.gmra.mrb[0].mxu0 %v5961
  %v5963 = vpop.f32.mrb[0].mxu0
  %v5964 = vadd.f32 %v5770, %v5963
  %v5965 = vpop.f32.mrb[0].mxu0
  %5966 = vmatprep.mubr.f32.mxu0 0.0
  %v5967 = vand.u32 %v5084, 4294901760
  %5968 = vmatmul.mubr.f32.gmra.mrb[0].mxu0 %v5967
  %v5969 = vpop.f32.mrb[0].mxu0
  %v5970 = vadd.f32 %v5778, %v5969
  %v5971 = vpop.f32.mrb[0].mxu0
  %5972 = vmatprep.mubr.f32.mxu0 0.0
  %v5973 = vand.u32 %v5087, 4294901760
  %5974 = vmatmul.mubr.f32.gmra.mrb[0].mxu0 %v5973
  %v5975 = vpop.f32.mrb[0].mxu0
  %v5976 = vadd.f32 %v5786, %v5975
  %v5977 = vpop.f32.mrb[0].mxu0
  %5978 = vmatprep.mubr.f32.mxu0 0.0
  %v5979 = vand.u32 %v5090, 4294901760
  %5980 = vmatmul.mubr.f32.gmra.mrb[0].mxu0 %v5979
  %v5981 = vpop.f32.mrb[0].mxu0
  %v5982 = vadd.f32 %v5794, %v5981
  %v5983 = vpop.f32.mrb[0].mxu0
  %5984 = vmatprep.mubr.f32.mxu0 0.0
  %v5985 = vand.u32 %v5093, 4294901760
  %5986 = vmatmul.mubr.f32.gmra.mrb[0].mxu0 %v5985
  %v5987 = vpop.f32.mrb[0].mxu0
  %v5988 = vadd.f32 %v5802, %v5987
  %v5989 = vpop.f32.mrb[0].mxu0
  %5990 = vmatprep.mubr.f32.mxu0 0.0
  %v5991 = vand.u32 %v5096, 4294901760
  %5992 = vmatmul.mubr.f32.gmra.mrb[0].mxu0 %v5991
  %v5993 = vpop.f32.mrb[0].mxu0
  %v5994 = vadd.f32 %v5810, %v5993
  %v5995 = vpop.f32.mrb[0].mxu0
  %5996 = vmatprep.mubr.f32.mxu0 0.0
  %v5997 = vand.u32 %v5099, 4294901760
  %5998 = vmatmul.mubr.f32.gmra.mrb[0].mxu0 %v5997
  %v5999 = vpop.f32.mrb[0].mxu0
  %v6000 = vadd.f32 %v5818, %v5999
  %v6001 = vpop.f32.mrb[0].mxu0
  %6002 = vmatprep.mubr.f32.mxu0 0.0
  %v6003 = vand.u32 %v5102, 4294901760
  %6004 = vmatmul.mubr.f32.gmra.mrb[0].mxu0 %v6003
  %v6005 = vpop.f32.mrb[0].mxu0
  %v6006 = vadd.f32 %v5826, %v6005
  %v6007 = vpop.f32.mrb[0].mxu0
  %6008 = vmatprep.mubr.f32.mxu0 0.0
  %v6009 = vand.u32 %v5105, 4294901760
  %6010 = vmatmul.mubr.f32.gmra.mrb[0].mxu0 %v6009
  %v6011 = vpop.f32.mrb[0].mxu0
  %v6012 = vadd.f32 %v5834, %v6011
  %v6013 = vpop.f32.mrb[0].mxu0
  %6014 = vmatprep.mubr.f32.mxu0 0.0
  %v6015 = vand.u32 %v5108, 4294901760
  %6016 = vmatmul.mubr.f32.gmra.mrb[0].mxu0 %v6015
  %v6017 = vpop.f32.mrb[0].mxu0
  %v6018 = vadd.f32 %v5842, %v6017
  %v6019 = vpop.f32.mrb[0].mxu0
  %6020 = vmatprep.mubr.f32.mxu0 0.0
  %v6021 = vand.u32 %v5111, 4294901760
  %6022 = vmatmul.mubr.f32.gmra.mrb[0].mxu0 %v6021
  %v6023 = vpop.f32.mrb[0].mxu0
  %v6024 = vadd.f32 %v5850, %v6023
  %v6025 = vpop.f32.mrb[0].mxu0
  %6026 = vmatprep.mubr.f32.mxu0 0.0
  %v6027 = vand.u32 %v5114, 4294901760
  %6028 = vmatmul.mubr.f32.gmra.mrb[0].mxu0 %v6027
  %v6029 = vpop.f32.mrb[0].mxu0
  %v6030 = vadd.f32 %v5858, %v6029
  %v6031 = vpop.f32.mrb[0].mxu0
  %6032 = vmatprep.mubr.f32.mxu0 0.0
  %v6033 = vand.u32 %v5117, 4294901760
  %6034 = vmatmul.mubr.f32.gmra.mrb[0].mxu0 %v6033
  %v6035 = vpop.f32.mrb[0].mxu0
  %v6036 = vadd.f32 %v5866, %v6035
  %v6037 = vpop.f32.mrb[0].mxu0
  %6038 = vmatprep.mubr.f32.mxu0 0.0
  %v6039 = vand.u32 %v5120, 4294901760
  %6040 = vmatmul.mubr.f32.gmra.mrb[0].mxu0 %v6039
  %v6041 = vpop.f32.mrb[0].mxu0
  %v6042 = vadd.f32 %v5874, %v6041
  %v6043 = vpop.f32.mrb[0].mxu0
  %6044 = vmatprep.mubr.f32.mxu0 0.0
  %v6045 = vand.u32 %v5123, 4294901760
  %6046 = vmatmul.mubr.f32.gmra.mrb[0].mxu0 %v6045
  %v6047 = vpop.f32.mrb[0].mxu0
  %v6048 = vadd.f32 %v5882, %v6047
  %v6049 = vpop.f32.mrb[0].mxu0
  %6050 = vmatprep.mubr.f32.mxu0 0.0
  %v6051 = vand.u32 %v5126, 4294901760
  %6052 = vmatmul.mubr.f32.gmra.mrb[0].mxu0 %v6051
  %v6053 = vpop.f32.mrb[0].mxu0
  %v6054 = vadd.f32 %v5890, %v6053
  %v6055 = vpop.f32.mrb[0].mxu0
  %6056 = vdwg.mxu0
  %6057 = vmatprep.subr.mxu0 0.0
  %v6058 = vand.u32 %v5071, 4294901760
  %6059 = vmatpush1.msra.mxu0 %v6058
  %6060 = vmatprep.subr.mxu0 0.0
  %6061 = vmatpush1.msra.mxu0 0.0
  %6062 = vmatprep.subr.mxu0 0.0
  %6063 = vmatpush1.msra.mxu0 0.0
  %6064 = vmatprep.subr.mxu0 0.0
  %6065 = vmatpush1.msra.mxu0 0.0
  %6066 = vmatprep.subr.mxu0 0.0
  %6067 = vmatpush1.msra.mxu0 0.0
  %6068 = vmatprep.subr.mxu0 0.0
  %6069 = vmatpush1.msra.mxu0 0.0
  %6070 = vmatprep.subr.mxu0 0.0
  %6071 = vmatpush1.msra.mxu0 0.0
  %6072 = vmatprep.subr.mxu0 0.0
  %6073 = vmatpush1.msra.mxu0 0.0
  %6074 = vmatprep.subr.mxu0 0.0
  %6075 = vmatpush1.msra.mxu0 0.0
  %6076 = vmatprep.subr.mxu0 0.0
  %6077 = vmatpush1.msra.mxu0 0.0
  %6078 = vmatprep.subr.mxu0 0.0
  %6079 = vmatpush1.msra.mxu0 0.0
  %6080 = vmatprep.subr.mxu0 0.0
  %6081 = vmatpush1.msra.mxu0 0.0
  %6082 = vmatprep.subr.mxu0 0.0
  %6083 = vmatpush1.msra.mxu0 0.0
  %6084 = vmatprep.subr.mxu0 0.0
  %6085 = vmatpush1.msra.mxu0 0.0
  %6086 = vmatprep.subr.mxu0 0.0
  %6087 = vmatpush1.msra.mxu0 0.0
  %6088 = vmatprep.subr.mxu0 0.0
  %6089 = vmatpush1.msra.mxu0 0.0
  %6090 = vmatprep.subr.mxu0 0.0
  %6091 = vmatpush1.msra.mxu0 0.0
  %6092 = vmatprep.subr.mxu0 0.0
  %6093 = vmatpush1.msra.mxu0 0.0
  %6094 = vmatprep.subr.mxu0 0.0
  %6095 = vmatpush1.msra.mxu0 0.0
  %6096 = vmatprep.subr.mxu0 0.0
  %6097 = vmatpush1.msra.mxu0 0.0
  %6098 = vmatprep.subr.mxu0 0.0
  %6099 = vmatpush1.msra.mxu0 0.0
  %6100 = vmatprep.subr.mxu0 0.0
  %6101 = vmatpush1.msra.mxu0 0.0
  %6102 = vmatprep.subr.mxu0 0.0
  %6103 = vmatpush1.msra.mxu0 0.0
  %6104 = vmatprep.subr.mxu0 0.0
  %6105 = vmatpush1.msra.mxu0 0.0
  %6106 = vmatprep.subr.mxu0 0.0
  %6107 = vmatpush1.msra.mxu0 0.0
  %6108 = vmatprep.subr.mxu0 0.0
  %6109 = vmatpush1.msra.mxu0 0.0
  %6110 = vmatprep.subr.mxu0 0.0
  %6111 = vmatpush1.msra.mxu0 0.0
  %6112 = vmatprep.subr.mxu0 0.0
  %6113 = vmatpush1.msra.mxu0 0.0
  %6114 = vmatprep.subr.mxu0 0.0
  %6115 = vmatpush1.msra.mxu0 0.0
  %6116 = vmatprep.subr.mxu0 0.0
  %6117 = vmatpush1.msra.mxu0 0.0
  %6118 = vmatprep.subr.mxu0 0.0
  %6119 = vmatpush1.msra.mxu0 0.0
  %6120 = vmatprep.subr.mxu0 0.0
  %6121 = vmatpush1.msra.mxu0 0.0
  %6122 = vmatprep.mubr.f32.mxu0 0.0
  %v6123 = vand.u32 %v5081, 4294901760
  %6124 = vmatmul.mubr.f32.gmra.mrb[0].mxu0 %v6123
  %v6125 = vpop.f32.mrb[0].mxu0
  %v6126 = vadd.f32 %v5964, %v6125
  %v6127 = vpop.f32.mrb[0].mxu0
  %6128 = vmatprep.mubr.f32.mxu0 0.0
  %v6129 = vand.u32 %v5084, 4294901760
  %6130 = vmatmul.mubr.f32.gmra.mrb[0].mxu0 %v6129
  %v6131 = vpop.f32.mrb[0].mxu0
  %v6132 = vadd.f32 %v5970, %v6131
  %v6133 = vpop.f32.mrb[0].mxu0
  %6134 = vmatprep.mubr.f32.mxu0 0.0
  %v6135 = vand.u32 %v5087, 4294901760
  %6136 = vmatmul.mubr.f32.gmra.mrb[0].mxu0 %v6135
  %v6137 = vpop.f32.mrb[0].mxu0
  %v6138 = vadd.f32 %v5976, %v6137
  %v6139 = vpop.f32.mrb[0].mxu0
  %6140 = vmatprep.mubr.f32.mxu0 0.0
  %v6141 = vand.u32 %v5090, 4294901760
  %6142 = vmatmul.mubr.f32.gmra.mrb[0].mxu0 %v6141
  %v6143 = vpop.f32.mrb[0].mxu0
  %v6144 = vadd.f32 %v5982, %v6143
  %v6145 = vpop.f32.mrb[0].mxu0
  %6146 = vmatprep.mubr.f32.mxu0 0.0
  %v6147 = vand.u32 %v5093, 4294901760
  %6148 = vmatmul.mubr.f32.gmra.mrb[0].mxu0 %v6147
  %v6149 = vpop.f32.mrb[0].mxu0
  %v6150 = vadd.f32 %v5988, %v6149
  %v6151 = vpop.f32.mrb[0].mxu0
  %6152 = vmatprep.mubr.f32.mxu0 0.0
  %v6153 = vand.u32 %v5096, 4294901760
  %6154 = vmatmul.mubr.f32.gmra.mrb[0].mxu0 %v6153
  %v6155 = vpop.f32.mrb[0].mxu0
  %v6156 = vadd.f32 %v5994, %v6155
  %v6157 = vpop.f32.mrb[0].mxu0
  %6158 = vmatprep.mubr.f32.mxu0 0.0
  %v6159 = vand.u32 %v5099, 4294901760
  %6160 = vmatmul.mubr.f32.gmra.mrb[0].mxu0 %v6159
  %v6161 = vpop.f32.mrb[0].mxu0
  %v6162 = vadd.f32 %v6000, %v6161
  %v6163 = vpop.f32.mrb[0].mxu0
  %6164 = vmatprep.mubr.f32.mxu0 0.0
  %v6165 = vand.u32 %v5102, 4294901760
  %6166 = vmatmul.mubr.f32.gmra.mrb[0].mxu0 %v6165
  %v6167 = vpop.f32.mrb[0].mxu0
  %v6168 = vadd.f32 %v6006, %v6167
  %v6169 = vpop.f32.mrb[0].mxu0
  %6170 = vmatprep.mubr.f32.mxu0 0.0
  %v6171 = vand.u32 %v5105, 4294901760
  %6172 = vmatmul.mubr.f32.gmra.mrb[0].mxu0 %v6171
  %v6173 = vpop.f32.mrb[0].mxu0
  %v6174 = vadd.f32 %v6012, %v6173
  %v6175 = vpop.f32.mrb[0].mxu0
  %6176 = vmatprep.mubr.f32.mxu0 0.0
  %v6177 = vand.u32 %v5108, 4294901760
  %6178 = vmatmul.mubr.f32.gmra.mrb[0].mxu0 %v6177
  %v6179 = vpop.f32.mrb[0].mxu0
  %v6180 = vadd.f32 %v6018, %v6179
  %v6181 = vpop.f32.mrb[0].mxu0
  %6182 = vmatprep.mubr.f32.mxu0 0.0
  %v6183 = vand.u32 %v5111, 4294901760
  %6184 = vmatmul.mubr.f32.gmra.mrb[0].mxu0 %v6183
  %v6185 = vpop.f32.mrb[0].mxu0
  %v6186 = vadd.f32 %v6024, %v6185
  %v6187 = vpop.f32.mrb[0].mxu0
  %6188 = vmatprep.mubr.f32.mxu0 0.0
  %v6189 = vand.u32 %v5114, 4294901760
  %6190 = vmatmul.mubr.f32.gmra.mrb[0].mxu0 %v6189
  %v6191 = vpop.f32.mrb[0].mxu0
  %v6192 = vadd.f32 %v6030, %v6191
  %v6193 = vpop.f32.mrb[0].mxu0
  %6194 = vmatprep.mubr.f32.mxu0 0.0
  %v6195 = vand.u32 %v5117, 4294901760
  %6196 = vmatmul.mubr.f32.gmra.mrb[0].mxu0 %v6195
  %v6197 = vpop.f32.mrb[0].mxu0
  %v6198 = vadd.f32 %v6036, %v6197
  %v6199 = vpop.f32.mrb[0].mxu0
  %6200 = vmatprep.mubr.f32.mxu0 0.0
  %v6201 = vand.u32 %v5120, 4294901760
  %6202 = vmatmul.mubr.f32.gmra.mrb[0].mxu0 %v6201
  %v6203 = vpop.f32.mrb[0].mxu0
  %v6204 = vadd.f32 %v6042, %v6203
  %v6205 = vpop.f32.mrb[0].mxu0
  %6206 = vmatprep.mubr.f32.mxu0 0.0
  %v6207 = vand.u32 %v5123, 4294901760
  %6208 = vmatmul.mubr.f32.gmra.mrb[0].mxu0 %v6207
  %v6209 = vpop.f32.mrb[0].mxu0
  %v6210 = vadd.f32 %v6048, %v6209
  %v6211 = vpop.f32.mrb[0].mxu0
  %6212 = vmatprep.mubr.f32.mxu0 0.0
  %v6213 = vand.u32 %v5126, 4294901760
  %6214 = vmatmul.mubr.f32.gmra.mrb[0].mxu0 %v6213
  %v6215 = vpop.f32.mrb[0].mxu0
  %v6216 = vadd.f32 %v6054, %v6215
  %v6217 = vpop.f32.mrb[0].mxu0
  %6218 = vdwg.mxu0
  %v6219 = vxor.u32 %v6126, 2147483648
  %v6220 = vxor.u32 %v6132, 2147483648
  %v6221 = vxor.u32 %v6138, 2147483648
  %v6222 = vxor.u32 %v6144, 2147483648
  %v6223 = vxor.u32 %v6150, 2147483648
  %v6224 = vxor.u32 %v6156, 2147483648
  %v6225 = vxor.u32 %v6162, 2147483648
  %v6226 = vxor.u32 %v6168, 2147483648
  %v6227 = vxor.u32 %v6174, 2147483648
  %v6228 = vxor.u32 %v6180, 2147483648
  %v6229 = vxor.u32 %v6186, 2147483648
  %v6230 = vxor.u32 %v6192, 2147483648
  %v6231 = vxor.u32 %v6198, 2147483648
  %v6232 = vxor.u32 %v6204, 2147483648
  %v6233 = vxor.u32 %v6210, 2147483648
  %v6234 = vxor.u32 %v6216, 2147483648
  %v6235 = vmul.f32 %v6219, 1.442695
  %v6236 = vpow.pop %v6235
  %v6237 = vmul.f32 %v6220, 1.442695
  %v6238 = vpow.pop %v6237
  %v6239 = vmul.f32 %v6221, 1.442695
  %v6240 = vpow.pop %v6239
  %v6241 = vmul.f32 %v6222, 1.442695
  %v6242 = vpow.pop %v6241
  %v6243 = vmul.f32 %v6223, 1.442695
  %v6244 = vpow.pop %v6243
  %v6245 = vmul.f32 %v6224, 1.442695
  %v6246 = vpow.pop %v6245
  %v6247 = vmul.f32 %v6225, 1.442695
  %v6248 = vpow.pop %v6247
  %v6249 = vmul.f32 %v6226, 1.442695
  %v6250 = vpow.pop %v6249
  %v6251 = vmul.f32 %v6227, 1.442695
  %v6252 = vpow.pop %v6251
  %v6253 = vmul.f32 %v6228, 1.442695
  %v6254 = vpow.pop %v6253
  %v6255 = vmul.f32 %v6229, 1.442695
  %v6256 = vpow.pop %v6255
  %v6257 = vmul.f32 %v6230, 1.442695
  %v6258 = vpow.pop %v6257
  %v6259 = vmul.f32 %v6231, 1.442695
  %v6260 = vpow.pop %v6259
  %v6261 = vmul.f32 %v6232, 1.442695
  %v6262 = vpow.pop %v6261
  %v6263 = vmul.f32 %v6233, 1.442695
  %v6264 = vpow.pop %v6263
  %v6265 = vmul.f32 %v6234, 1.442695
  %v6266 = vpow.pop %v6265
  %v6267 = vadd.f32 %v6236, 1.0
  %v6268 = vadd.f32 %v6238, 1.0
  %v6269 = vadd.f32 %v6240, 1.0
  %v6270 = vadd.f32 %v6242, 1.0
  %v6271 = vadd.f32 %v6244, 1.0
  %v6272 = vadd.f32 %v6246, 1.0
  %v6273 = vadd.f32 %v6248, 1.0
  %v6274 = vadd.f32 %v6250, 1.0
  %v6275 = vadd.f32 %v6252, 1.0
  %v6276 = vadd.f32 %v6254, 1.0
  %v6277 = vadd.f32 %v6256, 1.0
  %v6278 = vadd.f32 %v6258, 1.0
  %v6279 = vadd.f32 %v6260, 1.0
  %v6280 = vadd.f32 %v6262, 1.0
  %v6281 = vadd.f32 %v6264, 1.0
  %v6282 = vadd.f32 %v6266, 1.0
  %v6283 = vrcp.pop %v6267
  %v6284 = vmul.f32 1.0, %v6283
  %v6285 = vrcp.pop %v6268
  %v6286 = vmul.f32 1.0, %v6285
  %v6287 = vrcp.pop %v6269
  %v6288 = vmul.f32 1.0, %v6287
  %v6289 = vrcp.pop %v6270
  %v6290 = vmul.f32 1.0, %v6289
  %v6291 = vrcp.pop %v6271
  %v6292 = vmul.f32 1.0, %v6291
  %v6293 = vrcp.pop %v6272
  %v6294 = vmul.f32 1.0, %v6293
  %v6295 = vrcp.pop %v6273
  %v6296 = vmul.f32 1.0, %v6295
  %v6297 = vrcp.pop %v6274
  %v6298 = vmul.f32 1.0, %v6297
  %v6299 = vrcp.pop %v6275
  %v6300 = vmul.f32 1.0, %v6299
  %v6301 = vrcp.pop %v6276
  %v6302 = vmul.f32 1.0, %v6301
  %v6303 = vrcp.pop %v6277
  %v6304 = vmul.f32 1.0, %v6303
  %v6305 = vrcp.pop %v6278
  %v6306 = vmul.f32 1.0, %v6305
  %v6307 = vrcp.pop %v6279
  %v6308 = vmul.f32 1.0, %v6307
  %v6309 = vrcp.pop %v6280
  %v6310 = vmul.f32 1.0, %v6309
  %v6311 = vrcp.pop %v6281
  %v6312 = vmul.f32 1.0, %v6311
  %v6313 = vrcp.pop %v6282
  %v6314 = vmul.f32 1.0, %v6313
  %v6315 = vld [vmem:[%s8] sm:$0xff]
  %v6316 = vld [vmem:[%s9] sm:$0x1]
  %v6318 = vlaneseq
  %v6319 = vshrl.u32 %v6318, 7
  %v6320 = vsub.s32 0, %v6319
  %v6321 = vrot.slane %v6316, %v6320
  %v6324 = vsel %vm5079, %v5041, 0
  %v6327 = vsel %vm5079, %v5042, 0
  %v6330 = vsel %vm5079, %v5045, 0
  %v6333 = vsel %vm5079, %v5046, 0
  %v6336 = vsel %vm5079, %v5049, 0
  %v6339 = vsel %vm5079, %v5050, 0
  %v6342 = vsel %vm5079, %v5053, 0
  %v6345 = vsel %vm5079, %v5054, 0
  %v6348 = vsel %vm5079, %v5057, 0
  %v6351 = vsel %vm5079, %v5058, 0
  %v6354 = vsel %vm5079, %v5061, 0
  %v6357 = vsel %vm5079, %v5062, 0
  %v6360 = vsel %vm5079, %v5065, 0
  %v6363 = vsel %vm5079, %v5066, 0
  %v6366 = vsel %vm5079, %v5069, 0
  %v6369 = vsel %vm5079, %v5070, 0
  %6371 = vmatprep.subr.mxu0 0.0
  %v6372 = vand.u32 %v6315, 4294901760
  %6373 = vmatpush1.msra.mxu0 %v6372
  %6374 = vmatprep.subr.mxu0 0.0
  %6375 = vmatpush1.msra.mxu0 0.0
  %6376 = vmatprep.subr.mxu0 0.0
  %6377 = vmatpush1.msra.mxu0 0.0
  %6378 = vmatprep.subr.mxu0 0.0
  %6379 = vmatpush1.msra.mxu0 0.0
  %6380 = vmatprep.subr.mxu0 0.0
  %6381 = vmatpush1.msra.mxu0 0.0
  %6382 = vmatprep.subr.mxu0 0.0
  %6383 = vmatpush1.msra.mxu0 0.0
  %6384 = vmatprep.subr.mxu0 0.0
  %6385 = vmatpush1.msra.mxu0 0.0
  %6386 = vmatprep.subr.mxu0 0.0
  %6387 = vmatpush1.msra.mxu0 0.0
  %6388 = vmatprep.subr.mxu0 0.0
  %6389 = vmatpush1.msra.mxu0 0.0
  %6390 = vmatprep.subr.mxu0 0.0
  %6391 = vmatpush1.msra.mxu0 0.0
  %6392 = vmatprep.subr.mxu0 0.0
  %6393 = vmatpush1.msra.mxu0 0.0
  %6394 = vmatprep.subr.mxu0 0.0
  %6395 = vmatpush1.msra.mxu0 0.0
  %6396 = vmatprep.subr.mxu0 0.0
  %6397 = vmatpush1.msra.mxu0 0.0
  %6398 = vmatprep.subr.mxu0 0.0
  %6399 = vmatpush1.msra.mxu0 0.0
  %6400 = vmatprep.subr.mxu0 0.0
  %6401 = vmatpush1.msra.mxu0 0.0
  %6402 = vmatprep.subr.mxu0 0.0
  %6403 = vmatpush1.msra.mxu0 0.0
  %6404 = vmatprep.subr.mxu0 0.0
  %6405 = vmatpush1.msra.mxu0 0.0
  %6406 = vmatprep.subr.mxu0 0.0
  %6407 = vmatpush1.msra.mxu0 0.0
  %6408 = vmatprep.subr.mxu0 0.0
  %6409 = vmatpush1.msra.mxu0 0.0
  %6410 = vmatprep.subr.mxu0 0.0
  %6411 = vmatpush1.msra.mxu0 0.0
  %6412 = vmatprep.subr.mxu0 0.0
  %6413 = vmatpush1.msra.mxu0 0.0
  %6414 = vmatprep.subr.mxu0 0.0
  %6415 = vmatpush1.msra.mxu0 0.0
  %6416 = vmatprep.subr.mxu0 0.0
  %6417 = vmatpush1.msra.mxu0 0.0
  %6418 = vmatprep.subr.mxu0 0.0
  %6419 = vmatpush1.msra.mxu0 0.0
  %6420 = vmatprep.subr.mxu0 0.0
  %6421 = vmatpush1.msra.mxu0 0.0
  %6422 = vmatprep.subr.mxu0 0.0
  %6423 = vmatpush1.msra.mxu0 0.0
  %6424 = vmatprep.subr.mxu0 0.0
  %6425 = vmatpush1.msra.mxu0 0.0
  %6426 = vmatprep.subr.mxu0 0.0
  %6427 = vmatpush1.msra.mxu0 0.0
  %6428 = vmatprep.subr.mxu0 0.0
  %6429 = vmatpush1.msra.mxu0 0.0
  %6430 = vmatprep.subr.mxu0 0.0
  %6431 = vmatpush1.msra.mxu0 0.0
  %6432 = vmatprep.subr.mxu0 0.0
  %6433 = vmatpush1.msra.mxu0 0.0
  %6434 = vmatprep.subr.mxu0 0.0
  %6435 = vmatpush1.msra.mxu0 0.0
  %6436 = vmatprep.mubr.f32.mxu0 0.0
  %v6437 = vand.u32 %v6324, 4294901760
  %v6438 = vsub.f32 %v6324, %v6437
  %v6439 = vand.u32 %v6438, 4294901760
  %v6440 = vsub.f32 %v6438, %v6439
  %v6441 = vand.u32 %v6440, 4294901760
  %6442 = vmatmul.mubr.f32.gmra.mrb[0].mxu0 %v6441
  %v6443 = vpop.f32.mrb[0].mxu0
  %v6444 = vadd.f32 %v6321, %v6443
  %v6445 = vpop.f32.mrb[0].mxu0
  %6446 = vmatprep.mubr.f32.mxu0 0.0
  %v6447 = vand.u32 %v6327, 4294901760
  %v6448 = vsub.f32 %v6327, %v6447
  %v6449 = vand.u32 %v6448, 4294901760
  %v6450 = vsub.f32 %v6448, %v6449
  %v6451 = vand.u32 %v6450, 4294901760
  %6452 = vmatmul.mubr.f32.gmra.mrb[0].mxu0 %v6451
  %v6453 = vpop.f32.mrb[0].mxu0
  %v6454 = vadd.f32 %v6321, %v6453
  %v6455 = vpop.f32.mrb[0].mxu0
  %6456 = vmatprep.mubr.f32.mxu0 0.0
  %v6457 = vand.u32 %v6330, 4294901760
  %v6458 = vsub.f32 %v6330, %v6457
  %v6459 = vand.u32 %v6458, 4294901760
  %v6460 = vsub.f32 %v6458, %v6459
  %v6461 = vand.u32 %v6460, 4294901760
  %6462 = vmatmul.mubr.f32.gmra.mrb[0].mxu0 %v6461
  %v6463 = vpop.f32.mrb[0].mxu0
  %v6464 = vadd.f32 %v6321, %v6463
  %v6465 = vpop.f32.mrb[0].mxu0
  %6466 = vmatprep.mubr.f32.mxu0 0.0
  %v6467 = vand.u32 %v6333, 4294901760
  %v6468 = vsub.f32 %v6333, %v6467
  %v6469 = vand.u32 %v6468, 4294901760
  %v6470 = vsub.f32 %v6468, %v6469
  %v6471 = vand.u32 %v6470, 4294901760
  %6472 = vmatmul.mubr.f32.gmra.mrb[0].mxu0 %v6471
  %v6473 = vpop.f32.mrb[0].mxu0
  %v6474 = vadd.f32 %v6321, %v6473
  %v6475 = vpop.f32.mrb[0].mxu0
  %6476 = vmatprep.mubr.f32.mxu0 0.0
  %v6477 = vand.u32 %v6336, 4294901760
  %v6478 = vsub.f32 %v6336, %v6477
  %v6479 = vand.u32 %v6478, 4294901760
  %v6480 = vsub.f32 %v6478, %v6479
  %v6481 = vand.u32 %v6480, 4294901760
  %6482 = vmatmul.mubr.f32.gmra.mrb[0].mxu0 %v6481
  %v6483 = vpop.f32.mrb[0].mxu0
  %v6484 = vadd.f32 %v6321, %v6483
  %v6485 = vpop.f32.mrb[0].mxu0
  %6486 = vmatprep.mubr.f32.mxu0 0.0
  %v6487 = vand.u32 %v6339, 4294901760
  %v6488 = vsub.f32 %v6339, %v6487
  %v6489 = vand.u32 %v6488, 4294901760
  %v6490 = vsub.f32 %v6488, %v6489
  %v6491 = vand.u32 %v6490, 4294901760
  %6492 = vmatmul.mubr.f32.gmra.mrb[0].mxu0 %v6491
  %v6493 = vpop.f32.mrb[0].mxu0
  %v6494 = vadd.f32 %v6321, %v6493
  %v6495 = vpop.f32.mrb[0].mxu0
  %6496 = vmatprep.mubr.f32.mxu0 0.0
  %v6497 = vand.u32 %v6342, 4294901760
  %v6498 = vsub.f32 %v6342, %v6497
  %v6499 = vand.u32 %v6498, 4294901760
  %v6500 = vsub.f32 %v6498, %v6499
  %v6501 = vand.u32 %v6500, 4294901760
  %6502 = vmatmul.mubr.f32.gmra.mrb[0].mxu0 %v6501
  %v6503 = vpop.f32.mrb[0].mxu0
  %v6504 = vadd.f32 %v6321, %v6503
  %v6505 = vpop.f32.mrb[0].mxu0
  %6506 = vmatprep.mubr.f32.mxu0 0.0
  %v6507 = vand.u32 %v6345, 4294901760
  %v6508 = vsub.f32 %v6345, %v6507
  %v6509 = vand.u32 %v6508, 4294901760
  %v6510 = vsub.f32 %v6508, %v6509
  %v6511 = vand.u32 %v6510, 4294901760
  %6512 = vmatmul.mubr.f32.gmra.mrb[0].mxu0 %v6511
  %v6513 = vpop.f32.mrb[0].mxu0
  %v6514 = vadd.f32 %v6321, %v6513
  %v6515 = vpop.f32.mrb[0].mxu0
  %6516 = vmatprep.mubr.f32.mxu0 0.0
  %v6517 = vand.u32 %v6348, 4294901760
  %v6518 = vsub.f32 %v6348, %v6517
  %v6519 = vand.u32 %v6518, 4294901760
  %v6520 = vsub.f32 %v6518, %v6519
  %v6521 = vand.u32 %v6520, 4294901760
  %6522 = vmatmul.mubr.f32.gmra.mrb[0].mxu0 %v6521
  %v6523 = vpop.f32.mrb[0].mxu0
  %v6524 = vadd.f32 %v6321, %v6523
  %v6525 = vpop.f32.mrb[0].mxu0
  %6526 = vmatprep.mubr.f32.mxu0 0.0
  %v6527 = vand.u32 %v6351, 4294901760
  %v6528 = vsub.f32 %v6351, %v6527
  %v6529 = vand.u32 %v6528, 4294901760
  %v6530 = vsub.f32 %v6528, %v6529
  %v6531 = vand.u32 %v6530, 4294901760
  %6532 = vmatmul.mubr.f32.gmra.mrb[0].mxu0 %v6531
  %v6533 = vpop.f32.mrb[0].mxu0
  %v6534 = vadd.f32 %v6321, %v6533
  %v6535 = vpop.f32.mrb[0].mxu0
  %6536 = vmatprep.mubr.f32.mxu0 0.0
  %v6537 = vand.u32 %v6354, 4294901760
  %v6538 = vsub.f32 %v6354, %v6537
  %v6539 = vand.u32 %v6538, 4294901760
  %v6540 = vsub.f32 %v6538, %v6539
  %v6541 = vand.u32 %v6540, 4294901760
  %6542 = vmatmul.mubr.f32.gmra.mrb[0].mxu0 %v6541
  %v6543 = vpop.f32.mrb[0].mxu0
  %v6544 = vadd.f32 %v6321, %v6543
  %v6545 = vpop.f32.mrb[0].mxu0
  %6546 = vmatprep.mubr.f32.mxu0 0.0
  %v6547 = vand.u32 %v6357, 4294901760
  %v6548 = vsub.f32 %v6357, %v6547
  %v6549 = vand.u32 %v6548, 4294901760
  %v6550 = vsub.f32 %v6548, %v6549
  %v6551 = vand.u32 %v6550, 4294901760
  %6552 = vmatmul.mubr.f32.gmra.mrb[0].mxu0 %v6551
  %v6553 = vpop.f32.mrb[0].mxu0
  %v6554 = vadd.f32 %v6321, %v6553
  %v6555 = vpop.f32.mrb[0].mxu0
  %6556 = vmatprep.mubr.f32.mxu0 0.0
  %v6557 = vand.u32 %v6360, 4294901760
  %v6558 = vsub.f32 %v6360, %v6557
  %v6559 = vand.u32 %v6558, 4294901760
  %v6560 = vsub.f32 %v6558, %v6559
  %v6561 = vand.u32 %v6560, 4294901760
  %6562 = vmatmul.mubr.f32.gmra.mrb[0].mxu0 %v6561
  %v6563 = vpop.f32.mrb[0].mxu0
  %v6564 = vadd.f32 %v6321, %v6563
  %v6565 = vpop.f32.mrb[0].mxu0
  %6566 = vmatprep.mubr.f32.mxu0 0.0
  %v6567 = vand.u32 %v6363, 4294901760
  %v6568 = vsub.f32 %v6363, %v6567
  %v6569 = vand.u32 %v6568, 4294901760
  %v6570 = vsub.f32 %v6568, %v6569
  %v6571 = vand.u32 %v6570, 4294901760
  %6572 = vmatmul.mubr.f32.gmra.mrb[0].mxu0 %v6571
  %v6573 = vpop.f32.mrb[0].mxu0
  %v6574 = vadd.f32 %v6321, %v6573
  %v6575 = vpop.f32.mrb[0].mxu0
  %6576 = vmatprep.mubr.f32.mxu0 0.0
  %v6577 = vand.u32 %v6366, 4294901760
  %v6578 = vsub.f32 %v6366, %v6577
  %v6579 = vand.u32 %v6578, 4294901760
  %v6580 = vsub.f32 %v6578, %v6579
  %v6581 = vand.u32 %v6580, 4294901760
  %6582 = vmatmul.mubr.f32.gmra.mrb[0].mxu0 %v6581
  %v6583 = vpop.f32.mrb[0].mxu0
  %v6584 = vadd.f32 %v6321, %v6583
  %v6585 = vpop.f32.mrb[0].mxu0
  %6586 = vmatprep.mubr.f32.mxu0 0.0
  %v6587 = vand.u32 %v6369, 4294901760
  %v6588 = vsub.f32 %v6369, %v6587
  %v6589 = vand.u32 %v6588, 4294901760
  %v6590 = vsub.f32 %v6588, %v6589
  %v6591 = vand.u32 %v6590, 4294901760
  %6592 = vmatmul.mubr.f32.gmra.mrb[0].mxu0 %v6591
  %v6593 = vpop.f32.mrb[0].mxu0
  %v6594 = vadd.f32 %v6321, %v6593
  %v6595 = vpop.f32.mrb[0].mxu0
  %6596 = vdwg.mxu0
  %6597 = vmatprep.subr.mxu0 0.0
  %v6598 = vand.u32 %v6315, 4294901760
  %v6599 = vsub.f32 %v6315, %v6598
  %v6600 = vand.u32 %v6599, 4294901760
  %v6601 = vsub.f32 %v6599, %v6600
  %v6602 = vand.u32 %v6601, 4294901760
  %6603 = vmatpush1.msra.mxu0 %v6602
  %6604 = vmatprep.subr.mxu0 0.0
  %6605 = vmatpush1.msra.mxu0 0.0
  %6606 = vmatprep.subr.mxu0 0.0
  %6607 = vmatpush1.msra.mxu0 0.0
  %6608 = vmatprep.subr.mxu0 0.0
  %6609 = vmatpush1.msra.mxu0 0.0
  %6610 = vmatprep.subr.mxu0 0.0
  %6611 = vmatpush1.msra.mxu0 0.0
  %6612 = vmatprep.subr.mxu0 0.0
  %6613 = vmatpush1.msra.mxu0 0.0
  %6614 = vmatprep.subr.mxu0 0.0
  %6615 = vmatpush1.msra.mxu0 0.0
  %6616 = vmatprep.subr.mxu0 0.0
  %6617 = vmatpush1.msra.mxu0 0.0
  %6618 = vmatprep.subr.mxu0 0.0
  %6619 = vmatpush1.msra.mxu0 0.0
  %6620 = vmatprep.subr.mxu0 0.0
  %6621 = vmatpush1.msra.mxu0 0.0
  %6622 = vmatprep.subr.mxu0 0.0
  %6623 = vmatpush1.msra.mxu0 0.0
  %6624 = vmatprep.subr.mxu0 0.0
  %6625 = vmatpush1.msra.mxu0 0.0
  %6626 = vmatprep.subr.mxu0 0.0
  %6627 = vmatpush1.msra.mxu0 0.0
  %6628 = vmatprep.subr.mxu0 0.0
  %6629 = vmatpush1.msra.mxu0 0.0
  %6630 = vmatprep.subr.mxu0 0.0
  %6631 = vmatpush1.msra.mxu0 0.0
  %6632 = vmatprep.subr.mxu0 0.0
  %6633 = vmatpush1.msra.mxu0 0.0
  %6634 = vmatprep.subr.mxu0 0.0
  %6635 = vmatpush1.msra.mxu0 0.0
  %6636 = vmatprep.subr.mxu0 0.0
  %6637 = vmatpush1.msra.mxu0 0.0
  %6638 = vmatprep.subr.mxu0 0.0
  %6639 = vmatpush1.msra.mxu0 0.0
  %6640 = vmatprep.subr.mxu0 0.0
  %6641 = vmatpush1.msra.mxu0 0.0
  %6642 = vmatprep.subr.mxu0 0.0
  %6643 = vmatpush1.msra.mxu0 0.0
  %6644 = vmatprep.subr.mxu0 0.0
  %6645 = vmatpush1.msra.mxu0 0.0
  %6646 = vmatprep.subr.mxu0 0.0
  %6647 = vmatpush1.msra.mxu0 0.0
  %6648 = vmatprep.subr.mxu0 0.0
  %6649 = vmatpush1.msra.mxu0 0.0
  %6650 = vmatprep.subr.mxu0 0.0
  %6651 = vmatpush1.msra.mxu0 0.0
  %6652 = vmatprep.subr.mxu0 0.0
  %6653 = vmatpush1.msra.mxu0 0.0
  %6654 = vmatprep.subr.mxu0 0.0
  %6655 = vmatpush1.msra.mxu0 0.0
  %6656 = vmatprep.subr.mxu0 0.0
  %6657 = vmatpush1.msra.mxu0 0.0
  %6658 = vmatprep.subr.mxu0 0.0
  %6659 = vmatpush1.msra.mxu0 0.0
  %6660 = vmatprep.subr.mxu0 0.0
  %6661 = vmatpush1.msra.mxu0 0.0
  %6662 = vmatprep.subr.mxu0 0.0
  %6663 = vmatpush1.msra.mxu0 0.0
  %6664 = vmatprep.subr.mxu0 0.0
  %6665 = vmatpush1.msra.mxu0 0.0
  %6666 = vmatprep.mubr.f32.mxu0 0.0
  %v6667 = vand.u32 %v6324, 4294901760
  %6668 = vmatmul.mubr.f32.gmra.mrb[0].mxu0 %v6667
  %v6669 = vpop.f32.mrb[0].mxu0
  %v6670 = vadd.f32 %v6444, %v6669
  %v6671 = vpop.f32.mrb[0].mxu0
  %6672 = vmatprep.mubr.f32.mxu0 0.0
  %v6673 = vand.u32 %v6327, 4294901760
  %6674 = vmatmul.mubr.f32.gmra.mrb[0].mxu0 %v6673
  %v6675 = vpop.f32.mrb[0].mxu0
  %v6676 = vadd.f32 %v6454, %v6675
  %v6677 = vpop.f32.mrb[0].mxu0
  %6678 = vmatprep.mubr.f32.mxu0 0.0
  %v6679 = vand.u32 %v6330, 4294901760
  %6680 = vmatmul.mubr.f32.gmra.mrb[0].mxu0 %v6679
  %v6681 = vpop.f32.mrb[0].mxu0
  %v6682 = vadd.f32 %v6464, %v6681
  %v6683 = vpop.f32.mrb[0].mxu0
  %6684 = vmatprep.mubr.f32.mxu0 0.0
  %v6685 = vand.u32 %v6333, 4294901760
  %6686 = vmatmul.mubr.f32.gmra.mrb[0].mxu0 %v6685
  %v6687 = vpop.f32.mrb[0].mxu0
  %v6688 = vadd.f32 %v6474, %v6687
  %v6689 = vpop.f32.mrb[0].mxu0
  %6690 = vmatprep.mubr.f32.mxu0 0.0
  %v6691 = vand.u32 %v6336, 4294901760
  %6692 = vmatmul.mubr.f32.gmra.mrb[0].mxu0 %v6691
  %v6693 = vpop.f32.mrb[0].mxu0
  %v6694 = vadd.f32 %v6484, %v6693
  %v6695 = vpop.f32.mrb[0].mxu0
  %6696 = vmatprep.mubr.f32.mxu0 0.0
  %v6697 = vand.u32 %v6339, 4294901760
  %6698 = vmatmul.mubr.f32.gmra.mrb[0].mxu0 %v6697
  %v6699 = vpop.f32.mrb[0].mxu0
  %v6700 = vadd.f32 %v6494, %v6699
  %v6701 = vpop.f32.mrb[0].mxu0
  %6702 = vmatprep.mubr.f32.mxu0 0.0
  %v6703 = vand.u32 %v6342, 4294901760
  %6704 = vmatmul.mubr.f32.gmra.mrb[0].mxu0 %v6703
  %v6705 = vpop.f32.mrb[0].mxu0
  %v6706 = vadd.f32 %v6504, %v6705
  %v6707 = vpop.f32.mrb[0].mxu0
  %6708 = vmatprep.mubr.f32.mxu0 0.0
  %v6709 = vand.u32 %v6345, 4294901760
  %6710 = vmatmul.mubr.f32.gmra.mrb[0].mxu0 %v6709
  %v6711 = vpop.f32.mrb[0].mxu0
  %v6712 = vadd.f32 %v6514, %v6711
  %v6713 = vpop.f32.mrb[0].mxu0
  %6714 = vmatprep.mubr.f32.mxu0 0.0
  %v6715 = vand.u32 %v6348, 4294901760
  %6716 = vmatmul.mubr.f32.gmra.mrb[0].mxu0 %v6715
  %v6717 = vpop.f32.mrb[0].mxu0
  %v6718 = vadd.f32 %v6524, %v6717
  %v6719 = vpop.f32.mrb[0].mxu0
  %6720 = vmatprep.mubr.f32.mxu0 0.0
  %v6721 = vand.u32 %v6351, 4294901760
  %6722 = vmatmul.mubr.f32.gmra.mrb[0].mxu0 %v6721
  %v6723 = vpop.f32.mrb[0].mxu0
  %v6724 = vadd.f32 %v6534, %v6723
  %v6725 = vpop.f32.mrb[0].mxu0
  %6726 = vmatprep.mubr.f32.mxu0 0.0
  %v6727 = vand.u32 %v6354, 4294901760
  %6728 = vmatmul.mubr.f32.gmra.mrb[0].mxu0 %v6727
  %v6729 = vpop.f32.mrb[0].mxu0
  %v6730 = vadd.f32 %v6544, %v6729
  %v6731 = vpop.f32.mrb[0].mxu0
  %6732 = vmatprep.mubr.f32.mxu0 0.0
  %v6733 = vand.u32 %v6357, 4294901760
  %6734 = vmatmul.mubr.f32.gmra.mrb[0].mxu0 %v6733
  %v6735 = vpop.f32.mrb[0].mxu0
  %v6736 = vadd.f32 %v6554, %v6735
  %v6737 = vpop.f32.mrb[0].mxu0
  %6738 = vmatprep.mubr.f32.mxu0 0.0
  %v6739 = vand.u32 %v6360, 4294901760
  %6740 = vmatmul.mubr.f32.gmra.mrb[0].mxu0 %v6739
  %v6741 = vpop.f32.mrb[0].mxu0
  %v6742 = vadd.f32 %v6564, %v6741
  %v6743 = vpop.f32.mrb[0].mxu0
  %6744 = vmatprep.mubr.f32.mxu0 0.0
  %v6745 = vand.u32 %v6363, 4294901760
  %6746 = vmatmul.mubr.f32.gmra.mrb[0].mxu0 %v6745
  %v6747 = vpop.f32.mrb[0].mxu0
  %v6748 = vadd.f32 %v6574, %v6747
  %v6749 = vpop.f32.mrb[0].mxu0
  %6750 = vmatprep.mubr.f32.mxu0 0.0
  %v6751 = vand.u32 %v6366, 4294901760
  %6752 = vmatmul.mubr.f32.gmra.mrb[0].mxu0 %v6751
  %v6753 = vpop.f32.mrb[0].mxu0
  %v6754 = vadd.f32 %v6584, %v6753
  %v6755 = vpop.f32.mrb[0].mxu0
  %6756 = vmatprep.mubr.f32.mxu0 0.0
  %v6757 = vand.u32 %v6369, 4294901760
  %6758 = vmatmul.mubr.f32.gmra.mrb[0].mxu0 %v6757
  %v6759 = vpop.f32.mrb[0].mxu0
  %v6760 = vadd.f32 %v6594, %v6759
  %v6761 = vpop.f32.mrb[0].mxu0
  %6762 = vdwg.mxu0
  %6763 = vmatprep.subr.mxu0 0.0
  %v6764 = vand.u32 %v6315, 4294901760
  %v6765 = vsub.f32 %v6315, %v6764
  %6766 = vmatpush1.msra.mxu0 %v6765
  %6767 = vmatprep.subr.mxu0 0.0
  %6768 = vmatpush1.msra.mxu0 0.0
  %6769 = vmatprep.subr.mxu0 0.0
  %6770 = vmatpush1.msra.mxu0 0.0
  %6771 = vmatprep.subr.mxu0 0.0
  %6772 = vmatpush1.msra.mxu0 0.0
  %6773 = vmatprep.subr.mxu0 0.0
  %6774 = vmatpush1.msra.mxu0 0.0
  %6775 = vmatprep.subr.mxu0 0.0
  %6776 = vmatpush1.msra.mxu0 0.0
  %6777 = vmatprep.subr.mxu0 0.0
  %6778 = vmatpush1.msra.mxu0 0.0
  %6779 = vmatprep.subr.mxu0 0.0
  %6780 = vmatpush1.msra.mxu0 0.0
  %6781 = vmatprep.subr.mxu0 0.0
  %6782 = vmatpush1.msra.mxu0 0.0
  %6783 = vmatprep.subr.mxu0 0.0
  %6784 = vmatpush1.msra.mxu0 0.0
  %6785 = vmatprep.subr.mxu0 0.0
  %6786 = vmatpush1.msra.mxu0 0.0
  %6787 = vmatprep.subr.mxu0 0.0
  %6788 = vmatpush1.msra.mxu0 0.0
  %6789 = vmatprep.subr.mxu0 0.0
  %6790 = vmatpush1.msra.mxu0 0.0
  %6791 = vmatprep.subr.mxu0 0.0
  %6792 = vmatpush1.msra.mxu0 0.0
  %6793 = vmatprep.subr.mxu0 0.0
  %6794 = vmatpush1.msra.mxu0 0.0
  %6795 = vmatprep.subr.mxu0 0.0
  %6796 = vmatpush1.msra.mxu0 0.0
  %6797 = vmatprep.subr.mxu0 0.0
  %6798 = vmatpush1.msra.mxu0 0.0
  %6799 = vmatprep.subr.mxu0 0.0
  %6800 = vmatpush1.msra.mxu0 0.0
  %6801 = vmatprep.subr.mxu0 0.0
  %6802 = vmatpush1.msra.mxu0 0.0
  %6803 = vmatprep.subr.mxu0 0.0
  %6804 = vmatpush1.msra.mxu0 0.0
  %6805 = vmatprep.subr.mxu0 0.0
  %6806 = vmatpush1.msra.mxu0 0.0
  %6807 = vmatprep.subr.mxu0 0.0
  %6808 = vmatpush1.msra.mxu0 0.0
  %6809 = vmatprep.subr.mxu0 0.0
  %6810 = vmatpush1.msra.mxu0 0.0
  %6811 = vmatprep.subr.mxu0 0.0
  %6812 = vmatpush1.msra.mxu0 0.0
  %6813 = vmatprep.subr.mxu0 0.0
  %6814 = vmatpush1.msra.mxu0 0.0
  %6815 = vmatprep.subr.mxu0 0.0
  %6816 = vmatpush1.msra.mxu0 0.0
  %6817 = vmatprep.subr.mxu0 0.0
  %6818 = vmatpush1.msra.mxu0 0.0
  %6819 = vmatprep.subr.mxu0 0.0
  %6820 = vmatpush1.msra.mxu0 0.0
  %6821 = vmatprep.subr.mxu0 0.0
  %6822 = vmatpush1.msra.mxu0 0.0
  %6823 = vmatprep.subr.mxu0 0.0
  %6824 = vmatpush1.msra.mxu0 0.0
  %6825 = vmatprep.subr.mxu0 0.0
  %6826 = vmatpush1.msra.mxu0 0.0
  %6827 = vmatprep.subr.mxu0 0.0
  %6828 = vmatpush1.msra.mxu0 0.0
  %6829 = vmatprep.mubr.f32.mxu0 0.0
  %v6830 = vand.u32 %v6324, 4294901760
  %v6831 = vsub.f32 %v6324, %v6830
  %6832 = vmatmul.mubr.f32.gmra.mrb[0].mxu0 %v6831
  %v6833 = vpop.f32.mrb[0].mxu0
  %v6834 = vadd.f32 %v6670, %v6833
  %v6835 = vpop.f32.mrb[0].mxu0
  %6836 = vmatprep.mubr.f32.mxu0 0.0
  %v6837 = vand.u32 %v6327, 4294901760
  %v6838 = vsub.f32 %v6327, %v6837
  %6839 = vmatmul.mubr.f32.gmra.mrb[0].mxu0 %v6838
  %v6840 = vpop.f32.mrb[0].mxu0
  %v6841 = vadd.f32 %v6676, %v6840
  %v6842 = vpop.f32.mrb[0].mxu0
  %6843 = vmatprep.mubr.f32.mxu0 0.0
  %v6844 = vand.u32 %v6330, 4294901760
  %v6845 = vsub.f32 %v6330, %v6844
  %6846 = vmatmul.mubr.f32.gmra.mrb[0].mxu0 %v6845
  %v6847 = vpop.f32.mrb[0].mxu0
  %v6848 = vadd.f32 %v6682, %v6847
  %v6849 = vpop.f32.mrb[0].mxu0
  %6850 = vmatprep.mubr.f32.mxu0 0.0
  %v6851 = vand.u32 %v6333, 4294901760
  %v6852 = vsub.f32 %v6333, %v6851
  %6853 = vmatmul.mubr.f32.gmra.mrb[0].mxu0 %v6852
  %v6854 = vpop.f32.mrb[0].mxu0
  %v6855 = vadd.f32 %v6688, %v6854
  %v6856 = vpop.f32.mrb[0].mxu0
  %6857 = vmatprep.mubr.f32.mxu0 0.0
  %v6858 = vand.u32 %v6336, 4294901760
  %v6859 = vsub.f32 %v6336, %v6858
  %6860 = vmatmul.mubr.f32.gmra.mrb[0].mxu0 %v6859
  %v6861 = vpop.f32.mrb[0].mxu0
  %v6862 = vadd.f32 %v6694, %v6861
  %v6863 = vpop.f32.mrb[0].mxu0
  %6864 = vmatprep.mubr.f32.mxu0 0.0
  %v6865 = vand.u32 %v6339, 4294901760
  %v6866 = vsub.f32 %v6339, %v6865
  %6867 = vmatmul.mubr.f32.gmra.mrb[0].mxu0 %v6866
  %v6868 = vpop.f32.mrb[0].mxu0
  %v6869 = vadd.f32 %v6700, %v6868
  %v6870 = vpop.f32.mrb[0].mxu0
  %6871 = vmatprep.mubr.f32.mxu0 0.0
  %v6872 = vand.u32 %v6342, 4294901760
  %v6873 = vsub.f32 %v6342, %v6872
  %6874 = vmatmul.mubr.f32.gmra.mrb[0].mxu0 %v6873
  %v6875 = vpop.f32.mrb[0].mxu0
  %v6876 = vadd.f32 %v6706, %v6875
  %v6877 = vpop.f32.mrb[0].mxu0
  %6878 = vmatprep.mubr.f32.mxu0 0.0
  %v6879 = vand.u32 %v6345, 4294901760
  %v6880 = vsub.f32 %v6345, %v6879
  %6881 = vmatmul.mubr.f32.gmra.mrb[0].mxu0 %v6880
  %v6882 = vpop.f32.mrb[0].mxu0
  %v6883 = vadd.f32 %v6712, %v6882
  %v6884 = vpop.f32.mrb[0].mxu0
  %6885 = vmatprep.mubr.f32.mxu0 0.0
  %v6886 = vand.u32 %v6348, 4294901760
  %v6887 = vsub.f32 %v6348, %v6886
  %6888 = vmatmul.mubr.f32.gmra.mrb[0].mxu0 %v6887
  %v6889 = vpop.f32.mrb[0].mxu0
  %v6890 = vadd.f32 %v6718, %v6889
  %v6891 = vpop.f32.mrb[0].mxu0
  %6892 = vmatprep.mubr.f32.mxu0 0.0
  %v6893 = vand.u32 %v6351, 4294901760
  %v6894 = vsub.f32 %v6351, %v6893
  %6895 = vmatmul.mubr.f32.gmra.mrb[0].mxu0 %v6894
  %v6896 = vpop.f32.mrb[0].mxu0
  %v6897 = vadd.f32 %v6724, %v6896
  %v6898 = vpop.f32.mrb[0].mxu0
  %6899 = vmatprep.mubr.f32.mxu0 0.0
  %v6900 = vand.u32 %v6354, 4294901760
  %v6901 = vsub.f32 %v6354, %v6900
  %6902 = vmatmul.mubr.f32.gmra.mrb[0].mxu0 %v6901
  %v6903 = vpop.f32.mrb[0].mxu0
  %v6904 = vadd.f32 %v6730, %v6903
  %v6905 = vpop.f32.mrb[0].mxu0
  %6906 = vmatprep.mubr.f32.mxu0 0.0
  %v6907 = vand.u32 %v6357, 4294901760
  %v6908 = vsub.f32 %v6357, %v6907
  %6909 = vmatmul.mubr.f32.gmra.mrb[0].mxu0 %v6908
  %v6910 = vpop.f32.mrb[0].mxu0
  %v6911 = vadd.f32 %v6736, %v6910
  %v6912 = vpop.f32.mrb[0].mxu0
  %6913 = vmatprep.mubr.f32.mxu0 0.0
  %v6914 = vand.u32 %v6360, 4294901760
  %v6915 = vsub.f32 %v6360, %v6914
  %6916 = vmatmul.mubr.f32.gmra.mrb[0].mxu0 %v6915
  %v6917 = vpop.f32.mrb[0].mxu0
  %v6918 = vadd.f32 %v6742, %v6917
  %v6919 = vpop.f32.mrb[0].mxu0
  %6920 = vmatprep.mubr.f32.mxu0 0.0
  %v6921 = vand.u32 %v6363, 4294901760
  %v6922 = vsub.f32 %v6363, %v6921
  %6923 = vmatmul.mubr.f32.gmra.mrb[0].mxu0 %v6922
  %v6924 = vpop.f32.mrb[0].mxu0
  %v6925 = vadd.f32 %v6748, %v6924
  %v6926 = vpop.f32.mrb[0].mxu0
  %6927 = vmatprep.mubr.f32.mxu0 0.0
  %v6928 = vand.u32 %v6366, 4294901760
  %v6929 = vsub.f32 %v6366, %v6928
  %6930 = vmatmul.mubr.f32.gmra.mrb[0].mxu0 %v6929
  %v6931 = vpop.f32.mrb[0].mxu0
  %v6932 = vadd.f32 %v6754, %v6931
  %v6933 = vpop.f32.mrb[0].mxu0
  %6934 = vmatprep.mubr.f32.mxu0 0.0
  %v6935 = vand.u32 %v6369, 4294901760
  %v6936 = vsub.f32 %v6369, %v6935
  %6937 = vmatmul.mubr.f32.gmra.mrb[0].mxu0 %v6936
  %v6938 = vpop.f32.mrb[0].mxu0
  %v6939 = vadd.f32 %v6760, %v6938
  %v6940 = vpop.f32.mrb[0].mxu0
  %6941 = vdwg.mxu0
  %6942 = vmatprep.subr.mxu0 0.0
  %v6943 = vand.u32 %v6315, 4294901760
  %6944 = vmatpush1.msra.mxu0 %v6943
  %6945 = vmatprep.subr.mxu0 0.0
  %6946 = vmatpush1.msra.mxu0 0.0
  %6947 = vmatprep.subr.mxu0 0.0
  %6948 = vmatpush1.msra.mxu0 0.0
  %6949 = vmatprep.subr.mxu0 0.0
  %6950 = vmatpush1.msra.mxu0 0.0
  %6951 = vmatprep.subr.mxu0 0.0
  %6952 = vmatpush1.msra.mxu0 0.0
  %6953 = vmatprep.subr.mxu0 0.0
  %6954 = vmatpush1.msra.mxu0 0.0
  %6955 = vmatprep.subr.mxu0 0.0
  %6956 = vmatpush1.msra.mxu0 0.0
  %6957 = vmatprep.subr.mxu0 0.0
  %6958 = vmatpush1.msra.mxu0 0.0
  %6959 = vmatprep.subr.mxu0 0.0
  %6960 = vmatpush1.msra.mxu0 0.0
  %6961 = vmatprep.subr.mxu0 0.0
  %6962 = vmatpush1.msra.mxu0 0.0
  %6963 = vmatprep.subr.mxu0 0.0
  %6964 = vmatpush1.msra.mxu0 0.0
  %6965 = vmatprep.subr.mxu0 0.0
  %6966 = vmatpush1.msra.mxu0 0.0
  %6967 = vmatprep.subr.mxu0 0.0
  %6968 = vmatpush1.msra.mxu0 0.0
  %6969 = vmatprep.subr.mxu0 0.0
  %6970 = vmatpush1.msra.mxu0 0.0
  %6971 = vmatprep.subr.mxu0 0.0
  %6972 = vmatpush1.msra.mxu0 0.0
  %6973 = vmatprep.subr.mxu0 0.0
  %6974 = vmatpush1.msra.mxu0 0.0
  %6975 = vmatprep.subr.mxu0 0.0
  %6976 = vmatpush1.msra.mxu0 0.0
  %6977 = vmatprep.subr.mxu0 0.0
  %6978 = vmatpush1.msra.mxu0 0.0
  %6979 = vmatprep.subr.mxu0 0.0
  %6980 = vmatpush1.msra.mxu0 0.0
  %6981 = vmatprep.subr.mxu0 0.0
  %6982 = vmatpush1.msra.mxu0 0.0
  %6983 = vmatprep.subr.mxu0 0.0
  %6984 = vmatpush1.msra.mxu0 0.0
  %6985 = vmatprep.subr.mxu0 0.0
  %6986 = vmatpush1.msra.mxu0 0.0
  %6987 = vmatprep.subr.mxu0 0.0
  %6988 = vmatpush1.msra.mxu0 0.0
  %6989 = vmatprep.subr.mxu0 0.0
  %6990 = vmatpush1.msra.mxu0 0.0
  %6991 = vmatprep.subr.mxu0 0.0
  %6992 = vmatpush1.msra.mxu0 0.0
  %6993 = vmatprep.subr.mxu0 0.0
  %6994 = vmatpush1.msra.mxu0 0.0
  %6995 = vmatprep.subr.mxu0 0.0
  %6996 = vmatpush1.msra.mxu0 0.0
  %6997 = vmatprep.subr.mxu0 0.0
  %6998 = vmatpush1.msra.mxu0 0.0
  %6999 = vmatprep.subr.mxu0 0.0
  %7000 = vmatpush1.msra.mxu0 0.0
  %7001 = vmatprep.subr.mxu0 0.0
  %7002 = vmatpush1.msra.mxu0 0.0
  %7003 = vmatprep.subr.mxu0 0.0
  %7004 = vmatpush1.msra.mxu0 0.0
  %7005 = vmatprep.subr.mxu0 0.0
  %7006 = vmatpush1.msra.mxu0 0.0
  %7007 = vmatprep.mubr.f32.mxu0 0.0
  %v7008 = vand.u32 %v6324, 4294901760
  %v7009 = vsub.f32 %v6324, %v7008
  %v7010 = vand.u32 %v7009, 4294901760
  %7011 = vmatmul.mubr.f32.gmra.mrb[0].mxu0 %v7010
  %v7012 = vpop.f32.mrb[0].mxu0
  %v7013 = vadd.f32 %v6834, %v7012
  %v7014 = vpop.f32.mrb[0].mxu0
  %7015 = vmatprep.mubr.f32.mxu0 0.0
  %v7016 = vand.u32 %v6327, 4294901760
  %v7017 = vsub.f32 %v6327, %v7016
  %v7018 = vand.u32 %v7017, 4294901760
  %7019 = vmatmul.mubr.f32.gmra.mrb[0].mxu0 %v7018
  %v7020 = vpop.f32.mrb[0].mxu0
  %v7021 = vadd.f32 %v6841, %v7020
  %v7022 = vpop.f32.mrb[0].mxu0
  %7023 = vmatprep.mubr.f32.mxu0 0.0
  %v7024 = vand.u32 %v6330, 4294901760
  %v7025 = vsub.f32 %v6330, %v7024
  %v7026 = vand.u32 %v7025, 4294901760
  %7027 = vmatmul.mubr.f32.gmra.mrb[0].mxu0 %v7026
  %v7028 = vpop.f32.mrb[0].mxu0
  %v7029 = vadd.f32 %v6848, %v7028
  %v7030 = vpop.f32.mrb[0].mxu0
  %7031 = vmatprep.mubr.f32.mxu0 0.0
  %v7032 = vand.u32 %v6333, 4294901760
  %v7033 = vsub.f32 %v6333, %v7032
  %v7034 = vand.u32 %v7033, 4294901760
  %7035 = vmatmul.mubr.f32.gmra.mrb[0].mxu0 %v7034
  %v7036 = vpop.f32.mrb[0].mxu0
  %v7037 = vadd.f32 %v6855, %v7036
  %v7038 = vpop.f32.mrb[0].mxu0
  %7039 = vmatprep.mubr.f32.mxu0 0.0
  %v7040 = vand.u32 %v6336, 4294901760
  %v7041 = vsub.f32 %v6336, %v7040
  %v7042 = vand.u32 %v7041, 4294901760
  %7043 = vmatmul.mubr.f32.gmra.mrb[0].mxu0 %v7042
  %v7044 = vpop.f32.mrb[0].mxu0
  %v7045 = vadd.f32 %v6862, %v7044
  %v7046 = vpop.f32.mrb[0].mxu0
  %7047 = vmatprep.mubr.f32.mxu0 0.0
  %v7048 = vand.u32 %v6339, 4294901760
  %v7049 = vsub.f32 %v6339, %v7048
  %v7050 = vand.u32 %v7049, 4294901760
  %7051 = vmatmul.mubr.f32.gmra.mrb[0].mxu0 %v7050
  %v7052 = vpop.f32.mrb[0].mxu0
  %v7053 = vadd.f32 %v6869, %v7052
  %v7054 = vpop.f32.mrb[0].mxu0
  %7055 = vmatprep.mubr.f32.mxu0 0.0
  %v7056 = vand.u32 %v6342, 4294901760
  %v7057 = vsub.f32 %v6342, %v7056
  %v7058 = vand.u32 %v7057, 4294901760
  %7059 = vmatmul.mubr.f32.gmra.mrb[0].mxu0 %v7058
  %v7060 = vpop.f32.mrb[0].mxu0
  %v7061 = vadd.f32 %v6876, %v7060
  %v7062 = vpop.f32.mrb[0].mxu0
  %7063 = vmatprep.mubr.f32.mxu0 0.0
  %v7064 = vand.u32 %v6345, 4294901760
  %v7065 = vsub.f32 %v6345, %v7064
  %v7066 = vand.u32 %v7065, 4294901760
  %7067 = vmatmul.mubr.f32.gmra.mrb[0].mxu0 %v7066
  %v7068 = vpop.f32.mrb[0].mxu0
  %v7069 = vadd.f32 %v6883, %v7068
  %v7070 = vpop.f32.mrb[0].mxu0
  %7071 = vmatprep.mubr.f32.mxu0 0.0
  %v7072 = vand.u32 %v6348, 4294901760
  %v7073 = vsub.f32 %v6348, %v7072
  %v7074 = vand.u32 %v7073, 4294901760
  %7075 = vmatmul.mubr.f32.gmra.mrb[0].mxu0 %v7074
  %v7076 = vpop.f32.mrb[0].mxu0
  %v7077 = vadd.f32 %v6890, %v7076
  %v7078 = vpop.f32.mrb[0].mxu0
  %7079 = vmatprep.mubr.f32.mxu0 0.0
  %v7080 = vand.u32 %v6351, 4294901760
  %v7081 = vsub.f32 %v6351, %v7080
  %v7082 = vand.u32 %v7081, 4294901760
  %7083 = vmatmul.mubr.f32.gmra.mrb[0].mxu0 %v7082
  %v7084 = vpop.f32.mrb[0].mxu0
  %v7085 = vadd.f32 %v6897, %v7084
  %v7086 = vpop.f32.mrb[0].mxu0
  %7087 = vmatprep.mubr.f32.mxu0 0.0
  %v7088 = vand.u32 %v6354, 4294901760
  %v7089 = vsub.f32 %v6354, %v7088
  %v7090 = vand.u32 %v7089, 4294901760
  %7091 = vmatmul.mubr.f32.gmra.mrb[0].mxu0 %v7090
  %v7092 = vpop.f32.mrb[0].mxu0
  %v7093 = vadd.f32 %v6904, %v7092
  %v7094 = vpop.f32.mrb[0].mxu0
  %7095 = vmatprep.mubr.f32.mxu0 0.0
  %v7096 = vand.u32 %v6357, 4294901760
  %v7097 = vsub.f32 %v6357, %v7096
  %v7098 = vand.u32 %v7097, 4294901760
  %7099 = vmatmul.mubr.f32.gmra.mrb[0].mxu0 %v7098
  %v7100 = vpop.f32.mrb[0].mxu0
  %v7101 = vadd.f32 %v6911, %v7100
  %v7102 = vpop.f32.mrb[0].mxu0
  %7103 = vmatprep.mubr.f32.mxu0 0.0
  %v7104 = vand.u32 %v6360, 4294901760
  %v7105 = vsub.f32 %v6360, %v7104
  %v7106 = vand.u32 %v7105, 4294901760
  %7107 = vmatmul.mubr.f32.gmra.mrb[0].mxu0 %v7106
  %v7108 = vpop.f32.mrb[0].mxu0
  %v7109 = vadd.f32 %v6918, %v7108
  %v7110 = vpop.f32.mrb[0].mxu0
  %7111 = vmatprep.mubr.f32.mxu0 0.0
  %v7112 = vand.u32 %v6363, 4294901760
  %v7113 = vsub.f32 %v6363, %v7112
  %v7114 = vand.u32 %v7113, 4294901760
  %7115 = vmatmul.mubr.f32.gmra.mrb[0].mxu0 %v7114
  %v7116 = vpop.f32.mrb[0].mxu0
  %v7117 = vadd.f32 %v6925, %v7116
  %v7118 = vpop.f32.mrb[0].mxu0
  %7119 = vmatprep.mubr.f32.mxu0 0.0
  %v7120 = vand.u32 %v6366, 4294901760
  %v7121 = vsub.f32 %v6366, %v7120
  %v7122 = vand.u32 %v7121, 4294901760
  %7123 = vmatmul.mubr.f32.gmra.mrb[0].mxu0 %v7122
  %v7124 = vpop.f32.mrb[0].mxu0
  %v7125 = vadd.f32 %v6932, %v7124
  %v7126 = vpop.f32.mrb[0].mxu0
  %7127 = vmatprep.mubr.f32.mxu0 0.0
  %v7128 = vand.u32 %v6369, 4294901760
  %v7129 = vsub.f32 %v6369, %v7128
  %v7130 = vand.u32 %v7129, 4294901760
  %7131 = vmatmul.mubr.f32.gmra.mrb[0].mxu0 %v7130
  %v7132 = vpop.f32.mrb[0].mxu0
  %v7133 = vadd.f32 %v6939, %v7132
  %v7134 = vpop.f32.mrb[0].mxu0
  %7135 = vdwg.mxu0
  %7136 = vmatprep.subr.mxu0 0.0
  %v7137 = vand.u32 %v6315, 4294901760
  %v7138 = vsub.f32 %v6315, %v7137
  %v7139 = vand.u32 %v7138, 4294901760
  %7140 = vmatpush1.msra.mxu0 %v7139
  %7141 = vmatprep.subr.mxu0 0.0
  %7142 = vmatpush1.msra.mxu0 0.0
  %7143 = vmatprep.subr.mxu0 0.0
  %7144 = vmatpush1.msra.mxu0 0.0
  %7145 = vmatprep.subr.mxu0 0.0
  %7146 = vmatpush1.msra.mxu0 0.0
  %7147 = vmatprep.subr.mxu0 0.0
  %7148 = vmatpush1.msra.mxu0 0.0
  %7149 = vmatprep.subr.mxu0 0.0
  %7150 = vmatpush1.msra.mxu0 0.0
  %7151 = vmatprep.subr.mxu0 0.0
  %7152 = vmatpush1.msra.mxu0 0.0
  %7153 = vmatprep.subr.mxu0 0.0
  %7154 = vmatpush1.msra.mxu0 0.0
  %7155 = vmatprep.subr.mxu0 0.0
  %7156 = vmatpush1.msra.mxu0 0.0
  %7157 = vmatprep.subr.mxu0 0.0
  %7158 = vmatpush1.msra.mxu0 0.0
  %7159 = vmatprep.subr.mxu0 0.0
  %7160 = vmatpush1.msra.mxu0 0.0
  %7161 = vmatprep.subr.mxu0 0.0
  %7162 = vmatpush1.msra.mxu0 0.0
  %7163 = vmatprep.subr.mxu0 0.0
  %7164 = vmatpush1.msra.mxu0 0.0
  %7165 = vmatprep.subr.mxu0 0.0
  %7166 = vmatpush1.msra.mxu0 0.0
  %7167 = vmatprep.subr.mxu0 0.0
  %7168 = vmatpush1.msra.mxu0 0.0
  %7169 = vmatprep.subr.mxu0 0.0
  %7170 = vmatpush1.msra.mxu0 0.0
  %7171 = vmatprep.subr.mxu0 0.0
  %7172 = vmatpush1.msra.mxu0 0.0
  %7173 = vmatprep.subr.mxu0 0.0
  %7174 = vmatpush1.msra.mxu0 0.0
  %7175 = vmatprep.subr.mxu0 0.0
  %7176 = vmatpush1.msra.mxu0 0.0
  %7177 = vmatprep.subr.mxu0 0.0
  %7178 = vmatpush1.msra.mxu0 0.0
  %7179 = vmatprep.subr.mxu0 0.0
  %7180 = vmatpush1.msra.mxu0 0.0
  %7181 = vmatprep.subr.mxu0 0.0
  %7182 = vmatpush1.msra.mxu0 0.0
  %7183 = vmatprep.subr.mxu0 0.0
  %7184 = vmatpush1.msra.mxu0 0.0
  %7185 = vmatprep.subr.mxu0 0.0
  %7186 = vmatpush1.msra.mxu0 0.0
  %7187 = vmatprep.subr.mxu0 0.0
  %7188 = vmatpush1.msra.mxu0 0.0
  %7189 = vmatprep.subr.mxu0 0.0
  %7190 = vmatpush1.msra.mxu0 0.0
  %7191 = vmatprep.subr.mxu0 0.0
  %7192 = vmatpush1.msra.mxu0 0.0
  %7193 = vmatprep.subr.mxu0 0.0
  %7194 = vmatpush1.msra.mxu0 0.0
  %7195 = vmatprep.subr.mxu0 0.0
  %7196 = vmatpush1.msra.mxu0 0.0
  %7197 = vmatprep.subr.mxu0 0.0
  %7198 = vmatpush1.msra.mxu0 0.0
  %7199 = vmatprep.subr.mxu0 0.0
  %7200 = vmatpush1.msra.mxu0 0.0
  %7201 = vmatprep.subr.mxu0 0.0
  %7202 = vmatpush1.msra.mxu0 0.0
  %7203 = vmatprep.mubr.f32.mxu0 0.0
  %v7204 = vand.u32 %v6324, 4294901760
  %7205 = vmatmul.mubr.f32.gmra.mrb[0].mxu0 %v7204
  %v7206 = vpop.f32.mrb[0].mxu0
  %v7207 = vadd.f32 %v7013, %v7206
  %v7208 = vpop.f32.mrb[0].mxu0
  %7209 = vmatprep.mubr.f32.mxu0 0.0
  %v7210 = vand.u32 %v6327, 4294901760
  %7211 = vmatmul.mubr.f32.gmra.mrb[0].mxu0 %v7210
  %v7212 = vpop.f32.mrb[0].mxu0
  %v7213 = vadd.f32 %v7021, %v7212
  %v7214 = vpop.f32.mrb[0].mxu0
  %7215 = vmatprep.mubr.f32.mxu0 0.0
  %v7216 = vand.u32 %v6330, 4294901760
  %7217 = vmatmul.mubr.f32.gmra.mrb[0].mxu0 %v7216
  %v7218 = vpop.f32.mrb[0].mxu0
  %v7219 = vadd.f32 %v7029, %v7218
  %v7220 = vpop.f32.mrb[0].mxu0
  %7221 = vmatprep.mubr.f32.mxu0 0.0
  %v7222 = vand.u32 %v6333, 4294901760
  %7223 = vmatmul.mubr.f32.gmra.mrb[0].mxu0 %v7222
  %v7224 = vpop.f32.mrb[0].mxu0
  %v7225 = vadd.f32 %v7037, %v7224
  %v7226 = vpop.f32.mrb[0].mxu0
  %7227 = vmatprep.mubr.f32.mxu0 0.0
  %v7228 = vand.u32 %v6336, 4294901760
  %7229 = vmatmul.mubr.f32.gmra.mrb[0].mxu0 %v7228
  %v7230 = vpop.f32.mrb[0].mxu0
  %v7231 = vadd.f32 %v7045, %v7230
  %v7232 = vpop.f32.mrb[0].mxu0
  %7233 = vmatprep.mubr.f32.mxu0 0.0
  %v7234 = vand.u32 %v6339, 4294901760
  %7235 = vmatmul.mubr.f32.gmra.mrb[0].mxu0 %v7234
  %v7236 = vpop.f32.mrb[0].mxu0
  %v7237 = vadd.f32 %v7053, %v7236
  %v7238 = vpop.f32.mrb[0].mxu0
  %7239 = vmatprep.mubr.f32.mxu0 0.0
  %v7240 = vand.u32 %v6342, 4294901760
  %7241 = vmatmul.mubr.f32.gmra.mrb[0].mxu0 %v7240
  %v7242 = vpop.f32.mrb[0].mxu0
  %v7243 = vadd.f32 %v7061, %v7242
  %v7244 = vpop.f32.mrb[0].mxu0
  %7245 = vmatprep.mubr.f32.mxu0 0.0
  %v7246 = vand.u32 %v6345, 4294901760
  %7247 = vmatmul.mubr.f32.gmra.mrb[0].mxu0 %v7246
  %v7248 = vpop.f32.mrb[0].mxu0
  %v7249 = vadd.f32 %v7069, %v7248
  %v7250 = vpop.f32.mrb[0].mxu0
  %7251 = vmatprep.mubr.f32.mxu0 0.0
  %v7252 = vand.u32 %v6348, 4294901760
  %7253 = vmatmul.mubr.f32.gmra.mrb[0].mxu0 %v7252
  %v7254 = vpop.f32.mrb[0].mxu0
  %v7255 = vadd.f32 %v7077, %v7254
  %v7256 = vpop.f32.mrb[0].mxu0
  %7257 = vmatprep.mubr.f32.mxu0 0.0
  %v7258 = vand.u32 %v6351, 4294901760
  %7259 = vmatmul.mubr.f32.gmra.mrb[0].mxu0 %v7258
  %v7260 = vpop.f32.mrb[0].mxu0
  %v7261 = vadd.f32 %v7085, %v7260
  %v7262 = vpop.f32.mrb[0].mxu0
  %7263 = vmatprep.mubr.f32.mxu0 0.0
  %v7264 = vand.u32 %v6354, 4294901760
  %7265 = vmatmul.mubr.f32.gmra.mrb[0].mxu0 %v7264
  %v7266 = vpop.f32.mrb[0].mxu0
  %v7267 = vadd.f32 %v7093, %v7266
  %v7268 = vpop.f32.mrb[0].mxu0
  %7269 = vmatprep.mubr.f32.mxu0 0.0
  %v7270 = vand.u32 %v6357, 4294901760
  %7271 = vmatmul.mubr.f32.gmra.mrb[0].mxu0 %v7270
  %v7272 = vpop.f32.mrb[0].mxu0
  %v7273 = vadd.f32 %v7101, %v7272
  %v7274 = vpop.f32.mrb[0].mxu0
  %7275 = vmatprep.mubr.f32.mxu0 0.0
  %v7276 = vand.u32 %v6360, 4294901760
  %7277 = vmatmul.mubr.f32.gmra.mrb[0].mxu0 %v7276
  %v7278 = vpop.f32.mrb[0].mxu0
  %v7279 = vadd.f32 %v7109, %v7278
  %v7280 = vpop.f32.mrb[0].mxu0
  %7281 = vmatprep.mubr.f32.mxu0 0.0
  %v7282 = vand.u32 %v6363, 4294901760
  %7283 = vmatmul.mubr.f32.gmra.mrb[0].mxu0 %v7282
  %v7284 = vpop.f32.mrb[0].mxu0
  %v7285 = vadd.f32 %v7117, %v7284
  %v7286 = vpop.f32.mrb[0].mxu0
  %7287 = vmatprep.mubr.f32.mxu0 0.0
  %v7288 = vand.u32 %v6366, 4294901760
  %7289 = vmatmul.mubr.f32.gmra.mrb[0].mxu0 %v7288
  %v7290 = vpop.f32.mrb[0].mxu0
  %v7291 = vadd.f32 %v7125, %v7290
  %v7292 = vpop.f32.mrb[0].mxu0
  %7293 = vmatprep.mubr.f32.mxu0 0.0
  %v7294 = vand.u32 %v6369, 4294901760
  %7295 = vmatmul.mubr.f32.gmra.mrb[0].mxu0 %v7294
  %v7296 = vpop.f32.mrb[0].mxu0
  %v7297 = vadd.f32 %v7133, %v7296
  %v7298 = vpop.f32.mrb[0].mxu0
  %7299 = vdwg.mxu0
  %7300 = vmatprep.subr.mxu0 0.0
  %v7301 = vand.u32 %v6315, 4294901760
  %7302 = vmatpush1.msra.mxu0 %v7301
  %7303 = vmatprep.subr.mxu0 0.0
  %7304 = vmatpush1.msra.mxu0 0.0
  %7305 = vmatprep.subr.mxu0 0.0
  %7306 = vmatpush1.msra.mxu0 0.0
  %7307 = vmatprep.subr.mxu0 0.0
  %7308 = vmatpush1.msra.mxu0 0.0
  %7309 = vmatprep.subr.mxu0 0.0
  %7310 = vmatpush1.msra.mxu0 0.0
  %7311 = vmatprep.subr.mxu0 0.0
  %7312 = vmatpush1.msra.mxu0 0.0
  %7313 = vmatprep.subr.mxu0 0.0
  %7314 = vmatpush1.msra.mxu0 0.0
  %7315 = vmatprep.subr.mxu0 0.0
  %7316 = vmatpush1.msra.mxu0 0.0
  %7317 = vmatprep.subr.mxu0 0.0
  %7318 = vmatpush1.msra.mxu0 0.0
  %7319 = vmatprep.subr.mxu0 0.0
  %7320 = vmatpush1.msra.mxu0 0.0
  %7321 = vmatprep.subr.mxu0 0.0
  %7322 = vmatpush1.msra.mxu0 0.0
  %7323 = vmatprep.subr.mxu0 0.0
  %7324 = vmatpush1.msra.mxu0 0.0
  %7325 = vmatprep.subr.mxu0 0.0
  %7326 = vmatpush1.msra.mxu0 0.0
  %7327 = vmatprep.subr.mxu0 0.0
  %7328 = vmatpush1.msra.mxu0 0.0
  %7329 = vmatprep.subr.mxu0 0.0
  %7330 = vmatpush1.msra.mxu0 0.0
  %7331 = vmatprep.subr.mxu0 0.0
  %7332 = vmatpush1.msra.mxu0 0.0
  %7333 = vmatprep.subr.mxu0 0.0
  %7334 = vmatpush1.msra.mxu0 0.0
  %7335 = vmatprep.subr.mxu0 0.0
  %7336 = vmatpush1.msra.mxu0 0.0
  %7337 = vmatprep.subr.mxu0 0.0
  %7338 = vmatpush1.msra.mxu0 0.0
  %7339 = vmatprep.subr.mxu0 0.0
  %7340 = vmatpush1.msra.mxu0 0.0
  %7341 = vmatprep.subr.mxu0 0.0
  %7342 = vmatpush1.msra.mxu0 0.0
  %7343 = vmatprep.subr.mxu0 0.0
  %7344 = vmatpush1.msra.mxu0 0.0
  %7345 = vmatprep.subr.mxu0 0.0
  %7346 = vmatpush1.msra.mxu0 0.0
  %7347 = vmatprep.subr.mxu0 0.0
  %7348 = vmatpush1.msra.mxu0 0.0
  %7349 = vmatprep.subr.mxu0 0.0
  %7350 = vmatpush1.msra.mxu0 0.0
  %7351 = vmatprep.subr.mxu0 0.0
  %7352 = vmatpush1.msra.mxu0 0.0
  %7353 = vmatprep.subr.mxu0 0.0
  %7354 = vmatpush1.msra.mxu0 0.0
  %7355 = vmatprep.subr.mxu0 0.0
  %7356 = vmatpush1.msra.mxu0 0.0
  %7357 = vmatprep.subr.mxu0 0.0
  %7358 = vmatpush1.msra.mxu0 0.0
  %7359 = vmatprep.subr.mxu0 0.0
  %7360 = vmatpush1.msra.mxu0 0.0
  %7361 = vmatprep.subr.mxu0 0.0
  %7362 = vmatpush1.msra.mxu0 0.0
  %7363 = vmatprep.subr.mxu0 0.0
  %7364 = vmatpush1.msra.mxu0 0.0
  %7365 = vmatprep.mubr.f32.mxu0 0.0
  %v7366 = vand.u32 %v6324, 4294901760
  %7367 = vmatmul.mubr.f32.gmra.mrb[0].mxu0 %v7366
  %v7368 = vpop.f32.mrb[0].mxu0
  %v7369 = vadd.f32 %v7207, %v7368
  %v7370 = vpop.f32.mrb[0].mxu0
  %7371 = vmatprep.mubr.f32.mxu0 0.0
  %v7372 = vand.u32 %v6327, 4294901760
  %7373 = vmatmul.mubr.f32.gmra.mrb[0].mxu0 %v7372
  %v7374 = vpop.f32.mrb[0].mxu0
  %v7375 = vadd.f32 %v7213, %v7374
  %v7376 = vpop.f32.mrb[0].mxu0
  %7377 = vmatprep.mubr.f32.mxu0 0.0
  %v7378 = vand.u32 %v6330, 4294901760
  %7379 = vmatmul.mubr.f32.gmra.mrb[0].mxu0 %v7378
  %v7380 = vpop.f32.mrb[0].mxu0
  %v7381 = vadd.f32 %v7219, %v7380
  %v7382 = vpop.f32.mrb[0].mxu0
  %7383 = vmatprep.mubr.f32.mxu0 0.0
  %v7384 = vand.u32 %v6333, 4294901760
  %7385 = vmatmul.mubr.f32.gmra.mrb[0].mxu0 %v7384
  %v7386 = vpop.f32.mrb[0].mxu0
  %v7387 = vadd.f32 %v7225, %v7386
  %v7388 = vpop.f32.mrb[0].mxu0
  %7389 = vmatprep.mubr.f32.mxu0 0.0
  %v7390 = vand.u32 %v6336, 4294901760
  %7391 = vmatmul.mubr.f32.gmra.mrb[0].mxu0 %v7390
  %v7392 = vpop.f32.mrb[0].mxu0
  %v7393 = vadd.f32 %v7231, %v7392
  %v7394 = vpop.f32.mrb[0].mxu0
  %7395 = vmatprep.mubr.f32.mxu0 0.0
  %v7396 = vand.u32 %v6339, 4294901760
  %7397 = vmatmul.mubr.f32.gmra.mrb[0].mxu0 %v7396
  %v7398 = vpop.f32.mrb[0].mxu0
  %v7399 = vadd.f32 %v7237, %v7398
  %v7400 = vpop.f32.mrb[0].mxu0
  %7401 = vmatprep.mubr.f32.mxu0 0.0
  %v7402 = vand.u32 %v6342, 4294901760
  %7403 = vmatmul.mubr.f32.gmra.mrb[0].mxu0 %v7402
  %v7404 = vpop.f32.mrb[0].mxu0
  %v7405 = vadd.f32 %v7243, %v7404
  %v7406 = vpop.f32.mrb[0].mxu0
  %7407 = vmatprep.mubr.f32.mxu0 0.0
  %v7408 = vand.u32 %v6345, 4294901760
  %7409 = vmatmul.mubr.f32.gmra.mrb[0].mxu0 %v7408
  %v7410 = vpop.f32.mrb[0].mxu0
  %v7411 = vadd.f32 %v7249, %v7410
  %v7412 = vpop.f32.mrb[0].mxu0
  %7413 = vmatprep.mubr.f32.mxu0 0.0
  %v7414 = vand.u32 %v6348, 4294901760
  %7415 = vmatmul.mubr.f32.gmra.mrb[0].mxu0 %v7414
  %v7416 = vpop.f32.mrb[0].mxu0
  %v7417 = vadd.f32 %v7255, %v7416
  %v7418 = vpop.f32.mrb[0].mxu0
  %7419 = vmatprep.mubr.f32.mxu0 0.0
  %v7420 = vand.u32 %v6351, 4294901760
  %7421 = vmatmul.mubr.f32.gmra.mrb[0].mxu0 %v7420
  %v7422 = vpop.f32.mrb[0].mxu0
  %v7423 = vadd.f32 %v7261, %v7422
  %v7424 = vpop.f32.mrb[0].mxu0
  %7425 = vmatprep.mubr.f32.mxu0 0.0
  %v7426 = vand.u32 %v6354, 4294901760
  %7427 = vmatmul.mubr.f32.gmra.mrb[0].mxu0 %v7426
  %v7428 = vpop.f32.mrb[0].mxu0
  %v7429 = vadd.f32 %v7267, %v7428
  %v7430 = vpop.f32.mrb[0].mxu0
  %7431 = vmatprep.mubr.f32.mxu0 0.0
  %v7432 = vand.u32 %v6357, 4294901760
  %7433 = vmatmul.mubr.f32.gmra.mrb[0].mxu0 %v7432
  %v7434 = vpop.f32.mrb[0].mxu0
  %v7435 = vadd.f32 %v7273, %v7434
  %v7436 = vpop.f32.mrb[0].mxu0
  %7437 = vmatprep.mubr.f32.mxu0 0.0
  %v7438 = vand.u32 %v6360, 4294901760
  %7439 = vmatmul.mubr.f32.gmra.mrb[0].mxu0 %v7438
  %v7440 = vpop.f32.mrb[0].mxu0
  %v7441 = vadd.f32 %v7279, %v7440
  %v7442 = vpop.f32.mrb[0].mxu0
  %7443 = vmatprep.mubr.f32.mxu0 0.0
  %v7444 = vand.u32 %v6363, 4294901760
  %7445 = vmatmul.mubr.f32.gmra.mrb[0].mxu0 %v7444
  %v7446 = vpop.f32.mrb[0].mxu0
  %v7447 = vadd.f32 %v7285, %v7446
  %v7448 = vpop.f32.mrb[0].mxu0
  %7449 = vmatprep.mubr.f32.mxu0 0.0
  %v7450 = vand.u32 %v6366, 4294901760
  %7451 = vmatmul.mubr.f32.gmra.mrb[0].mxu0 %v7450
  %v7452 = vpop.f32.mrb[0].mxu0
  %v7453 = vadd.f32 %v7291, %v7452
  %v7454 = vpop.f32.mrb[0].mxu0
  %7455 = vmatprep.mubr.f32.mxu0 0.0
  %v7456 = vand.u32 %v6369, 4294901760
  %7457 = vmatmul.mubr.f32.gmra.mrb[0].mxu0 %v7456
  %v7458 = vpop.f32.mrb[0].mxu0
  %v7459 = vadd.f32 %v7297, %v7458
  %v7460 = vpop.f32.mrb[0].mxu0
  %7461 = vdwg.mxu0
  %v7462 = vxor.u32 %v7369, 2147483648
  %v7463 = vxor.u32 %v7375, 2147483648
  %v7464 = vxor.u32 %v7381, 2147483648
  %v7465 = vxor.u32 %v7387, 2147483648
  %v7466 = vxor.u32 %v7393, 2147483648
  %v7467 = vxor.u32 %v7399, 2147483648
  %v7468 = vxor.u32 %v7405, 2147483648
  %v7469 = vxor.u32 %v7411, 2147483648
  %v7470 = vxor.u32 %v7417, 2147483648
  %v7471 = vxor.u32 %v7423, 2147483648
  %v7472 = vxor.u32 %v7429, 2147483648
  %v7473 = vxor.u32 %v7435, 2147483648
  %v7474 = vxor.u32 %v7441, 2147483648
  %v7475 = vxor.u32 %v7447, 2147483648
  %v7476 = vxor.u32 %v7453, 2147483648
  %v7477 = vxor.u32 %v7459, 2147483648
  %v7478 = vmul.f32 %v7462, 1.442695
  %v7479 = vpow.pop %v7478
  %v7480 = vmul.f32 %v7463, 1.442695
  %v7481 = vpow.pop %v7480
  %v7482 = vmul.f32 %v7464, 1.442695
  %v7483 = vpow.pop %v7482
  %v7484 = vmul.f32 %v7465, 1.442695
  %v7485 = vpow.pop %v7484
  %v7486 = vmul.f32 %v7466, 1.442695
  %v7487 = vpow.pop %v7486
  %v7488 = vmul.f32 %v7467, 1.442695
  %v7489 = vpow.pop %v7488
  %v7490 = vmul.f32 %v7468, 1.442695
  %v7491 = vpow.pop %v7490
  %v7492 = vmul.f32 %v7469, 1.442695
  %v7493 = vpow.pop %v7492
  %v7494 = vmul.f32 %v7470, 1.442695
  %v7495 = vpow.pop %v7494
  %v7496 = vmul.f32 %v7471, 1.442695
  %v7497 = vpow.pop %v7496
  %v7498 = vmul.f32 %v7472, 1.442695
  %v7499 = vpow.pop %v7498
  %v7500 = vmul.f32 %v7473, 1.442695
  %v7501 = vpow.pop %v7500
  %v7502 = vmul.f32 %v7474, 1.442695
  %v7503 = vpow.pop %v7502
  %v7504 = vmul.f32 %v7475, 1.442695
  %v7505 = vpow.pop %v7504
  %v7506 = vmul.f32 %v7476, 1.442695
  %v7507 = vpow.pop %v7506
  %v7508 = vmul.f32 %v7477, 1.442695
  %v7509 = vpow.pop %v7508
  %v7510 = vadd.f32 %v7479, 1.0
  %v7511 = vadd.f32 %v7481, 1.0
  %v7512 = vadd.f32 %v7483, 1.0
  %v7513 = vadd.f32 %v7485, 1.0
  %v7514 = vadd.f32 %v7487, 1.0
  %v7515 = vadd.f32 %v7489, 1.0
  %v7516 = vadd.f32 %v7491, 1.0
  %v7517 = vadd.f32 %v7493, 1.0
  %v7518 = vadd.f32 %v7495, 1.0
  %v7519 = vadd.f32 %v7497, 1.0
  %v7520 = vadd.f32 %v7499, 1.0
  %v7521 = vadd.f32 %v7501, 1.0
  %v7522 = vadd.f32 %v7503, 1.0
  %v7523 = vadd.f32 %v7505, 1.0
  %v7524 = vadd.f32 %v7507, 1.0
  %v7525 = vadd.f32 %v7509, 1.0
  %v7526 = vrcp.pop %v7510
  %v7527 = vmul.f32 1.0, %v7526
  %v7528 = vrcp.pop %v7511
  %v7529 = vmul.f32 1.0, %v7528
  %v7530 = vrcp.pop %v7512
  %v7531 = vmul.f32 1.0, %v7530
  %v7532 = vrcp.pop %v7513
  %v7533 = vmul.f32 1.0, %v7532
  %v7534 = vrcp.pop %v7514
  %v7535 = vmul.f32 1.0, %v7534
  %v7536 = vrcp.pop %v7515
  %v7537 = vmul.f32 1.0, %v7536
  %v7538 = vrcp.pop %v7516
  %v7539 = vmul.f32 1.0, %v7538
  %v7540 = vrcp.pop %v7517
  %v7541 = vmul.f32 1.0, %v7540
  %v7542 = vrcp.pop %v7518
  %v7543 = vmul.f32 1.0, %v7542
  %v7544 = vrcp.pop %v7519
  %v7545 = vmul.f32 1.0, %v7544
  %v7546 = vrcp.pop %v7520
  %v7547 = vmul.f32 1.0, %v7546
  %v7548 = vrcp.pop %v7521
  %v7549 = vmul.f32 1.0, %v7548
  %v7550 = vrcp.pop %v7522
  %v7551 = vmul.f32 1.0, %v7550
  %v7552 = vrcp.pop %v7523
  %v7553 = vmul.f32 1.0, %v7552
  %v7554 = vrcp.pop %v7524
  %v7555 = vmul.f32 1.0, %v7554
  %v7556 = vrcp.pop %v7525
  %v7557 = vmul.f32 1.0, %v7556
  %7558 = vxpose.xlu0.b32.start [1/16] %v6284, 128
  %7559 = vxpose.xlu0.b32.cont [2/16] %v6286, 128
  %7560 = vxpose.xlu0.b32.cont [3/16] 0.0, 128
  %7561 = vxpose.xlu0.b32.cont [4/16] 0.0, 128
  %7562 = vxpose.xlu0.b32.cont [5/16] 0.0, 128
  %7563 = vxpose.xlu0.b32.cont [6/16] 0.0, 128
  %7564 = vxpose.xlu0.b32.cont [7/16] 0.0, 128
  %7565 = vxpose.xlu0.b32.cont [8/16] 0.0, 128
  %7566 = vxpose.xlu0.b32.cont [9/16] 0.0, 128
  %7567 = vxpose.xlu0.b32.cont [10/16] 0.0, 128
  %7568 = vxpose.xlu0.b32.cont [11/16] 0.0, 128
  %7569 = vxpose.xlu0.b32.cont [12/16] 0.0, 128
  %7570 = vxpose.xlu0.b32.cont [13/16] 0.0, 128
  %7571 = vxpose.xlu0.b32.cont [14/16] 0.0, 128
  %7572 = vxpose.xlu0.b32.cont [15/16] 0.0, 128
  %7573 = vxpose.xlu0.b32.end [16/16] 0.0, 128
  %v7574 = vpop.trf.xlu0
  %v7575 = vpop.trf.xlu0
  %v7576 = vpop.trf.xlu0
  %v7577 = vpop.trf.xlu0
  %v7578 = vpop.trf.xlu0
  %v7579 = vpop.trf.xlu0
  %v7580 = vpop.trf.xlu0
  %v7581 = vpop.trf.xlu0
  %v7582 = vpop.trf.xlu0
  %v7583 = vpop.trf.xlu0
  %v7584 = vpop.trf.xlu0
  %v7585 = vpop.trf.xlu0
  %v7586 = vpop.trf.xlu0
  %v7587 = vpop.trf.xlu0
  %v7588 = vpop.trf.xlu0
  %v7589 = vpop.trf.xlu0
  %7590 = vxpose.xlu0.b32.start [1/16] %v6288, 128
  %7591 = vxpose.xlu0.b32.cont [2/16] %v6290, 128
  %7592 = vxpose.xlu0.b32.cont [3/16] 0.0, 128
  %7593 = vxpose.xlu0.b32.cont [4/16] 0.0, 128
  %7594 = vxpose.xlu0.b32.cont [5/16] 0.0, 128
  %7595 = vxpose.xlu0.b32.cont [6/16] 0.0, 128
  %7596 = vxpose.xlu0.b32.cont [7/16] 0.0, 128
  %7597 = vxpose.xlu0.b32.cont [8/16] 0.0, 128
  %7598 = vxpose.xlu0.b32.cont [9/16] 0.0, 128
  %7599 = vxpose.xlu0.b32.cont [10/16] 0.0, 128
  %7600 = vxpose.xlu0.b32.cont [11/16] 0.0, 128
  %7601 = vxpose.xlu0.b32.cont [12/16] 0.0, 128
  %7602 = vxpose.xlu0.b32.cont [13/16] 0.0, 128
  %7603 = vxpose.xlu0.b32.cont [14/16] 0.0, 128
  %7604 = vxpose.xlu0.b32.cont [15/16] 0.0, 128
  %7605 = vxpose.xlu0.b32.end [16/16] 0.0, 128
  %v7606 = vpop.trf.xlu0
  %v7607 = vpop.trf.xlu0
  %v7608 = vpop.trf.xlu0
  %v7609 = vpop.trf.xlu0
  %v7610 = vpop.trf.xlu0
  %v7611 = vpop.trf.xlu0
  %v7612 = vpop.trf.xlu0
  %v7613 = vpop.trf.xlu0
  %v7614 = vpop.trf.xlu0
  %v7615 = vpop.trf.xlu0
  %v7616 = vpop.trf.xlu0
  %v7617 = vpop.trf.xlu0
  %v7618 = vpop.trf.xlu0
  %v7619 = vpop.trf.xlu0
  %v7620 = vpop.trf.xlu0
  %v7621 = vpop.trf.xlu0
  %7622 = vxpose.xlu0.b32.start [1/16] %v6292, 128
  %7623 = vxpose.xlu0.b32.cont [2/16] %v6294, 128
  %7624 = vxpose.xlu0.b32.cont [3/16] 0.0, 128
  %7625 = vxpose.xlu0.b32.cont [4/16] 0.0, 128
  %7626 = vxpose.xlu0.b32.cont [5/16] 0.0, 128
  %7627 = vxpose.xlu0.b32.cont [6/16] 0.0, 128
  %7628 = vxpose.xlu0.b32.cont [7/16] 0.0, 128
  %7629 = vxpose.xlu0.b32.cont [8/16] 0.0, 128
  %7630 = vxpose.xlu0.b32.cont [9/16] 0.0, 128
  %7631 = vxpose.xlu0.b32.cont [10/16] 0.0, 128
  %7632 = vxpose.xlu0.b32.cont [11/16] 0.0, 128
  %7633 = vxpose.xlu0.b32.cont [12/16] 0.0, 128
  %7634 = vxpose.xlu0.b32.cont [13/16] 0.0, 128
  %7635 = vxpose.xlu0.b32.cont [14/16] 0.0, 128
  %7636 = vxpose.xlu0.b32.cont [15/16] 0.0, 128
  %7637 = vxpose.xlu0.b32.end [16/16] 0.0, 128
  %v7638 = vpop.trf.xlu0
  %v7639 = vpop.trf.xlu0
  %v7640 = vpop.trf.xlu0
  %v7641 = vpop.trf.xlu0
  %v7642 = vpop.trf.xlu0
  %v7643 = vpop.trf.xlu0
  %v7644 = vpop.trf.xlu0
  %v7645 = vpop.trf.xlu0
  %v7646 = vpop.trf.xlu0
  %v7647 = vpop.trf.xlu0
  %v7648 = vpop.trf.xlu0
  %v7649 = vpop.trf.xlu0
  %v7650 = vpop.trf.xlu0
  %v7651 = vpop.trf.xlu0
  %v7652 = vpop.trf.xlu0
  %v7653 = vpop.trf.xlu0
  %7654 = vxpose.xlu0.b32.start [1/16] %v6296, 128
  %7655 = vxpose.xlu0.b32.cont [2/16] %v6298, 128
  %7656 = vxpose.xlu0.b32.cont [3/16] 0.0, 128
  %7657 = vxpose.xlu0.b32.cont [4/16] 0.0, 128
  %7658 = vxpose.xlu0.b32.cont [5/16] 0.0, 128
  %7659 = vxpose.xlu0.b32.cont [6/16] 0.0, 128
  %7660 = vxpose.xlu0.b32.cont [7/16] 0.0, 128
  %7661 = vxpose.xlu0.b32.cont [8/16] 0.0, 128
  %7662 = vxpose.xlu0.b32.cont [9/16] 0.0, 128
  %7663 = vxpose.xlu0.b32.cont [10/16] 0.0, 128
  %7664 = vxpose.xlu0.b32.cont [11/16] 0.0, 128
  %7665 = vxpose.xlu0.b32.cont [12/16] 0.0, 128
  %7666 = vxpose.xlu0.b32.cont [13/16] 0.0, 128
  %7667 = vxpose.xlu0.b32.cont [14/16] 0.0, 128
  %7668 = vxpose.xlu0.b32.cont [15/16] 0.0, 128
  %7669 = vxpose.xlu0.b32.end [16/16] 0.0, 128
  %v7670 = vpop.trf.xlu0
  %v7671 = vpop.trf.xlu0
  %v7672 = vpop.trf.xlu0
  %v7673 = vpop.trf.xlu0
  %v7674 = vpop.trf.xlu0
  %v7675 = vpop.trf.xlu0
  %v7676 = vpop.trf.xlu0
  %v7677 = vpop.trf.xlu0
  %v7678 = vpop.trf.xlu0
  %v7679 = vpop.trf.xlu0
  %v7680 = vpop.trf.xlu0
  %v7681 = vpop.trf.xlu0
  %v7682 = vpop.trf.xlu0
  %v7683 = vpop.trf.xlu0
  %v7684 = vpop.trf.xlu0
  %v7685 = vpop.trf.xlu0
  %7686 = vxpose.xlu0.b32.start [1/16] %v6300, 128
  %7687 = vxpose.xlu0.b32.cont [2/16] %v6302, 128
  %7688 = vxpose.xlu0.b32.cont [3/16] 0.0, 128
  %7689 = vxpose.xlu0.b32.cont [4/16] 0.0, 128
  %7690 = vxpose.xlu0.b32.cont [5/16] 0.0, 128
  %7691 = vxpose.xlu0.b32.cont [6/16] 0.0, 128
  %7692 = vxpose.xlu0.b32.cont [7/16] 0.0, 128
  %7693 = vxpose.xlu0.b32.cont [8/16] 0.0, 128
  %7694 = vxpose.xlu0.b32.cont [9/16] 0.0, 128
  %7695 = vxpose.xlu0.b32.cont [10/16] 0.0, 128
  %7696 = vxpose.xlu0.b32.cont [11/16] 0.0, 128
  %7697 = vxpose.xlu0.b32.cont [12/16] 0.0, 128
  %7698 = vxpose.xlu0.b32.cont [13/16] 0.0, 128
  %7699 = vxpose.xlu0.b32.cont [14/16] 0.0, 128
  %7700 = vxpose.xlu0.b32.cont [15/16] 0.0, 128
  %7701 = vxpose.xlu0.b32.end [16/16] 0.0, 128
  %v7702 = vpop.trf.xlu0
  %v7703 = vpop.trf.xlu0
  %v7704 = vpop.trf.xlu0
  %v7705 = vpop.trf.xlu0
  %v7706 = vpop.trf.xlu0
  %v7707 = vpop.trf.xlu0
  %v7708 = vpop.trf.xlu0
  %v7709 = vpop.trf.xlu0
  %v7710 = vpop.trf.xlu0
  %v7711 = vpop.trf.xlu0
  %v7712 = vpop.trf.xlu0
  %v7713 = vpop.trf.xlu0
  %v7714 = vpop.trf.xlu0
  %v7715 = vpop.trf.xlu0
  %v7716 = vpop.trf.xlu0
  %v7717 = vpop.trf.xlu0
  %7718 = vxpose.xlu0.b32.start [1/16] %v6304, 128
  %7719 = vxpose.xlu0.b32.cont [2/16] %v6306, 128
  %7720 = vxpose.xlu0.b32.cont [3/16] 0.0, 128
  %7721 = vxpose.xlu0.b32.cont [4/16] 0.0, 128
  %7722 = vxpose.xlu0.b32.cont [5/16] 0.0, 128
  %7723 = vxpose.xlu0.b32.cont [6/16] 0.0, 128
  %7724 = vxpose.xlu0.b32.cont [7/16] 0.0, 128
  %7725 = vxpose.xlu0.b32.cont [8/16] 0.0, 128
  %7726 = vxpose.xlu0.b32.cont [9/16] 0.0, 128
  %7727 = vxpose.xlu0.b32.cont [10/16] 0.0, 128
  %7728 = vxpose.xlu0.b32.cont [11/16] 0.0, 128
  %7729 = vxpose.xlu0.b32.cont [12/16] 0.0, 128
  %7730 = vxpose.xlu0.b32.cont [13/16] 0.0, 128
  %7731 = vxpose.xlu0.b32.cont [14/16] 0.0, 128
  %7732 = vxpose.xlu0.b32.cont [15/16] 0.0, 128
  %7733 = vxpose.xlu0.b32.end [16/16] 0.0, 128
  %v7734 = vpop.trf.xlu0
  %v7735 = vpop.trf.xlu0
  %v7736 = vpop.trf.xlu0
  %v7737 = vpop.trf.xlu0
  %v7738 = vpop.trf.xlu0
  %v7739 = vpop.trf.xlu0
  %v7740 = vpop.trf.xlu0
  %v7741 = vpop.trf.xlu0
  %v7742 = vpop.trf.xlu0
  %v7743 = vpop.trf.xlu0
  %v7744 = vpop.trf.xlu0
  %v7745 = vpop.trf.xlu0
  %v7746 = vpop.trf.xlu0
  %v7747 = vpop.trf.xlu0
  %v7748 = vpop.trf.xlu0
  %v7749 = vpop.trf.xlu0
  %7750 = vxpose.xlu0.b32.start [1/16] %v6308, 128
  %7751 = vxpose.xlu0.b32.cont [2/16] %v6310, 128
  %7752 = vxpose.xlu0.b32.cont [3/16] 0.0, 128
  %7753 = vxpose.xlu0.b32.cont [4/16] 0.0, 128
  %7754 = vxpose.xlu0.b32.cont [5/16] 0.0, 128
  %7755 = vxpose.xlu0.b32.cont [6/16] 0.0, 128
  %7756 = vxpose.xlu0.b32.cont [7/16] 0.0, 128
  %7757 = vxpose.xlu0.b32.cont [8/16] 0.0, 128
  %7758 = vxpose.xlu0.b32.cont [9/16] 0.0, 128
  %7759 = vxpose.xlu0.b32.cont [10/16] 0.0, 128
  %7760 = vxpose.xlu0.b32.cont [11/16] 0.0, 128
  %7761 = vxpose.xlu0.b32.cont [12/16] 0.0, 128
  %7762 = vxpose.xlu0.b32.cont [13/16] 0.0, 128
  %7763 = vxpose.xlu0.b32.cont [14/16] 0.0, 128
  %7764 = vxpose.xlu0.b32.cont [15/16] 0.0, 128
  %7765 = vxpose.xlu0.b32.end [16/16] 0.0, 128
  %v7766 = vpop.trf.xlu0
  %v7767 = vpop.trf.xlu0
  %v7768 = vpop.trf.xlu0
  %v7769 = vpop.trf.xlu0
  %v7770 = vpop.trf.xlu0
  %v7771 = vpop.trf.xlu0
  %v7772 = vpop.trf.xlu0
  %v7773 = vpop.trf.xlu0
  %v7774 = vpop.trf.xlu0
  %v7775 = vpop.trf.xlu0
  %v7776 = vpop.trf.xlu0
  %v7777 = vpop.trf.xlu0
  %v7778 = vpop.trf.xlu0
  %v7779 = vpop.trf.xlu0
  %v7780 = vpop.trf.xlu0
  %v7781 = vpop.trf.xlu0
  %7782 = vxpose.xlu0.b32.start [1/16] %v6312, 128
  %7783 = vxpose.xlu0.b32.cont [2/16] %v6314, 128
  %7784 = vxpose.xlu0.b32.cont [3/16] 0.0, 128
  %7785 = vxpose.xlu0.b32.cont [4/16] 0.0, 128
  %7786 = vxpose.xlu0.b32.cont [5/16] 0.0, 128
  %7787 = vxpose.xlu0.b32.cont [6/16] 0.0, 128
  %7788 = vxpose.xlu0.b32.cont [7/16] 0.0, 128
  %7789 = vxpose.xlu0.b32.cont [8/16] 0.0, 128
  %7790 = vxpose.xlu0.b32.cont [9/16] 0.0, 128
  %7791 = vxpose.xlu0.b32.cont [10/16] 0.0, 128
  %7792 = vxpose.xlu0.b32.cont [11/16] 0.0, 128
  %7793 = vxpose.xlu0.b32.cont [12/16] 0.0, 128
  %7794 = vxpose.xlu0.b32.cont [13/16] 0.0, 128
  %7795 = vxpose.xlu0.b32.cont [14/16] 0.0, 128
  %7796 = vxpose.xlu0.b32.cont [15/16] 0.0, 128
  %7797 = vxpose.xlu0.b32.end [16/16] 0.0, 128
  %v7798 = vpop.trf.xlu0
  %v7799 = vpop.trf.xlu0
  %v7800 = vpop.trf.xlu0
  %v7801 = vpop.trf.xlu0
  %v7802 = vpop.trf.xlu0
  %v7803 = vpop.trf.xlu0
  %v7804 = vpop.trf.xlu0
  %v7805 = vpop.trf.xlu0
  %v7806 = vpop.trf.xlu0
  %v7807 = vpop.trf.xlu0
  %v7808 = vpop.trf.xlu0
  %v7809 = vpop.trf.xlu0
  %v7810 = vpop.trf.xlu0
  %v7811 = vpop.trf.xlu0
  %v7812 = vpop.trf.xlu0
  %v7813 = vpop.trf.xlu0
  %7814 = vxpose.xlu0.b32.start [1/16] %v7527, 128
  %7815 = vxpose.xlu0.b32.cont [2/16] %v7529, 128
  %7816 = vxpose.xlu0.b32.cont [3/16] 0.0, 128
  %7817 = vxpose.xlu0.b32.cont [4/16] 0.0, 128
  %7818 = vxpose.xlu0.b32.cont [5/16] 0.0, 128
  %7819 = vxpose.xlu0.b32.cont [6/16] 0.0, 128
  %7820 = vxpose.xlu0.b32.cont [7/16] 0.0, 128
  %7821 = vxpose.xlu0.b32.cont [8/16] 0.0, 128
  %7822 = vxpose.xlu0.b32.cont [9/16] 0.0, 128
  %7823 = vxpose.xlu0.b32.cont [10/16] 0.0, 128
  %7824 = vxpose.xlu0.b32.cont [11/16] 0.0, 128
  %7825 = vxpose.xlu0.b32.cont [12/16] 0.0, 128
  %7826 = vxpose.xlu0.b32.cont [13/16] 0.0, 128
  %7827 = vxpose.xlu0.b32.cont [14/16] 0.0, 128
  %7828 = vxpose.xlu0.b32.cont [15/16] 0.0, 128
  %7829 = vxpose.xlu0.b32.end [16/16] 0.0, 128
  %v7830 = vpop.trf.xlu0
  %v7831 = vpop.trf.xlu0
  %v7832 = vpop.trf.xlu0
  %v7833 = vpop.trf.xlu0
  %v7834 = vpop.trf.xlu0
  %v7835 = vpop.trf.xlu0
  %v7836 = vpop.trf.xlu0
  %v7837 = vpop.trf.xlu0
  %v7838 = vpop.trf.xlu0
  %v7839 = vpop.trf.xlu0
  %v7840 = vpop.trf.xlu0
  %v7841 = vpop.trf.xlu0
  %v7842 = vpop.trf.xlu0
  %v7843 = vpop.trf.xlu0
  %v7844 = vpop.trf.xlu0
  %v7845 = vpop.trf.xlu0
  %7846 = vxpose.xlu0.b32.start [1/16] %v7531, 128
  %7847 = vxpose.xlu0.b32.cont [2/16] %v7533, 128
  %7848 = vxpose.xlu0.b32.cont [3/16] 0.0, 128
  %7849 = vxpose.xlu0.b32.cont [4/16] 0.0, 128
  %7850 = vxpose.xlu0.b32.cont [5/16] 0.0, 128
  %7851 = vxpose.xlu0.b32.cont [6/16] 0.0, 128
  %7852 = vxpose.xlu0.b32.cont [7/16] 0.0, 128
  %7853 = vxpose.xlu0.b32.cont [8/16] 0.0, 128
  %7854 = vxpose.xlu0.b32.cont [9/16] 0.0, 128
  %7855 = vxpose.xlu0.b32.cont [10/16] 0.0, 128
  %7856 = vxpose.xlu0.b32.cont [11/16] 0.0, 128
  %7857 = vxpose.xlu0.b32.cont [12/16] 0.0, 128
  %7858 = vxpose.xlu0.b32.cont [13/16] 0.0, 128
  %7859 = vxpose.xlu0.b32.cont [14/16] 0.0, 128
  %7860 = vxpose.xlu0.b32.cont [15/16] 0.0, 128
  %7861 = vxpose.xlu0.b32.end [16/16] 0.0, 128
  %v7862 = vpop.trf.xlu0
  %v7863 = vpop.trf.xlu0
  %v7864 = vpop.trf.xlu0
  %v7865 = vpop.trf.xlu0
  %v7866 = vpop.trf.xlu0
  %v7867 = vpop.trf.xlu0
  %v7868 = vpop.trf.xlu0
  %v7869 = vpop.trf.xlu0
  %v7870 = vpop.trf.xlu0
  %v7871 = vpop.trf.xlu0
  %v7872 = vpop.trf.xlu0
  %v7873 = vpop.trf.xlu0
  %v7874 = vpop.trf.xlu0
  %v7875 = vpop.trf.xlu0
  %v7876 = vpop.trf.xlu0
  %v7877 = vpop.trf.xlu0
  %7878 = vxpose.xlu0.b32.start [1/16] %v7535, 128
  %7879 = vxpose.xlu0.b32.cont [2/16] %v7537, 128
  %7880 = vxpose.xlu0.b32.cont [3/16] 0.0, 128
  %7881 = vxpose.xlu0.b32.cont [4/16] 0.0, 128
  %7882 = vxpose.xlu0.b32.cont [5/16] 0.0, 128
  %7883 = vxpose.xlu0.b32.cont [6/16] 0.0, 128
  %7884 = vxpose.xlu0.b32.cont [7/16] 0.0, 128
  %7885 = vxpose.xlu0.b32.cont [8/16] 0.0, 128
  %7886 = vxpose.xlu0.b32.cont [9/16] 0.0, 128
  %7887 = vxpose.xlu0.b32.cont [10/16] 0.0, 128
  %7888 = vxpose.xlu0.b32.cont [11/16] 0.0, 128
  %7889 = vxpose.xlu0.b32.cont [12/16] 0.0, 128
  %7890 = vxpose.xlu0.b32.cont [13/16] 0.0, 128
  %7891 = vxpose.xlu0.b32.cont [14/16] 0.0, 128
  %7892 = vxpose.xlu0.b32.cont [15/16] 0.0, 128
  %7893 = vxpose.xlu0.b32.end [16/16] 0.0, 128
  %v7894 = vpop.trf.xlu0
  %v7895 = vpop.trf.xlu0
  %v7896 = vpop.trf.xlu0
  %v7897 = vpop.trf.xlu0
  %v7898 = vpop.trf.xlu0
  %v7899 = vpop.trf.xlu0
  %v7900 = vpop.trf.xlu0
  %v7901 = vpop.trf.xlu0
  %v7902 = vpop.trf.xlu0
  %v7903 = vpop.trf.xlu0
  %v7904 = vpop.trf.xlu0
  %v7905 = vpop.trf.xlu0
  %v7906 = vpop.trf.xlu0
  %v7907 = vpop.trf.xlu0
  %v7908 = vpop.trf.xlu0
  %v7909 = vpop.trf.xlu0
  %7910 = vxpose.xlu0.b32.start [1/16] %v7539, 128
  %7911 = vxpose.xlu0.b32.cont [2/16] %v7541, 128
  %7912 = vxpose.xlu0.b32.cont [3/16] 0.0, 128
  %7913 = vxpose.xlu0.b32.cont [4/16] 0.0, 128
  %7914 = vxpose.xlu0.b32.cont [5/16] 0.0, 128
  %7915 = vxpose.xlu0.b32.cont [6/16] 0.0, 128
  %7916 = vxpose.xlu0.b32.cont [7/16] 0.0, 128
  %7917 = vxpose.xlu0.b32.cont [8/16] 0.0, 128
  %7918 = vxpose.xlu0.b32.cont [9/16] 0.0, 128
  %7919 = vxpose.xlu0.b32.cont [10/16] 0.0, 128
  %7920 = vxpose.xlu0.b32.cont [11/16] 0.0, 128
  %7921 = vxpose.xlu0.b32.cont [12/16] 0.0, 128
  %7922 = vxpose.xlu0.b32.cont [13/16] 0.0, 128
  %7923 = vxpose.xlu0.b32.cont [14/16] 0.0, 128
  %7924 = vxpose.xlu0.b32.cont [15/16] 0.0, 128
  %7925 = vxpose.xlu0.b32.end [16/16] 0.0, 128
  %v7926 = vpop.trf.xlu0
  %v7927 = vpop.trf.xlu0
  %v7928 = vpop.trf.xlu0
  %v7929 = vpop.trf.xlu0
  %v7930 = vpop.trf.xlu0
  %v7931 = vpop.trf.xlu0
  %v7932 = vpop.trf.xlu0
  %v7933 = vpop.trf.xlu0
  %v7934 = vpop.trf.xlu0
  %v7935 = vpop.trf.xlu0
  %v7936 = vpop.trf.xlu0
  %v7937 = vpop.trf.xlu0
  %v7938 = vpop.trf.xlu0
  %v7939 = vpop.trf.xlu0
  %v7940 = vpop.trf.xlu0
  %v7941 = vpop.trf.xlu0
  %7942 = vxpose.xlu0.b32.start [1/16] %v7543, 128
  %7943 = vxpose.xlu0.b32.cont [2/16] %v7545, 128
  %7944 = vxpose.xlu0.b32.cont [3/16] 0.0, 128
  %7945 = vxpose.xlu0.b32.cont [4/16] 0.0, 128
  %7946 = vxpose.xlu0.b32.cont [5/16] 0.0, 128
  %7947 = vxpose.xlu0.b32.cont [6/16] 0.0, 128
  %7948 = vxpose.xlu0.b32.cont [7/16] 0.0, 128
  %7949 = vxpose.xlu0.b32.cont [8/16] 0.0, 128
  %7950 = vxpose.xlu0.b32.cont [9/16] 0.0, 128
  %7951 = vxpose.xlu0.b32.cont [10/16] 0.0, 128
  %7952 = vxpose.xlu0.b32.cont [11/16] 0.0, 128
  %7953 = vxpose.xlu0.b32.cont [12/16] 0.0, 128
  %7954 = vxpose.xlu0.b32.cont [13/16] 0.0, 128
  %7955 = vxpose.xlu0.b32.cont [14/16] 0.0, 128
  %7956 = vxpose.xlu0.b32.cont [15/16] 0.0, 128
  %7957 = vxpose.xlu0.b32.end [16/16] 0.0, 128
  %v7958 = vpop.trf.xlu0
  %v7959 = vpop.trf.xlu0
  %v7960 = vpop.trf.xlu0
  %v7961 = vpop.trf.xlu0
  %v7962 = vpop.trf.xlu0
  %v7963 = vpop.trf.xlu0
  %v7964 = vpop.trf.xlu0
  %v7965 = vpop.trf.xlu0
  %v7966 = vpop.trf.xlu0
  %v7967 = vpop.trf.xlu0
  %v7968 = vpop.trf.xlu0
  %v7969 = vpop.trf.xlu0
  %v7970 = vpop.trf.xlu0
  %v7971 = vpop.trf.xlu0
  %v7972 = vpop.trf.xlu0
  %v7973 = vpop.trf.xlu0
  %7974 = vxpose.xlu0.b32.start [1/16] %v7547, 128
  %7975 = vxpose.xlu0.b32.cont [2/16] %v7549, 128
  %7976 = vxpose.xlu0.b32.cont [3/16] 0.0, 128
  %7977 = vxpose.xlu0.b32.cont [4/16] 0.0, 128
  %7978 = vxpose.xlu0.b32.cont [5/16] 0.0, 128
  %7979 = vxpose.xlu0.b32.cont [6/16] 0.0, 128
  %7980 = vxpose.xlu0.b32.cont [7/16] 0.0, 128
  %7981 = vxpose.xlu0.b32.cont [8/16] 0.0, 128
  %7982 = vxpose.xlu0.b32.cont [9/16] 0.0, 128
  %7983 = vxpose.xlu0.b32.cont [10/16] 0.0, 128
  %7984 = vxpose.xlu0.b32.cont [11/16] 0.0, 128
  %7985 = vxpose.xlu0.b32.cont [12/16] 0.0, 128
  %7986 = vxpose.xlu0.b32.cont [13/16] 0.0, 128
  %7987 = vxpose.xlu0.b32.cont [14/16] 0.0, 128
  %7988 = vxpose.xlu0.b32.cont [15/16] 0.0, 128
  %7989 = vxpose.xlu0.b32.end [16/16] 0.0, 128
  %v7990 = vpop.trf.xlu0
  %v7991 = vpop.trf.xlu0
  %v7992 = vpop.trf.xlu0
  %v7993 = vpop.trf.xlu0
  %v7994 = vpop.trf.xlu0
  %v7995 = vpop.trf.xlu0
  %v7996 = vpop.trf.xlu0
  %v7997 = vpop.trf.xlu0
  %v7998 = vpop.trf.xlu0
  %v7999 = vpop.trf.xlu0
  %v8000 = vpop.trf.xlu0
  %v8001 = vpop.trf.xlu0
  %v8002 = vpop.trf.xlu0
  %v8003 = vpop.trf.xlu0
  %v8004 = vpop.trf.xlu0
  %v8005 = vpop.trf.xlu0
  %8006 = vxpose.xlu0.b32.start [1/16] %v7551, 128
  %8007 = vxpose.xlu0.b32.cont [2/16] %v7553, 128
  %8008 = vxpose.xlu0.b32.cont [3/16] 0.0, 128
  %8009 = vxpose.xlu0.b32.cont [4/16] 0.0, 128
  %8010 = vxpose.xlu0.b32.cont [5/16] 0.0, 128
  %8011 = vxpose.xlu0.b32.cont [6/16] 0.0, 128
  %8012 = vxpose.xlu0.b32.cont [7/16] 0.0, 128
  %8013 = vxpose.xlu0.b32.cont [8/16] 0.0, 128
  %8014 = vxpose.xlu0.b32.cont [9/16] 0.0, 128
  %8015 = vxpose.xlu0.b32.cont [10/16] 0.0, 128
  %8016 = vxpose.xlu0.b32.cont [11/16] 0.0, 128
  %8017 = vxpose.xlu0.b32.cont [12/16] 0.0, 128
  %8018 = vxpose.xlu0.b32.cont [13/16] 0.0, 128
  %8019 = vxpose.xlu0.b32.cont [14/16] 0.0, 128
  %8020 = vxpose.xlu0.b32.cont [15/16] 0.0, 128
  %8021 = vxpose.xlu0.b32.end [16/16] 0.0, 128
  %v8022 = vpop.trf.xlu0
  %v8023 = vpop.trf.xlu0
  %v8024 = vpop.trf.xlu0
  %v8025 = vpop.trf.xlu0
  %v8026 = vpop.trf.xlu0
  %v8027 = vpop.trf.xlu0
  %v8028 = vpop.trf.xlu0
  %v8029 = vpop.trf.xlu0
  %v8030 = vpop.trf.xlu0
  %v8031 = vpop.trf.xlu0
  %v8032 = vpop.trf.xlu0
  %v8033 = vpop.trf.xlu0
  %v8034 = vpop.trf.xlu0
  %v8035 = vpop.trf.xlu0
  %v8036 = vpop.trf.xlu0
  %v8037 = vpop.trf.xlu0
  %8038 = vxpose.xlu0.b32.start [1/16] %v7555, 128
  %8039 = vxpose.xlu0.b32.cont [2/16] %v7557, 128
  %8040 = vxpose.xlu0.b32.cont [3/16] 0.0, 128
  %8041 = vxpose.xlu0.b32.cont [4/16] 0.0, 128
  %8042 = vxpose.xlu0.b32.cont [5/16] 0.0, 128
  %8043 = vxpose.xlu0.b32.cont [6/16] 0.0, 128
  %8044 = vxpose.xlu0.b32.cont [7/16] 0.0, 128
  %8045 = vxpose.xlu0.b32.cont [8/16] 0.0, 128
  %8046 = vxpose.xlu0.b32.cont [9/16] 0.0, 128
  %8047 = vxpose.xlu0.b32.cont [10/16] 0.0, 128
  %8048 = vxpose.xlu0.b32.cont [11/16] 0.0, 128
  %8049 = vxpose.xlu0.b32.cont [12/16] 0.0, 128
  %8050 = vxpose.xlu0.b32.cont [13/16] 0.0, 128
  %8051 = vxpose.xlu0.b32.cont [14/16] 0.0, 128
  %8052 = vxpose.xlu0.b32.cont [15/16] 0.0, 128
  %8053 = vxpose.xlu0.b32.end [16/16] 0.0, 128
  %v8054 = vpop.trf.xlu0
  %v8055 = vpop.trf.xlu0
  %v8056 = vpop.trf.xlu0
  %v8057 = vpop.trf.xlu0
  %v8058 = vpop.trf.xlu0
  %v8059 = vpop.trf.xlu0
  %v8060 = vpop.trf.xlu0
  %v8061 = vpop.trf.xlu0
  %v8062 = vpop.trf.xlu0
  %v8063 = vpop.trf.xlu0
  %v8064 = vpop.trf.xlu0
  %v8065 = vpop.trf.xlu0
  %v8066 = vpop.trf.xlu0
  %v8067 = vpop.trf.xlu0
  %v8068 = vpop.trf.xlu0
  %v8069 = vpop.trf.xlu0
  %v8070 = vld [vmem:[%s2] sm:$0xff]
  %v8071 = vld [vmem:[%s2 + $0x8] sm:$0xff]
  %v8072 = vld [vmem:[%s2 + $0x10] sm:$0xff]
  %v8073 = vld [vmem:[%s2 + $0x18] sm:$0xff]
  %vm8074 = vcmask 130048
  %v8076 = vsel %vm8074, %v7574, 0
  %v8079 = vsel %vm8074, %v7575, 0
  %v8082 = vsel %vm8074, %v7576, 0
  %v8085 = vsel %vm8074, %v7577, 0
  %v8088 = vsel %vm8074, %v7606, 0
  %v8091 = vsel %vm8074, %v7607, 0
  %v8094 = vsel %vm8074, %v7608, 0
  %v8097 = vsel %vm8074, %v7609, 0
  %v8100 = vsel %vm8074, %v7638, 0
  %v8103 = vsel %vm8074, %v7639, 0
  %v8106 = vsel %vm8074, %v7640, 0
  %v8109 = vsel %vm8074, %v7641, 0
  %v8112 = vsel %vm8074, %v7670, 0
  %v8115 = vsel %vm8074, %v7671, 0
  %v8118 = vsel %vm8074, %v7672, 0
  %v8121 = vsel %vm8074, %v7673, 0
  %v8124 = vsel %vm8074, %v7702, 0
  %v8127 = vsel %vm8074, %v7703, 0
  %v8130 = vsel %vm8074, %v7704, 0
  %v8133 = vsel %vm8074, %v7705, 0
  %v8136 = vsel %vm8074, %v7734, 0
  %v8139 = vsel %vm8074, %v7735, 0
  %v8142 = vsel %vm8074, %v7736, 0
  %v8145 = vsel %vm8074, %v7737, 0
  %v8148 = vsel %vm8074, %v7766, 0
  %v8151 = vsel %vm8074, %v7767, 0
  %v8154 = vsel %vm8074, %v7768, 0
  %v8157 = vsel %vm8074, %v7769, 0
  %v8160 = vsel %vm8074, %v7798, 0
  %v8163 = vsel %vm8074, %v7799, 0
  %v8166 = vsel %vm8074, %v7800, 0
  %v8169 = vsel %vm8074, %v7801, 0
  %v8171 = vand.u32 %v8071, 4294901760
  %8172 = vmatprep.subr.mxu0 %v8171
  %v8173 = vand.u32 %v8070, 4294901760
  %8174 = vmatpush1.msra.mxu0 %v8173
  %v8175 = vand.u32 %v8073, 4294901760
  %8176 = vmatprep.subr.mxu0 %v8175
  %v8177 = vand.u32 %v8072, 4294901760
  %8178 = vmatpush1.msra.mxu0 %v8177
  %8179 = vmatprep.subr.mxu0 0.0
  %8180 = vmatpush1.msra.mxu0 0.0
  %8181 = vmatprep.subr.mxu0 0.0
  %8182 = vmatpush1.msra.mxu0 0.0
  %8183 = vmatprep.subr.mxu0 0.0
  %8184 = vmatpush1.msra.mxu0 0.0
  %8185 = vmatprep.subr.mxu0 0.0
  %8186 = vmatpush1.msra.mxu0 0.0
  %8187 = vmatprep.subr.mxu0 0.0
  %8188 = vmatpush1.msra.mxu0 0.0
  %8189 = vmatprep.subr.mxu0 0.0
  %8190 = vmatpush1.msra.mxu0 0.0
  %8191 = vmatprep.subr.mxu0 0.0
  %8192 = vmatpush1.msra.mxu0 0.0
  %8193 = vmatprep.subr.mxu0 0.0
  %8194 = vmatpush1.msra.mxu0 0.0
  %8195 = vmatprep.subr.mxu0 0.0
  %8196 = vmatpush1.msra.mxu0 0.0
  %8197 = vmatprep.subr.mxu0 0.0
  %8198 = vmatpush1.msra.mxu0 0.0
  %8199 = vmatprep.subr.mxu0 0.0
  %8200 = vmatpush1.msra.mxu0 0.0
  %8201 = vmatprep.subr.mxu0 0.0
  %8202 = vmatpush1.msra.mxu0 0.0
  %8203 = vmatprep.subr.mxu0 0.0
  %8204 = vmatpush1.msra.mxu0 0.0
  %8205 = vmatprep.subr.mxu0 0.0
  %8206 = vmatpush1.msra.mxu0 0.0
  %8207 = vmatprep.subr.mxu0 0.0
  %8208 = vmatpush1.msra.mxu0 0.0
  %8209 = vmatprep.subr.mxu0 0.0
  %8210 = vmatpush1.msra.mxu0 0.0
  %8211 = vmatprep.subr.mxu0 0.0
  %8212 = vmatpush1.msra.mxu0 0.0
  %8213 = vmatprep.subr.mxu0 0.0
  %8214 = vmatpush1.msra.mxu0 0.0
  %8215 = vmatprep.subr.mxu0 0.0
  %8216 = vmatpush1.msra.mxu0 0.0
  %8217 = vmatprep.subr.mxu0 0.0
  %8218 = vmatpush1.msra.mxu0 0.0
  %8219 = vmatprep.subr.mxu0 0.0
  %8220 = vmatpush1.msra.mxu0 0.0
  %8221 = vmatprep.subr.mxu0 0.0
  %8222 = vmatpush1.msra.mxu0 0.0
  %8223 = vmatprep.subr.mxu0 0.0
  %8224 = vmatpush1.msra.mxu0 0.0
  %8225 = vmatprep.subr.mxu0 0.0
  %8226 = vmatpush1.msra.mxu0 0.0
  %8227 = vmatprep.subr.mxu0 0.0
  %8228 = vmatpush1.msra.mxu0 0.0
  %8229 = vmatprep.subr.mxu0 0.0
  %8230 = vmatpush1.msra.mxu0 0.0
  %8231 = vmatprep.subr.mxu0 0.0
  %8232 = vmatpush1.msra.mxu0 0.0
  %8233 = vmatprep.subr.mxu0 0.0
  %8234 = vmatpush1.msra.mxu0 0.0
  %8235 = vmatprep.subr.mxu0 0.0
  %8236 = vmatpush1.msra.mxu0 0.0
  %8237 = vmatprep.subr.mxu0 0.0
  %8238 = vmatpush1.msra.mxu0 0.0
  %8239 = vmatprep.mubr.f32.mxu0 0.0
  %v8240 = vand.u32 %v8076, 4294901760
  %v8241 = vsub.f32 %v8076, %v8240
  %v8242 = vand.u32 %v8241, 4294901760
  %v8243 = vsub.f32 %v8241, %v8242
  %v8244 = vand.u32 %v8243, 4294901760
  %8245 = vmatmul.mubr.f32.gmra.mrb[0].mxu0 %v8244
  %v8246 = vpop.f32.mrb[0].mxu0
  %v8247 = vadd.f32 0.0, %v8246
  %v8248 = vpop.f32.mrb[0].mxu0
  %v8249 = vadd.f32 0.0, %v8248
  %8250 = vmatprep.mubr.f32.mxu0 0.0
  %v8251 = vand.u32 %v8079, 4294901760
  %v8252 = vsub.f32 %v8079, %v8251
  %v8253 = vand.u32 %v8252, 4294901760
  %v8254 = vsub.f32 %v8252, %v8253
  %v8255 = vand.u32 %v8254, 4294901760
  %8256 = vmatmul.mubr.f32.gmra.mrb[0].mxu0 %v8255
  %v8257 = vpop.f32.mrb[0].mxu0
  %v8258 = vadd.f32 0.0, %v8257
  %v8259 = vpop.f32.mrb[0].mxu0
  %v8260 = vadd.f32 0.0, %v8259
  %8261 = vmatprep.mubr.f32.mxu0 0.0
  %v8262 = vand.u32 %v8082, 4294901760
  %v8263 = vsub.f32 %v8082, %v8262
  %v8264 = vand.u32 %v8263, 4294901760
  %v8265 = vsub.f32 %v8263, %v8264
  %v8266 = vand.u32 %v8265, 4294901760
  %8267 = vmatmul.mubr.f32.gmra.mrb[0].mxu0 %v8266
  %v8268 = vpop.f32.mrb[0].mxu0
  %v8269 = vadd.f32 0.0, %v8268
  %v8270 = vpop.f32.mrb[0].mxu0
  %v8271 = vadd.f32 0.0, %v8270
  %8272 = vmatprep.mubr.f32.mxu0 0.0
  %v8273 = vand.u32 %v8085, 4294901760
  %v8274 = vsub.f32 %v8085, %v8273
  %v8275 = vand.u32 %v8274, 4294901760
  %v8276 = vsub.f32 %v8274, %v8275
  %v8277 = vand.u32 %v8276, 4294901760
  %8278 = vmatmul.mubr.f32.gmra.mrb[0].mxu0 %v8277
  %v8279 = vpop.f32.mrb[0].mxu0
  %v8280 = vadd.f32 0.0, %v8279
  %v8281 = vpop.f32.mrb[0].mxu0
  %v8282 = vadd.f32 0.0, %v8281
  %8283 = vmatprep.mubr.f32.mxu0 0.0
  %v8284 = vand.u32 %v8088, 4294901760
  %v8285 = vsub.f32 %v8088, %v8284
  %v8286 = vand.u32 %v8285, 4294901760
  %v8287 = vsub.f32 %v8285, %v8286
  %v8288 = vand.u32 %v8287, 4294901760
  %8289 = vmatmul.mubr.f32.gmra.mrb[0].mxu0 %v8288
  %v8290 = vpop.f32.mrb[0].mxu0
  %v8291 = vadd.f32 0.0, %v8290
  %v8292 = vpop.f32.mrb[0].mxu0
  %v8293 = vadd.f32 0.0, %v8292
  %8294 = vmatprep.mubr.f32.mxu0 0.0
  %v8295 = vand.u32 %v8091, 4294901760
  %v8296 = vsub.f32 %v8091, %v8295
  %v8297 = vand.u32 %v8296, 4294901760
  %v8298 = vsub.f32 %v8296, %v8297
  %v8299 = vand.u32 %v8298, 4294901760
  %8300 = vmatmul.mubr.f32.gmra.mrb[0].mxu0 %v8299
  %v8301 = vpop.f32.mrb[0].mxu0
  %v8302 = vadd.f32 0.0, %v8301
  %v8303 = vpop.f32.mrb[0].mxu0
  %v8304 = vadd.f32 0.0, %v8303
  %8305 = vmatprep.mubr.f32.mxu0 0.0
  %v8306 = vand.u32 %v8094, 4294901760
  %v8307 = vsub.f32 %v8094, %v8306
  %v8308 = vand.u32 %v8307, 4294901760
  %v8309 = vsub.f32 %v8307, %v8308
  %v8310 = vand.u32 %v8309, 4294901760
  %8311 = vmatmul.mubr.f32.gmra.mrb[0].mxu0 %v8310
  %v8312 = vpop.f32.mrb[0].mxu0
  %v8313 = vadd.f32 0.0, %v8312
  %v8314 = vpop.f32.mrb[0].mxu0
  %v8315 = vadd.f32 0.0, %v8314
  %8316 = vmatprep.mubr.f32.mxu0 0.0
  %v8317 = vand.u32 %v8097, 4294901760
  %v8318 = vsub.f32 %v8097, %v8317
  %v8319 = vand.u32 %v8318, 4294901760
  %v8320 = vsub.f32 %v8318, %v8319
  %v8321 = vand.u32 %v8320, 4294901760
  %8322 = vmatmul.mubr.f32.gmra.mrb[0].mxu0 %v8321
  %v8323 = vpop.f32.mrb[0].mxu0
  %v8324 = vadd.f32 0.0, %v8323
  %v8325 = vpop.f32.mrb[0].mxu0
  %v8326 = vadd.f32 0.0, %v8325
  %8327 = vmatprep.mubr.f32.mxu0 0.0
  %v8328 = vand.u32 %v8100, 4294901760
  %v8329 = vsub.f32 %v8100, %v8328
  %v8330 = vand.u32 %v8329, 4294901760
  %v8331 = vsub.f32 %v8329, %v8330
  %v8332 = vand.u32 %v8331, 4294901760
  %8333 = vmatmul.mubr.f32.gmra.mrb[0].mxu0 %v8332
  %v8334 = vpop.f32.mrb[0].mxu0
  %v8335 = vadd.f32 0.0, %v8334
  %v8336 = vpop.f32.mrb[0].mxu0
  %v8337 = vadd.f32 0.0, %v8336
  %8338 = vmatprep.mubr.f32.mxu0 0.0
  %v8339 = vand.u32 %v8103, 4294901760
  %v8340 = vsub.f32 %v8103, %v8339
  %v8341 = vand.u32 %v8340, 4294901760
  %v8342 = vsub.f32 %v8340, %v8341
  %v8343 = vand.u32 %v8342, 4294901760
  %8344 = vmatmul.mubr.f32.gmra.mrb[0].mxu0 %v8343
  %v8345 = vpop.f32.mrb[0].mxu0
  %v8346 = vadd.f32 0.0, %v8345
  %v8347 = vpop.f32.mrb[0].mxu0
  %v8348 = vadd.f32 0.0, %v8347
  %8349 = vmatprep.mubr.f32.mxu0 0.0
  %v8350 = vand.u32 %v8106, 4294901760
  %v8351 = vsub.f32 %v8106, %v8350
  %v8352 = vand.u32 %v8351, 4294901760
  %v8353 = vsub.f32 %v8351, %v8352
  %v8354 = vand.u32 %v8353, 4294901760
  %8355 = vmatmul.mubr.f32.gmra.mrb[0].mxu0 %v8354
  %v8356 = vpop.f32.mrb[0].mxu0
  %v8357 = vadd.f32 0.0, %v8356
  %v8358 = vpop.f32.mrb[0].mxu0
  %v8359 = vadd.f32 0.0, %v8358
  %8360 = vmatprep.mubr.f32.mxu0 0.0
  %v8361 = vand.u32 %v8109, 4294901760
  %v8362 = vsub.f32 %v8109, %v8361
  %v8363 = vand.u32 %v8362, 4294901760
  %v8364 = vsub.f32 %v8362, %v8363
  %v8365 = vand.u32 %v8364, 4294901760
  %8366 = vmatmul.mubr.f32.gmra.mrb[0].mxu0 %v8365
  %v8367 = vpop.f32.mrb[0].mxu0
  %v8368 = vadd.f32 0.0, %v8367
  %v8369 = vpop.f32.mrb[0].mxu0
  %v8370 = vadd.f32 0.0, %v8369
  %8371 = vmatprep.mubr.f32.mxu0 0.0
  %v8372 = vand.u32 %v8112, 4294901760
  %v8373 = vsub.f32 %v8112, %v8372
  %v8374 = vand.u32 %v8373, 4294901760
  %v8375 = vsub.f32 %v8373, %v8374
  %v8376 = vand.u32 %v8375, 4294901760
  %8377 = vmatmul.mubr.f32.gmra.mrb[0].mxu0 %v8376
  %v8378 = vpop.f32.mrb[0].mxu0
  %v8379 = vadd.f32 0.0, %v8378
  %v8380 = vpop.f32.mrb[0].mxu0
  %v8381 = vadd.f32 0.0, %v8380
  %8382 = vmatprep.mubr.f32.mxu0 0.0
  %v8383 = vand.u32 %v8115, 4294901760
  %v8384 = vsub.f32 %v8115, %v8383
  %v8385 = vand.u32 %v8384, 4294901760
  %v8386 = vsub.f32 %v8384, %v8385
  %v8387 = vand.u32 %v8386, 4294901760
  %8388 = vmatmul.mubr.f32.gmra.mrb[0].mxu0 %v8387
  %v8389 = vpop.f32.mrb[0].mxu0
  %v8390 = vadd.f32 0.0, %v8389
  %v8391 = vpop.f32.mrb[0].mxu0
  %v8392 = vadd.f32 0.0, %v8391
  %8393 = vmatprep.mubr.f32.mxu0 0.0
  %v8394 = vand.u32 %v8118, 4294901760
  %v8395 = vsub.f32 %v8118, %v8394
  %v8396 = vand.u32 %v8395, 4294901760
  %v8397 = vsub.f32 %v8395, %v8396
  %v8398 = vand.u32 %v8397, 4294901760
  %8399 = vmatmul.mubr.f32.gmra.mrb[0].mxu0 %v8398
  %v8400 = vpop.f32.mrb[0].mxu0
  %v8401 = vadd.f32 0.0, %v8400
  %v8402 = vpop.f32.mrb[0].mxu0
  %v8403 = vadd.f32 0.0, %v8402
  %8404 = vmatprep.mubr.f32.mxu0 0.0
  %v8405 = vand.u32 %v8121, 4294901760
  %v8406 = vsub.f32 %v8121, %v8405
  %v8407 = vand.u32 %v8406, 4294901760
  %v8408 = vsub.f32 %v8406, %v8407
  %v8409 = vand.u32 %v8408, 4294901760
  %8410 = vmatmul.mubr.f32.gmra.mrb[0].mxu0 %v8409
  %v8411 = vpop.f32.mrb[0].mxu0
  %v8412 = vadd.f32 0.0, %v8411
  %v8413 = vpop.f32.mrb[0].mxu0
  %v8414 = vadd.f32 0.0, %v8413
  %8415 = vmatprep.mubr.f32.mxu0 0.0
  %v8416 = vand.u32 %v8124, 4294901760
  %v8417 = vsub.f32 %v8124, %v8416
  %v8418 = vand.u32 %v8417, 4294901760
  %v8419 = vsub.f32 %v8417, %v8418
  %v8420 = vand.u32 %v8419, 4294901760
  %8421 = vmatmul.mubr.f32.gmra.mrb[0].mxu0 %v8420
  %v8422 = vpop.f32.mrb[0].mxu0
  %v8423 = vadd.f32 0.0, %v8422
  %v8424 = vpop.f32.mrb[0].mxu0
  %v8425 = vadd.f32 0.0, %v8424
  %8426 = vmatprep.mubr.f32.mxu0 0.0
  %v8427 = vand.u32 %v8127, 4294901760
  %v8428 = vsub.f32 %v8127, %v8427
  %v8429 = vand.u32 %v8428, 4294901760
  %v8430 = vsub.f32 %v8428, %v8429
  %v8431 = vand.u32 %v8430, 4294901760
  %8432 = vmatmul.mubr.f32.gmra.mrb[0].mxu0 %v8431
  %v8433 = vpop.f32.mrb[0].mxu0
  %v8434 = vadd.f32 0.0, %v8433
  %v8435 = vpop.f32.mrb[0].mxu0
  %v8436 = vadd.f32 0.0, %v8435
  %8437 = vmatprep.mubr.f32.mxu0 0.0
  %v8438 = vand.u32 %v8130, 4294901760
  %v8439 = vsub.f32 %v8130, %v8438
  %v8440 = vand.u32 %v8439, 4294901760
  %v8441 = vsub.f32 %v8439, %v8440
  %v8442 = vand.u32 %v8441, 4294901760
  %8443 = vmatmul.mubr.f32.gmra.mrb[0].mxu0 %v8442
  %v8444 = vpop.f32.mrb[0].mxu0
  %v8445 = vadd.f32 0.0, %v8444
  %v8446 = vpop.f32.mrb[0].mxu0
  %v8447 = vadd.f32 0.0, %v8446
  %8448 = vmatprep.mubr.f32.mxu0 0.0
  %v8449 = vand.u32 %v8133, 4294901760
  %v8450 = vsub.f32 %v8133, %v8449
  %v8451 = vand.u32 %v8450, 4294901760
  %v8452 = vsub.f32 %v8450, %v8451
  %v8453 = vand.u32 %v8452, 4294901760
  %8454 = vmatmul.mubr.f32.gmra.mrb[0].mxu0 %v8453
  %v8455 = vpop.f32.mrb[0].mxu0
  %v8456 = vadd.f32 0.0, %v8455
  %v8457 = vpop.f32.mrb[0].mxu0
  %v8458 = vadd.f32 0.0, %v8457
  %8459 = vmatprep.mubr.f32.mxu0 0.0
  %v8460 = vand.u32 %v8136, 4294901760
  %v8461 = vsub.f32 %v8136, %v8460
  %v8462 = vand.u32 %v8461, 4294901760
  %v8463 = vsub.f32 %v8461, %v8462
  %v8464 = vand.u32 %v8463, 4294901760
  %8465 = vmatmul.mubr.f32.gmra.mrb[0].mxu0 %v8464
  %v8466 = vpop.f32.mrb[0].mxu0
  %v8467 = vadd.f32 0.0, %v8466
  %v8468 = vpop.f32.mrb[0].mxu0
  %v8469 = vadd.f32 0.0, %v8468
  %8470 = vmatprep.mubr.f32.mxu0 0.0
  %v8471 = vand.u32 %v8139, 4294901760
  %v8472 = vsub.f32 %v8139, %v8471
  %v8473 = vand.u32 %v8472, 4294901760
  %v8474 = vsub.f32 %v8472, %v8473
  %v8475 = vand.u32 %v8474, 4294901760
  %8476 = vmatmul.mubr.f32.gmra.mrb[0].mxu0 %v8475
  %v8477 = vpop.f32.mrb[0].mxu0
  %v8478 = vadd.f32 0.0, %v8477
  %v8479 = vpop.f32.mrb[0].mxu0
  %v8480 = vadd.f32 0.0, %v8479
  %8481 = vmatprep.mubr.f32.mxu0 0.0
  %v8482 = vand.u32 %v8142, 4294901760
  %v8483 = vsub.f32 %v8142, %v8482
  %v8484 = vand.u32 %v8483, 4294901760
  %v8485 = vsub.f32 %v8483, %v8484
  %v8486 = vand.u32 %v8485, 4294901760
  %8487 = vmatmul.mubr.f32.gmra.mrb[0].mxu0 %v8486
  %v8488 = vpop.f32.mrb[0].mxu0
  %v8489 = vadd.f32 0.0, %v8488
  %v8490 = vpop.f32.mrb[0].mxu0
  %v8491 = vadd.f32 0.0, %v8490
  %8492 = vmatprep.mubr.f32.mxu0 0.0
  %v8493 = vand.u32 %v8145, 4294901760
  %v8494 = vsub.f32 %v8145, %v8493
  %v8495 = vand.u32 %v8494, 4294901760
  %v8496 = vsub.f32 %v8494, %v8495
  %v8497 = vand.u32 %v8496, 4294901760
  %8498 = vmatmul.mubr.f32.gmra.mrb[0].mxu0 %v8497
  %v8499 = vpop.f32.mrb[0].mxu0
  %v8500 = vadd.f32 0.0, %v8499
  %v8501 = vpop.f32.mrb[0].mxu0
  %v8502 = vadd.f32 0.0, %v8501
  %8503 = vmatprep.mubr.f32.mxu0 0.0
  %v8504 = vand.u32 %v8148, 4294901760
  %v8505 = vsub.f32 %v8148, %v8504
  %v8506 = vand.u32 %v8505, 4294901760
  %v8507 = vsub.f32 %v8505, %v8506
  %v8508 = vand.u32 %v8507, 4294901760
  %8509 = vmatmul.mubr.f32.gmra.mrb[0].mxu0 %v8508
  %v8510 = vpop.f32.mrb[0].mxu0
  %v8511 = vadd.f32 0.0, %v8510
  %v8512 = vpop.f32.mrb[0].mxu0
  %v8513 = vadd.f32 0.0, %v8512
  %8514 = vmatprep.mubr.f32.mxu0 0.0
  %v8515 = vand.u32 %v8151, 4294901760
  %v8516 = vsub.f32 %v8151, %v8515
  %v8517 = vand.u32 %v8516, 4294901760
  %v8518 = vsub.f32 %v8516, %v8517
  %v8519 = vand.u32 %v8518, 4294901760
  %8520 = vmatmul.mubr.f32.gmra.mrb[0].mxu0 %v8519
  %v8521 = vpop.f32.mrb[0].mxu0
  %v8522 = vadd.f32 0.0, %v8521
  %v8523 = vpop.f32.mrb[0].mxu0
  %v8524 = vadd.f32 0.0, %v8523
  %8525 = vmatprep.mubr.f32.mxu0 0.0
  %v8526 = vand.u32 %v8154, 4294901760
  %v8527 = vsub.f32 %v8154, %v8526
  %v8528 = vand.u32 %v8527, 4294901760
  %v8529 = vsub.f32 %v8527, %v8528
  %v8530 = vand.u32 %v8529, 4294901760
  %8531 = vmatmul.mubr.f32.gmra.mrb[0].mxu0 %v8530
  %v8532 = vpop.f32.mrb[0].mxu0
  %v8533 = vadd.f32 0.0, %v8532
  %v8534 = vpop.f32.mrb[0].mxu0
  %v8535 = vadd.f32 0.0, %v8534
  %8536 = vmatprep.mubr.f32.mxu0 0.0
  %v8537 = vand.u32 %v8157, 4294901760
  %v8538 = vsub.f32 %v8157, %v8537
  %v8539 = vand.u32 %v8538, 4294901760
  %v8540 = vsub.f32 %v8538, %v8539
  %v8541 = vand.u32 %v8540, 4294901760
  %8542 = vmatmul.mubr.f32.gmra.mrb[0].mxu0 %v8541
  %v8543 = vpop.f32.mrb[0].mxu0
  %v8544 = vadd.f32 0.0, %v8543
  %v8545 = vpop.f32.mrb[0].mxu0
  %v8546 = vadd.f32 0.0, %v8545
  %8547 = vmatprep.mubr.f32.mxu0 0.0
  %v8548 = vand.u32 %v8160, 4294901760
  %v8549 = vsub.f32 %v8160, %v8548
  %v8550 = vand.u32 %v8549, 4294901760
  %v8551 = vsub.f32 %v8549, %v8550
  %v8552 = vand.u32 %v8551, 4294901760
  %8553 = vmatmul.mubr.f32.gmra.mrb[0].mxu0 %v8552
  %v8554 = vpop.f32.mrb[0].mxu0
  %v8555 = vadd.f32 0.0, %v8554
  %v8556 = vpop.f32.mrb[0].mxu0
  %v8557 = vadd.f32 0.0, %v8556
  %8558 = vmatprep.mubr.f32.mxu0 0.0
  %v8559 = vand.u32 %v8163, 4294901760
  %v8560 = vsub.f32 %v8163, %v8559
  %v8561 = vand.u32 %v8560, 4294901760
  %v8562 = vsub.f32 %v8560, %v8561
  %v8563 = vand.u32 %v8562, 4294901760
  %8564 = vmatmul.mubr.f32.gmra.mrb[0].mxu0 %v8563
  %v8565 = vpop.f32.mrb[0].mxu0
  %v8566 = vadd.f32 0.0, %v8565
  %v8567 = vpop.f32.mrb[0].mxu0
  %v8568 = vadd.f32 0.0, %v8567
  %8569 = vmatprep.mubr.f32.mxu0 0.0
  %v8570 = vand.u32 %v8166, 4294901760
  %v8571 = vsub.f32 %v8166, %v8570
  %v8572 = vand.u32 %v8571, 4294901760
  %v8573 = vsub.f32 %v8571, %v8572
  %v8574 = vand.u32 %v8573, 4294901760
  %8575 = vmatmul.mubr.f32.gmra.mrb[0].mxu0 %v8574
  %v8576 = vpop.f32.mrb[0].mxu0
  %v8577 = vadd.f32 0.0, %v8576
  %v8578 = vpop.f32.mrb[0].mxu0
  %v8579 = vadd.f32 0.0, %v8578
  %8580 = vmatprep.mubr.f32.mxu0 0.0
  %v8581 = vand.u32 %v8169, 4294901760
  %v8582 = vsub.f32 %v8169, %v8581
  %v8583 = vand.u32 %v8582, 4294901760
  %v8584 = vsub.f32 %v8582, %v8583
  %v8585 = vand.u32 %v8584, 4294901760
  %8586 = vmatmul.mubr.f32.gmra.mrb[0].mxu0 %v8585
  %v8587 = vpop.f32.mrb[0].mxu0
  %v8588 = vadd.f32 0.0, %v8587
  %v8589 = vpop.f32.mrb[0].mxu0
  %v8590 = vadd.f32 0.0, %v8589
  %8591 = vdwg.mxu0
  %v8592 = vand.u32 %v8071, 4294901760
  %v8593 = vsub.f32 %v8071, %v8592
  %v8594 = vand.u32 %v8593, 4294901760
  %v8595 = vsub.f32 %v8593, %v8594
  %v8596 = vand.u32 %v8595, 4294901760
  %8597 = vmatprep.subr.mxu0 %v8596
  %v8598 = vand.u32 %v8070, 4294901760
  %v8599 = vsub.f32 %v8070, %v8598
  %v8600 = vand.u32 %v8599, 4294901760
  %v8601 = vsub.f32 %v8599, %v8600
  %v8602 = vand.u32 %v8601, 4294901760
  %8603 = vmatpush1.msra.mxu0 %v8602
  %v8604 = vand.u32 %v8073, 4294901760
  %v8605 = vsub.f32 %v8073, %v8604
  %v8606 = vand.u32 %v8605, 4294901760
  %v8607 = vsub.f32 %v8605, %v8606
  %v8608 = vand.u32 %v8607, 4294901760
  %8609 = vmatprep.subr.mxu0 %v8608
  %v8610 = vand.u32 %v8072, 4294901760
  %v8611 = vsub.f32 %v8072, %v8610
  %v8612 = vand.u32 %v8611, 4294901760
  %v8613 = vsub.f32 %v8611, %v8612
  %v8614 = vand.u32 %v8613, 4294901760
  %8615 = vmatpush1.msra.mxu0 %v8614
  %8616 = vmatprep.subr.mxu0 0.0
  %8617 = vmatpush1.msra.mxu0 0.0
  %8618 = vmatprep.subr.mxu0 0.0
  %8619 = vmatpush1.msra.mxu0 0.0
  %8620 = vmatprep.subr.mxu0 0.0
  %8621 = vmatpush1.msra.mxu0 0.0
  %8622 = vmatprep.subr.mxu0 0.0
  %8623 = vmatpush1.msra.mxu0 0.0
  %8624 = vmatprep.subr.mxu0 0.0
  %8625 = vmatpush1.msra.mxu0 0.0
  %8626 = vmatprep.subr.mxu0 0.0
  %8627 = vmatpush1.msra.mxu0 0.0
  %8628 = vmatprep.subr.mxu0 0.0
  %8629 = vmatpush1.msra.mxu0 0.0
  %8630 = vmatprep.subr.mxu0 0.0
  %8631 = vmatpush1.msra.mxu0 0.0
  %8632 = vmatprep.subr.mxu0 0.0
  %8633 = vmatpush1.msra.mxu0 0.0
  %8634 = vmatprep.subr.mxu0 0.0
  %8635 = vmatpush1.msra.mxu0 0.0
  %8636 = vmatprep.subr.mxu0 0.0
  %8637 = vmatpush1.msra.mxu0 0.0
  %8638 = vmatprep.subr.mxu0 0.0
  %8639 = vmatpush1.msra.mxu0 0.0
  %8640 = vmatprep.subr.mxu0 0.0
  %8641 = vmatpush1.msra.mxu0 0.0
  %8642 = vmatprep.subr.mxu0 0.0
  %8643 = vmatpush1.msra.mxu0 0.0
  %8644 = vmatprep.subr.mxu0 0.0
  %8645 = vmatpush1.msra.mxu0 0.0
  %8646 = vmatprep.subr.mxu0 0.0
  %8647 = vmatpush1.msra.mxu0 0.0
  %8648 = vmatprep.subr.mxu0 0.0
  %8649 = vmatpush1.msra.mxu0 0.0
  %8650 = vmatprep.subr.mxu0 0.0
  %8651 = vmatpush1.msra.mxu0 0.0
  %8652 = vmatprep.subr.mxu0 0.0
  %8653 = vmatpush1.msra.mxu0 0.0
  %8654 = vmatprep.subr.mxu0 0.0
  %8655 = vmatpush1.msra.mxu0 0.0
  %8656 = vmatprep.subr.mxu0 0.0
  %8657 = vmatpush1.msra.mxu0 0.0
  %8658 = vmatprep.subr.mxu0 0.0
  %8659 = vmatpush1.msra.mxu0 0.0
  %8660 = vmatprep.subr.mxu0 0.0
  %8661 = vmatpush1.msra.mxu0 0.0
  %8662 = vmatprep.subr.mxu0 0.0
  %8663 = vmatpush1.msra.mxu0 0.0
  %8664 = vmatprep.subr.mxu0 0.0
  %8665 = vmatpush1.msra.mxu0 0.0
  %8666 = vmatprep.subr.mxu0 0.0
  %8667 = vmatpush1.msra.mxu0 0.0
  %8668 = vmatprep.subr.mxu0 0.0
  %8669 = vmatpush1.msra.mxu0 0.0
  %8670 = vmatprep.subr.mxu0 0.0
  %8671 = vmatpush1.msra.mxu0 0.0
  %8672 = vmatprep.subr.mxu0 0.0
  %8673 = vmatpush1.msra.mxu0 0.0
  %8674 = vmatprep.subr.mxu0 0.0
  %8675 = vmatpush1.msra.mxu0 0.0
  %8676 = vmatprep.mubr.f32.mxu0 0.0
  %v8677 = vand.u32 %v8076, 4294901760
  %8678 = vmatmul.mubr.f32.gmra.mrb[0].mxu0 %v8677
  %v8679 = vpop.f32.mrb[0].mxu0
  %v8680 = vadd.f32 %v8247, %v8679
  %v8681 = vpop.f32.mrb[0].mxu0
  %v8682 = vadd.f32 %v8249, %v8681
  %8683 = vmatprep.mubr.f32.mxu0 0.0
  %v8684 = vand.u32 %v8079, 4294901760
  %8685 = vmatmul.mubr.f32.gmra.mrb[0].mxu0 %v8684
  %v8686 = vpop.f32.mrb[0].mxu0
  %v8687 = vadd.f32 %v8258, %v8686
  %v8688 = vpop.f32.mrb[0].mxu0
  %v8689 = vadd.f32 %v8260, %v8688
  %8690 = vmatprep.mubr.f32.mxu0 0.0
  %v8691 = vand.u32 %v8082, 4294901760
  %8692 = vmatmul.mubr.f32.gmra.mrb[0].mxu0 %v8691
  %v8693 = vpop.f32.mrb[0].mxu0
  %v8694 = vadd.f32 %v8269, %v8693
  %v8695 = vpop.f32.mrb[0].mxu0
  %v8696 = vadd.f32 %v8271, %v8695
  %8697 = vmatprep.mubr.f32.mxu0 0.0
  %v8698 = vand.u32 %v8085, 4294901760
  %8699 = vmatmul.mubr.f32.gmra.mrb[0].mxu0 %v8698
  %v8700 = vpop.f32.mrb[0].mxu0
  %v8701 = vadd.f32 %v8280, %v8700
  %v8702 = vpop.f32.mrb[0].mxu0
  %v8703 = vadd.f32 %v8282, %v8702
  %8704 = vmatprep.mubr.f32.mxu0 0.0
  %v8705 = vand.u32 %v8088, 4294901760
  %8706 = vmatmul.mubr.f32.gmra.mrb[0].mxu0 %v8705
  %v8707 = vpop.f32.mrb[0].mxu0
  %v8708 = vadd.f32 %v8291, %v8707
  %v8709 = vpop.f32.mrb[0].mxu0
  %v8710 = vadd.f32 %v8293, %v8709
  %8711 = vmatprep.mubr.f32.mxu0 0.0
  %v8712 = vand.u32 %v8091, 4294901760
  %8713 = vmatmul.mubr.f32.gmra.mrb[0].mxu0 %v8712
  %v8714 = vpop.f32.mrb[0].mxu0
  %v8715 = vadd.f32 %v8302, %v8714
  %v8716 = vpop.f32.mrb[0].mxu0
  %v8717 = vadd.f32 %v8304, %v8716
  %8718 = vmatprep.mubr.f32.mxu0 0.0
  %v8719 = vand.u32 %v8094, 4294901760
  %8720 = vmatmul.mubr.f32.gmra.mrb[0].mxu0 %v8719
  %v8721 = vpop.f32.mrb[0].mxu0
  %v8722 = vadd.f32 %v8313, %v8721
  %v8723 = vpop.f32.mrb[0].mxu0
  %v8724 = vadd.f32 %v8315, %v8723
  %8725 = vmatprep.mubr.f32.mxu0 0.0
  %v8726 = vand.u32 %v8097, 4294901760
  %8727 = vmatmul.mubr.f32.gmra.mrb[0].mxu0 %v8726
  %v8728 = vpop.f32.mrb[0].mxu0
  %v8729 = vadd.f32 %v8324, %v8728
  %v8730 = vpop.f32.mrb[0].mxu0
  %v8731 = vadd.f32 %v8326, %v8730
  %8732 = vmatprep.mubr.f32.mxu0 0.0
  %v8733 = vand.u32 %v8100, 4294901760
  %8734 = vmatmul.mubr.f32.gmra.mrb[0].mxu0 %v8733
  %v8735 = vpop.f32.mrb[0].mxu0
  %v8736 = vadd.f32 %v8335, %v8735
  %v8737 = vpop.f32.mrb[0].mxu0
  %v8738 = vadd.f32 %v8337, %v8737
  %8739 = vmatprep.mubr.f32.mxu0 0.0
  %v8740 = vand.u32 %v8103, 4294901760
  %8741 = vmatmul.mubr.f32.gmra.mrb[0].mxu0 %v8740
  %v8742 = vpop.f32.mrb[0].mxu0
  %v8743 = vadd.f32 %v8346, %v8742
  %v8744 = vpop.f32.mrb[0].mxu0
  %v8745 = vadd.f32 %v8348, %v8744
  %8746 = vmatprep.mubr.f32.mxu0 0.0
  %v8747 = vand.u32 %v8106, 4294901760
  %8748 = vmatmul.mubr.f32.gmra.mrb[0].mxu0 %v8747
  %v8749 = vpop.f32.mrb[0].mxu0
  %v8750 = vadd.f32 %v8357, %v8749
  %v8751 = vpop.f32.mrb[0].mxu0
  %v8752 = vadd.f32 %v8359, %v8751
  %8753 = vmatprep.mubr.f32.mxu0 0.0
  %v8754 = vand.u32 %v8109, 4294901760
  %8755 = vmatmul.mubr.f32.gmra.mrb[0].mxu0 %v8754
  %v8756 = vpop.f32.mrb[0].mxu0
  %v8757 = vadd.f32 %v8368, %v8756
  %v8758 = vpop.f32.mrb[0].mxu0
  %v8759 = vadd.f32 %v8370, %v8758
  %8760 = vmatprep.mubr.f32.mxu0 0.0
  %v8761 = vand.u32 %v8112, 4294901760
  %8762 = vmatmul.mubr.f32.gmra.mrb[0].mxu0 %v8761
  %v8763 = vpop.f32.mrb[0].mxu0
  %v8764 = vadd.f32 %v8379, %v8763
  %v8765 = vpop.f32.mrb[0].mxu0
  %v8766 = vadd.f32 %v8381, %v8765
  %8767 = vmatprep.mubr.f32.mxu0 0.0
  %v8768 = vand.u32 %v8115, 4294901760
  %8769 = vmatmul.mubr.f32.gmra.mrb[0].mxu0 %v8768
  %v8770 = vpop.f32.mrb[0].mxu0
  %v8771 = vadd.f32 %v8390, %v8770
  %v8772 = vpop.f32.mrb[0].mxu0
  %v8773 = vadd.f32 %v8392, %v8772
  %8774 = vmatprep.mubr.f32.mxu0 0.0
  %v8775 = vand.u32 %v8118, 4294901760
  %8776 = vmatmul.mubr.f32.gmra.mrb[0].mxu0 %v8775
  %v8777 = vpop.f32.mrb[0].mxu0
  %v8778 = vadd.f32 %v8401, %v8777
  %v8779 = vpop.f32.mrb[0].mxu0
  %v8780 = vadd.f32 %v8403, %v8779
  %8781 = vmatprep.mubr.f32.mxu0 0.0
  %v8782 = vand.u32 %v8121, 4294901760
  %8783 = vmatmul.mubr.f32.gmra.mrb[0].mxu0 %v8782
  %v8784 = vpop.f32.mrb[0].mxu0
  %v8785 = vadd.f32 %v8412, %v8784
  %v8786 = vpop.f32.mrb[0].mxu0
  %v8787 = vadd.f32 %v8414, %v8786
  %8788 = vmatprep.mubr.f32.mxu0 0.0
  %v8789 = vand.u32 %v8124, 4294901760
  %8790 = vmatmul.mubr.f32.gmra.mrb[0].mxu0 %v8789
  %v8791 = vpop.f32.mrb[0].mxu0
  %v8792 = vadd.f32 %v8423, %v8791
  %v8793 = vpop.f32.mrb[0].mxu0
  %v8794 = vadd.f32 %v8425, %v8793
  %8795 = vmatprep.mubr.f32.mxu0 0.0
  %v8796 = vand.u32 %v8127, 4294901760
  %8797 = vmatmul.mubr.f32.gmra.mrb[0].mxu0 %v8796
  %v8798 = vpop.f32.mrb[0].mxu0
  %v8799 = vadd.f32 %v8434, %v8798
  %v8800 = vpop.f32.mrb[0].mxu0
  %v8801 = vadd.f32 %v8436, %v8800
  %8802 = vmatprep.mubr.f32.mxu0 0.0
  %v8803 = vand.u32 %v8130, 4294901760
  %8804 = vmatmul.mubr.f32.gmra.mrb[0].mxu0 %v8803
  %v8805 = vpop.f32.mrb[0].mxu0
  %v8806 = vadd.f32 %v8445, %v8805
  %v8807 = vpop.f32.mrb[0].mxu0
  %v8808 = vadd.f32 %v8447, %v8807
  %8809 = vmatprep.mubr.f32.mxu0 0.0
  %v8810 = vand.u32 %v8133, 4294901760
  %8811 = vmatmul.mubr.f32.gmra.mrb[0].mxu0 %v8810
  %v8812 = vpop.f32.mrb[0].mxu0
  %v8813 = vadd.f32 %v8456, %v8812
  %v8814 = vpop.f32.mrb[0].mxu0
  %v8815 = vadd.f32 %v8458, %v8814
  %8816 = vmatprep.mubr.f32.mxu0 0.0
  %v8817 = vand.u32 %v8136, 4294901760
  %8818 = vmatmul.mubr.f32.gmra.mrb[0].mxu0 %v8817
  %v8819 = vpop.f32.mrb[0].mxu0
  %v8820 = vadd.f32 %v8467, %v8819
  %v8821 = vpop.f32.mrb[0].mxu0
  %v8822 = vadd.f32 %v8469, %v8821
  %8823 = vmatprep.mubr.f32.mxu0 0.0
  %v8824 = vand.u32 %v8139, 4294901760
  %8825 = vmatmul.mubr.f32.gmra.mrb[0].mxu0 %v8824
  %v8826 = vpop.f32.mrb[0].mxu0
  %v8827 = vadd.f32 %v8478, %v8826
  %v8828 = vpop.f32.mrb[0].mxu0
  %v8829 = vadd.f32 %v8480, %v8828
  %8830 = vmatprep.mubr.f32.mxu0 0.0
  %v8831 = vand.u32 %v8142, 4294901760
  %8832 = vmatmul.mubr.f32.gmra.mrb[0].mxu0 %v8831
  %v8833 = vpop.f32.mrb[0].mxu0
  %v8834 = vadd.f32 %v8489, %v8833
  %v8835 = vpop.f32.mrb[0].mxu0
  %v8836 = vadd.f32 %v8491, %v8835
  %8837 = vmatprep.mubr.f32.mxu0 0.0
  %v8838 = vand.u32 %v8145, 4294901760
  %8839 = vmatmul.mubr.f32.gmra.mrb[0].mxu0 %v8838
  %v8840 = vpop.f32.mrb[0].mxu0
  %v8841 = vadd.f32 %v8500, %v8840
  %v8842 = vpop.f32.mrb[0].mxu0
  %v8843 = vadd.f32 %v8502, %v8842
  %8844 = vmatprep.mubr.f32.mxu0 0.0
  %v8845 = vand.u32 %v8148, 4294901760
  %8846 = vmatmul.mubr.f32.gmra.mrb[0].mxu0 %v8845
  %v8847 = vpop.f32.mrb[0].mxu0
  %v8848 = vadd.f32 %v8511, %v8847
  %v8849 = vpop.f32.mrb[0].mxu0
  %v8850 = vadd.f32 %v8513, %v8849
  %8851 = vmatprep.mubr.f32.mxu0 0.0
  %v8852 = vand.u32 %v8151, 4294901760
  %8853 = vmatmul.mubr.f32.gmra.mrb[0].mxu0 %v8852
  %v8854 = vpop.f32.mrb[0].mxu0
  %v8855 = vadd.f32 %v8522, %v8854
  %v8856 = vpop.f32.mrb[0].mxu0
  %v8857 = vadd.f32 %v8524, %v8856
  %8858 = vmatprep.mubr.f32.mxu0 0.0
  %v8859 = vand.u32 %v8154, 4294901760
  %8860 = vmatmul.mubr.f32.gmra.mrb[0].mxu0 %v8859
  %v8861 = vpop.f32.mrb[0].mxu0
  %v8862 = vadd.f32 %v8533, %v8861
  %v8863 = vpop.f32.mrb[0].mxu0
  %v8864 = vadd.f32 %v8535, %v8863
  %8865 = vmatprep.mubr.f32.mxu0 0.0
  %v8866 = vand.u32 %v8157, 4294901760
  %8867 = vmatmul.mubr.f32.gmra.mrb[0].mxu0 %v8866
  %v8868 = vpop.f32.mrb[0].mxu0
  %v8869 = vadd.f32 %v8544, %v8868
  %v8870 = vpop.f32.mrb[0].mxu0
  %v8871 = vadd.f32 %v8546, %v8870
  %8872 = vmatprep.mubr.f32.mxu0 0.0
  %v8873 = vand.u32 %v8160, 4294901760
  %8874 = vmatmul.mubr.f32.gmra.mrb[0].mxu0 %v8873
  %v8875 = vpop.f32.mrb[0].mxu0
  %v8876 = vadd.f32 %v8555, %v8875
  %v8877 = vpop.f32.mrb[0].mxu0
  %v8878 = vadd.f32 %v8557, %v8877
  %8879 = vmatprep.mubr.f32.mxu0 0.0
  %v8880 = vand.u32 %v8163, 4294901760
  %8881 = vmatmul.mubr.f32.gmra.mrb[0].mxu0 %v8880
  %v8882 = vpop.f32.mrb[0].mxu0
  %v8883 = vadd.f32 %v8566, %v8882
  %v8884 = vpop.f32.mrb[0].mxu0
  %v8885 = vadd.f32 %v8568, %v8884
  %8886 = vmatprep.mubr.f32.mxu0 0.0
  %v8887 = vand.u32 %v8166, 4294901760
  %8888 = vmatmul.mubr.f32.gmra.mrb[0].mxu0 %v8887
  %v8889 = vpop.f32.mrb[0].mxu0
  %v8890 = vadd.f32 %v8577, %v8889
  %v8891 = vpop.f32.mrb[0].mxu0
  %v8892 = vadd.f32 %v8579, %v8891
  %8893 = vmatprep.mubr.f32.mxu0 0.0
  %v8894 = vand.u32 %v8169, 4294901760
  %8895 = vmatmul.mubr.f32.gmra.mrb[0].mxu0 %v8894
  %v8896 = vpop.f32.mrb[0].mxu0
  %v8897 = vadd.f32 %v8588, %v8896
  %v8898 = vpop.f32.mrb[0].mxu0
  %v8899 = vadd.f32 %v8590, %v8898
  %8900 = vdwg.mxu0
  %v8901 = vand.u32 %v8071, 4294901760
  %v8902 = vsub.f32 %v8071, %v8901
  %8903 = vmatprep.subr.mxu0 %v8902
  %v8904 = vand.u32 %v8070, 4294901760
  %v8905 = vsub.f32 %v8070, %v8904
  %8906 = vmatpush1.msra.mxu0 %v8905
  %v8907 = vand.u32 %v8073, 4294901760
  %v8908 = vsub.f32 %v8073, %v8907
  %8909 = vmatprep.subr.mxu0 %v8908
  %v8910 = vand.u32 %v8072, 4294901760
  %v8911 = vsub.f32 %v8072, %v8910
  %8912 = vmatpush1.msra.mxu0 %v8911
  %8913 = vmatprep.subr.mxu0 0.0
  %8914 = vmatpush1.msra.mxu0 0.0
  %8915 = vmatprep.subr.mxu0 0.0
  %8916 = vmatpush1.msra.mxu0 0.0
  %8917 = vmatprep.subr.mxu0 0.0
  %8918 = vmatpush1.msra.mxu0 0.0
  %8919 = vmatprep.subr.mxu0 0.0
  %8920 = vmatpush1.msra.mxu0 0.0
  %8921 = vmatprep.subr.mxu0 0.0
  %8922 = vmatpush1.msra.mxu0 0.0
  %8923 = vmatprep.subr.mxu0 0.0
  %8924 = vmatpush1.msra.mxu0 0.0
  %8925 = vmatprep.subr.mxu0 0.0
  %8926 = vmatpush1.msra.mxu0 0.0
  %8927 = vmatprep.subr.mxu0 0.0
  %8928 = vmatpush1.msra.mxu0 0.0
  %8929 = vmatprep.subr.mxu0 0.0
  %8930 = vmatpush1.msra.mxu0 0.0
  %8931 = vmatprep.subr.mxu0 0.0
  %8932 = vmatpush1.msra.mxu0 0.0
  %8933 = vmatprep.subr.mxu0 0.0
  %8934 = vmatpush1.msra.mxu0 0.0
  %8935 = vmatprep.subr.mxu0 0.0
  %8936 = vmatpush1.msra.mxu0 0.0
  %8937 = vmatprep.subr.mxu0 0.0
  %8938 = vmatpush1.msra.mxu0 0.0
  %8939 = vmatprep.subr.mxu0 0.0
  %8940 = vmatpush1.msra.mxu0 0.0
  %8941 = vmatprep.subr.mxu0 0.0
  %8942 = vmatpush1.msra.mxu0 0.0
  %8943 = vmatprep.subr.mxu0 0.0
  %8944 = vmatpush1.msra.mxu0 0.0
  %8945 = vmatprep.subr.mxu0 0.0
  %8946 = vmatpush1.msra.mxu0 0.0
  %8947 = vmatprep.subr.mxu0 0.0
  %8948 = vmatpush1.msra.mxu0 0.0
  %8949 = vmatprep.subr.mxu0 0.0
  %8950 = vmatpush1.msra.mxu0 0.0
  %8951 = vmatprep.subr.mxu0 0.0
  %8952 = vmatpush1.msra.mxu0 0.0
  %8953 = vmatprep.subr.mxu0 0.0
  %8954 = vmatpush1.msra.mxu0 0.0
  %8955 = vmatprep.subr.mxu0 0.0
  %8956 = vmatpush1.msra.mxu0 0.0
  %8957 = vmatprep.subr.mxu0 0.0
  %8958 = vmatpush1.msra.mxu0 0.0
  %8959 = vmatprep.subr.mxu0 0.0
  %8960 = vmatpush1.msra.mxu0 0.0
  %8961 = vmatprep.subr.mxu0 0.0
  %8962 = vmatpush1.msra.mxu0 0.0
  %8963 = vmatprep.subr.mxu0 0.0
  %8964 = vmatpush1.msra.mxu0 0.0
  %8965 = vmatprep.subr.mxu0 0.0
  %8966 = vmatpush1.msra.mxu0 0.0
  %8967 = vmatprep.subr.mxu0 0.0
  %8968 = vmatpush1.msra.mxu0 0.0
  %8969 = vmatprep.subr.mxu0 0.0
  %8970 = vmatpush1.msra.mxu0 0.0
  %8971 = vmatprep.subr.mxu0 0.0
  %8972 = vmatpush1.msra.mxu0 0.0
  %8973 = vmatprep.mubr.f32.mxu0 0.0
  %v8974 = vand.u32 %v8076, 4294901760
  %v8975 = vsub.f32 %v8076, %v8974
  %8976 = vmatmul.mubr.f32.gmra.mrb[0].mxu0 %v8975
  %v8977 = vpop.f32.mrb[0].mxu0
  %v8978 = vadd.f32 %v8680, %v8977
  %v8979 = vpop.f32.mrb[0].mxu0
  %v8980 = vadd.f32 %v8682, %v8979
  %8981 = vmatprep.mubr.f32.mxu0 0.0
  %v8982 = vand.u32 %v8079, 4294901760
  %v8983 = vsub.f32 %v8079, %v8982
  %8984 = vmatmul.mubr.f32.gmra.mrb[0].mxu0 %v8983
  %v8985 = vpop.f32.mrb[0].mxu0
  %v8986 = vadd.f32 %v8687, %v8985
  %v8987 = vpop.f32.mrb[0].mxu0
  %v8988 = vadd.f32 %v8689, %v8987
  %8989 = vmatprep.mubr.f32.mxu0 0.0
  %v8990 = vand.u32 %v8082, 4294901760
  %v8991 = vsub.f32 %v8082, %v8990
  %8992 = vmatmul.mubr.f32.gmra.mrb[0].mxu0 %v8991
  %v8993 = vpop.f32.mrb[0].mxu0
  %v8994 = vadd.f32 %v8694, %v8993
  %v8995 = vpop.f32.mrb[0].mxu0
  %v8996 = vadd.f32 %v8696, %v8995
  %8997 = vmatprep.mubr.f32.mxu0 0.0
  %v8998 = vand.u32 %v8085, 4294901760
  %v8999 = vsub.f32 %v8085, %v8998
  %9000 = vmatmul.mubr.f32.gmra.mrb[0].mxu0 %v8999
  %v9001 = vpop.f32.mrb[0].mxu0
  %v9002 = vadd.f32 %v8701, %v9001
  %v9003 = vpop.f32.mrb[0].mxu0
  %v9004 = vadd.f32 %v8703, %v9003
  %9005 = vmatprep.mubr.f32.mxu0 0.0
  %v9006 = vand.u32 %v8088, 4294901760
  %v9007 = vsub.f32 %v8088, %v9006
  %9008 = vmatmul.mubr.f32.gmra.mrb[0].mxu0 %v9007
  %v9009 = vpop.f32.mrb[0].mxu0
  %v9010 = vadd.f32 %v8708, %v9009
  %v9011 = vpop.f32.mrb[0].mxu0
  %v9012 = vadd.f32 %v8710, %v9011
  %9013 = vmatprep.mubr.f32.mxu0 0.0
  %v9014 = vand.u32 %v8091, 4294901760
  %v9015 = vsub.f32 %v8091, %v9014
  %9016 = vmatmul.mubr.f32.gmra.mrb[0].mxu0 %v9015
  %v9017 = vpop.f32.mrb[0].mxu0
  %v9018 = vadd.f32 %v8715, %v9017
  %v9019 = vpop.f32.mrb[0].mxu0
  %v9020 = vadd.f32 %v8717, %v9019
  %9021 = vmatprep.mubr.f32.mxu0 0.0
  %v9022 = vand.u32 %v8094, 4294901760
  %v9023 = vsub.f32 %v8094, %v9022
  %9024 = vmatmul.mubr.f32.gmra.mrb[0].mxu0 %v9023
  %v9025 = vpop.f32.mrb[0].mxu0
  %v9026 = vadd.f32 %v8722, %v9025
  %v9027 = vpop.f32.mrb[0].mxu0
  %v9028 = vadd.f32 %v8724, %v9027
  %9029 = vmatprep.mubr.f32.mxu0 0.0
  %v9030 = vand.u32 %v8097, 4294901760
  %v9031 = vsub.f32 %v8097, %v9030
  %9032 = vmatmul.mubr.f32.gmra.mrb[0].mxu0 %v9031
  %v9033 = vpop.f32.mrb[0].mxu0
  %v9034 = vadd.f32 %v8729, %v9033
  %v9035 = vpop.f32.mrb[0].mxu0
  %v9036 = vadd.f32 %v8731, %v9035
  %9037 = vmatprep.mubr.f32.mxu0 0.0
  %v9038 = vand.u32 %v8100, 4294901760
  %v9039 = vsub.f32 %v8100, %v9038
  %9040 = vmatmul.mubr.f32.gmra.mrb[0].mxu0 %v9039
  %v9041 = vpop.f32.mrb[0].mxu0
  %v9042 = vadd.f32 %v8736, %v9041
  %v9043 = vpop.f32.mrb[0].mxu0
  %v9044 = vadd.f32 %v8738, %v9043
  %9045 = vmatprep.mubr.f32.mxu0 0.0
  %v9046 = vand.u32 %v8103, 4294901760
  %v9047 = vsub.f32 %v8103, %v9046
  %9048 = vmatmul.mubr.f32.gmra.mrb[0].mxu0 %v9047
  %v9049 = vpop.f32.mrb[0].mxu0
  %v9050 = vadd.f32 %v8743, %v9049
  %v9051 = vpop.f32.mrb[0].mxu0
  %v9052 = vadd.f32 %v8745, %v9051
  %9053 = vmatprep.mubr.f32.mxu0 0.0
  %v9054 = vand.u32 %v8106, 4294901760
  %v9055 = vsub.f32 %v8106, %v9054
  %9056 = vmatmul.mubr.f32.gmra.mrb[0].mxu0 %v9055
  %v9057 = vpop.f32.mrb[0].mxu0
  %v9058 = vadd.f32 %v8750, %v9057
  %v9059 = vpop.f32.mrb[0].mxu0
  %v9060 = vadd.f32 %v8752, %v9059
  %9061 = vmatprep.mubr.f32.mxu0 0.0
  %v9062 = vand.u32 %v8109, 4294901760
  %v9063 = vsub.f32 %v8109, %v9062
  %9064 = vmatmul.mubr.f32.gmra.mrb[0].mxu0 %v9063
  %v9065 = vpop.f32.mrb[0].mxu0
  %v9066 = vadd.f32 %v8757, %v9065
  %v9067 = vpop.f32.mrb[0].mxu0
  %v9068 = vadd.f32 %v8759, %v9067
  %9069 = vmatprep.mubr.f32.mxu0 0.0
  %v9070 = vand.u32 %v8112, 4294901760
  %v9071 = vsub.f32 %v8112, %v9070
  %9072 = vmatmul.mubr.f32.gmra.mrb[0].mxu0 %v9071
  %v9073 = vpop.f32.mrb[0].mxu0
  %v9074 = vadd.f32 %v8764, %v9073
  %v9075 = vpop.f32.mrb[0].mxu0
  %v9076 = vadd.f32 %v8766, %v9075
  %9077 = vmatprep.mubr.f32.mxu0 0.0
  %v9078 = vand.u32 %v8115, 4294901760
  %v9079 = vsub.f32 %v8115, %v9078
  %9080 = vmatmul.mubr.f32.gmra.mrb[0].mxu0 %v9079
  %v9081 = vpop.f32.mrb[0].mxu0
  %v9082 = vadd.f32 %v8771, %v9081
  %v9083 = vpop.f32.mrb[0].mxu0
  %v9084 = vadd.f32 %v8773, %v9083
  %9085 = vmatprep.mubr.f32.mxu0 0.0
  %v9086 = vand.u32 %v8118, 4294901760
  %v9087 = vsub.f32 %v8118, %v9086
  %9088 = vmatmul.mubr.f32.gmra.mrb[0].mxu0 %v9087
  %v9089 = vpop.f32.mrb[0].mxu0
  %v9090 = vadd.f32 %v8778, %v9089
  %v9091 = vpop.f32.mrb[0].mxu0
  %v9092 = vadd.f32 %v8780, %v9091
  %9093 = vmatprep.mubr.f32.mxu0 0.0
  %v9094 = vand.u32 %v8121, 4294901760
  %v9095 = vsub.f32 %v8121, %v9094
  %9096 = vmatmul.mubr.f32.gmra.mrb[0].mxu0 %v9095
  %v9097 = vpop.f32.mrb[0].mxu0
  %v9098 = vadd.f32 %v8785, %v9097
  %v9099 = vpop.f32.mrb[0].mxu0
  %v9100 = vadd.f32 %v8787, %v9099
  %9101 = vmatprep.mubr.f32.mxu0 0.0
  %v9102 = vand.u32 %v8124, 4294901760
  %v9103 = vsub.f32 %v8124, %v9102
  %9104 = vmatmul.mubr.f32.gmra.mrb[0].mxu0 %v9103
  %v9105 = vpop.f32.mrb[0].mxu0
  %v9106 = vadd.f32 %v8792, %v9105
  %v9107 = vpop.f32.mrb[0].mxu0
  %v9108 = vadd.f32 %v8794, %v9107
  %9109 = vmatprep.mubr.f32.mxu0 0.0
  %v9110 = vand.u32 %v8127, 4294901760
  %v9111 = vsub.f32 %v8127, %v9110
  %9112 = vmatmul.mubr.f32.gmra.mrb[0].mxu0 %v9111
  %v9113 = vpop.f32.mrb[0].mxu0
  %v9114 = vadd.f32 %v8799, %v9113
  %v9115 = vpop.f32.mrb[0].mxu0
  %v9116 = vadd.f32 %v8801, %v9115
  %9117 = vmatprep.mubr.f32.mxu0 0.0
  %v9118 = vand.u32 %v8130, 4294901760
  %v9119 = vsub.f32 %v8130, %v9118
  %9120 = vmatmul.mubr.f32.gmra.mrb[0].mxu0 %v9119
  %v9121 = vpop.f32.mrb[0].mxu0
  %v9122 = vadd.f32 %v8806, %v9121
  %v9123 = vpop.f32.mrb[0].mxu0
  %v9124 = vadd.f32 %v8808, %v9123
  %9125 = vmatprep.mubr.f32.mxu0 0.0
  %v9126 = vand.u32 %v8133, 4294901760
  %v9127 = vsub.f32 %v8133, %v9126
  %9128 = vmatmul.mubr.f32.gmra.mrb[0].mxu0 %v9127
  %v9129 = vpop.f32.mrb[0].mxu0
  %v9130 = vadd.f32 %v8813, %v9129
  %v9131 = vpop.f32.mrb[0].mxu0
  %v9132 = vadd.f32 %v8815, %v9131
  %9133 = vmatprep.mubr.f32.mxu0 0.0
  %v9134 = vand.u32 %v8136, 4294901760
  %v9135 = vsub.f32 %v8136, %v9134
  %9136 = vmatmul.mubr.f32.gmra.mrb[0].mxu0 %v9135
  %v9137 = vpop.f32.mrb[0].mxu0
  %v9138 = vadd.f32 %v8820, %v9137
  %v9139 = vpop.f32.mrb[0].mxu0
  %v9140 = vadd.f32 %v8822, %v9139
  %9141 = vmatprep.mubr.f32.mxu0 0.0
  %v9142 = vand.u32 %v8139, 4294901760
  %v9143 = vsub.f32 %v8139, %v9142
  %9144 = vmatmul.mubr.f32.gmra.mrb[0].mxu0 %v9143
  %v9145 = vpop.f32.mrb[0].mxu0
  %v9146 = vadd.f32 %v8827, %v9145
  %v9147 = vpop.f32.mrb[0].mxu0
  %v9148 = vadd.f32 %v8829, %v9147
  %9149 = vmatprep.mubr.f32.mxu0 0.0
  %v9150 = vand.u32 %v8142, 4294901760
  %v9151 = vsub.f32 %v8142, %v9150
  %9152 = vmatmul.mubr.f32.gmra.mrb[0].mxu0 %v9151
  %v9153 = vpop.f32.mrb[0].mxu0
  %v9154 = vadd.f32 %v8834, %v9153
  %v9155 = vpop.f32.mrb[0].mxu0
  %v9156 = vadd.f32 %v8836, %v9155
  %9157 = vmatprep.mubr.f32.mxu0 0.0
  %v9158 = vand.u32 %v8145, 4294901760
  %v9159 = vsub.f32 %v8145, %v9158
  %9160 = vmatmul.mubr.f32.gmra.mrb[0].mxu0 %v9159
  %v9161 = vpop.f32.mrb[0].mxu0
  %v9162 = vadd.f32 %v8841, %v9161
  %v9163 = vpop.f32.mrb[0].mxu0
  %v9164 = vadd.f32 %v8843, %v9163
  %9165 = vmatprep.mubr.f32.mxu0 0.0
  %v9166 = vand.u32 %v8148, 4294901760
  %v9167 = vsub.f32 %v8148, %v9166
  %9168 = vmatmul.mubr.f32.gmra.mrb[0].mxu0 %v9167
  %v9169 = vpop.f32.mrb[0].mxu0
  %v9170 = vadd.f32 %v8848, %v9169
  %v9171 = vpop.f32.mrb[0].mxu0
  %v9172 = vadd.f32 %v8850, %v9171
  %9173 = vmatprep.mubr.f32.mxu0 0.0
  %v9174 = vand.u32 %v8151, 4294901760
  %v9175 = vsub.f32 %v8151, %v9174
  %9176 = vmatmul.mubr.f32.gmra.mrb[0].mxu0 %v9175
  %v9177 = vpop.f32.mrb[0].mxu0
  %v9178 = vadd.f32 %v8855, %v9177
  %v9179 = vpop.f32.mrb[0].mxu0
  %v9180 = vadd.f32 %v8857, %v9179
  %9181 = vmatprep.mubr.f32.mxu0 0.0
  %v9182 = vand.u32 %v8154, 4294901760
  %v9183 = vsub.f32 %v8154, %v9182
  %9184 = vmatmul.mubr.f32.gmra.mrb[0].mxu0 %v9183
  %v9185 = vpop.f32.mrb[0].mxu0
  %v9186 = vadd.f32 %v8862, %v9185
  %v9187 = vpop.f32.mrb[0].mxu0
  %v9188 = vadd.f32 %v8864, %v9187
  %9189 = vmatprep.mubr.f32.mxu0 0.0
  %v9190 = vand.u32 %v8157, 4294901760
  %v9191 = vsub.f32 %v8157, %v9190
  %9192 = vmatmul.mubr.f32.gmra.mrb[0].mxu0 %v9191
  %v9193 = vpop.f32.mrb[0].mxu0
  %v9194 = vadd.f32 %v8869, %v9193
  %v9195 = vpop.f32.mrb[0].mxu0
  %v9196 = vadd.f32 %v8871, %v9195
  %9197 = vmatprep.mubr.f32.mxu0 0.0
  %v9198 = vand.u32 %v8160, 4294901760
  %v9199 = vsub.f32 %v8160, %v9198
  %9200 = vmatmul.mubr.f32.gmra.mrb[0].mxu0 %v9199
  %v9201 = vpop.f32.mrb[0].mxu0
  %v9202 = vadd.f32 %v8876, %v9201
  %v9203 = vpop.f32.mrb[0].mxu0
  %v9204 = vadd.f32 %v8878, %v9203
  %9205 = vmatprep.mubr.f32.mxu0 0.0
  %v9206 = vand.u32 %v8163, 4294901760
  %v9207 = vsub.f32 %v8163, %v9206
  %9208 = vmatmul.mubr.f32.gmra.mrb[0].mxu0 %v9207
  %v9209 = vpop.f32.mrb[0].mxu0
  %v9210 = vadd.f32 %v8883, %v9209
  %v9211 = vpop.f32.mrb[0].mxu0
  %v9212 = vadd.f32 %v8885, %v9211
  %9213 = vmatprep.mubr.f32.mxu0 0.0
  %v9214 = vand.u32 %v8166, 4294901760
  %v9215 = vsub.f32 %v8166, %v9214
  %9216 = vmatmul.mubr.f32.gmra.mrb[0].mxu0 %v9215
  %v9217 = vpop.f32.mrb[0].mxu0
  %v9218 = vadd.f32 %v8890, %v9217
  %v9219 = vpop.f32.mrb[0].mxu0
  %v9220 = vadd.f32 %v8892, %v9219
  %9221 = vmatprep.mubr.f32.mxu0 0.0
  %v9222 = vand.u32 %v8169, 4294901760
  %v9223 = vsub.f32 %v8169, %v9222
  %9224 = vmatmul.mubr.f32.gmra.mrb[0].mxu0 %v9223
  %v9225 = vpop.f32.mrb[0].mxu0
  %v9226 = vadd.f32 %v8897, %v9225
  %v9227 = vpop.f32.mrb[0].mxu0
  %v9228 = vadd.f32 %v8899, %v9227
  %9229 = vdwg.mxu0
  %v9230 = vand.u32 %v8071, 4294901760
  %9231 = vmatprep.subr.mxu0 %v9230
  %v9232 = vand.u32 %v8070, 4294901760
  %9233 = vmatpush1.msra.mxu0 %v9232
  %v9234 = vand.u32 %v8073, 4294901760
  %9235 = vmatprep.subr.mxu0 %v9234
  %v9236 = vand.u32 %v8072, 4294901760
  %9237 = vmatpush1.msra.mxu0 %v9236
  %9238 = vmatprep.subr.mxu0 0.0
  %9239 = vmatpush1.msra.mxu0 0.0
  %9240 = vmatprep.subr.mxu0 0.0
  %9241 = vmatpush1.msra.mxu0 0.0
  %9242 = vmatprep.subr.mxu0 0.0
  %9243 = vmatpush1.msra.mxu0 0.0
  %9244 = vmatprep.subr.mxu0 0.0
  %9245 = vmatpush1.msra.mxu0 0.0
  %9246 = vmatprep.subr.mxu0 0.0
  %9247 = vmatpush1.msra.mxu0 0.0
  %9248 = vmatprep.subr.mxu0 0.0
  %9249 = vmatpush1.msra.mxu0 0.0
  %9250 = vmatprep.subr.mxu0 0.0
  %9251 = vmatpush1.msra.mxu0 0.0
  %9252 = vmatprep.subr.mxu0 0.0
  %9253 = vmatpush1.msra.mxu0 0.0
  %9254 = vmatprep.subr.mxu0 0.0
  %9255 = vmatpush1.msra.mxu0 0.0
  %9256 = vmatprep.subr.mxu0 0.0
  %9257 = vmatpush1.msra.mxu0 0.0
  %9258 = vmatprep.subr.mxu0 0.0
  %9259 = vmatpush1.msra.mxu0 0.0
  %9260 = vmatprep.subr.mxu0 0.0
  %9261 = vmatpush1.msra.mxu0 0.0
  %9262 = vmatprep.subr.mxu0 0.0
  %9263 = vmatpush1.msra.mxu0 0.0
  %9264 = vmatprep.subr.mxu0 0.0
  %9265 = vmatpush1.msra.mxu0 0.0
  %9266 = vmatprep.subr.mxu0 0.0
  %9267 = vmatpush1.msra.mxu0 0.0
  %9268 = vmatprep.subr.mxu0 0.0
  %9269 = vmatpush1.msra.mxu0 0.0
  %9270 = vmatprep.subr.mxu0 0.0
  %9271 = vmatpush1.msra.mxu0 0.0
  %9272 = vmatprep.subr.mxu0 0.0
  %9273 = vmatpush1.msra.mxu0 0.0
  %9274 = vmatprep.subr.mxu0 0.0
  %9275 = vmatpush1.msra.mxu0 0.0
  %9276 = vmatprep.subr.mxu0 0.0
  %9277 = vmatpush1.msra.mxu0 0.0
  %9278 = vmatprep.subr.mxu0 0.0
  %9279 = vmatpush1.msra.mxu0 0.0
  %9280 = vmatprep.subr.mxu0 0.0
  %9281 = vmatpush1.msra.mxu0 0.0
  %9282 = vmatprep.subr.mxu0 0.0
  %9283 = vmatpush1.msra.mxu0 0.0
  %9284 = vmatprep.subr.mxu0 0.0
  %9285 = vmatpush1.msra.mxu0 0.0
  %9286 = vmatprep.subr.mxu0 0.0
  %9287 = vmatpush1.msra.mxu0 0.0
  %9288 = vmatprep.subr.mxu0 0.0
  %9289 = vmatpush1.msra.mxu0 0.0
  %9290 = vmatprep.subr.mxu0 0.0
  %9291 = vmatpush1.msra.mxu0 0.0
  %9292 = vmatprep.subr.mxu0 0.0
  %9293 = vmatpush1.msra.mxu0 0.0
  %9294 = vmatprep.subr.mxu0 0.0
  %9295 = vmatpush1.msra.mxu0 0.0
  %9296 = vmatprep.subr.mxu0 0.0
  %9297 = vmatpush1.msra.mxu0 0.0
  %9298 = vmatprep.mubr.f32.mxu0 0.0
  %v9299 = vand.u32 %v8076, 4294901760
  %v9300 = vsub.f32 %v8076, %v9299
  %v9301 = vand.u32 %v9300, 4294901760
  %9302 = vmatmul.mubr.f32.gmra.mrb[0].mxu0 %v9301
  %v9303 = vpop.f32.mrb[0].mxu0
  %v9304 = vadd.f32 %v8978, %v9303
  %v9305 = vpop.f32.mrb[0].mxu0
  %v9306 = vadd.f32 %v8980, %v9305
  %9307 = vmatprep.mubr.f32.mxu0 0.0
  %v9308 = vand.u32 %v8079, 4294901760
  %v9309 = vsub.f32 %v8079, %v9308
  %v9310 = vand.u32 %v9309, 4294901760
  %9311 = vmatmul.mubr.f32.gmra.mrb[0].mxu0 %v9310
  %v9312 = vpop.f32.mrb[0].mxu0
  %v9313 = vadd.f32 %v8986, %v9312
  %v9314 = vpop.f32.mrb[0].mxu0
  %v9315 = vadd.f32 %v8988, %v9314
  %9316 = vmatprep.mubr.f32.mxu0 0.0
  %v9317 = vand.u32 %v8082, 4294901760
  %v9318 = vsub.f32 %v8082, %v9317
  %v9319 = vand.u32 %v9318, 4294901760
  %9320 = vmatmul.mubr.f32.gmra.mrb[0].mxu0 %v9319
  %v9321 = vpop.f32.mrb[0].mxu0
  %v9322 = vadd.f32 %v8994, %v9321
  %v9323 = vpop.f32.mrb[0].mxu0
  %v9324 = vadd.f32 %v8996, %v9323
  %9325 = vmatprep.mubr.f32.mxu0 0.0
  %v9326 = vand.u32 %v8085, 4294901760
  %v9327 = vsub.f32 %v8085, %v9326
  %v9328 = vand.u32 %v9327, 4294901760
  %9329 = vmatmul.mubr.f32.gmra.mrb[0].mxu0 %v9328
  %v9330 = vpop.f32.mrb[0].mxu0
  %v9331 = vadd.f32 %v9002, %v9330
  %v9332 = vpop.f32.mrb[0].mxu0
  %v9333 = vadd.f32 %v9004, %v9332
  %9334 = vmatprep.mubr.f32.mxu0 0.0
  %v9335 = vand.u32 %v8088, 4294901760
  %v9336 = vsub.f32 %v8088, %v9335
  %v9337 = vand.u32 %v9336, 4294901760
  %9338 = vmatmul.mubr.f32.gmra.mrb[0].mxu0 %v9337
  %v9339 = vpop.f32.mrb[0].mxu0
  %v9340 = vadd.f32 %v9010, %v9339
  %v9341 = vpop.f32.mrb[0].mxu0
  %v9342 = vadd.f32 %v9012, %v9341
  %9343 = vmatprep.mubr.f32.mxu0 0.0
  %v9344 = vand.u32 %v8091, 4294901760
  %v9345 = vsub.f32 %v8091, %v9344
  %v9346 = vand.u32 %v9345, 4294901760
  %9347 = vmatmul.mubr.f32.gmra.mrb[0].mxu0 %v9346
  %v9348 = vpop.f32.mrb[0].mxu0
  %v9349 = vadd.f32 %v9018, %v9348
  %v9350 = vpop.f32.mrb[0].mxu0
  %v9351 = vadd.f32 %v9020, %v9350
  %9352 = vmatprep.mubr.f32.mxu0 0.0
  %v9353 = vand.u32 %v8094, 4294901760
  %v9354 = vsub.f32 %v8094, %v9353
  %v9355 = vand.u32 %v9354, 4294901760
  %9356 = vmatmul.mubr.f32.gmra.mrb[0].mxu0 %v9355
  %v9357 = vpop.f32.mrb[0].mxu0
  %v9358 = vadd.f32 %v9026, %v9357
  %v9359 = vpop.f32.mrb[0].mxu0
  %v9360 = vadd.f32 %v9028, %v9359
  %9361 = vmatprep.mubr.f32.mxu0 0.0
  %v9362 = vand.u32 %v8097, 4294901760
  %v9363 = vsub.f32 %v8097, %v9362
  %v9364 = vand.u32 %v9363, 4294901760
  %9365 = vmatmul.mubr.f32.gmra.mrb[0].mxu0 %v9364
  %v9366 = vpop.f32.mrb[0].mxu0
  %v9367 = vadd.f32 %v9034, %v9366
  %v9368 = vpop.f32.mrb[0].mxu0
  %v9369 = vadd.f32 %v9036, %v9368
  %9370 = vmatprep.mubr.f32.mxu0 0.0
  %v9371 = vand.u32 %v8100, 4294901760
  %v9372 = vsub.f32 %v8100, %v9371
  %v9373 = vand.u32 %v9372, 4294901760
  %9374 = vmatmul.mubr.f32.gmra.mrb[0].mxu0 %v9373
  %v9375 = vpop.f32.mrb[0].mxu0
  %v9376 = vadd.f32 %v9042, %v9375
  %v9377 = vpop.f32.mrb[0].mxu0
  %v9378 = vadd.f32 %v9044, %v9377
  %9379 = vmatprep.mubr.f32.mxu0 0.0
  %v9380 = vand.u32 %v8103, 4294901760
  %v9381 = vsub.f32 %v8103, %v9380
  %v9382 = vand.u32 %v9381, 4294901760
  %9383 = vmatmul.mubr.f32.gmra.mrb[0].mxu0 %v9382
  %v9384 = vpop.f32.mrb[0].mxu0
  %v9385 = vadd.f32 %v9050, %v9384
  %v9386 = vpop.f32.mrb[0].mxu0
  %v9387 = vadd.f32 %v9052, %v9386
  %9388 = vmatprep.mubr.f32.mxu0 0.0
  %v9389 = vand.u32 %v8106, 4294901760
  %v9390 = vsub.f32 %v8106, %v9389
  %v9391 = vand.u32 %v9390, 4294901760
  %9392 = vmatmul.mubr.f32.gmra.mrb[0].mxu0 %v9391
  %v9393 = vpop.f32.mrb[0].mxu0
  %v9394 = vadd.f32 %v9058, %v9393
  %v9395 = vpop.f32.mrb[0].mxu0
  %v9396 = vadd.f32 %v9060, %v9395
  %9397 = vmatprep.mubr.f32.mxu0 0.0
  %v9398 = vand.u32 %v8109, 4294901760
  %v9399 = vsub.f32 %v8109, %v9398
  %v9400 = vand.u32 %v9399, 4294901760
  %9401 = vmatmul.mubr.f32.gmra.mrb[0].mxu0 %v9400
  %v9402 = vpop.f32.mrb[0].mxu0
  %v9403 = vadd.f32 %v9066, %v9402
  %v9404 = vpop.f32.mrb[0].mxu0
  %v9405 = vadd.f32 %v9068, %v9404
  %9406 = vmatprep.mubr.f32.mxu0 0.0
  %v9407 = vand.u32 %v8112, 4294901760
  %v9408 = vsub.f32 %v8112, %v9407
  %v9409 = vand.u32 %v9408, 4294901760
  %9410 = vmatmul.mubr.f32.gmra.mrb[0].mxu0 %v9409
  %v9411 = vpop.f32.mrb[0].mxu0
  %v9412 = vadd.f32 %v9074, %v9411
  %v9413 = vpop.f32.mrb[0].mxu0
  %v9414 = vadd.f32 %v9076, %v9413
  %9415 = vmatprep.mubr.f32.mxu0 0.0
  %v9416 = vand.u32 %v8115, 4294901760
  %v9417 = vsub.f32 %v8115, %v9416
  %v9418 = vand.u32 %v9417, 4294901760
  %9419 = vmatmul.mubr.f32.gmra.mrb[0].mxu0 %v9418
  %v9420 = vpop.f32.mrb[0].mxu0
  %v9421 = vadd.f32 %v9082, %v9420
  %v9422 = vpop.f32.mrb[0].mxu0
  %v9423 = vadd.f32 %v9084, %v9422
  %9424 = vmatprep.mubr.f32.mxu0 0.0
  %v9425 = vand.u32 %v8118, 4294901760
  %v9426 = vsub.f32 %v8118, %v9425
  %v9427 = vand.u32 %v9426, 4294901760
  %9428 = vmatmul.mubr.f32.gmra.mrb[0].mxu0 %v9427
  %v9429 = vpop.f32.mrb[0].mxu0
  %v9430 = vadd.f32 %v9090, %v9429
  %v9431 = vpop.f32.mrb[0].mxu0
  %v9432 = vadd.f32 %v9092, %v9431
  %9433 = vmatprep.mubr.f32.mxu0 0.0
  %v9434 = vand.u32 %v8121, 4294901760
  %v9435 = vsub.f32 %v8121, %v9434
  %v9436 = vand.u32 %v9435, 4294901760
  %9437 = vmatmul.mubr.f32.gmra.mrb[0].mxu0 %v9436
  %v9438 = vpop.f32.mrb[0].mxu0
  %v9439 = vadd.f32 %v9098, %v9438
  %v9440 = vpop.f32.mrb[0].mxu0
  %v9441 = vadd.f32 %v9100, %v9440
  %9442 = vmatprep.mubr.f32.mxu0 0.0
  %v9443 = vand.u32 %v8124, 4294901760
  %v9444 = vsub.f32 %v8124, %v9443
  %v9445 = vand.u32 %v9444, 4294901760
  %9446 = vmatmul.mubr.f32.gmra.mrb[0].mxu0 %v9445
  %v9447 = vpop.f32.mrb[0].mxu0
  %v9448 = vadd.f32 %v9106, %v9447
  %v9449 = vpop.f32.mrb[0].mxu0
  %v9450 = vadd.f32 %v9108, %v9449
  %9451 = vmatprep.mubr.f32.mxu0 0.0
  %v9452 = vand.u32 %v8127, 4294901760
  %v9453 = vsub.f32 %v8127, %v9452
  %v9454 = vand.u32 %v9453, 4294901760
  %9455 = vmatmul.mubr.f32.gmra.mrb[0].mxu0 %v9454
  %v9456 = vpop.f32.mrb[0].mxu0
  %v9457 = vadd.f32 %v9114, %v9456
  %v9458 = vpop.f32.mrb[0].mxu0
  %v9459 = vadd.f32 %v9116, %v9458
  %9460 = vmatprep.mubr.f32.mxu0 0.0
  %v9461 = vand.u32 %v8130, 4294901760
  %v9462 = vsub.f32 %v8130, %v9461
  %v9463 = vand.u32 %v9462, 4294901760
  %9464 = vmatmul.mubr.f32.gmra.mrb[0].mxu0 %v9463
  %v9465 = vpop.f32.mrb[0].mxu0
  %v9466 = vadd.f32 %v9122, %v9465
  %v9467 = vpop.f32.mrb[0].mxu0
  %v9468 = vadd.f32 %v9124, %v9467
  %9469 = vmatprep.mubr.f32.mxu0 0.0
  %v9470 = vand.u32 %v8133, 4294901760
  %v9471 = vsub.f32 %v8133, %v9470
  %v9472 = vand.u32 %v9471, 4294901760
  %9473 = vmatmul.mubr.f32.gmra.mrb[0].mxu0 %v9472
  %v9474 = vpop.f32.mrb[0].mxu0
  %v9475 = vadd.f32 %v9130, %v9474
  %v9476 = vpop.f32.mrb[0].mxu0
  %v9477 = vadd.f32 %v9132, %v9476
  %9478 = vmatprep.mubr.f32.mxu0 0.0
  %v9479 = vand.u32 %v8136, 4294901760
  %v9480 = vsub.f32 %v8136, %v9479
  %v9481 = vand.u32 %v9480, 4294901760
  %9482 = vmatmul.mubr.f32.gmra.mrb[0].mxu0 %v9481
  %v9483 = vpop.f32.mrb[0].mxu0
  %v9484 = vadd.f32 %v9138, %v9483
  %v9485 = vpop.f32.mrb[0].mxu0
  %v9486 = vadd.f32 %v9140, %v9485
  %9487 = vmatprep.mubr.f32.mxu0 0.0
  %v9488 = vand.u32 %v8139, 4294901760
  %v9489 = vsub.f32 %v8139, %v9488
  %v9490 = vand.u32 %v9489, 4294901760
  %9491 = vmatmul.mubr.f32.gmra.mrb[0].mxu0 %v9490
  %v9492 = vpop.f32.mrb[0].mxu0
  %v9493 = vadd.f32 %v9146, %v9492
  %v9494 = vpop.f32.mrb[0].mxu0
  %v9495 = vadd.f32 %v9148, %v9494
  %9496 = vmatprep.mubr.f32.mxu0 0.0
  %v9497 = vand.u32 %v8142, 4294901760
  %v9498 = vsub.f32 %v8142, %v9497
  %v9499 = vand.u32 %v9498, 4294901760
  %9500 = vmatmul.mubr.f32.gmra.mrb[0].mxu0 %v9499
  %v9501 = vpop.f32.mrb[0].mxu0
  %v9502 = vadd.f32 %v9154, %v9501
  %v9503 = vpop.f32.mrb[0].mxu0
  %v9504 = vadd.f32 %v9156, %v9503
  %9505 = vmatprep.mubr.f32.mxu0 0.0
  %v9506 = vand.u32 %v8145, 4294901760
  %v9507 = vsub.f32 %v8145, %v9506
  %v9508 = vand.u32 %v9507, 4294901760
  %9509 = vmatmul.mubr.f32.gmra.mrb[0].mxu0 %v9508
  %v9510 = vpop.f32.mrb[0].mxu0
  %v9511 = vadd.f32 %v9162, %v9510
  %v9512 = vpop.f32.mrb[0].mxu0
  %v9513 = vadd.f32 %v9164, %v9512
  %9514 = vmatprep.mubr.f32.mxu0 0.0
  %v9515 = vand.u32 %v8148, 4294901760
  %v9516 = vsub.f32 %v8148, %v9515
  %v9517 = vand.u32 %v9516, 4294901760
  %9518 = vmatmul.mubr.f32.gmra.mrb[0].mxu0 %v9517
  %v9519 = vpop.f32.mrb[0].mxu0
  %v9520 = vadd.f32 %v9170, %v9519
  %v9521 = vpop.f32.mrb[0].mxu0
  %v9522 = vadd.f32 %v9172, %v9521
  %9523 = vmatprep.mubr.f32.mxu0 0.0
  %v9524 = vand.u32 %v8151, 4294901760
  %v9525 = vsub.f32 %v8151, %v9524
  %v9526 = vand.u32 %v9525, 4294901760
  %9527 = vmatmul.mubr.f32.gmra.mrb[0].mxu0 %v9526
  %v9528 = vpop.f32.mrb[0].mxu0
  %v9529 = vadd.f32 %v9178, %v9528
  %v9530 = vpop.f32.mrb[0].mxu0
  %v9531 = vadd.f32 %v9180, %v9530
  %9532 = vmatprep.mubr.f32.mxu0 0.0
  %v9533 = vand.u32 %v8154, 4294901760
  %v9534 = vsub.f32 %v8154, %v9533
  %v9535 = vand.u32 %v9534, 4294901760
  %9536 = vmatmul.mubr.f32.gmra.mrb[0].mxu0 %v9535
  %v9537 = vpop.f32.mrb[0].mxu0
  %v9538 = vadd.f32 %v9186, %v9537
  %v9539 = vpop.f32.mrb[0].mxu0
  %v9540 = vadd.f32 %v9188, %v9539
  %9541 = vmatprep.mubr.f32.mxu0 0.0
  %v9542 = vand.u32 %v8157, 4294901760
  %v9543 = vsub.f32 %v8157, %v9542
  %v9544 = vand.u32 %v9543, 4294901760
  %9545 = vmatmul.mubr.f32.gmra.mrb[0].mxu0 %v9544
  %v9546 = vpop.f32.mrb[0].mxu0
  %v9547 = vadd.f32 %v9194, %v9546
  %v9548 = vpop.f32.mrb[0].mxu0
  %v9549 = vadd.f32 %v9196, %v9548
  %9550 = vmatprep.mubr.f32.mxu0 0.0
  %v9551 = vand.u32 %v8160, 4294901760
  %v9552 = vsub.f32 %v8160, %v9551
  %v9553 = vand.u32 %v9552, 4294901760
  %9554 = vmatmul.mubr.f32.gmra.mrb[0].mxu0 %v9553
  %v9555 = vpop.f32.mrb[0].mxu0
  %v9556 = vadd.f32 %v9202, %v9555
  %v9557 = vpop.f32.mrb[0].mxu0
  %v9558 = vadd.f32 %v9204, %v9557
  %9559 = vmatprep.mubr.f32.mxu0 0.0
  %v9560 = vand.u32 %v8163, 4294901760
  %v9561 = vsub.f32 %v8163, %v9560
  %v9562 = vand.u32 %v9561, 4294901760
  %9563 = vmatmul.mubr.f32.gmra.mrb[0].mxu0 %v9562
  %v9564 = vpop.f32.mrb[0].mxu0
  %v9565 = vadd.f32 %v9210, %v9564
  %v9566 = vpop.f32.mrb[0].mxu0
  %v9567 = vadd.f32 %v9212, %v9566
  %9568 = vmatprep.mubr.f32.mxu0 0.0
  %v9569 = vand.u32 %v8166, 4294901760
  %v9570 = vsub.f32 %v8166, %v9569
  %v9571 = vand.u32 %v9570, 4294901760
  %9572 = vmatmul.mubr.f32.gmra.mrb[0].mxu0 %v9571
  %v9573 = vpop.f32.mrb[0].mxu0
  %v9574 = vadd.f32 %v9218, %v9573
  %v9575 = vpop.f32.mrb[0].mxu0
  %v9576 = vadd.f32 %v9220, %v9575
  %9577 = vmatprep.mubr.f32.mxu0 0.0
  %v9578 = vand.u32 %v8169, 4294901760
  %v9579 = vsub.f32 %v8169, %v9578
  %v9580 = vand.u32 %v9579, 4294901760
  %9581 = vmatmul.mubr.f32.gmra.mrb[0].mxu0 %v9580
  %v9582 = vpop.f32.mrb[0].mxu0
  %v9583 = vadd.f32 %v9226, %v9582
  %v9584 = vpop.f32.mrb[0].mxu0
  %v9585 = vadd.f32 %v9228, %v9584
  %9586 = vdwg.mxu0
  %v9587 = vand.u32 %v8071, 4294901760
  %v9588 = vsub.f32 %v8071, %v9587
  %v9589 = vand.u32 %v9588, 4294901760
  %9590 = vmatprep.subr.mxu0 %v9589
  %v9591 = vand.u32 %v8070, 4294901760
  %v9592 = vsub.f32 %v8070, %v9591
  %v9593 = vand.u32 %v9592, 4294901760
  %9594 = vmatpush1.msra.mxu0 %v9593
  %v9595 = vand.u32 %v8073, 4294901760
  %v9596 = vsub.f32 %v8073, %v9595
  %v9597 = vand.u32 %v9596, 4294901760
  %9598 = vmatprep.subr.mxu0 %v9597
  %v9599 = vand.u32 %v8072, 4294901760
  %v9600 = vsub.f32 %v8072, %v9599
  %v9601 = vand.u32 %v9600, 4294901760
  %9602 = vmatpush1.msra.mxu0 %v9601
  %9603 = vmatprep.subr.mxu0 0.0
  %9604 = vmatpush1.msra.mxu0 0.0
  %9605 = vmatprep.subr.mxu0 0.0
  %9606 = vmatpush1.msra.mxu0 0.0
  %9607 = vmatprep.subr.mxu0 0.0
  %9608 = vmatpush1.msra.mxu0 0.0
  %9609 = vmatprep.subr.mxu0 0.0
  %9610 = vmatpush1.msra.mxu0 0.0
  %9611 = vmatprep.subr.mxu0 0.0
  %9612 = vmatpush1.msra.mxu0 0.0
  %9613 = vmatprep.subr.mxu0 0.0
  %9614 = vmatpush1.msra.mxu0 0.0
  %9615 = vmatprep.subr.mxu0 0.0
  %9616 = vmatpush1.msra.mxu0 0.0
  %9617 = vmatprep.subr.mxu0 0.0
  %9618 = vmatpush1.msra.mxu0 0.0
  %9619 = vmatprep.subr.mxu0 0.0
  %9620 = vmatpush1.msra.mxu0 0.0
  %9621 = vmatprep.subr.mxu0 0.0
  %9622 = vmatpush1.msra.mxu0 0.0
  %9623 = vmatprep.subr.mxu0 0.0
  %9624 = vmatpush1.msra.mxu0 0.0
  %9625 = vmatprep.subr.mxu0 0.0
  %9626 = vmatpush1.msra.mxu0 0.0
  %9627 = vmatprep.subr.mxu0 0.0
  %9628 = vmatpush1.msra.mxu0 0.0
  %9629 = vmatprep.subr.mxu0 0.0
  %9630 = vmatpush1.msra.mxu0 0.0
  %9631 = vmatprep.subr.mxu0 0.0
  %9632 = vmatpush1.msra.mxu0 0.0
  %9633 = vmatprep.subr.mxu0 0.0
  %9634 = vmatpush1.msra.mxu0 0.0
  %9635 = vmatprep.subr.mxu0 0.0
  %9636 = vmatpush1.msra.mxu0 0.0
  %9637 = vmatprep.subr.mxu0 0.0
  %9638 = vmatpush1.msra.mxu0 0.0
  %9639 = vmatprep.subr.mxu0 0.0
  %9640 = vmatpush1.msra.mxu0 0.0
  %9641 = vmatprep.subr.mxu0 0.0
  %9642 = vmatpush1.msra.mxu0 0.0
  %9643 = vmatprep.subr.mxu0 0.0
  %9644 = vmatpush1.msra.mxu0 0.0
  %9645 = vmatprep.subr.mxu0 0.0
  %9646 = vmatpush1.msra.mxu0 0.0
  %9647 = vmatprep.subr.mxu0 0.0
  %9648 = vmatpush1.msra.mxu0 0.0
  %9649 = vmatprep.subr.mxu0 0.0
  %9650 = vmatpush1.msra.mxu0 0.0
  %9651 = vmatprep.subr.mxu0 0.0
  %9652 = vmatpush1.msra.mxu0 0.0
  %9653 = vmatprep.subr.mxu0 0.0
  %9654 = vmatpush1.msra.mxu0 0.0
  %9655 = vmatprep.subr.mxu0 0.0
  %9656 = vmatpush1.msra.mxu0 0.0
  %9657 = vmatprep.subr.mxu0 0.0
  %9658 = vmatpush1.msra.mxu0 0.0
  %9659 = vmatprep.subr.mxu0 0.0
  %9660 = vmatpush1.msra.mxu0 0.0
  %9661 = vmatprep.subr.mxu0 0.0
  %9662 = vmatpush1.msra.mxu0 0.0
  %9663 = vmatprep.mubr.f32.mxu0 0.0
  %v9664 = vand.u32 %v8076, 4294901760
  %9665 = vmatmul.mubr.f32.gmra.mrb[0].mxu0 %v9664
  %v9666 = vpop.f32.mrb[0].mxu0
  %v9667 = vadd.f32 %v9304, %v9666
  %v9668 = vpop.f32.mrb[0].mxu0
  %v9669 = vadd.f32 %v9306, %v9668
  %9670 = vmatprep.mubr.f32.mxu0 0.0
  %v9671 = vand.u32 %v8079, 4294901760
  %9672 = vmatmul.mubr.f32.gmra.mrb[0].mxu0 %v9671
  %v9673 = vpop.f32.mrb[0].mxu0
  %v9674 = vadd.f32 %v9313, %v9673
  %v9675 = vpop.f32.mrb[0].mxu0
  %v9676 = vadd.f32 %v9315, %v9675
  %9677 = vmatprep.mubr.f32.mxu0 0.0
  %v9678 = vand.u32 %v8082, 4294901760
  %9679 = vmatmul.mubr.f32.gmra.mrb[0].mxu0 %v9678
  %v9680 = vpop.f32.mrb[0].mxu0
  %v9681 = vadd.f32 %v9322, %v9680
  %v9682 = vpop.f32.mrb[0].mxu0
  %v9683 = vadd.f32 %v9324, %v9682
  %9684 = vmatprep.mubr.f32.mxu0 0.0
  %v9685 = vand.u32 %v8085, 4294901760
  %9686 = vmatmul.mubr.f32.gmra.mrb[0].mxu0 %v9685
  %v9687 = vpop.f32.mrb[0].mxu0
  %v9688 = vadd.f32 %v9331, %v9687
  %v9689 = vpop.f32.mrb[0].mxu0
  %v9690 = vadd.f32 %v9333, %v9689
  %9691 = vmatprep.mubr.f32.mxu0 0.0
  %v9692 = vand.u32 %v8088, 4294901760
  %9693 = vmatmul.mubr.f32.gmra.mrb[0].mxu0 %v9692
  %v9694 = vpop.f32.mrb[0].mxu0
  %v9695 = vadd.f32 %v9340, %v9694
  %v9696 = vpop.f32.mrb[0].mxu0
  %v9697 = vadd.f32 %v9342, %v9696
  %9698 = vmatprep.mubr.f32.mxu0 0.0
  %v9699 = vand.u32 %v8091, 4294901760
  %9700 = vmatmul.mubr.f32.gmra.mrb[0].mxu0 %v9699
  %v9701 = vpop.f32.mrb[0].mxu0
  %v9702 = vadd.f32 %v9349, %v9701
  %v9703 = vpop.f32.mrb[0].mxu0
  %v9704 = vadd.f32 %v9351, %v9703
  %9705 = vmatprep.mubr.f32.mxu0 0.0
  %v9706 = vand.u32 %v8094, 4294901760
  %9707 = vmatmul.mubr.f32.gmra.mrb[0].mxu0 %v9706
  %v9708 = vpop.f32.mrb[0].mxu0
  %v9709 = vadd.f32 %v9358, %v9708
  %v9710 = vpop.f32.mrb[0].mxu0
  %v9711 = vadd.f32 %v9360, %v9710
  %9712 = vmatprep.mubr.f32.mxu0 0.0
  %v9713 = vand.u32 %v8097, 4294901760
  %9714 = vmatmul.mubr.f32.gmra.mrb[0].mxu0 %v9713
  %v9715 = vpop.f32.mrb[0].mxu0
  %v9716 = vadd.f32 %v9367, %v9715
  %v9717 = vpop.f32.mrb[0].mxu0
  %v9718 = vadd.f32 %v9369, %v9717
  %9719 = vmatprep.mubr.f32.mxu0 0.0
  %v9720 = vand.u32 %v8100, 4294901760
  %9721 = vmatmul.mubr.f32.gmra.mrb[0].mxu0 %v9720
  %v9722 = vpop.f32.mrb[0].mxu0
  %v9723 = vadd.f32 %v9376, %v9722
  %v9724 = vpop.f32.mrb[0].mxu0
  %v9725 = vadd.f32 %v9378, %v9724
  %9726 = vmatprep.mubr.f32.mxu0 0.0
  %v9727 = vand.u32 %v8103, 4294901760
  %9728 = vmatmul.mubr.f32.gmra.mrb[0].mxu0 %v9727
  %v9729 = vpop.f32.mrb[0].mxu0
  %v9730 = vadd.f32 %v9385, %v9729
  %v9731 = vpop.f32.mrb[0].mxu0
  %v9732 = vadd.f32 %v9387, %v9731
  %9733 = vmatprep.mubr.f32.mxu0 0.0
  %v9734 = vand.u32 %v8106, 4294901760
  %9735 = vmatmul.mubr.f32.gmra.mrb[0].mxu0 %v9734
  %v9736 = vpop.f32.mrb[0].mxu0
  %v9737 = vadd.f32 %v9394, %v9736
  %v9738 = vpop.f32.mrb[0].mxu0
  %v9739 = vadd.f32 %v9396, %v9738
  %9740 = vmatprep.mubr.f32.mxu0 0.0
  %v9741 = vand.u32 %v8109, 4294901760
  %9742 = vmatmul.mubr.f32.gmra.mrb[0].mxu0 %v9741
  %v9743 = vpop.f32.mrb[0].mxu0
  %v9744 = vadd.f32 %v9403, %v9743
  %v9745 = vpop.f32.mrb[0].mxu0
  %v9746 = vadd.f32 %v9405, %v9745
  %9747 = vmatprep.mubr.f32.mxu0 0.0
  %v9748 = vand.u32 %v8112, 4294901760
  %9749 = vmatmul.mubr.f32.gmra.mrb[0].mxu0 %v9748
  %v9750 = vpop.f32.mrb[0].mxu0
  %v9751 = vadd.f32 %v9412, %v9750
  %v9752 = vpop.f32.mrb[0].mxu0
  %v9753 = vadd.f32 %v9414, %v9752
  %9754 = vmatprep.mubr.f32.mxu0 0.0
  %v9755 = vand.u32 %v8115, 4294901760
  %9756 = vmatmul.mubr.f32.gmra.mrb[0].mxu0 %v9755
  %v9757 = vpop.f32.mrb[0].mxu0
  %v9758 = vadd.f32 %v9421, %v9757
  %v9759 = vpop.f32.mrb[0].mxu0
  %v9760 = vadd.f32 %v9423, %v9759
  %9761 = vmatprep.mubr.f32.mxu0 0.0
  %v9762 = vand.u32 %v8118, 4294901760
  %9763 = vmatmul.mubr.f32.gmra.mrb[0].mxu0 %v9762
  %v9764 = vpop.f32.mrb[0].mxu0
  %v9765 = vadd.f32 %v9430, %v9764
  %v9766 = vpop.f32.mrb[0].mxu0
  %v9767 = vadd.f32 %v9432, %v9766
  %9768 = vmatprep.mubr.f32.mxu0 0.0
  %v9769 = vand.u32 %v8121, 4294901760
  %9770 = vmatmul.mubr.f32.gmra.mrb[0].mxu0 %v9769
  %v9771 = vpop.f32.mrb[0].mxu0
  %v9772 = vadd.f32 %v9439, %v9771
  %v9773 = vpop.f32.mrb[0].mxu0
  %v9774 = vadd.f32 %v9441, %v9773
  %9775 = vmatprep.mubr.f32.mxu0 0.0
  %v9776 = vand.u32 %v8124, 4294901760
  %9777 = vmatmul.mubr.f32.gmra.mrb[0].mxu0 %v9776
  %v9778 = vpop.f32.mrb[0].mxu0
  %v9779 = vadd.f32 %v9448, %v9778
  %v9780 = vpop.f32.mrb[0].mxu0
  %v9781 = vadd.f32 %v9450, %v9780
  %9782 = vmatprep.mubr.f32.mxu0 0.0
  %v9783 = vand.u32 %v8127, 4294901760
  %9784 = vmatmul.mubr.f32.gmra.mrb[0].mxu0 %v9783
  %v9785 = vpop.f32.mrb[0].mxu0
  %v9786 = vadd.f32 %v9457, %v9785
  %v9787 = vpop.f32.mrb[0].mxu0
  %v9788 = vadd.f32 %v9459, %v9787
  %9789 = vmatprep.mubr.f32.mxu0 0.0
  %v9790 = vand.u32 %v8130, 4294901760
  %9791 = vmatmul.mubr.f32.gmra.mrb[0].mxu0 %v9790
  %v9792 = vpop.f32.mrb[0].mxu0
  %v9793 = vadd.f32 %v9466, %v9792
  %v9794 = vpop.f32.mrb[0].mxu0
  %v9795 = vadd.f32 %v9468, %v9794
  %9796 = vmatprep.mubr.f32.mxu0 0.0
  %v9797 = vand.u32 %v8133, 4294901760
  %9798 = vmatmul.mubr.f32.gmra.mrb[0].mxu0 %v9797
  %v9799 = vpop.f32.mrb[0].mxu0
  %v9800 = vadd.f32 %v9475, %v9799
  %v9801 = vpop.f32.mrb[0].mxu0
  %v9802 = vadd.f32 %v9477, %v9801
  %9803 = vmatprep.mubr.f32.mxu0 0.0
  %v9804 = vand.u32 %v8136, 4294901760
  %9805 = vmatmul.mubr.f32.gmra.mrb[0].mxu0 %v9804
  %v9806 = vpop.f32.mrb[0].mxu0
  %v9807 = vadd.f32 %v9484, %v9806
  %v9808 = vpop.f32.mrb[0].mxu0
  %v9809 = vadd.f32 %v9486, %v9808
  %9810 = vmatprep.mubr.f32.mxu0 0.0
  %v9811 = vand.u32 %v8139, 4294901760
  %9812 = vmatmul.mubr.f32.gmra.mrb[0].mxu0 %v9811
  %v9813 = vpop.f32.mrb[0].mxu0
  %v9814 = vadd.f32 %v9493, %v9813
  %v9815 = vpop.f32.mrb[0].mxu0
  %v9816 = vadd.f32 %v9495, %v9815
  %9817 = vmatprep.mubr.f32.mxu0 0.0
  %v9818 = vand.u32 %v8142, 4294901760
  %9819 = vmatmul.mubr.f32.gmra.mrb[0].mxu0 %v9818
  %v9820 = vpop.f32.mrb[0].mxu0
  %v9821 = vadd.f32 %v9502, %v9820
  %v9822 = vpop.f32.mrb[0].mxu0
  %v9823 = vadd.f32 %v9504, %v9822
  %9824 = vmatprep.mubr.f32.mxu0 0.0
  %v9825 = vand.u32 %v8145, 4294901760
  %9826 = vmatmul.mubr.f32.gmra.mrb[0].mxu0 %v9825
  %v9827 = vpop.f32.mrb[0].mxu0
  %v9828 = vadd.f32 %v9511, %v9827
  %v9829 = vpop.f32.mrb[0].mxu0
  %v9830 = vadd.f32 %v9513, %v9829
  %9831 = vmatprep.mubr.f32.mxu0 0.0
  %v9832 = vand.u32 %v8148, 4294901760
  %9833 = vmatmul.mubr.f32.gmra.mrb[0].mxu0 %v9832
  %v9834 = vpop.f32.mrb[0].mxu0
  %v9835 = vadd.f32 %v9520, %v9834
  %v9836 = vpop.f32.mrb[0].mxu0
  %v9837 = vadd.f32 %v9522, %v9836
  %9838 = vmatprep.mubr.f32.mxu0 0.0
  %v9839 = vand.u32 %v8151, 4294901760
  %9840 = vmatmul.mubr.f32.gmra.mrb[0].mxu0 %v9839
  %v9841 = vpop.f32.mrb[0].mxu0
  %v9842 = vadd.f32 %v9529, %v9841
  %v9843 = vpop.f32.mrb[0].mxu0
  %v9844 = vadd.f32 %v9531, %v9843
  %9845 = vmatprep.mubr.f32.mxu0 0.0
  %v9846 = vand.u32 %v8154, 4294901760
  %9847 = vmatmul.mubr.f32.gmra.mrb[0].mxu0 %v9846
  %v9848 = vpop.f32.mrb[0].mxu0
  %v9849 = vadd.f32 %v9538, %v9848
  %v9850 = vpop.f32.mrb[0].mxu0
  %v9851 = vadd.f32 %v9540, %v9850
  %9852 = vmatprep.mubr.f32.mxu0 0.0
  %v9853 = vand.u32 %v8157, 4294901760
  %9854 = vmatmul.mubr.f32.gmra.mrb[0].mxu0 %v9853
  %v9855 = vpop.f32.mrb[0].mxu0
  %v9856 = vadd.f32 %v9547, %v9855
  %v9857 = vpop.f32.mrb[0].mxu0
  %v9858 = vadd.f32 %v9549, %v9857
  %9859 = vmatprep.mubr.f32.mxu0 0.0
  %v9860 = vand.u32 %v8160, 4294901760
  %9861 = vmatmul.mubr.f32.gmra.mrb[0].mxu0 %v9860
  %v9862 = vpop.f32.mrb[0].mxu0
  %v9863 = vadd.f32 %v9556, %v9862
  %v9864 = vpop.f32.mrb[0].mxu0
  %v9865 = vadd.f32 %v9558, %v9864
  %9866 = vmatprep.mubr.f32.mxu0 0.0
  %v9867 = vand.u32 %v8163, 4294901760
  %9868 = vmatmul.mubr.f32.gmra.mrb[0].mxu0 %v9867
  %v9869 = vpop.f32.mrb[0].mxu0
  %v9870 = vadd.f32 %v9565, %v9869
  %v9871 = vpop.f32.mrb[0].mxu0
  %v9872 = vadd.f32 %v9567, %v9871
  %9873 = vmatprep.mubr.f32.mxu0 0.0
  %v9874 = vand.u32 %v8166, 4294901760
  %9875 = vmatmul.mubr.f32.gmra.mrb[0].mxu0 %v9874
  %v9876 = vpop.f32.mrb[0].mxu0
  %v9877 = vadd.f32 %v9574, %v9876
  %v9878 = vpop.f32.mrb[0].mxu0
  %v9879 = vadd.f32 %v9576, %v9878
  %9880 = vmatprep.mubr.f32.mxu0 0.0
  %v9881 = vand.u32 %v8169, 4294901760
  %9882 = vmatmul.mubr.f32.gmra.mrb[0].mxu0 %v9881
  %v9883 = vpop.f32.mrb[0].mxu0
  %v9884 = vadd.f32 %v9583, %v9883
  %v9885 = vpop.f32.mrb[0].mxu0
  %v9886 = vadd.f32 %v9585, %v9885
  %9887 = vdwg.mxu0
  %v9888 = vand.u32 %v8071, 4294901760
  %9889 = vmatprep.subr.mxu0 %v9888
  %v9890 = vand.u32 %v8070, 4294901760
  %9891 = vmatpush1.msra.mxu0 %v9890
  %v9892 = vand.u32 %v8073, 4294901760
  %9893 = vmatprep.subr.mxu0 %v9892
  %v9894 = vand.u32 %v8072, 4294901760
  %9895 = vmatpush1.msra.mxu0 %v9894
  %9896 = vmatprep.subr.mxu0 0.0
  %9897 = vmatpush1.msra.mxu0 0.0
  %9898 = vmatprep.subr.mxu0 0.0
  %9899 = vmatpush1.msra.mxu0 0.0
  %9900 = vmatprep.subr.mxu0 0.0
  %9901 = vmatpush1.msra.mxu0 0.0
  %9902 = vmatprep.subr.mxu0 0.0
  %9903 = vmatpush1.msra.mxu0 0.0
  %9904 = vmatprep.subr.mxu0 0.0
  %9905 = vmatpush1.msra.mxu0 0.0
  %9906 = vmatprep.subr.mxu0 0.0
  %9907 = vmatpush1.msra.mxu0 0.0
  %9908 = vmatprep.subr.mxu0 0.0
  %9909 = vmatpush1.msra.mxu0 0.0
  %9910 = vmatprep.subr.mxu0 0.0
  %9911 = vmatpush1.msra.mxu0 0.0
  %9912 = vmatprep.subr.mxu0 0.0
  %9913 = vmatpush1.msra.mxu0 0.0
  %9914 = vmatprep.subr.mxu0 0.0
  %9915 = vmatpush1.msra.mxu0 0.0
  %9916 = vmatprep.subr.mxu0 0.0
  %9917 = vmatpush1.msra.mxu0 0.0
  %9918 = vmatprep.subr.mxu0 0.0
  %9919 = vmatpush1.msra.mxu0 0.0
  %9920 = vmatprep.subr.mxu0 0.0
  %9921 = vmatpush1.msra.mxu0 0.0
  %9922 = vmatprep.subr.mxu0 0.0
  %9923 = vmatpush1.msra.mxu0 0.0
  %9924 = vmatprep.subr.mxu0 0.0
  %9925 = vmatpush1.msra.mxu0 0.0
  %9926 = vmatprep.subr.mxu0 0.0
  %9927 = vmatpush1.msra.mxu0 0.0
  %9928 = vmatprep.subr.mxu0 0.0
  %9929 = vmatpush1.msra.mxu0 0.0
  %9930 = vmatprep.subr.mxu0 0.0
  %9931 = vmatpush1.msra.mxu0 0.0
  %9932 = vmatprep.subr.mxu0 0.0
  %9933 = vmatpush1.msra.mxu0 0.0
  %9934 = vmatprep.subr.mxu0 0.0
  %9935 = vmatpush1.msra.mxu0 0.0
  %9936 = vmatprep.subr.mxu0 0.0
  %9937 = vmatpush1.msra.mxu0 0.0
  %9938 = vmatprep.subr.mxu0 0.0
  %9939 = vmatpush1.msra.mxu0 0.0
  %9940 = vmatprep.subr.mxu0 0.0
  %9941 = vmatpush1.msra.mxu0 0.0
  %9942 = vmatprep.subr.mxu0 0.0
  %9943 = vmatpush1.msra.mxu0 0.0
  %9944 = vmatprep.subr.mxu0 0.0
  %9945 = vmatpush1.msra.mxu0 0.0
  %9946 = vmatprep.subr.mxu0 0.0
  %9947 = vmatpush1.msra.mxu0 0.0
  %9948 = vmatprep.subr.mxu0 0.0
  %9949 = vmatpush1.msra.mxu0 0.0
  %9950 = vmatprep.subr.mxu0 0.0
  %9951 = vmatpush1.msra.mxu0 0.0
  %9952 = vmatprep.subr.mxu0 0.0
  %9953 = vmatpush1.msra.mxu0 0.0
  %9954 = vmatprep.subr.mxu0 0.0
  %9955 = vmatpush1.msra.mxu0 0.0
  %9956 = vmatprep.mubr.f32.mxu0 0.0
  %v9957 = vand.u32 %v8076, 4294901760
  %9958 = vmatmul.mubr.f32.gmra.mrb[0].mxu0 %v9957
  %v9959 = vpop.f32.mrb[0].mxu0
  %v9960 = vadd.f32 %v9667, %v9959
  %v9961 = vpop.f32.mrb[0].mxu0
  %v9962 = vadd.f32 %v9669, %v9961
  %9963 = vmatprep.mubr.f32.mxu0 0.0
  %v9964 = vand.u32 %v8079, 4294901760
  %9965 = vmatmul.mubr.f32.gmra.mrb[0].mxu0 %v9964
  %v9966 = vpop.f32.mrb[0].mxu0
  %v9967 = vadd.f32 %v9674, %v9966
  %v9968 = vpop.f32.mrb[0].mxu0
  %v9969 = vadd.f32 %v9676, %v9968
  %9970 = vmatprep.mubr.f32.mxu0 0.0
  %v9971 = vand.u32 %v8082, 4294901760
  %9972 = vmatmul.mubr.f32.gmra.mrb[0].mxu0 %v9971
  %v9973 = vpop.f32.mrb[0].mxu0
  %v9974 = vadd.f32 %v9681, %v9973
  %v9975 = vpop.f32.mrb[0].mxu0
  %v9976 = vadd.f32 %v9683, %v9975
  %9977 = vmatprep.mubr.f32.mxu0 0.0
  %v9978 = vand.u32 %v8085, 4294901760
  %9979 = vmatmul.mubr.f32.gmra.mrb[0].mxu0 %v9978
  %v9980 = vpop.f32.mrb[0].mxu0
  %v9981 = vadd.f32 %v9688, %v9980
  %v9982 = vpop.f32.mrb[0].mxu0
  %v9983 = vadd.f32 %v9690, %v9982
  %9984 = vmatprep.mubr.f32.mxu0 0.0
  %v9985 = vand.u32 %v8088, 4294901760
  %9986 = vmatmul.mubr.f32.gmra.mrb[0].mxu0 %v9985
  %v9987 = vpop.f32.mrb[0].mxu0
  %v9988 = vadd.f32 %v9695, %v9987
  %v9989 = vpop.f32.mrb[0].mxu0
  %v9990 = vadd.f32 %v9697, %v9989
  %9991 = vmatprep.mubr.f32.mxu0 0.0
  %v9992 = vand.u32 %v8091, 4294901760
  %9993 = vmatmul.mubr.f32.gmra.mrb[0].mxu0 %v9992
  %v9994 = vpop.f32.mrb[0].mxu0
  %v9995 = vadd.f32 %v9702, %v9994
  %v9996 = vpop.f32.mrb[0].mxu0
  %v9997 = vadd.f32 %v9704, %v9996
  %9998 = vmatprep.mubr.f32.mxu0 0.0
  %v9999 = vand.u32 %v8094, 4294901760
  %10000 = vmatmul.mubr.f32.gmra.mrb[0].mxu0 %v9999
  %v10001 = vpop.f32.mrb[0].mxu0
  %v10002 = vadd.f32 %v9709, %v10001
  %v10003 = vpop.f32.mrb[0].mxu0
  %v10004 = vadd.f32 %v9711, %v10003
  %10005 = vmatprep.mubr.f32.mxu0 0.0
  %v10006 = vand.u32 %v8097, 4294901760
  %10007 = vmatmul.mubr.f32.gmra.mrb[0].mxu0 %v10006
  %v10008 = vpop.f32.mrb[0].mxu0
  %v10009 = vadd.f32 %v9716, %v10008
  %v10010 = vpop.f32.mrb[0].mxu0
  %v10011 = vadd.f32 %v9718, %v10010
  %10012 = vmatprep.mubr.f32.mxu0 0.0
  %v10013 = vand.u32 %v8100, 4294901760
  %10014 = vmatmul.mubr.f32.gmra.mrb[0].mxu0 %v10013
  %v10015 = vpop.f32.mrb[0].mxu0
  %v10016 = vadd.f32 %v9723, %v10015
  %v10017 = vpop.f32.mrb[0].mxu0
  %v10018 = vadd.f32 %v9725, %v10017
  %10019 = vmatprep.mubr.f32.mxu0 0.0
  %v10020 = vand.u32 %v8103, 4294901760
  %10021 = vmatmul.mubr.f32.gmra.mrb[0].mxu0 %v10020
  %v10022 = vpop.f32.mrb[0].mxu0
  %v10023 = vadd.f32 %v9730, %v10022
  %v10024 = vpop.f32.mrb[0].mxu0
  %v10025 = vadd.f32 %v9732, %v10024
  %10026 = vmatprep.mubr.f32.mxu0 0.0
  %v10027 = vand.u32 %v8106, 4294901760
  %10028 = vmatmul.mubr.f32.gmra.mrb[0].mxu0 %v10027
  %v10029 = vpop.f32.mrb[0].mxu0
  %v10030 = vadd.f32 %v9737, %v10029
  %v10031 = vpop.f32.mrb[0].mxu0
  %v10032 = vadd.f32 %v9739, %v10031
  %10033 = vmatprep.mubr.f32.mxu0 0.0
  %v10034 = vand.u32 %v8109, 4294901760
  %10035 = vmatmul.mubr.f32.gmra.mrb[0].mxu0 %v10034
  %v10036 = vpop.f32.mrb[0].mxu0
  %v10037 = vadd.f32 %v9744, %v10036
  %v10038 = vpop.f32.mrb[0].mxu0
  %v10039 = vadd.f32 %v9746, %v10038
  %10040 = vmatprep.mubr.f32.mxu0 0.0
  %v10041 = vand.u32 %v8112, 4294901760
  %10042 = vmatmul.mubr.f32.gmra.mrb[0].mxu0 %v10041
  %v10043 = vpop.f32.mrb[0].mxu0
  %v10044 = vadd.f32 %v9751, %v10043
  %v10045 = vpop.f32.mrb[0].mxu0
  %v10046 = vadd.f32 %v9753, %v10045
  %10047 = vmatprep.mubr.f32.mxu0 0.0
  %v10048 = vand.u32 %v8115, 4294901760
  %10049 = vmatmul.mubr.f32.gmra.mrb[0].mxu0 %v10048
  %v10050 = vpop.f32.mrb[0].mxu0
  %v10051 = vadd.f32 %v9758, %v10050
  %v10052 = vpop.f32.mrb[0].mxu0
  %v10053 = vadd.f32 %v9760, %v10052
  %10054 = vmatprep.mubr.f32.mxu0 0.0
  %v10055 = vand.u32 %v8118, 4294901760
  %10056 = vmatmul.mubr.f32.gmra.mrb[0].mxu0 %v10055
  %v10057 = vpop.f32.mrb[0].mxu0
  %v10058 = vadd.f32 %v9765, %v10057
  %v10059 = vpop.f32.mrb[0].mxu0
  %v10060 = vadd.f32 %v9767, %v10059
  %10061 = vmatprep.mubr.f32.mxu0 0.0
  %v10062 = vand.u32 %v8121, 4294901760
  %10063 = vmatmul.mubr.f32.gmra.mrb[0].mxu0 %v10062
  %v10064 = vpop.f32.mrb[0].mxu0
  %v10065 = vadd.f32 %v9772, %v10064
  %v10066 = vpop.f32.mrb[0].mxu0
  %v10067 = vadd.f32 %v9774, %v10066
  %10068 = vmatprep.mubr.f32.mxu0 0.0
  %v10069 = vand.u32 %v8124, 4294901760
  %10070 = vmatmul.mubr.f32.gmra.mrb[0].mxu0 %v10069
  %v10071 = vpop.f32.mrb[0].mxu0
  %v10072 = vadd.f32 %v9779, %v10071
  %v10073 = vpop.f32.mrb[0].mxu0
  %v10074 = vadd.f32 %v9781, %v10073
  %10075 = vmatprep.mubr.f32.mxu0 0.0
  %v10076 = vand.u32 %v8127, 4294901760
  %10077 = vmatmul.mubr.f32.gmra.mrb[0].mxu0 %v10076
  %v10078 = vpop.f32.mrb[0].mxu0
  %v10079 = vadd.f32 %v9786, %v10078
  %v10080 = vpop.f32.mrb[0].mxu0
  %v10081 = vadd.f32 %v9788, %v10080
  %10082 = vmatprep.mubr.f32.mxu0 0.0
  %v10083 = vand.u32 %v8130, 4294901760
  %10084 = vmatmul.mubr.f32.gmra.mrb[0].mxu0 %v10083
  %v10085 = vpop.f32.mrb[0].mxu0
  %v10086 = vadd.f32 %v9793, %v10085
  %v10087 = vpop.f32.mrb[0].mxu0
  %v10088 = vadd.f32 %v9795, %v10087
  %10089 = vmatprep.mubr.f32.mxu0 0.0
  %v10090 = vand.u32 %v8133, 4294901760
  %10091 = vmatmul.mubr.f32.gmra.mrb[0].mxu0 %v10090
  %v10092 = vpop.f32.mrb[0].mxu0
  %v10093 = vadd.f32 %v9800, %v10092
  %v10094 = vpop.f32.mrb[0].mxu0
  %v10095 = vadd.f32 %v9802, %v10094
  %10096 = vmatprep.mubr.f32.mxu0 0.0
  %v10097 = vand.u32 %v8136, 4294901760
  %10098 = vmatmul.mubr.f32.gmra.mrb[0].mxu0 %v10097
  %v10099 = vpop.f32.mrb[0].mxu0
  %v10100 = vadd.f32 %v9807, %v10099
  %v10101 = vpop.f32.mrb[0].mxu0
  %v10102 = vadd.f32 %v9809, %v10101
  %10103 = vmatprep.mubr.f32.mxu0 0.0
  %v10104 = vand.u32 %v8139, 4294901760
  %10105 = vmatmul.mubr.f32.gmra.mrb[0].mxu0 %v10104
  %v10106 = vpop.f32.mrb[0].mxu0
  %v10107 = vadd.f32 %v9814, %v10106
  %v10108 = vpop.f32.mrb[0].mxu0
  %v10109 = vadd.f32 %v9816, %v10108
  %10110 = vmatprep.mubr.f32.mxu0 0.0
  %v10111 = vand.u32 %v8142, 4294901760
  %10112 = vmatmul.mubr.f32.gmra.mrb[0].mxu0 %v10111
  %v10113 = vpop.f32.mrb[0].mxu0
  %v10114 = vadd.f32 %v9821, %v10113
  %v10115 = vpop.f32.mrb[0].mxu0
  %v10116 = vadd.f32 %v9823, %v10115
  %10117 = vmatprep.mubr.f32.mxu0 0.0
  %v10118 = vand.u32 %v8145, 4294901760
  %10119 = vmatmul.mubr.f32.gmra.mrb[0].mxu0 %v10118
  %v10120 = vpop.f32.mrb[0].mxu0
  %v10121 = vadd.f32 %v9828, %v10120
  %v10122 = vpop.f32.mrb[0].mxu0
  %v10123 = vadd.f32 %v9830, %v10122
  %10124 = vmatprep.mubr.f32.mxu0 0.0
  %v10125 = vand.u32 %v8148, 4294901760
  %10126 = vmatmul.mubr.f32.gmra.mrb[0].mxu0 %v10125
  %v10127 = vpop.f32.mrb[0].mxu0
  %v10128 = vadd.f32 %v9835, %v10127
  %v10129 = vpop.f32.mrb[0].mxu0
  %v10130 = vadd.f32 %v9837, %v10129
  %10131 = vmatprep.mubr.f32.mxu0 0.0
  %v10132 = vand.u32 %v8151, 4294901760
  %10133 = vmatmul.mubr.f32.gmra.mrb[0].mxu0 %v10132
  %v10134 = vpop.f32.mrb[0].mxu0
  %v10135 = vadd.f32 %v9842, %v10134
  %v10136 = vpop.f32.mrb[0].mxu0
  %v10137 = vadd.f32 %v9844, %v10136
  %10138 = vmatprep.mubr.f32.mxu0 0.0
  %v10139 = vand.u32 %v8154, 4294901760
  %10140 = vmatmul.mubr.f32.gmra.mrb[0].mxu0 %v10139
  %v10141 = vpop.f32.mrb[0].mxu0
  %v10142 = vadd.f32 %v9849, %v10141
  %v10143 = vpop.f32.mrb[0].mxu0
  %v10144 = vadd.f32 %v9851, %v10143
  %10145 = vmatprep.mubr.f32.mxu0 0.0
  %v10146 = vand.u32 %v8157, 4294901760
  %10147 = vmatmul.mubr.f32.gmra.mrb[0].mxu0 %v10146
  %v10148 = vpop.f32.mrb[0].mxu0
  %v10149 = vadd.f32 %v9856, %v10148
  %v10150 = vpop.f32.mrb[0].mxu0
  %v10151 = vadd.f32 %v9858, %v10150
  %10152 = vmatprep.mubr.f32.mxu0 0.0
  %v10153 = vand.u32 %v8160, 4294901760
  %10154 = vmatmul.mubr.f32.gmra.mrb[0].mxu0 %v10153
  %v10155 = vpop.f32.mrb[0].mxu0
  %v10156 = vadd.f32 %v9863, %v10155
  %v10157 = vpop.f32.mrb[0].mxu0
  %v10158 = vadd.f32 %v9865, %v10157
  %10159 = vmatprep.mubr.f32.mxu0 0.0
  %v10160 = vand.u32 %v8163, 4294901760
  %10161 = vmatmul.mubr.f32.gmra.mrb[0].mxu0 %v10160
  %v10162 = vpop.f32.mrb[0].mxu0
  %v10163 = vadd.f32 %v9870, %v10162
  %v10164 = vpop.f32.mrb[0].mxu0
  %v10165 = vadd.f32 %v9872, %v10164
  %10166 = vmatprep.mubr.f32.mxu0 0.0
  %v10167 = vand.u32 %v8166, 4294901760
  %10168 = vmatmul.mubr.f32.gmra.mrb[0].mxu0 %v10167
  %v10169 = vpop.f32.mrb[0].mxu0
  %v10170 = vadd.f32 %v9877, %v10169
  %v10171 = vpop.f32.mrb[0].mxu0
  %v10172 = vadd.f32 %v9879, %v10171
  %10173 = vmatprep.mubr.f32.mxu0 0.0
  %v10174 = vand.u32 %v8169, 4294901760
  %10175 = vmatmul.mubr.f32.gmra.mrb[0].mxu0 %v10174
  %v10176 = vpop.f32.mrb[0].mxu0
  %v10177 = vadd.f32 %v9884, %v10176
  %v10178 = vpop.f32.mrb[0].mxu0
  %v10179 = vadd.f32 %v9886, %v10178
  %10180 = vdwg.mxu0
  %v10181 = vld [vmem:[%s3] sm:$0xff]
  %v10182 = vld [vmem:[%s3 + $0x8] sm:$0xff]
  %v10183 = vld [vmem:[%s3 + $0x10] sm:$0xff]
  %v10184 = vld [vmem:[%s3 + $0x18] sm:$0xff]
  %v10186 = vsel %vm8074, %v7830, 0
  %v10189 = vsel %vm8074, %v7831, 0
  %v10192 = vsel %vm8074, %v7832, 0
  %v10195 = vsel %vm8074, %v7833, 0
  %v10198 = vsel %vm8074, %v7862, 0
  %v10201 = vsel %vm8074, %v7863, 0
  %v10204 = vsel %vm8074, %v7864, 0
  %v10207 = vsel %vm8074, %v7865, 0
  %v10210 = vsel %vm8074, %v7894, 0
  %v10213 = vsel %vm8074, %v7895, 0
  %v10216 = vsel %vm8074, %v7896, 0
  %v10219 = vsel %vm8074, %v7897, 0
  %v10222 = vsel %vm8074, %v7926, 0
  %v10225 = vsel %vm8074, %v7927, 0
  %v10228 = vsel %vm8074, %v7928, 0
  %v10231 = vsel %vm8074, %v7929, 0
  %v10234 = vsel %vm8074, %v7958, 0
  %v10237 = vsel %vm8074, %v7959, 0
  %v10240 = vsel %vm8074, %v7960, 0
  %v10243 = vsel %vm8074, %v7961, 0
  %v10246 = vsel %vm8074, %v7990, 0
  %v10249 = vsel %vm8074, %v7991, 0
  %v10252 = vsel %vm8074, %v7992, 0
  %v10255 = vsel %vm8074, %v7993, 0
  %v10258 = vsel %vm8074, %v8022, 0
  %v10261 = vsel %vm8074, %v8023, 0
  %v10264 = vsel %vm8074, %v8024, 0
  %v10267 = vsel %vm8074, %v8025, 0
  %v10270 = vsel %vm8074, %v8054, 0
  %v10273 = vsel %vm8074, %v8055, 0
  %v10276 = vsel %vm8074, %v8056, 0
  %v10279 = vsel %vm8074, %v8057, 0
  %v10281 = vand.u32 %v10182, 4294901760
  %10282 = vmatprep.subr.mxu0 %v10281
  %v10283 = vand.u32 %v10181, 4294901760
  %10284 = vmatpush1.msra.mxu0 %v10283
  %v10285 = vand.u32 %v10184, 4294901760
  %10286 = vmatprep.subr.mxu0 %v10285
  %v10287 = vand.u32 %v10183, 4294901760
  %10288 = vmatpush1.msra.mxu0 %v10287
  %10289 = vmatprep.subr.mxu0 0.0
  %10290 = vmatpush1.msra.mxu0 0.0
  %10291 = vmatprep.subr.mxu0 0.0
  %10292 = vmatpush1.msra.mxu0 0.0
  %10293 = vmatprep.subr.mxu0 0.0
  %10294 = vmatpush1.msra.mxu0 0.0
  %10295 = vmatprep.subr.mxu0 0.0
  %10296 = vmatpush1.msra.mxu0 0.0
  %10297 = vmatprep.subr.mxu0 0.0
  %10298 = vmatpush1.msra.mxu0 0.0
  %10299 = vmatprep.subr.mxu0 0.0
  %10300 = vmatpush1.msra.mxu0 0.0
  %10301 = vmatprep.subr.mxu0 0.0
  %10302 = vmatpush1.msra.mxu0 0.0
  %10303 = vmatprep.subr.mxu0 0.0
  %10304 = vmatpush1.msra.mxu0 0.0
  %10305 = vmatprep.subr.mxu0 0.0
  %10306 = vmatpush1.msra.mxu0 0.0
  %10307 = vmatprep.subr.mxu0 0.0
  %10308 = vmatpush1.msra.mxu0 0.0
  %10309 = vmatprep.subr.mxu0 0.0
  %10310 = vmatpush1.msra.mxu0 0.0
  %10311 = vmatprep.subr.mxu0 0.0
  %10312 = vmatpush1.msra.mxu0 0.0
  %10313 = vmatprep.subr.mxu0 0.0
  %10314 = vmatpush1.msra.mxu0 0.0
  %10315 = vmatprep.subr.mxu0 0.0
  %10316 = vmatpush1.msra.mxu0 0.0
  %10317 = vmatprep.subr.mxu0 0.0
  %10318 = vmatpush1.msra.mxu0 0.0
  %10319 = vmatprep.subr.mxu0 0.0
  %10320 = vmatpush1.msra.mxu0 0.0
  %10321 = vmatprep.subr.mxu0 0.0
  %10322 = vmatpush1.msra.mxu0 0.0
  %10323 = vmatprep.subr.mxu0 0.0
  %10324 = vmatpush1.msra.mxu0 0.0
  %10325 = vmatprep.subr.mxu0 0.0
  %10326 = vmatpush1.msra.mxu0 0.0
  %10327 = vmatprep.subr.mxu0 0.0
  %10328 = vmatpush1.msra.mxu0 0.0
  %10329 = vmatprep.subr.mxu0 0.0
  %10330 = vmatpush1.msra.mxu0 0.0
  %10331 = vmatprep.subr.mxu0 0.0
  %10332 = vmatpush1.msra.mxu0 0.0
  %10333 = vmatprep.subr.mxu0 0.0
  %10334 = vmatpush1.msra.mxu0 0.0
  %10335 = vmatprep.subr.mxu0 0.0
  %10336 = vmatpush1.msra.mxu0 0.0
  %10337 = vmatprep.subr.mxu0 0.0
  %10338 = vmatpush1.msra.mxu0 0.0
  %10339 = vmatprep.subr.mxu0 0.0
  %10340 = vmatpush1.msra.mxu0 0.0
  %10341 = vmatprep.subr.mxu0 0.0
  %10342 = vmatpush1.msra.mxu0 0.0
  %10343 = vmatprep.subr.mxu0 0.0
  %10344 = vmatpush1.msra.mxu0 0.0
  %10345 = vmatprep.subr.mxu0 0.0
  %10346 = vmatpush1.msra.mxu0 0.0
  %10347 = vmatprep.subr.mxu0 0.0
  %10348 = vmatpush1.msra.mxu0 0.0
  %10349 = vmatprep.mubr.f32.mxu0 0.0
  %v10350 = vand.u32 %v10186, 4294901760
  %v10351 = vsub.f32 %v10186, %v10350
  %v10352 = vand.u32 %v10351, 4294901760
  %v10353 = vsub.f32 %v10351, %v10352
  %v10354 = vand.u32 %v10353, 4294901760
  %10355 = vmatmul.mubr.f32.gmra.mrb[0].mxu0 %v10354
  %v10356 = vpop.f32.mrb[0].mxu0
  %v10357 = vadd.f32 0.0, %v10356
  %v10358 = vpop.f32.mrb[0].mxu0
  %v10359 = vadd.f32 0.0, %v10358
  %10360 = vmatprep.mubr.f32.mxu0 0.0
  %v10361 = vand.u32 %v10189, 4294901760
  %v10362 = vsub.f32 %v10189, %v10361
  %v10363 = vand.u32 %v10362, 4294901760
  %v10364 = vsub.f32 %v10362, %v10363
  %v10365 = vand.u32 %v10364, 4294901760
  %10366 = vmatmul.mubr.f32.gmra.mrb[0].mxu0 %v10365
  %v10367 = vpop.f32.mrb[0].mxu0
  %v10368 = vadd.f32 0.0, %v10367
  %v10369 = vpop.f32.mrb[0].mxu0
  %v10370 = vadd.f32 0.0, %v10369
  %10371 = vmatprep.mubr.f32.mxu0 0.0
  %v10372 = vand.u32 %v10192, 4294901760
  %v10373 = vsub.f32 %v10192, %v10372
  %v10374 = vand.u32 %v10373, 4294901760
  %v10375 = vsub.f32 %v10373, %v10374
  %v10376 = vand.u32 %v10375, 4294901760
  %10377 = vmatmul.mubr.f32.gmra.mrb[0].mxu0 %v10376
  %v10378 = vpop.f32.mrb[0].mxu0
  %v10379 = vadd.f32 0.0, %v10378
  %v10380 = vpop.f32.mrb[0].mxu0
  %v10381 = vadd.f32 0.0, %v10380
  %10382 = vmatprep.mubr.f32.mxu0 0.0
  %v10383 = vand.u32 %v10195, 4294901760
  %v10384 = vsub.f32 %v10195, %v10383
  %v10385 = vand.u32 %v10384, 4294901760
  %v10386 = vsub.f32 %v10384, %v10385
  %v10387 = vand.u32 %v10386, 4294901760
  %10388 = vmatmul.mubr.f32.gmra.mrb[0].mxu0 %v10387
  %v10389 = vpop.f32.mrb[0].mxu0
  %v10390 = vadd.f32 0.0, %v10389
  %v10391 = vpop.f32.mrb[0].mxu0
  %v10392 = vadd.f32 0.0, %v10391
  %10393 = vmatprep.mubr.f32.mxu0 0.0
  %v10394 = vand.u32 %v10198, 4294901760
  %v10395 = vsub.f32 %v10198, %v10394
  %v10396 = vand.u32 %v10395, 4294901760
  %v10397 = vsub.f32 %v10395, %v10396
  %v10398 = vand.u32 %v10397, 4294901760
  %10399 = vmatmul.mubr.f32.gmra.mrb[0].mxu0 %v10398
  %v10400 = vpop.f32.mrb[0].mxu0
  %v10401 = vadd.f32 0.0, %v10400
  %v10402 = vpop.f32.mrb[0].mxu0
  %v10403 = vadd.f32 0.0, %v10402
  %10404 = vmatprep.mubr.f32.mxu0 0.0
  %v10405 = vand.u32 %v10201, 4294901760
  %v10406 = vsub.f32 %v10201, %v10405
  %v10407 = vand.u32 %v10406, 4294901760
  %v10408 = vsub.f32 %v10406, %v10407
  %v10409 = vand.u32 %v10408, 4294901760
  %10410 = vmatmul.mubr.f32.gmra.mrb[0].mxu0 %v10409
  %v10411 = vpop.f32.mrb[0].mxu0
  %v10412 = vadd.f32 0.0, %v10411
  %v10413 = vpop.f32.mrb[0].mxu0
  %v10414 = vadd.f32 0.0, %v10413
  %10415 = vmatprep.mubr.f32.mxu0 0.0
  %v10416 = vand.u32 %v10204, 4294901760
  %v10417 = vsub.f32 %v10204, %v10416
  %v10418 = vand.u32 %v10417, 4294901760
  %v10419 = vsub.f32 %v10417, %v10418
  %v10420 = vand.u32 %v10419, 4294901760
  %10421 = vmatmul.mubr.f32.gmra.mrb[0].mxu0 %v10420
  %v10422 = vpop.f32.mrb[0].mxu0
  %v10423 = vadd.f32 0.0, %v10422
  %v10424 = vpop.f32.mrb[0].mxu0
  %v10425 = vadd.f32 0.0, %v10424
  %10426 = vmatprep.mubr.f32.mxu0 0.0
  %v10427 = vand.u32 %v10207, 4294901760
  %v10428 = vsub.f32 %v10207, %v10427
  %v10429 = vand.u32 %v10428, 4294901760
  %v10430 = vsub.f32 %v10428, %v10429
  %v10431 = vand.u32 %v10430, 4294901760
  %10432 = vmatmul.mubr.f32.gmra.mrb[0].mxu0 %v10431
  %v10433 = vpop.f32.mrb[0].mxu0
  %v10434 = vadd.f32 0.0, %v10433
  %v10435 = vpop.f32.mrb[0].mxu0
  %v10436 = vadd.f32 0.0, %v10435
  %10437 = vmatprep.mubr.f32.mxu0 0.0
  %v10438 = vand.u32 %v10210, 4294901760
  %v10439 = vsub.f32 %v10210, %v10438
  %v10440 = vand.u32 %v10439, 4294901760
  %v10441 = vsub.f32 %v10439, %v10440
  %v10442 = vand.u32 %v10441, 4294901760
  %10443 = vmatmul.mubr.f32.gmra.mrb[0].mxu0 %v10442
  %v10444 = vpop.f32.mrb[0].mxu0
  %v10445 = vadd.f32 0.0, %v10444
  %v10446 = vpop.f32.mrb[0].mxu0
  %v10447 = vadd.f32 0.0, %v10446
  %10448 = vmatprep.mubr.f32.mxu0 0.0
  %v10449 = vand.u32 %v10213, 4294901760
  %v10450 = vsub.f32 %v10213, %v10449
  %v10451 = vand.u32 %v10450, 4294901760
  %v10452 = vsub.f32 %v10450, %v10451
  %v10453 = vand.u32 %v10452, 4294901760
  %10454 = vmatmul.mubr.f32.gmra.mrb[0].mxu0 %v10453
  %v10455 = vpop.f32.mrb[0].mxu0
  %v10456 = vadd.f32 0.0, %v10455
  %v10457 = vpop.f32.mrb[0].mxu0
  %v10458 = vadd.f32 0.0, %v10457
  %10459 = vmatprep.mubr.f32.mxu0 0.0
  %v10460 = vand.u32 %v10216, 4294901760
  %v10461 = vsub.f32 %v10216, %v10460
  %v10462 = vand.u32 %v10461, 4294901760
  %v10463 = vsub.f32 %v10461, %v10462
  %v10464 = vand.u32 %v10463, 4294901760
  %10465 = vmatmul.mubr.f32.gmra.mrb[0].mxu0 %v10464
  %v10466 = vpop.f32.mrb[0].mxu0
  %v10467 = vadd.f32 0.0, %v10466
  %v10468 = vpop.f32.mrb[0].mxu0
  %v10469 = vadd.f32 0.0, %v10468
  %10470 = vmatprep.mubr.f32.mxu0 0.0
  %v10471 = vand.u32 %v10219, 4294901760
  %v10472 = vsub.f32 %v10219, %v10471
  %v10473 = vand.u32 %v10472, 4294901760
  %v10474 = vsub.f32 %v10472, %v10473
  %v10475 = vand.u32 %v10474, 4294901760
  %10476 = vmatmul.mubr.f32.gmra.mrb[0].mxu0 %v10475
  %v10477 = vpop.f32.mrb[0].mxu0
  %v10478 = vadd.f32 0.0, %v10477
  %v10479 = vpop.f32.mrb[0].mxu0
  %v10480 = vadd.f32 0.0, %v10479
  %10481 = vmatprep.mubr.f32.mxu0 0.0
  %v10482 = vand.u32 %v10222, 4294901760
  %v10483 = vsub.f32 %v10222, %v10482
  %v10484 = vand.u32 %v10483, 4294901760
  %v10485 = vsub.f32 %v10483, %v10484
  %v10486 = vand.u32 %v10485, 4294901760
  %10487 = vmatmul.mubr.f32.gmra.mrb[0].mxu0 %v10486
  %v10488 = vpop.f32.mrb[0].mxu0
  %v10489 = vadd.f32 0.0, %v10488
  %v10490 = vpop.f32.mrb[0].mxu0
  %v10491 = vadd.f32 0.0, %v10490
  %10492 = vmatprep.mubr.f32.mxu0 0.0
  %v10493 = vand.u32 %v10225, 4294901760
  %v10494 = vsub.f32 %v10225, %v10493
  %v10495 = vand.u32 %v10494, 4294901760
  %v10496 = vsub.f32 %v10494, %v10495
  %v10497 = vand.u32 %v10496, 4294901760
  %10498 = vmatmul.mubr.f32.gmra.mrb[0].mxu0 %v10497
  %v10499 = vpop.f32.mrb[0].mxu0
  %v10500 = vadd.f32 0.0, %v10499
  %v10501 = vpop.f32.mrb[0].mxu0
  %v10502 = vadd.f32 0.0, %v10501
  %10503 = vmatprep.mubr.f32.mxu0 0.0
  %v10504 = vand.u32 %v10228, 4294901760
  %v10505 = vsub.f32 %v10228, %v10504
  %v10506 = vand.u32 %v10505, 4294901760
  %v10507 = vsub.f32 %v10505, %v10506
  %v10508 = vand.u32 %v10507, 4294901760
  %10509 = vmatmul.mubr.f32.gmra.mrb[0].mxu0 %v10508
  %v10510 = vpop.f32.mrb[0].mxu0
  %v10511 = vadd.f32 0.0, %v10510
  %v10512 = vpop.f32.mrb[0].mxu0
  %v10513 = vadd.f32 0.0, %v10512
  %10514 = vmatprep.mubr.f32.mxu0 0.0
  %v10515 = vand.u32 %v10231, 4294901760
  %v10516 = vsub.f32 %v10231, %v10515
  %v10517 = vand.u32 %v10516, 4294901760
  %v10518 = vsub.f32 %v10516, %v10517
  %v10519 = vand.u32 %v10518, 4294901760
  %10520 = vmatmul.mubr.f32.gmra.mrb[0].mxu0 %v10519
  %v10521 = vpop.f32.mrb[0].mxu0
  %v10522 = vadd.f32 0.0, %v10521
  %v10523 = vpop.f32.mrb[0].mxu0
  %v10524 = vadd.f32 0.0, %v10523
  %10525 = vmatprep.mubr.f32.mxu0 0.0
  %v10526 = vand.u32 %v10234, 4294901760
  %v10527 = vsub.f32 %v10234, %v10526
  %v10528 = vand.u32 %v10527, 4294901760
  %v10529 = vsub.f32 %v10527, %v10528
  %v10530 = vand.u32 %v10529, 4294901760
  %10531 = vmatmul.mubr.f32.gmra.mrb[0].mxu0 %v10530
  %v10532 = vpop.f32.mrb[0].mxu0
  %v10533 = vadd.f32 0.0, %v10532
  %v10534 = vpop.f32.mrb[0].mxu0
  %v10535 = vadd.f32 0.0, %v10534
  %10536 = vmatprep.mubr.f32.mxu0 0.0
  %v10537 = vand.u32 %v10237, 4294901760
  %v10538 = vsub.f32 %v10237, %v10537
  %v10539 = vand.u32 %v10538, 4294901760
  %v10540 = vsub.f32 %v10538, %v10539
  %v10541 = vand.u32 %v10540, 4294901760
  %10542 = vmatmul.mubr.f32.gmra.mrb[0].mxu0 %v10541
  %v10543 = vpop.f32.mrb[0].mxu0
  %v10544 = vadd.f32 0.0, %v10543
  %v10545 = vpop.f32.mrb[0].mxu0
  %v10546 = vadd.f32 0.0, %v10545
  %10547 = vmatprep.mubr.f32.mxu0 0.0
  %v10548 = vand.u32 %v10240, 4294901760
  %v10549 = vsub.f32 %v10240, %v10548
  %v10550 = vand.u32 %v10549, 4294901760
  %v10551 = vsub.f32 %v10549, %v10550
  %v10552 = vand.u32 %v10551, 4294901760
  %10553 = vmatmul.mubr.f32.gmra.mrb[0].mxu0 %v10552
  %v10554 = vpop.f32.mrb[0].mxu0
  %v10555 = vadd.f32 0.0, %v10554
  %v10556 = vpop.f32.mrb[0].mxu0
  %v10557 = vadd.f32 0.0, %v10556
  %10558 = vmatprep.mubr.f32.mxu0 0.0
  %v10559 = vand.u32 %v10243, 4294901760
  %v10560 = vsub.f32 %v10243, %v10559
  %v10561 = vand.u32 %v10560, 4294901760
  %v10562 = vsub.f32 %v10560, %v10561
  %v10563 = vand.u32 %v10562, 4294901760
  %10564 = vmatmul.mubr.f32.gmra.mrb[0].mxu0 %v10563
  %v10565 = vpop.f32.mrb[0].mxu0
  %v10566 = vadd.f32 0.0, %v10565
  %v10567 = vpop.f32.mrb[0].mxu0
  %v10568 = vadd.f32 0.0, %v10567
  %10569 = vmatprep.mubr.f32.mxu0 0.0
  %v10570 = vand.u32 %v10246, 4294901760
  %v10571 = vsub.f32 %v10246, %v10570
  %v10572 = vand.u32 %v10571, 4294901760
  %v10573 = vsub.f32 %v10571, %v10572
  %v10574 = vand.u32 %v10573, 4294901760
  %10575 = vmatmul.mubr.f32.gmra.mrb[0].mxu0 %v10574
  %v10576 = vpop.f32.mrb[0].mxu0
  %v10577 = vadd.f32 0.0, %v10576
  %v10578 = vpop.f32.mrb[0].mxu0
  %v10579 = vadd.f32 0.0, %v10578
  %10580 = vmatprep.mubr.f32.mxu0 0.0
  %v10581 = vand.u32 %v10249, 4294901760
  %v10582 = vsub.f32 %v10249, %v10581
  %v10583 = vand.u32 %v10582, 4294901760
  %v10584 = vsub.f32 %v10582, %v10583
  %v10585 = vand.u32 %v10584, 4294901760
  %10586 = vmatmul.mubr.f32.gmra.mrb[0].mxu0 %v10585
  %v10587 = vpop.f32.mrb[0].mxu0
  %v10588 = vadd.f32 0.0, %v10587
  %v10589 = vpop.f32.mrb[0].mxu0
  %v10590 = vadd.f32 0.0, %v10589
  %10591 = vmatprep.mubr.f32.mxu0 0.0
  %v10592 = vand.u32 %v10252, 4294901760
  %v10593 = vsub.f32 %v10252, %v10592
  %v10594 = vand.u32 %v10593, 4294901760
  %v10595 = vsub.f32 %v10593, %v10594
  %v10596 = vand.u32 %v10595, 4294901760
  %10597 = vmatmul.mubr.f32.gmra.mrb[0].mxu0 %v10596
  %v10598 = vpop.f32.mrb[0].mxu0
  %v10599 = vadd.f32 0.0, %v10598
  %v10600 = vpop.f32.mrb[0].mxu0
  %v10601 = vadd.f32 0.0, %v10600
  %10602 = vmatprep.mubr.f32.mxu0 0.0
  %v10603 = vand.u32 %v10255, 4294901760
  %v10604 = vsub.f32 %v10255, %v10603
  %v10605 = vand.u32 %v10604, 4294901760
  %v10606 = vsub.f32 %v10604, %v10605
  %v10607 = vand.u32 %v10606, 4294901760
  %10608 = vmatmul.mubr.f32.gmra.mrb[0].mxu0 %v10607
  %v10609 = vpop.f32.mrb[0].mxu0
  %v10610 = vadd.f32 0.0, %v10609
  %v10611 = vpop.f32.mrb[0].mxu0
  %v10612 = vadd.f32 0.0, %v10611
  %10613 = vmatprep.mubr.f32.mxu0 0.0
  %v10614 = vand.u32 %v10258, 4294901760
  %v10615 = vsub.f32 %v10258, %v10614
  %v10616 = vand.u32 %v10615, 4294901760
  %v10617 = vsub.f32 %v10615, %v10616
  %v10618 = vand.u32 %v10617, 4294901760
  %10619 = vmatmul.mubr.f32.gmra.mrb[0].mxu0 %v10618
  %v10620 = vpop.f32.mrb[0].mxu0
  %v10621 = vadd.f32 0.0, %v10620
  %v10622 = vpop.f32.mrb[0].mxu0
  %v10623 = vadd.f32 0.0, %v10622
  %10624 = vmatprep.mubr.f32.mxu0 0.0
  %v10625 = vand.u32 %v10261, 4294901760
  %v10626 = vsub.f32 %v10261, %v10625
  %v10627 = vand.u32 %v10626, 4294901760
  %v10628 = vsub.f32 %v10626, %v10627
  %v10629 = vand.u32 %v10628, 4294901760
  %10630 = vmatmul.mubr.f32.gmra.mrb[0].mxu0 %v10629
  %v10631 = vpop.f32.mrb[0].mxu0
  %v10632 = vadd.f32 0.0, %v10631
  %v10633 = vpop.f32.mrb[0].mxu0
  %v10634 = vadd.f32 0.0, %v10633
  %10635 = vmatprep.mubr.f32.mxu0 0.0
  %v10636 = vand.u32 %v10264, 4294901760
  %v10637 = vsub.f32 %v10264, %v10636
  %v10638 = vand.u32 %v10637, 4294901760
  %v10639 = vsub.f32 %v10637, %v10638
  %v10640 = vand.u32 %v10639, 4294901760
  %10641 = vmatmul.mubr.f32.gmra.mrb[0].mxu0 %v10640
  %v10642 = vpop.f32.mrb[0].mxu0
  %v10643 = vadd.f32 0.0, %v10642
  %v10644 = vpop.f32.mrb[0].mxu0
  %v10645 = vadd.f32 0.0, %v10644
  %10646 = vmatprep.mubr.f32.mxu0 0.0
  %v10647 = vand.u32 %v10267, 4294901760
  %v10648 = vsub.f32 %v10267, %v10647
  %v10649 = vand.u32 %v10648, 4294901760
  %v10650 = vsub.f32 %v10648, %v10649
  %v10651 = vand.u32 %v10650, 4294901760
  %10652 = vmatmul.mubr.f32.gmra.mrb[0].mxu0 %v10651
  %v10653 = vpop.f32.mrb[0].mxu0
  %v10654 = vadd.f32 0.0, %v10653
  %v10655 = vpop.f32.mrb[0].mxu0
  %v10656 = vadd.f32 0.0, %v10655
  %10657 = vmatprep.mubr.f32.mxu0 0.0
  %v10658 = vand.u32 %v10270, 4294901760
  %v10659 = vsub.f32 %v10270, %v10658
  %v10660 = vand.u32 %v10659, 4294901760
  %v10661 = vsub.f32 %v10659, %v10660
  %v10662 = vand.u32 %v10661, 4294901760
  %10663 = vmatmul.mubr.f32.gmra.mrb[0].mxu0 %v10662
  %v10664 = vpop.f32.mrb[0].mxu0
  %v10665 = vadd.f32 0.0, %v10664
  %v10666 = vpop.f32.mrb[0].mxu0
  %v10667 = vadd.f32 0.0, %v10666
  %10668 = vmatprep.mubr.f32.mxu0 0.0
  %v10669 = vand.u32 %v10273, 4294901760
  %v10670 = vsub.f32 %v10273, %v10669
  %v10671 = vand.u32 %v10670, 4294901760
  %v10672 = vsub.f32 %v10670, %v10671
  %v10673 = vand.u32 %v10672, 4294901760
  %10674 = vmatmul.mubr.f32.gmra.mrb[0].mxu0 %v10673
  %v10675 = vpop.f32.mrb[0].mxu0
  %v10676 = vadd.f32 0.0, %v10675
  %v10677 = vpop.f32.mrb[0].mxu0
  %v10678 = vadd.f32 0.0, %v10677
  %10679 = vmatprep.mubr.f32.mxu0 0.0
  %v10680 = vand.u32 %v10276, 4294901760
  %v10681 = vsub.f32 %v10276, %v10680
  %v10682 = vand.u32 %v10681, 4294901760
  %v10683 = vsub.f32 %v10681, %v10682
  %v10684 = vand.u32 %v10683, 4294901760
  %10685 = vmatmul.mubr.f32.gmra.mrb[0].mxu0 %v10684
  %v10686 = vpop.f32.mrb[0].mxu0
  %v10687 = vadd.f32 0.0, %v10686
  %v10688 = vpop.f32.mrb[0].mxu0
  %v10689 = vadd.f32 0.0, %v10688
  %10690 = vmatprep.mubr.f32.mxu0 0.0
  %v10691 = vand.u32 %v10279, 4294901760
  %v10692 = vsub.f32 %v10279, %v10691
  %v10693 = vand.u32 %v10692, 4294901760
  %v10694 = vsub.f32 %v10692, %v10693
  %v10695 = vand.u32 %v10694, 4294901760
  %10696 = vmatmul.mubr.f32.gmra.mrb[0].mxu0 %v10695
  %v10697 = vpop.f32.mrb[0].mxu0
  %v10698 = vadd.f32 0.0, %v10697
  %v10699 = vpop.f32.mrb[0].mxu0
  %v10700 = vadd.f32 0.0, %v10699
  %10701 = vdwg.mxu0
  %v10702 = vand.u32 %v10182, 4294901760
  %v10703 = vsub.f32 %v10182, %v10702
  %v10704 = vand.u32 %v10703, 4294901760
  %v10705 = vsub.f32 %v10703, %v10704
  %v10706 = vand.u32 %v10705, 4294901760
  %10707 = vmatprep.subr.mxu0 %v10706
  %v10708 = vand.u32 %v10181, 4294901760
  %v10709 = vsub.f32 %v10181, %v10708
  %v10710 = vand.u32 %v10709, 4294901760
  %v10711 = vsub.f32 %v10709, %v10710
  %v10712 = vand.u32 %v10711, 4294901760
  %10713 = vmatpush1.msra.mxu0 %v10712
  %v10714 = vand.u32 %v10184, 4294901760
  %v10715 = vsub.f32 %v10184, %v10714
  %v10716 = vand.u32 %v10715, 4294901760
  %v10717 = vsub.f32 %v10715, %v10716
  %v10718 = vand.u32 %v10717, 4294901760
  %10719 = vmatprep.subr.mxu0 %v10718
  %v10720 = vand.u32 %v10183, 4294901760
  %v10721 = vsub.f32 %v10183, %v10720
  %v10722 = vand.u32 %v10721, 4294901760
  %v10723 = vsub.f32 %v10721, %v10722
  %v10724 = vand.u32 %v10723, 4294901760
  %10725 = vmatpush1.msra.mxu0 %v10724
  %10726 = vmatprep.subr.mxu0 0.0
  %10727 = vmatpush1.msra.mxu0 0.0
  %10728 = vmatprep.subr.mxu0 0.0
  %10729 = vmatpush1.msra.mxu0 0.0
  %10730 = vmatprep.subr.mxu0 0.0
  %10731 = vmatpush1.msra.mxu0 0.0
  %10732 = vmatprep.subr.mxu0 0.0
  %10733 = vmatpush1.msra.mxu0 0.0
  %10734 = vmatprep.subr.mxu0 0.0
  %10735 = vmatpush1.msra.mxu0 0.0
  %10736 = vmatprep.subr.mxu0 0.0
  %10737 = vmatpush1.msra.mxu0 0.0
  %10738 = vmatprep.subr.mxu0 0.0
  %10739 = vmatpush1.msra.mxu0 0.0
  %10740 = vmatprep.subr.mxu0 0.0
  %10741 = vmatpush1.msra.mxu0 0.0
  %10742 = vmatprep.subr.mxu0 0.0
  %10743 = vmatpush1.msra.mxu0 0.0
  %10744 = vmatprep.subr.mxu0 0.0
  %10745 = vmatpush1.msra.mxu0 0.0
  %10746 = vmatprep.subr.mxu0 0.0
  %10747 = vmatpush1.msra.mxu0 0.0
  %10748 = vmatprep.subr.mxu0 0.0
  %10749 = vmatpush1.msra.mxu0 0.0
  %10750 = vmatprep.subr.mxu0 0.0
  %10751 = vmatpush1.msra.mxu0 0.0
  %10752 = vmatprep.subr.mxu0 0.0
  %10753 = vmatpush1.msra.mxu0 0.0
  %10754 = vmatprep.subr.mxu0 0.0
  %10755 = vmatpush1.msra.mxu0 0.0
  %10756 = vmatprep.subr.mxu0 0.0
  %10757 = vmatpush1.msra.mxu0 0.0
  %10758 = vmatprep.subr.mxu0 0.0
  %10759 = vmatpush1.msra.mxu0 0.0
  %10760 = vmatprep.subr.mxu0 0.0
  %10761 = vmatpush1.msra.mxu0 0.0
  %10762 = vmatprep.subr.mxu0 0.0
  %10763 = vmatpush1.msra.mxu0 0.0
  %10764 = vmatprep.subr.mxu0 0.0
  %10765 = vmatpush1.msra.mxu0 0.0
  %10766 = vmatprep.subr.mxu0 0.0
  %10767 = vmatpush1.msra.mxu0 0.0
  %10768 = vmatprep.subr.mxu0 0.0
  %10769 = vmatpush1.msra.mxu0 0.0
  %10770 = vmatprep.subr.mxu0 0.0
  %10771 = vmatpush1.msra.mxu0 0.0
  %10772 = vmatprep.subr.mxu0 0.0
  %10773 = vmatpush1.msra.mxu0 0.0
  %10774 = vmatprep.subr.mxu0 0.0
  %10775 = vmatpush1.msra.mxu0 0.0
  %10776 = vmatprep.subr.mxu0 0.0
  %10777 = vmatpush1.msra.mxu0 0.0
  %10778 = vmatprep.subr.mxu0 0.0
  %10779 = vmatpush1.msra.mxu0 0.0
  %10780 = vmatprep.subr.mxu0 0.0
  %10781 = vmatpush1.msra.mxu0 0.0
  %10782 = vmatprep.subr.mxu0 0.0
  %10783 = vmatpush1.msra.mxu0 0.0
  %10784 = vmatprep.subr.mxu0 0.0
  %10785 = vmatpush1.msra.mxu0 0.0
  %10786 = vmatprep.mubr.f32.mxu0 0.0
  %v10787 = vand.u32 %v10186, 4294901760
  %10788 = vmatmul.mubr.f32.gmra.mrb[0].mxu0 %v10787
  %v10789 = vpop.f32.mrb[0].mxu0
  %v10790 = vadd.f32 %v10357, %v10789
  %v10791 = vpop.f32.mrb[0].mxu0
  %v10792 = vadd.f32 %v10359, %v10791
  %10793 = vmatprep.mubr.f32.mxu0 0.0
  %v10794 = vand.u32 %v10189, 4294901760
  %10795 = vmatmul.mubr.f32.gmra.mrb[0].mxu0 %v10794
  %v10796 = vpop.f32.mrb[0].mxu0
  %v10797 = vadd.f32 %v10368, %v10796
  %v10798 = vpop.f32.mrb[0].mxu0
  %v10799 = vadd.f32 %v10370, %v10798
  %10800 = vmatprep.mubr.f32.mxu0 0.0
  %v10801 = vand.u32 %v10192, 4294901760
  %10802 = vmatmul.mubr.f32.gmra.mrb[0].mxu0 %v10801
  %v10803 = vpop.f32.mrb[0].mxu0
  %v10804 = vadd.f32 %v10379, %v10803
  %v10805 = vpop.f32.mrb[0].mxu0
  %v10806 = vadd.f32 %v10381, %v10805
  %10807 = vmatprep.mubr.f32.mxu0 0.0
  %v10808 = vand.u32 %v10195, 4294901760
  %10809 = vmatmul.mubr.f32.gmra.mrb[0].mxu0 %v10808
  %v10810 = vpop.f32.mrb[0].mxu0
  %v10811 = vadd.f32 %v10390, %v10810
  %v10812 = vpop.f32.mrb[0].mxu0
  %v10813 = vadd.f32 %v10392, %v10812
  %10814 = vmatprep.mubr.f32.mxu0 0.0
  %v10815 = vand.u32 %v10198, 4294901760
  %10816 = vmatmul.mubr.f32.gmra.mrb[0].mxu0 %v10815
  %v10817 = vpop.f32.mrb[0].mxu0
  %v10818 = vadd.f32 %v10401, %v10817
  %v10819 = vpop.f32.mrb[0].mxu0
  %v10820 = vadd.f32 %v10403, %v10819
  %10821 = vmatprep.mubr.f32.mxu0 0.0
  %v10822 = vand.u32 %v10201, 4294901760
  %10823 = vmatmul.mubr.f32.gmra.mrb[0].mxu0 %v10822
  %v10824 = vpop.f32.mrb[0].mxu0
  %v10825 = vadd.f32 %v10412, %v10824
  %v10826 = vpop.f32.mrb[0].mxu0
  %v10827 = vadd.f32 %v10414, %v10826
  %10828 = vmatprep.mubr.f32.mxu0 0.0
  %v10829 = vand.u32 %v10204, 4294901760
  %10830 = vmatmul.mubr.f32.gmra.mrb[0].mxu0 %v10829
  %v10831 = vpop.f32.mrb[0].mxu0
  %v10832 = vadd.f32 %v10423, %v10831
  %v10833 = vpop.f32.mrb[0].mxu0
  %v10834 = vadd.f32 %v10425, %v10833
  %10835 = vmatprep.mubr.f32.mxu0 0.0
  %v10836 = vand.u32 %v10207, 4294901760
  %10837 = vmatmul.mubr.f32.gmra.mrb[0].mxu0 %v10836
  %v10838 = vpop.f32.mrb[0].mxu0
  %v10839 = vadd.f32 %v10434, %v10838
  %v10840 = vpop.f32.mrb[0].mxu0
  %v10841 = vadd.f32 %v10436, %v10840
  %10842 = vmatprep.mubr.f32.mxu0 0.0
  %v10843 = vand.u32 %v10210, 4294901760
  %10844 = vmatmul.mubr.f32.gmra.mrb[0].mxu0 %v10843
  %v10845 = vpop.f32.mrb[0].mxu0
  %v10846 = vadd.f32 %v10445, %v10845
  %v10847 = vpop.f32.mrb[0].mxu0
  %v10848 = vadd.f32 %v10447, %v10847
  %10849 = vmatprep.mubr.f32.mxu0 0.0
  %v10850 = vand.u32 %v10213, 4294901760
  %10851 = vmatmul.mubr.f32.gmra.mrb[0].mxu0 %v10850
  %v10852 = vpop.f32.mrb[0].mxu0
  %v10853 = vadd.f32 %v10456, %v10852
  %v10854 = vpop.f32.mrb[0].mxu0
  %v10855 = vadd.f32 %v10458, %v10854
  %10856 = vmatprep.mubr.f32.mxu0 0.0
  %v10857 = vand.u32 %v10216, 4294901760
  %10858 = vmatmul.mubr.f32.gmra.mrb[0].mxu0 %v10857
  %v10859 = vpop.f32.mrb[0].mxu0
  %v10860 = vadd.f32 %v10467, %v10859
  %v10861 = vpop.f32.mrb[0].mxu0
  %v10862 = vadd.f32 %v10469, %v10861
  %10863 = vmatprep.mubr.f32.mxu0 0.0
  %v10864 = vand.u32 %v10219, 4294901760
  %10865 = vmatmul.mubr.f32.gmra.mrb[0].mxu0 %v10864
  %v10866 = vpop.f32.mrb[0].mxu0
  %v10867 = vadd.f32 %v10478, %v10866
  %v10868 = vpop.f32.mrb[0].mxu0
  %v10869 = vadd.f32 %v10480, %v10868
  %10870 = vmatprep.mubr.f32.mxu0 0.0
  %v10871 = vand.u32 %v10222, 4294901760
  %10872 = vmatmul.mubr.f32.gmra.mrb[0].mxu0 %v10871
  %v10873 = vpop.f32.mrb[0].mxu0
  %v10874 = vadd.f32 %v10489, %v10873
  %v10875 = vpop.f32.mrb[0].mxu0
  %v10876 = vadd.f32 %v10491, %v10875
  %10877 = vmatprep.mubr.f32.mxu0 0.0
  %v10878 = vand.u32 %v10225, 4294901760
  %10879 = vmatmul.mubr.f32.gmra.mrb[0].mxu0 %v10878
  %v10880 = vpop.f32.mrb[0].mxu0
  %v10881 = vadd.f32 %v10500, %v10880
  %v10882 = vpop.f32.mrb[0].mxu0
  %v10883 = vadd.f32 %v10502, %v10882
  %10884 = vmatprep.mubr.f32.mxu0 0.0
  %v10885 = vand.u32 %v10228, 4294901760
  %10886 = vmatmul.mubr.f32.gmra.mrb[0].mxu0 %v10885
  %v10887 = vpop.f32.mrb[0].mxu0
  %v10888 = vadd.f32 %v10511, %v10887
  %v10889 = vpop.f32.mrb[0].mxu0
  %v10890 = vadd.f32 %v10513, %v10889
  %10891 = vmatprep.mubr.f32.mxu0 0.0
  %v10892 = vand.u32 %v10231, 4294901760
  %10893 = vmatmul.mubr.f32.gmra.mrb[0].mxu0 %v10892
  %v10894 = vpop.f32.mrb[0].mxu0
  %v10895 = vadd.f32 %v10522, %v10894
  %v10896 = vpop.f32.mrb[0].mxu0
  %v10897 = vadd.f32 %v10524, %v10896
  %10898 = vmatprep.mubr.f32.mxu0 0.0
  %v10899 = vand.u32 %v10234, 4294901760
  %10900 = vmatmul.mubr.f32.gmra.mrb[0].mxu0 %v10899
  %v10901 = vpop.f32.mrb[0].mxu0
  %v10902 = vadd.f32 %v10533, %v10901
  %v10903 = vpop.f32.mrb[0].mxu0
  %v10904 = vadd.f32 %v10535, %v10903
  %10905 = vmatprep.mubr.f32.mxu0 0.0
  %v10906 = vand.u32 %v10237, 4294901760
  %10907 = vmatmul.mubr.f32.gmra.mrb[0].mxu0 %v10906
  %v10908 = vpop.f32.mrb[0].mxu0
  %v10909 = vadd.f32 %v10544, %v10908
  %v10910 = vpop.f32.mrb[0].mxu0
  %v10911 = vadd.f32 %v10546, %v10910
  %10912 = vmatprep.mubr.f32.mxu0 0.0
  %v10913 = vand.u32 %v10240, 4294901760
  %10914 = vmatmul.mubr.f32.gmra.mrb[0].mxu0 %v10913
  %v10915 = vpop.f32.mrb[0].mxu0
  %v10916 = vadd.f32 %v10555, %v10915
  %v10917 = vpop.f32.mrb[0].mxu0
  %v10918 = vadd.f32 %v10557, %v10917
  %10919 = vmatprep.mubr.f32.mxu0 0.0
  %v10920 = vand.u32 %v10243, 4294901760
  %10921 = vmatmul.mubr.f32.gmra.mrb[0].mxu0 %v10920
  %v10922 = vpop.f32.mrb[0].mxu0
  %v10923 = vadd.f32 %v10566, %v10922
  %v10924 = vpop.f32.mrb[0].mxu0
  %v10925 = vadd.f32 %v10568, %v10924
  %10926 = vmatprep.mubr.f32.mxu0 0.0
  %v10927 = vand.u32 %v10246, 4294901760
  %10928 = vmatmul.mubr.f32.gmra.mrb[0].mxu0 %v10927
  %v10929 = vpop.f32.mrb[0].mxu0
  %v10930 = vadd.f32 %v10577, %v10929
  %v10931 = vpop.f32.mrb[0].mxu0
  %v10932 = vadd.f32 %v10579, %v10931
  %10933 = vmatprep.mubr.f32.mxu0 0.0
  %v10934 = vand.u32 %v10249, 4294901760
  %10935 = vmatmul.mubr.f32.gmra.mrb[0].mxu0 %v10934
  %v10936 = vpop.f32.mrb[0].mxu0
  %v10937 = vadd.f32 %v10588, %v10936
  %v10938 = vpop.f32.mrb[0].mxu0
  %v10939 = vadd.f32 %v10590, %v10938
  %10940 = vmatprep.mubr.f32.mxu0 0.0
  %v10941 = vand.u32 %v10252, 4294901760
  %10942 = vmatmul.mubr.f32.gmra.mrb[0].mxu0 %v10941
  %v10943 = vpop.f32.mrb[0].mxu0
  %v10944 = vadd.f32 %v10599, %v10943
  %v10945 = vpop.f32.mrb[0].mxu0
  %v10946 = vadd.f32 %v10601, %v10945
  %10947 = vmatprep.mubr.f32.mxu0 0.0
  %v10948 = vand.u32 %v10255, 4294901760
  %10949 = vmatmul.mubr.f32.gmra.mrb[0].mxu0 %v10948
  %v10950 = vpop.f32.mrb[0].mxu0
  %v10951 = vadd.f32 %v10610, %v10950
  %v10952 = vpop.f32.mrb[0].mxu0
  %v10953 = vadd.f32 %v10612, %v10952
  %10954 = vmatprep.mubr.f32.mxu0 0.0
  %v10955 = vand.u32 %v10258, 4294901760
  %10956 = vmatmul.mubr.f32.gmra.mrb[0].mxu0 %v10955
  %v10957 = vpop.f32.mrb[0].mxu0
  %v10958 = vadd.f32 %v10621, %v10957
  %v10959 = vpop.f32.mrb[0].mxu0
  %v10960 = vadd.f32 %v10623, %v10959
  %10961 = vmatprep.mubr.f32.mxu0 0.0
  %v10962 = vand.u32 %v10261, 4294901760
  %10963 = vmatmul.mubr.f32.gmra.mrb[0].mxu0 %v10962
  %v10964 = vpop.f32.mrb[0].mxu0
  %v10965 = vadd.f32 %v10632, %v10964
  %v10966 = vpop.f32.mrb[0].mxu0
  %v10967 = vadd.f32 %v10634, %v10966
  %10968 = vmatprep.mubr.f32.mxu0 0.0
  %v10969 = vand.u32 %v10264, 4294901760
  %10970 = vmatmul.mubr.f32.gmra.mrb[0].mxu0 %v10969
  %v10971 = vpop.f32.mrb[0].mxu0
  %v10972 = vadd.f32 %v10643, %v10971
  %v10973 = vpop.f32.mrb[0].mxu0
  %v10974 = vadd.f32 %v10645, %v10973
  %10975 = vmatprep.mubr.f32.mxu0 0.0
  %v10976 = vand.u32 %v10267, 4294901760
  %10977 = vmatmul.mubr.f32.gmra.mrb[0].mxu0 %v10976
  %v10978 = vpop.f32.mrb[0].mxu0
  %v10979 = vadd.f32 %v10654, %v10978
  %v10980 = vpop.f32.mrb[0].mxu0
  %v10981 = vadd.f32 %v10656, %v10980
  %10982 = vmatprep.mubr.f32.mxu0 0.0
  %v10983 = vand.u32 %v10270, 4294901760
  %10984 = vmatmul.mubr.f32.gmra.mrb[0].mxu0 %v10983
  %v10985 = vpop.f32.mrb[0].mxu0
  %v10986 = vadd.f32 %v10665, %v10985
  %v10987 = vpop.f32.mrb[0].mxu0
  %v10988 = vadd.f32 %v10667, %v10987
  %10989 = vmatprep.mubr.f32.mxu0 0.0
  %v10990 = vand.u32 %v10273, 4294901760
  %10991 = vmatmul.mubr.f32.gmra.mrb[0].mxu0 %v10990
  %v10992 = vpop.f32.mrb[0].mxu0
  %v10993 = vadd.f32 %v10676, %v10992
  %v10994 = vpop.f32.mrb[0].mxu0
  %v10995 = vadd.f32 %v10678, %v10994
  %10996 = vmatprep.mubr.f32.mxu0 0.0
  %v10997 = vand.u32 %v10276, 4294901760
  %10998 = vmatmul.mubr.f32.gmra.mrb[0].mxu0 %v10997
  %v10999 = vpop.f32.mrb[0].mxu0
  %v11000 = vadd.f32 %v10687, %v10999
  %v11001 = vpop.f32.mrb[0].mxu0
  %v11002 = vadd.f32 %v10689, %v11001
  %11003 = vmatprep.mubr.f32.mxu0 0.0
  %v11004 = vand.u32 %v10279, 4294901760
  %11005 = vmatmul.mubr.f32.gmra.mrb[0].mxu0 %v11004
  %v11006 = vpop.f32.mrb[0].mxu0
  %v11007 = vadd.f32 %v10698, %v11006
  %v11008 = vpop.f32.mrb[0].mxu0
  %v11009 = vadd.f32 %v10700, %v11008
  %11010 = vdwg.mxu0
  %v11011 = vand.u32 %v10182, 4294901760
  %v11012 = vsub.f32 %v10182, %v11011
  %11013 = vmatprep.subr.mxu0 %v11012
  %v11014 = vand.u32 %v10181, 4294901760
  %v11015 = vsub.f32 %v10181, %v11014
  %11016 = vmatpush1.msra.mxu0 %v11015
  %v11017 = vand.u32 %v10184, 4294901760
  %v11018 = vsub.f32 %v10184, %v11017
  %11019 = vmatprep.subr.mxu0 %v11018
  %v11020 = vand.u32 %v10183, 4294901760
  %v11021 = vsub.f32 %v10183, %v11020
  %11022 = vmatpush1.msra.mxu0 %v11021
  %11023 = vmatprep.subr.mxu0 0.0
  %11024 = vmatpush1.msra.mxu0 0.0
  %11025 = vmatprep.subr.mxu0 0.0
  %11026 = vmatpush1.msra.mxu0 0.0
  %11027 = vmatprep.subr.mxu0 0.0
  %11028 = vmatpush1.msra.mxu0 0.0
  %11029 = vmatprep.subr.mxu0 0.0
  %11030 = vmatpush1.msra.mxu0 0.0
  %11031 = vmatprep.subr.mxu0 0.0
  %11032 = vmatpush1.msra.mxu0 0.0
  %11033 = vmatprep.subr.mxu0 0.0
  %11034 = vmatpush1.msra.mxu0 0.0
  %11035 = vmatprep.subr.mxu0 0.0
  %11036 = vmatpush1.msra.mxu0 0.0
  %11037 = vmatprep.subr.mxu0 0.0
  %11038 = vmatpush1.msra.mxu0 0.0
  %11039 = vmatprep.subr.mxu0 0.0
  %11040 = vmatpush1.msra.mxu0 0.0
  %11041 = vmatprep.subr.mxu0 0.0
  %11042 = vmatpush1.msra.mxu0 0.0
  %11043 = vmatprep.subr.mxu0 0.0
  %11044 = vmatpush1.msra.mxu0 0.0
  %11045 = vmatprep.subr.mxu0 0.0
  %11046 = vmatpush1.msra.mxu0 0.0
  %11047 = vmatprep.subr.mxu0 0.0
  %11048 = vmatpush1.msra.mxu0 0.0
  %11049 = vmatprep.subr.mxu0 0.0
  %11050 = vmatpush1.msra.mxu0 0.0
  %11051 = vmatprep.subr.mxu0 0.0
  %11052 = vmatpush1.msra.mxu0 0.0
  %11053 = vmatprep.subr.mxu0 0.0
  %11054 = vmatpush1.msra.mxu0 0.0
  %11055 = vmatprep.subr.mxu0 0.0
  %11056 = vmatpush1.msra.mxu0 0.0
  %11057 = vmatprep.subr.mxu0 0.0
  %11058 = vmatpush1.msra.mxu0 0.0
  %11059 = vmatprep.subr.mxu0 0.0
  %11060 = vmatpush1.msra.mxu0 0.0
  %11061 = vmatprep.subr.mxu0 0.0
  %11062 = vmatpush1.msra.mxu0 0.0
  %11063 = vmatprep.subr.mxu0 0.0
  %11064 = vmatpush1.msra.mxu0 0.0
  %11065 = vmatprep.subr.mxu0 0.0
  %11066 = vmatpush1.msra.mxu0 0.0
  %11067 = vmatprep.subr.mxu0 0.0
  %11068 = vmatpush1.msra.mxu0 0.0
  %11069 = vmatprep.subr.mxu0 0.0
  %11070 = vmatpush1.msra.mxu0 0.0
  %11071 = vmatprep.subr.mxu0 0.0
  %11072 = vmatpush1.msra.mxu0 0.0
  %11073 = vmatprep.subr.mxu0 0.0
  %11074 = vmatpush1.msra.mxu0 0.0
  %11075 = vmatprep.subr.mxu0 0.0
  %11076 = vmatpush1.msra.mxu0 0.0
  %11077 = vmatprep.subr.mxu0 0.0
  %11078 = vmatpush1.msra.mxu0 0.0
  %11079 = vmatprep.subr.mxu0 0.0
  %11080 = vmatpush1.msra.mxu0 0.0
  %11081 = vmatprep.subr.mxu0 0.0
  %11082 = vmatpush1.msra.mxu0 0.0
  %11083 = vmatprep.mubr.f32.mxu0 0.0
  %v11084 = vand.u32 %v10186, 4294901760
  %v11085 = vsub.f32 %v10186, %v11084
  %11086 = vmatmul.mubr.f32.gmra.mrb[0].mxu0 %v11085
  %v11087 = vpop.f32.mrb[0].mxu0
  %v11088 = vadd.f32 %v10790, %v11087
  %v11089 = vpop.f32.mrb[0].mxu0
  %v11090 = vadd.f32 %v10792, %v11089
  %11091 = vmatprep.mubr.f32.mxu0 0.0
  %v11092 = vand.u32 %v10189, 4294901760
  %v11093 = vsub.f32 %v10189, %v11092
  %11094 = vmatmul.mubr.f32.gmra.mrb[0].mxu0 %v11093
  %v11095 = vpop.f32.mrb[0].mxu0
  %v11096 = vadd.f32 %v10797, %v11095
  %v11097 = vpop.f32.mrb[0].mxu0
  %v11098 = vadd.f32 %v10799, %v11097
  %11099 = vmatprep.mubr.f32.mxu0 0.0
  %v11100 = vand.u32 %v10192, 4294901760
  %v11101 = vsub.f32 %v10192, %v11100
  %11102 = vmatmul.mubr.f32.gmra.mrb[0].mxu0 %v11101
  %v11103 = vpop.f32.mrb[0].mxu0
  %v11104 = vadd.f32 %v10804, %v11103
  %v11105 = vpop.f32.mrb[0].mxu0
  %v11106 = vadd.f32 %v10806, %v11105
  %11107 = vmatprep.mubr.f32.mxu0 0.0
  %v11108 = vand.u32 %v10195, 4294901760
  %v11109 = vsub.f32 %v10195, %v11108
  %11110 = vmatmul.mubr.f32.gmra.mrb[0].mxu0 %v11109
  %v11111 = vpop.f32.mrb[0].mxu0
  %v11112 = vadd.f32 %v10811, %v11111
  %v11113 = vpop.f32.mrb[0].mxu0
  %v11114 = vadd.f32 %v10813, %v11113
  %11115 = vmatprep.mubr.f32.mxu0 0.0
  %v11116 = vand.u32 %v10198, 4294901760
  %v11117 = vsub.f32 %v10198, %v11116
  %11118 = vmatmul.mubr.f32.gmra.mrb[0].mxu0 %v11117
  %v11119 = vpop.f32.mrb[0].mxu0
  %v11120 = vadd.f32 %v10818, %v11119
  %v11121 = vpop.f32.mrb[0].mxu0
  %v11122 = vadd.f32 %v10820, %v11121
  %11123 = vmatprep.mubr.f32.mxu0 0.0
  %v11124 = vand.u32 %v10201, 4294901760
  %v11125 = vsub.f32 %v10201, %v11124
  %11126 = vmatmul.mubr.f32.gmra.mrb[0].mxu0 %v11125
  %v11127 = vpop.f32.mrb[0].mxu0
  %v11128 = vadd.f32 %v10825, %v11127
  %v11129 = vpop.f32.mrb[0].mxu0
  %v11130 = vadd.f32 %v10827, %v11129
  %11131 = vmatprep.mubr.f32.mxu0 0.0
  %v11132 = vand.u32 %v10204, 4294901760
  %v11133 = vsub.f32 %v10204, %v11132
  %11134 = vmatmul.mubr.f32.gmra.mrb[0].mxu0 %v11133
  %v11135 = vpop.f32.mrb[0].mxu0
  %v11136 = vadd.f32 %v10832, %v11135
  %v11137 = vpop.f32.mrb[0].mxu0
  %v11138 = vadd.f32 %v10834, %v11137
  %11139 = vmatprep.mubr.f32.mxu0 0.0
  %v11140 = vand.u32 %v10207, 4294901760
  %v11141 = vsub.f32 %v10207, %v11140
  %11142 = vmatmul.mubr.f32.gmra.mrb[0].mxu0 %v11141
  %v11143 = vpop.f32.mrb[0].mxu0
  %v11144 = vadd.f32 %v10839, %v11143
  %v11145 = vpop.f32.mrb[0].mxu0
  %v11146 = vadd.f32 %v10841, %v11145
  %11147 = vmatprep.mubr.f32.mxu0 0.0
  %v11148 = vand.u32 %v10210, 4294901760
  %v11149 = vsub.f32 %v10210, %v11148
  %11150 = vmatmul.mubr.f32.gmra.mrb[0].mxu0 %v11149
  %v11151 = vpop.f32.mrb[0].mxu0
  %v11152 = vadd.f32 %v10846, %v11151
  %v11153 = vpop.f32.mrb[0].mxu0
  %v11154 = vadd.f32 %v10848, %v11153
  %11155 = vmatprep.mubr.f32.mxu0 0.0
  %v11156 = vand.u32 %v10213, 4294901760
  %v11157 = vsub.f32 %v10213, %v11156
  %11158 = vmatmul.mubr.f32.gmra.mrb[0].mxu0 %v11157
  %v11159 = vpop.f32.mrb[0].mxu0
  %v11160 = vadd.f32 %v10853, %v11159
  %v11161 = vpop.f32.mrb[0].mxu0
  %v11162 = vadd.f32 %v10855, %v11161
  %11163 = vmatprep.mubr.f32.mxu0 0.0
  %v11164 = vand.u32 %v10216, 4294901760
  %v11165 = vsub.f32 %v10216, %v11164
  %11166 = vmatmul.mubr.f32.gmra.mrb[0].mxu0 %v11165
  %v11167 = vpop.f32.mrb[0].mxu0
  %v11168 = vadd.f32 %v10860, %v11167
  %v11169 = vpop.f32.mrb[0].mxu0
  %v11170 = vadd.f32 %v10862, %v11169
  %11171 = vmatprep.mubr.f32.mxu0 0.0
  %v11172 = vand.u32 %v10219, 4294901760
  %v11173 = vsub.f32 %v10219, %v11172
  %11174 = vmatmul.mubr.f32.gmra.mrb[0].mxu0 %v11173
  %v11175 = vpop.f32.mrb[0].mxu0
  %v11176 = vadd.f32 %v10867, %v11175
  %v11177 = vpop.f32.mrb[0].mxu0
  %v11178 = vadd.f32 %v10869, %v11177
  %11179 = vmatprep.mubr.f32.mxu0 0.0
  %v11180 = vand.u32 %v10222, 4294901760
  %v11181 = vsub.f32 %v10222, %v11180
  %11182 = vmatmul.mubr.f32.gmra.mrb[0].mxu0 %v11181
  %v11183 = vpop.f32.mrb[0].mxu0
  %v11184 = vadd.f32 %v10874, %v11183
  %v11185 = vpop.f32.mrb[0].mxu0
  %v11186 = vadd.f32 %v10876, %v11185
  %11187 = vmatprep.mubr.f32.mxu0 0.0
  %v11188 = vand.u32 %v10225, 4294901760
  %v11189 = vsub.f32 %v10225, %v11188
  %11190 = vmatmul.mubr.f32.gmra.mrb[0].mxu0 %v11189
  %v11191 = vpop.f32.mrb[0].mxu0
  %v11192 = vadd.f32 %v10881, %v11191
  %v11193 = vpop.f32.mrb[0].mxu0
  %v11194 = vadd.f32 %v10883, %v11193
  %11195 = vmatprep.mubr.f32.mxu0 0.0
  %v11196 = vand.u32 %v10228, 4294901760
  %v11197 = vsub.f32 %v10228, %v11196
  %11198 = vmatmul.mubr.f32.gmra.mrb[0].mxu0 %v11197
  %v11199 = vpop.f32.mrb[0].mxu0
  %v11200 = vadd.f32 %v10888, %v11199
  %v11201 = vpop.f32.mrb[0].mxu0
  %v11202 = vadd.f32 %v10890, %v11201
  %11203 = vmatprep.mubr.f32.mxu0 0.0
  %v11204 = vand.u32 %v10231, 4294901760
  %v11205 = vsub.f32 %v10231, %v11204
  %11206 = vmatmul.mubr.f32.gmra.mrb[0].mxu0 %v11205
  %v11207 = vpop.f32.mrb[0].mxu0
  %v11208 = vadd.f32 %v10895, %v11207
  %v11209 = vpop.f32.mrb[0].mxu0
  %v11210 = vadd.f32 %v10897, %v11209
  %11211 = vmatprep.mubr.f32.mxu0 0.0
  %v11212 = vand.u32 %v10234, 4294901760
  %v11213 = vsub.f32 %v10234, %v11212
  %11214 = vmatmul.mubr.f32.gmra.mrb[0].mxu0 %v11213
  %v11215 = vpop.f32.mrb[0].mxu0
  %v11216 = vadd.f32 %v10902, %v11215
  %v11217 = vpop.f32.mrb[0].mxu0
  %v11218 = vadd.f32 %v10904, %v11217
  %11219 = vmatprep.mubr.f32.mxu0 0.0
  %v11220 = vand.u32 %v10237, 4294901760
  %v11221 = vsub.f32 %v10237, %v11220
  %11222 = vmatmul.mubr.f32.gmra.mrb[0].mxu0 %v11221
  %v11223 = vpop.f32.mrb[0].mxu0
  %v11224 = vadd.f32 %v10909, %v11223
  %v11225 = vpop.f32.mrb[0].mxu0
  %v11226 = vadd.f32 %v10911, %v11225
  %11227 = vmatprep.mubr.f32.mxu0 0.0
  %v11228 = vand.u32 %v10240, 4294901760
  %v11229 = vsub.f32 %v10240, %v11228
  %11230 = vmatmul.mubr.f32.gmra.mrb[0].mxu0 %v11229
  %v11231 = vpop.f32.mrb[0].mxu0
  %v11232 = vadd.f32 %v10916, %v11231
  %v11233 = vpop.f32.mrb[0].mxu0
  %v11234 = vadd.f32 %v10918, %v11233
  %11235 = vmatprep.mubr.f32.mxu0 0.0
  %v11236 = vand.u32 %v10243, 4294901760
  %v11237 = vsub.f32 %v10243, %v11236
  %11238 = vmatmul.mubr.f32.gmra.mrb[0].mxu0 %v11237
  %v11239 = vpop.f32.mrb[0].mxu0
  %v11240 = vadd.f32 %v10923, %v11239
  %v11241 = vpop.f32.mrb[0].mxu0
  %v11242 = vadd.f32 %v10925, %v11241
  %11243 = vmatprep.mubr.f32.mxu0 0.0
  %v11244 = vand.u32 %v10246, 4294901760
  %v11245 = vsub.f32 %v10246, %v11244
  %11246 = vmatmul.mubr.f32.gmra.mrb[0].mxu0 %v11245
  %v11247 = vpop.f32.mrb[0].mxu0
  %v11248 = vadd.f32 %v10930, %v11247
  %v11249 = vpop.f32.mrb[0].mxu0
  %v11250 = vadd.f32 %v10932, %v11249
  %11251 = vmatprep.mubr.f32.mxu0 0.0
  %v11252 = vand.u32 %v10249, 4294901760
  %v11253 = vsub.f32 %v10249, %v11252
  %11254 = vmatmul.mubr.f32.gmra.mrb[0].mxu0 %v11253
  %v11255 = vpop.f32.mrb[0].mxu0
  %v11256 = vadd.f32 %v10937, %v11255
  %v11257 = vpop.f32.mrb[0].mxu0
  %v11258 = vadd.f32 %v10939, %v11257
  %11259 = vmatprep.mubr.f32.mxu0 0.0
  %v11260 = vand.u32 %v10252, 4294901760
  %v11261 = vsub.f32 %v10252, %v11260
  %11262 = vmatmul.mubr.f32.gmra.mrb[0].mxu0 %v11261
  %v11263 = vpop.f32.mrb[0].mxu0
  %v11264 = vadd.f32 %v10944, %v11263
  %v11265 = vpop.f32.mrb[0].mxu0
  %v11266 = vadd.f32 %v10946, %v11265
  %11267 = vmatprep.mubr.f32.mxu0 0.0
  %v11268 = vand.u32 %v10255, 4294901760
  %v11269 = vsub.f32 %v10255, %v11268
  %11270 = vmatmul.mubr.f32.gmra.mrb[0].mxu0 %v11269
  %v11271 = vpop.f32.mrb[0].mxu0
  %v11272 = vadd.f32 %v10951, %v11271
  %v11273 = vpop.f32.mrb[0].mxu0
  %v11274 = vadd.f32 %v10953, %v11273
  %11275 = vmatprep.mubr.f32.mxu0 0.0
  %v11276 = vand.u32 %v10258, 4294901760
  %v11277 = vsub.f32 %v10258, %v11276
  %11278 = vmatmul.mubr.f32.gmra.mrb[0].mxu0 %v11277
  %v11279 = vpop.f32.mrb[0].mxu0
  %v11280 = vadd.f32 %v10958, %v11279
  %v11281 = vpop.f32.mrb[0].mxu0
  %v11282 = vadd.f32 %v10960, %v11281
  %11283 = vmatprep.mubr.f32.mxu0 0.0
  %v11284 = vand.u32 %v10261, 4294901760
  %v11285 = vsub.f32 %v10261, %v11284
  %11286 = vmatmul.mubr.f32.gmra.mrb[0].mxu0 %v11285
  %v11287 = vpop.f32.mrb[0].mxu0
  %v11288 = vadd.f32 %v10965, %v11287
  %v11289 = vpop.f32.mrb[0].mxu0
  %v11290 = vadd.f32 %v10967, %v11289
  %11291 = vmatprep.mubr.f32.mxu0 0.0
  %v11292 = vand.u32 %v10264, 4294901760
  %v11293 = vsub.f32 %v10264, %v11292
  %11294 = vmatmul.mubr.f32.gmra.mrb[0].mxu0 %v11293
  %v11295 = vpop.f32.mrb[0].mxu0
  %v11296 = vadd.f32 %v10972, %v11295
  %v11297 = vpop.f32.mrb[0].mxu0
  %v11298 = vadd.f32 %v10974, %v11297
  %11299 = vmatprep.mubr.f32.mxu0 0.0
  %v11300 = vand.u32 %v10267, 4294901760
  %v11301 = vsub.f32 %v10267, %v11300
  %11302 = vmatmul.mubr.f32.gmra.mrb[0].mxu0 %v11301
  %v11303 = vpop.f32.mrb[0].mxu0
  %v11304 = vadd.f32 %v10979, %v11303
  %v11305 = vpop.f32.mrb[0].mxu0
  %v11306 = vadd.f32 %v10981, %v11305
  %11307 = vmatprep.mubr.f32.mxu0 0.0
  %v11308 = vand.u32 %v10270, 4294901760
  %v11309 = vsub.f32 %v10270, %v11308
  %11310 = vmatmul.mubr.f32.gmra.mrb[0].mxu0 %v11309
  %v11311 = vpop.f32.mrb[0].mxu0
  %v11312 = vadd.f32 %v10986, %v11311
  %v11313 = vpop.f32.mrb[0].mxu0
  %v11314 = vadd.f32 %v10988, %v11313
  %11315 = vmatprep.mubr.f32.mxu0 0.0
  %v11316 = vand.u32 %v10273, 4294901760
  %v11317 = vsub.f32 %v10273, %v11316
  %11318 = vmatmul.mubr.f32.gmra.mrb[0].mxu0 %v11317
  %v11319 = vpop.f32.mrb[0].mxu0
  %v11320 = vadd.f32 %v10993, %v11319
  %v11321 = vpop.f32.mrb[0].mxu0
  %v11322 = vadd.f32 %v10995, %v11321
  %11323 = vmatprep.mubr.f32.mxu0 0.0
  %v11324 = vand.u32 %v10276, 4294901760
  %v11325 = vsub.f32 %v10276, %v11324
  %11326 = vmatmul.mubr.f32.gmra.mrb[0].mxu0 %v11325
  %v11327 = vpop.f32.mrb[0].mxu0
  %v11328 = vadd.f32 %v11000, %v11327
  %v11329 = vpop.f32.mrb[0].mxu0
  %v11330 = vadd.f32 %v11002, %v11329
  %11331 = vmatprep.mubr.f32.mxu0 0.0
  %v11332 = vand.u32 %v10279, 4294901760
  %v11333 = vsub.f32 %v10279, %v11332
  %11334 = vmatmul.mubr.f32.gmra.mrb[0].mxu0 %v11333
  %v11335 = vpop.f32.mrb[0].mxu0
  %v11336 = vadd.f32 %v11007, %v11335
  %v11337 = vpop.f32.mrb[0].mxu0
  %v11338 = vadd.f32 %v11009, %v11337
  %11339 = vdwg.mxu0
  %v11340 = vand.u32 %v10182, 4294901760
  %11341 = vmatprep.subr.mxu0 %v11340
  %v11342 = vand.u32 %v10181, 4294901760
  %11343 = vmatpush1.msra.mxu0 %v11342
  %v11344 = vand.u32 %v10184, 4294901760
  %11345 = vmatprep.subr.mxu0 %v11344
  %v11346 = vand.u32 %v10183, 4294901760
  %11347 = vmatpush1.msra.mxu0 %v11346
  %11348 = vmatprep.subr.mxu0 0.0
  %11349 = vmatpush1.msra.mxu0 0.0
  %11350 = vmatprep.subr.mxu0 0.0
  %11351 = vmatpush1.msra.mxu0 0.0
  %11352 = vmatprep.subr.mxu0 0.0
  %11353 = vmatpush1.msra.mxu0 0.0
  %11354 = vmatprep.subr.mxu0 0.0
  %11355 = vmatpush1.msra.mxu0 0.0
  %11356 = vmatprep.subr.mxu0 0.0
  %11357 = vmatpush1.msra.mxu0 0.0
  %11358 = vmatprep.subr.mxu0 0.0
  %11359 = vmatpush1.msra.mxu0 0.0
  %11360 = vmatprep.subr.mxu0 0.0
  %11361 = vmatpush1.msra.mxu0 0.0
  %11362 = vmatprep.subr.mxu0 0.0
  %11363 = vmatpush1.msra.mxu0 0.0
  %11364 = vmatprep.subr.mxu0 0.0
  %11365 = vmatpush1.msra.mxu0 0.0
  %11366 = vmatprep.subr.mxu0 0.0
  %11367 = vmatpush1.msra.mxu0 0.0
  %11368 = vmatprep.subr.mxu0 0.0
  %11369 = vmatpush1.msra.mxu0 0.0
  %11370 = vmatprep.subr.mxu0 0.0
  %11371 = vmatpush1.msra.mxu0 0.0
  %11372 = vmatprep.subr.mxu0 0.0
  %11373 = vmatpush1.msra.mxu0 0.0
  %11374 = vmatprep.subr.mxu0 0.0
  %11375 = vmatpush1.msra.mxu0 0.0
  %11376 = vmatprep.subr.mxu0 0.0
  %11377 = vmatpush1.msra.mxu0 0.0
  %11378 = vmatprep.subr.mxu0 0.0
  %11379 = vmatpush1.msra.mxu0 0.0
  %11380 = vmatprep.subr.mxu0 0.0
  %11381 = vmatpush1.msra.mxu0 0.0
  %11382 = vmatprep.subr.mxu0 0.0
  %11383 = vmatpush1.msra.mxu0 0.0
  %11384 = vmatprep.subr.mxu0 0.0
  %11385 = vmatpush1.msra.mxu0 0.0
  %11386 = vmatprep.subr.mxu0 0.0
  %11387 = vmatpush1.msra.mxu0 0.0
  %11388 = vmatprep.subr.mxu0 0.0
  %11389 = vmatpush1.msra.mxu0 0.0
  %11390 = vmatprep.subr.mxu0 0.0
  %11391 = vmatpush1.msra.mxu0 0.0
  %11392 = vmatprep.subr.mxu0 0.0
  %11393 = vmatpush1.msra.mxu0 0.0
  %11394 = vmatprep.subr.mxu0 0.0
  %11395 = vmatpush1.msra.mxu0 0.0
  %11396 = vmatprep.subr.mxu0 0.0
  %11397 = vmatpush1.msra.mxu0 0.0
  %11398 = vmatprep.subr.mxu0 0.0
  %11399 = vmatpush1.msra.mxu0 0.0
  %11400 = vmatprep.subr.mxu0 0.0
  %11401 = vmatpush1.msra.mxu0 0.0
  %11402 = vmatprep.subr.mxu0 0.0
  %11403 = vmatpush1.msra.mxu0 0.0
  %11404 = vmatprep.subr.mxu0 0.0
  %11405 = vmatpush1.msra.mxu0 0.0
  %11406 = vmatprep.subr.mxu0 0.0
  %11407 = vmatpush1.msra.mxu0 0.0
  %11408 = vmatprep.mubr.f32.mxu0 0.0
  %v11409 = vand.u32 %v10186, 4294901760
  %v11410 = vsub.f32 %v10186, %v11409
  %v11411 = vand.u32 %v11410, 4294901760
  %11412 = vmatmul.mubr.f32.gmra.mrb[0].mxu0 %v11411
  %v11413 = vpop.f32.mrb[0].mxu0
  %v11414 = vadd.f32 %v11088, %v11413
  %v11415 = vpop.f32.mrb[0].mxu0
  %v11416 = vadd.f32 %v11090, %v11415
  %11417 = vmatprep.mubr.f32.mxu0 0.0
  %v11418 = vand.u32 %v10189, 4294901760
  %v11419 = vsub.f32 %v10189, %v11418
  %v11420 = vand.u32 %v11419, 4294901760
  %11421 = vmatmul.mubr.f32.gmra.mrb[0].mxu0 %v11420
  %v11422 = vpop.f32.mrb[0].mxu0
  %v11423 = vadd.f32 %v11096, %v11422
  %v11424 = vpop.f32.mrb[0].mxu0
  %v11425 = vadd.f32 %v11098, %v11424
  %11426 = vmatprep.mubr.f32.mxu0 0.0
  %v11427 = vand.u32 %v10192, 4294901760
  %v11428 = vsub.f32 %v10192, %v11427
  %v11429 = vand.u32 %v11428, 4294901760
  %11430 = vmatmul.mubr.f32.gmra.mrb[0].mxu0 %v11429
  %v11431 = vpop.f32.mrb[0].mxu0
  %v11432 = vadd.f32 %v11104, %v11431
  %v11433 = vpop.f32.mrb[0].mxu0
  %v11434 = vadd.f32 %v11106, %v11433
  %11435 = vmatprep.mubr.f32.mxu0 0.0
  %v11436 = vand.u32 %v10195, 4294901760
  %v11437 = vsub.f32 %v10195, %v11436
  %v11438 = vand.u32 %v11437, 4294901760
  %11439 = vmatmul.mubr.f32.gmra.mrb[0].mxu0 %v11438
  %v11440 = vpop.f32.mrb[0].mxu0
  %v11441 = vadd.f32 %v11112, %v11440
  %v11442 = vpop.f32.mrb[0].mxu0
  %v11443 = vadd.f32 %v11114, %v11442
  %11444 = vmatprep.mubr.f32.mxu0 0.0
  %v11445 = vand.u32 %v10198, 4294901760
  %v11446 = vsub.f32 %v10198, %v11445
  %v11447 = vand.u32 %v11446, 4294901760
  %11448 = vmatmul.mubr.f32.gmra.mrb[0].mxu0 %v11447
  %v11449 = vpop.f32.mrb[0].mxu0
  %v11450 = vadd.f32 %v11120, %v11449
  %v11451 = vpop.f32.mrb[0].mxu0
  %v11452 = vadd.f32 %v11122, %v11451
  %11453 = vmatprep.mubr.f32.mxu0 0.0
  %v11454 = vand.u32 %v10201, 4294901760
  %v11455 = vsub.f32 %v10201, %v11454
  %v11456 = vand.u32 %v11455, 4294901760
  %11457 = vmatmul.mubr.f32.gmra.mrb[0].mxu0 %v11456
  %v11458 = vpop.f32.mrb[0].mxu0
  %v11459 = vadd.f32 %v11128, %v11458
  %v11460 = vpop.f32.mrb[0].mxu0
  %v11461 = vadd.f32 %v11130, %v11460
  %11462 = vmatprep.mubr.f32.mxu0 0.0
  %v11463 = vand.u32 %v10204, 4294901760
  %v11464 = vsub.f32 %v10204, %v11463
  %v11465 = vand.u32 %v11464, 4294901760
  %11466 = vmatmul.mubr.f32.gmra.mrb[0].mxu0 %v11465
  %v11467 = vpop.f32.mrb[0].mxu0
  %v11468 = vadd.f32 %v11136, %v11467
  %v11469 = vpop.f32.mrb[0].mxu0
  %v11470 = vadd.f32 %v11138, %v11469
  %11471 = vmatprep.mubr.f32.mxu0 0.0
  %v11472 = vand.u32 %v10207, 4294901760
  %v11473 = vsub.f32 %v10207, %v11472
  %v11474 = vand.u32 %v11473, 4294901760
  %11475 = vmatmul.mubr.f32.gmra.mrb[0].mxu0 %v11474
  %v11476 = vpop.f32.mrb[0].mxu0
  %v11477 = vadd.f32 %v11144, %v11476
  %v11478 = vpop.f32.mrb[0].mxu0
  %v11479 = vadd.f32 %v11146, %v11478
  %11480 = vmatprep.mubr.f32.mxu0 0.0
  %v11481 = vand.u32 %v10210, 4294901760
  %v11482 = vsub.f32 %v10210, %v11481
  %v11483 = vand.u32 %v11482, 4294901760
  %11484 = vmatmul.mubr.f32.gmra.mrb[0].mxu0 %v11483
  %v11485 = vpop.f32.mrb[0].mxu0
  %v11486 = vadd.f32 %v11152, %v11485
  %v11487 = vpop.f32.mrb[0].mxu0
  %v11488 = vadd.f32 %v11154, %v11487
  %11489 = vmatprep.mubr.f32.mxu0 0.0
  %v11490 = vand.u32 %v10213, 4294901760
  %v11491 = vsub.f32 %v10213, %v11490
  %v11492 = vand.u32 %v11491, 4294901760
  %11493 = vmatmul.mubr.f32.gmra.mrb[0].mxu0 %v11492
  %v11494 = vpop.f32.mrb[0].mxu0
  %v11495 = vadd.f32 %v11160, %v11494
  %v11496 = vpop.f32.mrb[0].mxu0
  %v11497 = vadd.f32 %v11162, %v11496
  %11498 = vmatprep.mubr.f32.mxu0 0.0
  %v11499 = vand.u32 %v10216, 4294901760
  %v11500 = vsub.f32 %v10216, %v11499
  %v11501 = vand.u32 %v11500, 4294901760
  %11502 = vmatmul.mubr.f32.gmra.mrb[0].mxu0 %v11501
  %v11503 = vpop.f32.mrb[0].mxu0
  %v11504 = vadd.f32 %v11168, %v11503
  %v11505 = vpop.f32.mrb[0].mxu0
  %v11506 = vadd.f32 %v11170, %v11505
  %11507 = vmatprep.mubr.f32.mxu0 0.0
  %v11508 = vand.u32 %v10219, 4294901760
  %v11509 = vsub.f32 %v10219, %v11508
  %v11510 = vand.u32 %v11509, 4294901760
  %11511 = vmatmul.mubr.f32.gmra.mrb[0].mxu0 %v11510
  %v11512 = vpop.f32.mrb[0].mxu0
  %v11513 = vadd.f32 %v11176, %v11512
  %v11514 = vpop.f32.mrb[0].mxu0
  %v11515 = vadd.f32 %v11178, %v11514
  %11516 = vmatprep.mubr.f32.mxu0 0.0
  %v11517 = vand.u32 %v10222, 4294901760
  %v11518 = vsub.f32 %v10222, %v11517
  %v11519 = vand.u32 %v11518, 4294901760
  %11520 = vmatmul.mubr.f32.gmra.mrb[0].mxu0 %v11519
  %v11521 = vpop.f32.mrb[0].mxu0
  %v11522 = vadd.f32 %v11184, %v11521
  %v11523 = vpop.f32.mrb[0].mxu0
  %v11524 = vadd.f32 %v11186, %v11523
  %11525 = vmatprep.mubr.f32.mxu0 0.0
  %v11526 = vand.u32 %v10225, 4294901760
  %v11527 = vsub.f32 %v10225, %v11526
  %v11528 = vand.u32 %v11527, 4294901760
  %11529 = vmatmul.mubr.f32.gmra.mrb[0].mxu0 %v11528
  %v11530 = vpop.f32.mrb[0].mxu0
  %v11531 = vadd.f32 %v11192, %v11530
  %v11532 = vpop.f32.mrb[0].mxu0
  %v11533 = vadd.f32 %v11194, %v11532
  %11534 = vmatprep.mubr.f32.mxu0 0.0
  %v11535 = vand.u32 %v10228, 4294901760
  %v11536 = vsub.f32 %v10228, %v11535
  %v11537 = vand.u32 %v11536, 4294901760
  %11538 = vmatmul.mubr.f32.gmra.mrb[0].mxu0 %v11537
  %v11539 = vpop.f32.mrb[0].mxu0
  %v11540 = vadd.f32 %v11200, %v11539
  %v11541 = vpop.f32.mrb[0].mxu0
  %v11542 = vadd.f32 %v11202, %v11541
  %11543 = vmatprep.mubr.f32.mxu0 0.0
  %v11544 = vand.u32 %v10231, 4294901760
  %v11545 = vsub.f32 %v10231, %v11544
  %v11546 = vand.u32 %v11545, 4294901760
  %11547 = vmatmul.mubr.f32.gmra.mrb[0].mxu0 %v11546
  %v11548 = vpop.f32.mrb[0].mxu0
  %v11549 = vadd.f32 %v11208, %v11548
  %v11550 = vpop.f32.mrb[0].mxu0
  %v11551 = vadd.f32 %v11210, %v11550
  %11552 = vmatprep.mubr.f32.mxu0 0.0
  %v11553 = vand.u32 %v10234, 4294901760
  %v11554 = vsub.f32 %v10234, %v11553
  %v11555 = vand.u32 %v11554, 4294901760
  %11556 = vmatmul.mubr.f32.gmra.mrb[0].mxu0 %v11555
  %v11557 = vpop.f32.mrb[0].mxu0
  %v11558 = vadd.f32 %v11216, %v11557
  %v11559 = vpop.f32.mrb[0].mxu0
  %v11560 = vadd.f32 %v11218, %v11559
  %11561 = vmatprep.mubr.f32.mxu0 0.0
  %v11562 = vand.u32 %v10237, 4294901760
  %v11563 = vsub.f32 %v10237, %v11562
  %v11564 = vand.u32 %v11563, 4294901760
  %11565 = vmatmul.mubr.f32.gmra.mrb[0].mxu0 %v11564
  %v11566 = vpop.f32.mrb[0].mxu0
  %v11567 = vadd.f32 %v11224, %v11566
  %v11568 = vpop.f32.mrb[0].mxu0
  %v11569 = vadd.f32 %v11226, %v11568
  %11570 = vmatprep.mubr.f32.mxu0 0.0
  %v11571 = vand.u32 %v10240, 4294901760
  %v11572 = vsub.f32 %v10240, %v11571
  %v11573 = vand.u32 %v11572, 4294901760
  %11574 = vmatmul.mubr.f32.gmra.mrb[0].mxu0 %v11573
  %v11575 = vpop.f32.mrb[0].mxu0
  %v11576 = vadd.f32 %v11232, %v11575
  %v11577 = vpop.f32.mrb[0].mxu0
  %v11578 = vadd.f32 %v11234, %v11577
  %11579 = vmatprep.mubr.f32.mxu0 0.0
  %v11580 = vand.u32 %v10243, 4294901760
  %v11581 = vsub.f32 %v10243, %v11580
  %v11582 = vand.u32 %v11581, 4294901760
  %11583 = vmatmul.mubr.f32.gmra.mrb[0].mxu0 %v11582
  %v11584 = vpop.f32.mrb[0].mxu0
  %v11585 = vadd.f32 %v11240, %v11584
  %v11586 = vpop.f32.mrb[0].mxu0
  %v11587 = vadd.f32 %v11242, %v11586
  %11588 = vmatprep.mubr.f32.mxu0 0.0
  %v11589 = vand.u32 %v10246, 4294901760
  %v11590 = vsub.f32 %v10246, %v11589
  %v11591 = vand.u32 %v11590, 4294901760
  %11592 = vmatmul.mubr.f32.gmra.mrb[0].mxu0 %v11591
  %v11593 = vpop.f32.mrb[0].mxu0
  %v11594 = vadd.f32 %v11248, %v11593
  %v11595 = vpop.f32.mrb[0].mxu0
  %v11596 = vadd.f32 %v11250, %v11595
  %11597 = vmatprep.mubr.f32.mxu0 0.0
  %v11598 = vand.u32 %v10249, 4294901760
  %v11599 = vsub.f32 %v10249, %v11598
  %v11600 = vand.u32 %v11599, 4294901760
  %11601 = vmatmul.mubr.f32.gmra.mrb[0].mxu0 %v11600
  %v11602 = vpop.f32.mrb[0].mxu0
  %v11603 = vadd.f32 %v11256, %v11602
  %v11604 = vpop.f32.mrb[0].mxu0
  %v11605 = vadd.f32 %v11258, %v11604
  %11606 = vmatprep.mubr.f32.mxu0 0.0
  %v11607 = vand.u32 %v10252, 4294901760
  %v11608 = vsub.f32 %v10252, %v11607
  %v11609 = vand.u32 %v11608, 4294901760
  %11610 = vmatmul.mubr.f32.gmra.mrb[0].mxu0 %v11609
  %v11611 = vpop.f32.mrb[0].mxu0
  %v11612 = vadd.f32 %v11264, %v11611
  %v11613 = vpop.f32.mrb[0].mxu0
  %v11614 = vadd.f32 %v11266, %v11613
  %11615 = vmatprep.mubr.f32.mxu0 0.0
  %v11616 = vand.u32 %v10255, 4294901760
  %v11617 = vsub.f32 %v10255, %v11616
  %v11618 = vand.u32 %v11617, 4294901760
  %11619 = vmatmul.mubr.f32.gmra.mrb[0].mxu0 %v11618
  %v11620 = vpop.f32.mrb[0].mxu0
  %v11621 = vadd.f32 %v11272, %v11620
  %v11622 = vpop.f32.mrb[0].mxu0
  %v11623 = vadd.f32 %v11274, %v11622
  %11624 = vmatprep.mubr.f32.mxu0 0.0
  %v11625 = vand.u32 %v10258, 4294901760
  %v11626 = vsub.f32 %v10258, %v11625
  %v11627 = vand.u32 %v11626, 4294901760
  %11628 = vmatmul.mubr.f32.gmra.mrb[0].mxu0 %v11627
  %v11629 = vpop.f32.mrb[0].mxu0
  %v11630 = vadd.f32 %v11280, %v11629
  %v11631 = vpop.f32.mrb[0].mxu0
  %v11632 = vadd.f32 %v11282, %v11631
  %11633 = vmatprep.mubr.f32.mxu0 0.0
  %v11634 = vand.u32 %v10261, 4294901760
  %v11635 = vsub.f32 %v10261, %v11634
  %v11636 = vand.u32 %v11635, 4294901760
  %11637 = vmatmul.mubr.f32.gmra.mrb[0].mxu0 %v11636
  %v11638 = vpop.f32.mrb[0].mxu0
  %v11639 = vadd.f32 %v11288, %v11638
  %v11640 = vpop.f32.mrb[0].mxu0
  %v11641 = vadd.f32 %v11290, %v11640
  %11642 = vmatprep.mubr.f32.mxu0 0.0
  %v11643 = vand.u32 %v10264, 4294901760
  %v11644 = vsub.f32 %v10264, %v11643
  %v11645 = vand.u32 %v11644, 4294901760
  %11646 = vmatmul.mubr.f32.gmra.mrb[0].mxu0 %v11645
  %v11647 = vpop.f32.mrb[0].mxu0
  %v11648 = vadd.f32 %v11296, %v11647
  %v11649 = vpop.f32.mrb[0].mxu0
  %v11650 = vadd.f32 %v11298, %v11649
  %11651 = vmatprep.mubr.f32.mxu0 0.0
  %v11652 = vand.u32 %v10267, 4294901760
  %v11653 = vsub.f32 %v10267, %v11652
  %v11654 = vand.u32 %v11653, 4294901760
  %11655 = vmatmul.mubr.f32.gmra.mrb[0].mxu0 %v11654
  %v11656 = vpop.f32.mrb[0].mxu0
  %v11657 = vadd.f32 %v11304, %v11656
  %v11658 = vpop.f32.mrb[0].mxu0
  %v11659 = vadd.f32 %v11306, %v11658
  %11660 = vmatprep.mubr.f32.mxu0 0.0
  %v11661 = vand.u32 %v10270, 4294901760
  %v11662 = vsub.f32 %v10270, %v11661
  %v11663 = vand.u32 %v11662, 4294901760
  %11664 = vmatmul.mubr.f32.gmra.mrb[0].mxu0 %v11663
  %v11665 = vpop.f32.mrb[0].mxu0
  %v11666 = vadd.f32 %v11312, %v11665
  %v11667 = vpop.f32.mrb[0].mxu0
  %v11668 = vadd.f32 %v11314, %v11667
  %11669 = vmatprep.mubr.f32.mxu0 0.0
  %v11670 = vand.u32 %v10273, 4294901760
  %v11671 = vsub.f32 %v10273, %v11670
  %v11672 = vand.u32 %v11671, 4294901760
  %11673 = vmatmul.mubr.f32.gmra.mrb[0].mxu0 %v11672
  %v11674 = vpop.f32.mrb[0].mxu0
  %v11675 = vadd.f32 %v11320, %v11674
  %v11676 = vpop.f32.mrb[0].mxu0
  %v11677 = vadd.f32 %v11322, %v11676
  %11678 = vmatprep.mubr.f32.mxu0 0.0
  %v11679 = vand.u32 %v10276, 4294901760
  %v11680 = vsub.f32 %v10276, %v11679
  %v11681 = vand.u32 %v11680, 4294901760
  %11682 = vmatmul.mubr.f32.gmra.mrb[0].mxu0 %v11681
  %v11683 = vpop.f32.mrb[0].mxu0
  %v11684 = vadd.f32 %v11328, %v11683
  %v11685 = vpop.f32.mrb[0].mxu0
  %v11686 = vadd.f32 %v11330, %v11685
  %11687 = vmatprep.mubr.f32.mxu0 0.0
  %v11688 = vand.u32 %v10279, 4294901760
  %v11689 = vsub.f32 %v10279, %v11688
  %v11690 = vand.u32 %v11689, 4294901760
  %11691 = vmatmul.mubr.f32.gmra.mrb[0].mxu0 %v11690
  %v11692 = vpop.f32.mrb[0].mxu0
  %v11693 = vadd.f32 %v11336, %v11692
  %v11694 = vpop.f32.mrb[0].mxu0
  %v11695 = vadd.f32 %v11338, %v11694
  %11696 = vdwg.mxu0
  %v11697 = vand.u32 %v10182, 4294901760
  %v11698 = vsub.f32 %v10182, %v11697
  %v11699 = vand.u32 %v11698, 4294901760
  %11700 = vmatprep.subr.mxu0 %v11699
  %v11701 = vand.u32 %v10181, 4294901760
  %v11702 = vsub.f32 %v10181, %v11701
  %v11703 = vand.u32 %v11702, 4294901760
  %11704 = vmatpush1.msra.mxu0 %v11703
  %v11705 = vand.u32 %v10184, 4294901760
  %v11706 = vsub.f32 %v10184, %v11705
  %v11707 = vand.u32 %v11706, 4294901760
  %11708 = vmatprep.subr.mxu0 %v11707
  %v11709 = vand.u32 %v10183, 4294901760
  %v11710 = vsub.f32 %v10183, %v11709
  %v11711 = vand.u32 %v11710, 4294901760
  %11712 = vmatpush1.msra.mxu0 %v11711
  %11713 = vmatprep.subr.mxu0 0.0
  %11714 = vmatpush1.msra.mxu0 0.0
  %11715 = vmatprep.subr.mxu0 0.0
  %11716 = vmatpush1.msra.mxu0 0.0
  %11717 = vmatprep.subr.mxu0 0.0
  %11718 = vmatpush1.msra.mxu0 0.0
  %11719 = vmatprep.subr.mxu0 0.0
  %11720 = vmatpush1.msra.mxu0 0.0
  %11721 = vmatprep.subr.mxu0 0.0
  %11722 = vmatpush1.msra.mxu0 0.0
  %11723 = vmatprep.subr.mxu0 0.0
  %11724 = vmatpush1.msra.mxu0 0.0
  %11725 = vmatprep.subr.mxu0 0.0
  %11726 = vmatpush1.msra.mxu0 0.0
  %11727 = vmatprep.subr.mxu0 0.0
  %11728 = vmatpush1.msra.mxu0 0.0
  %11729 = vmatprep.subr.mxu0 0.0
  %11730 = vmatpush1.msra.mxu0 0.0
  %11731 = vmatprep.subr.mxu0 0.0
  %11732 = vmatpush1.msra.mxu0 0.0
  %11733 = vmatprep.subr.mxu0 0.0
  %11734 = vmatpush1.msra.mxu0 0.0
  %11735 = vmatprep.subr.mxu0 0.0
  %11736 = vmatpush1.msra.mxu0 0.0
  %11737 = vmatprep.subr.mxu0 0.0
  %11738 = vmatpush1.msra.mxu0 0.0
  %11739 = vmatprep.subr.mxu0 0.0
  %11740 = vmatpush1.msra.mxu0 0.0
  %11741 = vmatprep.subr.mxu0 0.0
  %11742 = vmatpush1.msra.mxu0 0.0
  %11743 = vmatprep.subr.mxu0 0.0
  %11744 = vmatpush1.msra.mxu0 0.0
  %11745 = vmatprep.subr.mxu0 0.0
  %11746 = vmatpush1.msra.mxu0 0.0
  %11747 = vmatprep.subr.mxu0 0.0
  %11748 = vmatpush1.msra.mxu0 0.0
  %11749 = vmatprep.subr.mxu0 0.0
  %11750 = vmatpush1.msra.mxu0 0.0
  %11751 = vmatprep.subr.mxu0 0.0
  %11752 = vmatpush1.msra.mxu0 0.0
  %11753 = vmatprep.subr.mxu0 0.0
  %11754 = vmatpush1.msra.mxu0 0.0
  %11755 = vmatprep.subr.mxu0 0.0
  %11756 = vmatpush1.msra.mxu0 0.0
  %11757 = vmatprep.subr.mxu0 0.0
  %11758 = vmatpush1.msra.mxu0 0.0
  %11759 = vmatprep.subr.mxu0 0.0
  %11760 = vmatpush1.msra.mxu0 0.0
  %11761 = vmatprep.subr.mxu0 0.0
  %11762 = vmatpush1.msra.mxu0 0.0
  %11763 = vmatprep.subr.mxu0 0.0
  %11764 = vmatpush1.msra.mxu0 0.0
  %11765 = vmatprep.subr.mxu0 0.0
  %11766 = vmatpush1.msra.mxu0 0.0
  %11767 = vmatprep.subr.mxu0 0.0
  %11768 = vmatpush1.msra.mxu0 0.0
  %11769 = vmatprep.subr.mxu0 0.0
  %11770 = vmatpush1.msra.mxu0 0.0
  %11771 = vmatprep.subr.mxu0 0.0
  %11772 = vmatpush1.msra.mxu0 0.0
  %11773 = vmatprep.mubr.f32.mxu0 0.0
  %v11774 = vand.u32 %v10186, 4294901760
  %11775 = vmatmul.mubr.f32.gmra.mrb[0].mxu0 %v11774
  %v11776 = vpop.f32.mrb[0].mxu0
  %v11777 = vadd.f32 %v11414, %v11776
  %v11778 = vpop.f32.mrb[0].mxu0
  %v11779 = vadd.f32 %v11416, %v11778
  %11780 = vmatprep.mubr.f32.mxu0 0.0
  %v11781 = vand.u32 %v10189, 4294901760
  %11782 = vmatmul.mubr.f32.gmra.mrb[0].mxu0 %v11781
  %v11783 = vpop.f32.mrb[0].mxu0
  %v11784 = vadd.f32 %v11423, %v11783
  %v11785 = vpop.f32.mrb[0].mxu0
  %v11786 = vadd.f32 %v11425, %v11785
  %11787 = vmatprep.mubr.f32.mxu0 0.0
  %v11788 = vand.u32 %v10192, 4294901760
  %11789 = vmatmul.mubr.f32.gmra.mrb[0].mxu0 %v11788
  %v11790 = vpop.f32.mrb[0].mxu0
  %v11791 = vadd.f32 %v11432, %v11790
  %v11792 = vpop.f32.mrb[0].mxu0
  %v11793 = vadd.f32 %v11434, %v11792
  %11794 = vmatprep.mubr.f32.mxu0 0.0
  %v11795 = vand.u32 %v10195, 4294901760
  %11796 = vmatmul.mubr.f32.gmra.mrb[0].mxu0 %v11795
  %v11797 = vpop.f32.mrb[0].mxu0
  %v11798 = vadd.f32 %v11441, %v11797
  %v11799 = vpop.f32.mrb[0].mxu0
  %v11800 = vadd.f32 %v11443, %v11799
  %11801 = vmatprep.mubr.f32.mxu0 0.0
  %v11802 = vand.u32 %v10198, 4294901760
  %11803 = vmatmul.mubr.f32.gmra.mrb[0].mxu0 %v11802
  %v11804 = vpop.f32.mrb[0].mxu0
  %v11805 = vadd.f32 %v11450, %v11804
  %v11806 = vpop.f32.mrb[0].mxu0
  %v11807 = vadd.f32 %v11452, %v11806
  %11808 = vmatprep.mubr.f32.mxu0 0.0
  %v11809 = vand.u32 %v10201, 4294901760
  %11810 = vmatmul.mubr.f32.gmra.mrb[0].mxu0 %v11809
  %v11811 = vpop.f32.mrb[0].mxu0
  %v11812 = vadd.f32 %v11459, %v11811
  %v11813 = vpop.f32.mrb[0].mxu0
  %v11814 = vadd.f32 %v11461, %v11813
  %11815 = vmatprep.mubr.f32.mxu0 0.0
  %v11816 = vand.u32 %v10204, 4294901760
  %11817 = vmatmul.mubr.f32.gmra.mrb[0].mxu0 %v11816
  %v11818 = vpop.f32.mrb[0].mxu0
  %v11819 = vadd.f32 %v11468, %v11818
  %v11820 = vpop.f32.mrb[0].mxu0
  %v11821 = vadd.f32 %v11470, %v11820
  %11822 = vmatprep.mubr.f32.mxu0 0.0
  %v11823 = vand.u32 %v10207, 4294901760
  %11824 = vmatmul.mubr.f32.gmra.mrb[0].mxu0 %v11823
  %v11825 = vpop.f32.mrb[0].mxu0
  %v11826 = vadd.f32 %v11477, %v11825
  %v11827 = vpop.f32.mrb[0].mxu0
  %v11828 = vadd.f32 %v11479, %v11827
  %11829 = vmatprep.mubr.f32.mxu0 0.0
  %v11830 = vand.u32 %v10210, 4294901760
  %11831 = vmatmul.mubr.f32.gmra.mrb[0].mxu0 %v11830
  %v11832 = vpop.f32.mrb[0].mxu0
  %v11833 = vadd.f32 %v11486, %v11832
  %v11834 = vpop.f32.mrb[0].mxu0
  %v11835 = vadd.f32 %v11488, %v11834
  %11836 = vmatprep.mubr.f32.mxu0 0.0
  %v11837 = vand.u32 %v10213, 4294901760
  %11838 = vmatmul.mubr.f32.gmra.mrb[0].mxu0 %v11837
  %v11839 = vpop.f32.mrb[0].mxu0
  %v11840 = vadd.f32 %v11495, %v11839
  %v11841 = vpop.f32.mrb[0].mxu0
  %v11842 = vadd.f32 %v11497, %v11841
  %11843 = vmatprep.mubr.f32.mxu0 0.0
  %v11844 = vand.u32 %v10216, 4294901760
  %11845 = vmatmul.mubr.f32.gmra.mrb[0].mxu0 %v11844
  %v11846 = vpop.f32.mrb[0].mxu0
  %v11847 = vadd.f32 %v11504, %v11846
  %v11848 = vpop.f32.mrb[0].mxu0
  %v11849 = vadd.f32 %v11506, %v11848
  %11850 = vmatprep.mubr.f32.mxu0 0.0
  %v11851 = vand.u32 %v10219, 4294901760
  %11852 = vmatmul.mubr.f32.gmra.mrb[0].mxu0 %v11851
  %v11853 = vpop.f32.mrb[0].mxu0
  %v11854 = vadd.f32 %v11513, %v11853
  %v11855 = vpop.f32.mrb[0].mxu0
  %v11856 = vadd.f32 %v11515, %v11855
  %11857 = vmatprep.mubr.f32.mxu0 0.0
  %v11858 = vand.u32 %v10222, 4294901760
  %11859 = vmatmul.mubr.f32.gmra.mrb[0].mxu0 %v11858
  %v11860 = vpop.f32.mrb[0].mxu0
  %v11861 = vadd.f32 %v11522, %v11860
  %v11862 = vpop.f32.mrb[0].mxu0
  %v11863 = vadd.f32 %v11524, %v11862
  %11864 = vmatprep.mubr.f32.mxu0 0.0
  %v11865 = vand.u32 %v10225, 4294901760
  %11866 = vmatmul.mubr.f32.gmra.mrb[0].mxu0 %v11865
  %v11867 = vpop.f32.mrb[0].mxu0
  %v11868 = vadd.f32 %v11531, %v11867
  %v11869 = vpop.f32.mrb[0].mxu0
  %v11870 = vadd.f32 %v11533, %v11869
  %11871 = vmatprep.mubr.f32.mxu0 0.0
  %v11872 = vand.u32 %v10228, 4294901760
  %11873 = vmatmul.mubr.f32.gmra.mrb[0].mxu0 %v11872
  %v11874 = vpop.f32.mrb[0].mxu0
  %v11875 = vadd.f32 %v11540, %v11874
  %v11876 = vpop.f32.mrb[0].mxu0
  %v11877 = vadd.f32 %v11542, %v11876
  %11878 = vmatprep.mubr.f32.mxu0 0.0
  %v11879 = vand.u32 %v10231, 4294901760
  %11880 = vmatmul.mubr.f32.gmra.mrb[0].mxu0 %v11879
  %v11881 = vpop.f32.mrb[0].mxu0
  %v11882 = vadd.f32 %v11549, %v11881
  %v11883 = vpop.f32.mrb[0].mxu0
  %v11884 = vadd.f32 %v11551, %v11883
  %11885 = vmatprep.mubr.f32.mxu0 0.0
  %v11886 = vand.u32 %v10234, 4294901760
  %11887 = vmatmul.mubr.f32.gmra.mrb[0].mxu0 %v11886
  %v11888 = vpop.f32.mrb[0].mxu0
  %v11889 = vadd.f32 %v11558, %v11888
  %v11890 = vpop.f32.mrb[0].mxu0
  %v11891 = vadd.f32 %v11560, %v11890
  %11892 = vmatprep.mubr.f32.mxu0 0.0
  %v11893 = vand.u32 %v10237, 4294901760
  %11894 = vmatmul.mubr.f32.gmra.mrb[0].mxu0 %v11893
  %v11895 = vpop.f32.mrb[0].mxu0
  %v11896 = vadd.f32 %v11567, %v11895
  %v11897 = vpop.f32.mrb[0].mxu0
  %v11898 = vadd.f32 %v11569, %v11897
  %11899 = vmatprep.mubr.f32.mxu0 0.0
  %v11900 = vand.u32 %v10240, 4294901760
  %11901 = vmatmul.mubr.f32.gmra.mrb[0].mxu0 %v11900
  %v11902 = vpop.f32.mrb[0].mxu0
  %v11903 = vadd.f32 %v11576, %v11902
  %v11904 = vpop.f32.mrb[0].mxu0
  %v11905 = vadd.f32 %v11578, %v11904
  %11906 = vmatprep.mubr.f32.mxu0 0.0
  %v11907 = vand.u32 %v10243, 4294901760
  %11908 = vmatmul.mubr.f32.gmra.mrb[0].mxu0 %v11907
  %v11909 = vpop.f32.mrb[0].mxu0
  %v11910 = vadd.f32 %v11585, %v11909
  %v11911 = vpop.f32.mrb[0].mxu0
  %v11912 = vadd.f32 %v11587, %v11911
  %11913 = vmatprep.mubr.f32.mxu0 0.0
  %v11914 = vand.u32 %v10246, 4294901760
  %11915 = vmatmul.mubr.f32.gmra.mrb[0].mxu0 %v11914
  %v11916 = vpop.f32.mrb[0].mxu0
  %v11917 = vadd.f32 %v11594, %v11916
  %v11918 = vpop.f32.mrb[0].mxu0
  %v11919 = vadd.f32 %v11596, %v11918
  %11920 = vmatprep.mubr.f32.mxu0 0.0
  %v11921 = vand.u32 %v10249, 4294901760
  %11922 = vmatmul.mubr.f32.gmra.mrb[0].mxu0 %v11921
  %v11923 = vpop.f32.mrb[0].mxu0
  %v11924 = vadd.f32 %v11603, %v11923
  %v11925 = vpop.f32.mrb[0].mxu0
  %v11926 = vadd.f32 %v11605, %v11925
  %11927 = vmatprep.mubr.f32.mxu0 0.0
  %v11928 = vand.u32 %v10252, 4294901760
  %11929 = vmatmul.mubr.f32.gmra.mrb[0].mxu0 %v11928
  %v11930 = vpop.f32.mrb[0].mxu0
  %v11931 = vadd.f32 %v11612, %v11930
  %v11932 = vpop.f32.mrb[0].mxu0
  %v11933 = vadd.f32 %v11614, %v11932
  %11934 = vmatprep.mubr.f32.mxu0 0.0
  %v11935 = vand.u32 %v10255, 4294901760
  %11936 = vmatmul.mubr.f32.gmra.mrb[0].mxu0 %v11935
  %v11937 = vpop.f32.mrb[0].mxu0
  %v11938 = vadd.f32 %v11621, %v11937
  %v11939 = vpop.f32.mrb[0].mxu0
  %v11940 = vadd.f32 %v11623, %v11939
  %11941 = vmatprep.mubr.f32.mxu0 0.0
  %v11942 = vand.u32 %v10258, 4294901760
  %11943 = vmatmul.mubr.f32.gmra.mrb[0].mxu0 %v11942
  %v11944 = vpop.f32.mrb[0].mxu0
  %v11945 = vadd.f32 %v11630, %v11944
  %v11946 = vpop.f32.mrb[0].mxu0
  %v11947 = vadd.f32 %v11632, %v11946
  %11948 = vmatprep.mubr.f32.mxu0 0.0
  %v11949 = vand.u32 %v10261, 4294901760
  %11950 = vmatmul.mubr.f32.gmra.mrb[0].mxu0 %v11949
  %v11951 = vpop.f32.mrb[0].mxu0
  %v11952 = vadd.f32 %v11639, %v11951
  %v11953 = vpop.f32.mrb[0].mxu0
  %v11954 = vadd.f32 %v11641, %v11953
  %11955 = vmatprep.mubr.f32.mxu0 0.0
  %v11956 = vand.u32 %v10264, 4294901760
  %11957 = vmatmul.mubr.f32.gmra.mrb[0].mxu0 %v11956
  %v11958 = vpop.f32.mrb[0].mxu0
  %v11959 = vadd.f32 %v11648, %v11958
  %v11960 = vpop.f32.mrb[0].mxu0
  %v11961 = vadd.f32 %v11650, %v11960
  %11962 = vmatprep.mubr.f32.mxu0 0.0
  %v11963 = vand.u32 %v10267, 4294901760
  %11964 = vmatmul.mubr.f32.gmra.mrb[0].mxu0 %v11963
  %v11965 = vpop.f32.mrb[0].mxu0
  %v11966 = vadd.f32 %v11657, %v11965
  %v11967 = vpop.f32.mrb[0].mxu0
  %v11968 = vadd.f32 %v11659, %v11967
  %11969 = vmatprep.mubr.f32.mxu0 0.0
  %v11970 = vand.u32 %v10270, 4294901760
  %11971 = vmatmul.mubr.f32.gmra.mrb[0].mxu0 %v11970
  %v11972 = vpop.f32.mrb[0].mxu0
  %v11973 = vadd.f32 %v11666, %v11972
  %v11974 = vpop.f32.mrb[0].mxu0
  %v11975 = vadd.f32 %v11668, %v11974
  %11976 = vmatprep.mubr.f32.mxu0 0.0
  %v11977 = vand.u32 %v10273, 4294901760
  %11978 = vmatmul.mubr.f32.gmra.mrb[0].mxu0 %v11977
  %v11979 = vpop.f32.mrb[0].mxu0
  %v11980 = vadd.f32 %v11675, %v11979
  %v11981 = vpop.f32.mrb[0].mxu0
  %v11982 = vadd.f32 %v11677, %v11981
  %11983 = vmatprep.mubr.f32.mxu0 0.0
  %v11984 = vand.u32 %v10276, 4294901760
  %11985 = vmatmul.mubr.f32.gmra.mrb[0].mxu0 %v11984
  %v11986 = vpop.f32.mrb[0].mxu0
  %v11987 = vadd.f32 %v11684, %v11986
  %v11988 = vpop.f32.mrb[0].mxu0
  %v11989 = vadd.f32 %v11686, %v11988
  %11990 = vmatprep.mubr.f32.mxu0 0.0
  %v11991 = vand.u32 %v10279, 4294901760
  %11992 = vmatmul.mubr.f32.gmra.mrb[0].mxu0 %v11991
  %v11993 = vpop.f32.mrb[0].mxu0
  %v11994 = vadd.f32 %v11693, %v11993
  %v11995 = vpop.f32.mrb[0].mxu0
  %v11996 = vadd.f32 %v11695, %v11995
  %11997 = vdwg.mxu0
  %v11998 = vand.u32 %v10182, 4294901760
  %11999 = vmatprep.subr.mxu0 %v11998
  %v12000 = vand.u32 %v10181, 4294901760
  %12001 = vmatpush1.msra.mxu0 %v12000
  %v12002 = vand.u32 %v10184, 4294901760
  %12003 = vmatprep.subr.mxu0 %v12002
  %v12004 = vand.u32 %v10183, 4294901760
  %12005 = vmatpush1.msra.mxu0 %v12004
  %12006 = vmatprep.subr.mxu0 0.0
  %12007 = vmatpush1.msra.mxu0 0.0
  %12008 = vmatprep.subr.mxu0 0.0
  %12009 = vmatpush1.msra.mxu0 0.0
  %12010 = vmatprep.subr.mxu0 0.0
  %12011 = vmatpush1.msra.mxu0 0.0
  %12012 = vmatprep.subr.mxu0 0.0
  %12013 = vmatpush1.msra.mxu0 0.0
  %12014 = vmatprep.subr.mxu0 0.0
  %12015 = vmatpush1.msra.mxu0 0.0
  %12016 = vmatprep.subr.mxu0 0.0
  %12017 = vmatpush1.msra.mxu0 0.0
  %12018 = vmatprep.subr.mxu0 0.0
  %12019 = vmatpush1.msra.mxu0 0.0
  %12020 = vmatprep.subr.mxu0 0.0
  %12021 = vmatpush1.msra.mxu0 0.0
  %12022 = vmatprep.subr.mxu0 0.0
  %12023 = vmatpush1.msra.mxu0 0.0
  %12024 = vmatprep.subr.mxu0 0.0
  %12025 = vmatpush1.msra.mxu0 0.0
  %12026 = vmatprep.subr.mxu0 0.0
  %12027 = vmatpush1.msra.mxu0 0.0
  %12028 = vmatprep.subr.mxu0 0.0
  %12029 = vmatpush1.msra.mxu0 0.0
  %12030 = vmatprep.subr.mxu0 0.0
  %12031 = vmatpush1.msra.mxu0 0.0
  %12032 = vmatprep.subr.mxu0 0.0
  %12033 = vmatpush1.msra.mxu0 0.0
  %12034 = vmatprep.subr.mxu0 0.0
  %12035 = vmatpush1.msra.mxu0 0.0
  %12036 = vmatprep.subr.mxu0 0.0
  %12037 = vmatpush1.msra.mxu0 0.0
  %12038 = vmatprep.subr.mxu0 0.0
  %12039 = vmatpush1.msra.mxu0 0.0
  %12040 = vmatprep.subr.mxu0 0.0
  %12041 = vmatpush1.msra.mxu0 0.0
  %12042 = vmatprep.subr.mxu0 0.0
  %12043 = vmatpush1.msra.mxu0 0.0
  %12044 = vmatprep.subr.mxu0 0.0
  %12045 = vmatpush1.msra.mxu0 0.0
  %12046 = vmatprep.subr.mxu0 0.0
  %12047 = vmatpush1.msra.mxu0 0.0
  %12048 = vmatprep.subr.mxu0 0.0
  %12049 = vmatpush1.msra.mxu0 0.0
  %12050 = vmatprep.subr.mxu0 0.0
  %12051 = vmatpush1.msra.mxu0 0.0
  %12052 = vmatprep.subr.mxu0 0.0
  %12053 = vmatpush1.msra.mxu0 0.0
  %12054 = vmatprep.subr.mxu0 0.0
  %12055 = vmatpush1.msra.mxu0 0.0
  %12056 = vmatprep.subr.mxu0 0.0
  %12057 = vmatpush1.msra.mxu0 0.0
  %12058 = vmatprep.subr.mxu0 0.0
  %12059 = vmatpush1.msra.mxu0 0.0
  %12060 = vmatprep.subr.mxu0 0.0
  %12061 = vmatpush1.msra.mxu0 0.0
  %12062 = vmatprep.subr.mxu0 0.0
  %12063 = vmatpush1.msra.mxu0 0.0
  %12064 = vmatprep.subr.mxu0 0.0
  %12065 = vmatpush1.msra.mxu0 0.0
  %12066 = vmatprep.mubr.f32.mxu0 0.0
  %v12067 = vand.u32 %v10186, 4294901760
  %12068 = vmatmul.mubr.f32.gmra.mrb[0].mxu0 %v12067
  %v12069 = vpop.f32.mrb[0].mxu0
  %v12070 = vadd.f32 %v11777, %v12069
  %v12071 = vpop.f32.mrb[0].mxu0
  %v12072 = vadd.f32 %v11779, %v12071
  %12073 = vmatprep.mubr.f32.mxu0 0.0
  %v12074 = vand.u32 %v10189, 4294901760
  %12075 = vmatmul.mubr.f32.gmra.mrb[0].mxu0 %v12074
  %v12076 = vpop.f32.mrb[0].mxu0
  %v12077 = vadd.f32 %v11784, %v12076
  %v12078 = vpop.f32.mrb[0].mxu0
  %v12079 = vadd.f32 %v11786, %v12078
  %12080 = vmatprep.mubr.f32.mxu0 0.0
  %v12081 = vand.u32 %v10192, 4294901760
  %12082 = vmatmul.mubr.f32.gmra.mrb[0].mxu0 %v12081
  %v12083 = vpop.f32.mrb[0].mxu0
  %v12084 = vadd.f32 %v11791, %v12083
  %v12085 = vpop.f32.mrb[0].mxu0
  %v12086 = vadd.f32 %v11793, %v12085
  %12087 = vmatprep.mubr.f32.mxu0 0.0
  %v12088 = vand.u32 %v10195, 4294901760
  %12089 = vmatmul.mubr.f32.gmra.mrb[0].mxu0 %v12088
  %v12090 = vpop.f32.mrb[0].mxu0
  %v12091 = vadd.f32 %v11798, %v12090
  %v12092 = vpop.f32.mrb[0].mxu0
  %v12093 = vadd.f32 %v11800, %v12092
  %12094 = vmatprep.mubr.f32.mxu0 0.0
  %v12095 = vand.u32 %v10198, 4294901760
  %12096 = vmatmul.mubr.f32.gmra.mrb[0].mxu0 %v12095
  %v12097 = vpop.f32.mrb[0].mxu0
  %v12098 = vadd.f32 %v11805, %v12097
  %v12099 = vpop.f32.mrb[0].mxu0
  %v12100 = vadd.f32 %v11807, %v12099
  %12101 = vmatprep.mubr.f32.mxu0 0.0
  %v12102 = vand.u32 %v10201, 4294901760
  %12103 = vmatmul.mubr.f32.gmra.mrb[0].mxu0 %v12102
  %v12104 = vpop.f32.mrb[0].mxu0
  %v12105 = vadd.f32 %v11812, %v12104
  %v12106 = vpop.f32.mrb[0].mxu0
  %v12107 = vadd.f32 %v11814, %v12106
  %12108 = vmatprep.mubr.f32.mxu0 0.0
  %v12109 = vand.u32 %v10204, 4294901760
  %12110 = vmatmul.mubr.f32.gmra.mrb[0].mxu0 %v12109
  %v12111 = vpop.f32.mrb[0].mxu0
  %v12112 = vadd.f32 %v11819, %v12111
  %v12113 = vpop.f32.mrb[0].mxu0
  %v12114 = vadd.f32 %v11821, %v12113
  %12115 = vmatprep.mubr.f32.mxu0 0.0
  %v12116 = vand.u32 %v10207, 4294901760
  %12117 = vmatmul.mubr.f32.gmra.mrb[0].mxu0 %v12116
  %v12118 = vpop.f32.mrb[0].mxu0
  %v12119 = vadd.f32 %v11826, %v12118
  %v12120 = vpop.f32.mrb[0].mxu0
  %v12121 = vadd.f32 %v11828, %v12120
  %12122 = vmatprep.mubr.f32.mxu0 0.0
  %v12123 = vand.u32 %v10210, 4294901760
  %12124 = vmatmul.mubr.f32.gmra.mrb[0].mxu0 %v12123
  %v12125 = vpop.f32.mrb[0].mxu0
  %v12126 = vadd.f32 %v11833, %v12125
  %v12127 = vpop.f32.mrb[0].mxu0
  %v12128 = vadd.f32 %v11835, %v12127
  %12129 = vmatprep.mubr.f32.mxu0 0.0
  %v12130 = vand.u32 %v10213, 4294901760
  %12131 = vmatmul.mubr.f32.gmra.mrb[0].mxu0 %v12130
  %v12132 = vpop.f32.mrb[0].mxu0
  %v12133 = vadd.f32 %v11840, %v12132
  %v12134 = vpop.f32.mrb[0].mxu0
  %v12135 = vadd.f32 %v11842, %v12134
  %12136 = vmatprep.mubr.f32.mxu0 0.0
  %v12137 = vand.u32 %v10216, 4294901760
  %12138 = vmatmul.mubr.f32.gmra.mrb[0].mxu0 %v12137
  %v12139 = vpop.f32.mrb[0].mxu0
  %v12140 = vadd.f32 %v11847, %v12139
  %v12141 = vpop.f32.mrb[0].mxu0
  %v12142 = vadd.f32 %v11849, %v12141
  %12143 = vmatprep.mubr.f32.mxu0 0.0
  %v12144 = vand.u32 %v10219, 4294901760
  %12145 = vmatmul.mubr.f32.gmra.mrb[0].mxu0 %v12144
  %v12146 = vpop.f32.mrb[0].mxu0
  %v12147 = vadd.f32 %v11854, %v12146
  %v12148 = vpop.f32.mrb[0].mxu0
  %v12149 = vadd.f32 %v11856, %v12148
  %12150 = vmatprep.mubr.f32.mxu0 0.0
  %v12151 = vand.u32 %v10222, 4294901760
  %12152 = vmatmul.mubr.f32.gmra.mrb[0].mxu0 %v12151
  %v12153 = vpop.f32.mrb[0].mxu0
  %v12154 = vadd.f32 %v11861, %v12153
  %v12155 = vpop.f32.mrb[0].mxu0
  %v12156 = vadd.f32 %v11863, %v12155
  %12157 = vmatprep.mubr.f32.mxu0 0.0
  %v12158 = vand.u32 %v10225, 4294901760
  %12159 = vmatmul.mubr.f32.gmra.mrb[0].mxu0 %v12158
  %v12160 = vpop.f32.mrb[0].mxu0
  %v12161 = vadd.f32 %v11868, %v12160
  %v12162 = vpop.f32.mrb[0].mxu0
  %v12163 = vadd.f32 %v11870, %v12162
  %12164 = vmatprep.mubr.f32.mxu0 0.0
  %v12165 = vand.u32 %v10228, 4294901760
  %12166 = vmatmul.mubr.f32.gmra.mrb[0].mxu0 %v12165
  %v12167 = vpop.f32.mrb[0].mxu0
  %v12168 = vadd.f32 %v11875, %v12167
  %v12169 = vpop.f32.mrb[0].mxu0
  %v12170 = vadd.f32 %v11877, %v12169
  %12171 = vmatprep.mubr.f32.mxu0 0.0
  %v12172 = vand.u32 %v10231, 4294901760
  %12173 = vmatmul.mubr.f32.gmra.mrb[0].mxu0 %v12172
  %v12174 = vpop.f32.mrb[0].mxu0
  %v12175 = vadd.f32 %v11882, %v12174
  %v12176 = vpop.f32.mrb[0].mxu0
  %v12177 = vadd.f32 %v11884, %v12176
  %12178 = vmatprep.mubr.f32.mxu0 0.0
  %v12179 = vand.u32 %v10234, 4294901760
  %12180 = vmatmul.mubr.f32.gmra.mrb[0].mxu0 %v12179
  %v12181 = vpop.f32.mrb[0].mxu0
  %v12182 = vadd.f32 %v11889, %v12181
  %v12183 = vpop.f32.mrb[0].mxu0
  %v12184 = vadd.f32 %v11891, %v12183
  %12185 = vmatprep.mubr.f32.mxu0 0.0
  %v12186 = vand.u32 %v10237, 4294901760
  %12187 = vmatmul.mubr.f32.gmra.mrb[0].mxu0 %v12186
  %v12188 = vpop.f32.mrb[0].mxu0
  %v12189 = vadd.f32 %v11896, %v12188
  %v12190 = vpop.f32.mrb[0].mxu0
  %v12191 = vadd.f32 %v11898, %v12190
  %12192 = vmatprep.mubr.f32.mxu0 0.0
  %v12193 = vand.u32 %v10240, 4294901760
  %12194 = vmatmul.mubr.f32.gmra.mrb[0].mxu0 %v12193
  %v12195 = vpop.f32.mrb[0].mxu0
  %v12196 = vadd.f32 %v11903, %v12195
  %v12197 = vpop.f32.mrb[0].mxu0
  %v12198 = vadd.f32 %v11905, %v12197
  %12199 = vmatprep.mubr.f32.mxu0 0.0
  %v12200 = vand.u32 %v10243, 4294901760
  %12201 = vmatmul.mubr.f32.gmra.mrb[0].mxu0 %v12200
  %v12202 = vpop.f32.mrb[0].mxu0
  %v12203 = vadd.f32 %v11910, %v12202
  %v12204 = vpop.f32.mrb[0].mxu0
  %v12205 = vadd.f32 %v11912, %v12204
  %12206 = vmatprep.mubr.f32.mxu0 0.0
  %v12207 = vand.u32 %v10246, 4294901760
  %12208 = vmatmul.mubr.f32.gmra.mrb[0].mxu0 %v12207
  %v12209 = vpop.f32.mrb[0].mxu0
  %v12210 = vadd.f32 %v11917, %v12209
  %v12211 = vpop.f32.mrb[0].mxu0
  %v12212 = vadd.f32 %v11919, %v12211
  %12213 = vmatprep.mubr.f32.mxu0 0.0
  %v12214 = vand.u32 %v10249, 4294901760
  %12215 = vmatmul.mubr.f32.gmra.mrb[0].mxu0 %v12214
  %v12216 = vpop.f32.mrb[0].mxu0
  %v12217 = vadd.f32 %v11924, %v12216
  %v12218 = vpop.f32.mrb[0].mxu0
  %v12219 = vadd.f32 %v11926, %v12218
  %12220 = vmatprep.mubr.f32.mxu0 0.0
  %v12221 = vand.u32 %v10252, 4294901760
  %12222 = vmatmul.mubr.f32.gmra.mrb[0].mxu0 %v12221
  %v12223 = vpop.f32.mrb[0].mxu0
  %v12224 = vadd.f32 %v11931, %v12223
  %v12225 = vpop.f32.mrb[0].mxu0
  %v12226 = vadd.f32 %v11933, %v12225
  %12227 = vmatprep.mubr.f32.mxu0 0.0
  %v12228 = vand.u32 %v10255, 4294901760
  %12229 = vmatmul.mubr.f32.gmra.mrb[0].mxu0 %v12228
  %v12230 = vpop.f32.mrb[0].mxu0
  %v12231 = vadd.f32 %v11938, %v12230
  %v12232 = vpop.f32.mrb[0].mxu0
  %v12233 = vadd.f32 %v11940, %v12232
  %12234 = vmatprep.mubr.f32.mxu0 0.0
  %v12235 = vand.u32 %v10258, 4294901760
  %12236 = vmatmul.mubr.f32.gmra.mrb[0].mxu0 %v12235
  %v12237 = vpop.f32.mrb[0].mxu0
  %v12238 = vadd.f32 %v11945, %v12237
  %v12239 = vpop.f32.mrb[0].mxu0
  %v12240 = vadd.f32 %v11947, %v12239
  %12241 = vmatprep.mubr.f32.mxu0 0.0
  %v12242 = vand.u32 %v10261, 4294901760
  %12243 = vmatmul.mubr.f32.gmra.mrb[0].mxu0 %v12242
  %v12244 = vpop.f32.mrb[0].mxu0
  %v12245 = vadd.f32 %v11952, %v12244
  %v12246 = vpop.f32.mrb[0].mxu0
  %v12247 = vadd.f32 %v11954, %v12246
  %12248 = vmatprep.mubr.f32.mxu0 0.0
  %v12249 = vand.u32 %v10264, 4294901760
  %12250 = vmatmul.mubr.f32.gmra.mrb[0].mxu0 %v12249
  %v12251 = vpop.f32.mrb[0].mxu0
  %v12252 = vadd.f32 %v11959, %v12251
  %v12253 = vpop.f32.mrb[0].mxu0
  %v12254 = vadd.f32 %v11961, %v12253
  %12255 = vmatprep.mubr.f32.mxu0 0.0
  %v12256 = vand.u32 %v10267, 4294901760
  %12257 = vmatmul.mubr.f32.gmra.mrb[0].mxu0 %v12256
  %v12258 = vpop.f32.mrb[0].mxu0
  %v12259 = vadd.f32 %v11966, %v12258
  %v12260 = vpop.f32.mrb[0].mxu0
  %v12261 = vadd.f32 %v11968, %v12260
  %12262 = vmatprep.mubr.f32.mxu0 0.0
  %v12263 = vand.u32 %v10270, 4294901760
  %12264 = vmatmul.mubr.f32.gmra.mrb[0].mxu0 %v12263
  %v12265 = vpop.f32.mrb[0].mxu0
  %v12266 = vadd.f32 %v11973, %v12265
  %v12267 = vpop.f32.mrb[0].mxu0
  %v12268 = vadd.f32 %v11975, %v12267
  %12269 = vmatprep.mubr.f32.mxu0 0.0
  %v12270 = vand.u32 %v10273, 4294901760
  %12271 = vmatmul.mubr.f32.gmra.mrb[0].mxu0 %v12270
  %v12272 = vpop.f32.mrb[0].mxu0
  %v12273 = vadd.f32 %v11980, %v12272
  %v12274 = vpop.f32.mrb[0].mxu0
  %v12275 = vadd.f32 %v11982, %v12274
  %12276 = vmatprep.mubr.f32.mxu0 0.0
  %v12277 = vand.u32 %v10276, 4294901760
  %12278 = vmatmul.mubr.f32.gmra.mrb[0].mxu0 %v12277
  %v12279 = vpop.f32.mrb[0].mxu0
  %v12280 = vadd.f32 %v11987, %v12279
  %v12281 = vpop.f32.mrb[0].mxu0
  %v12282 = vadd.f32 %v11989, %v12281
  %12283 = vmatprep.mubr.f32.mxu0 0.0
  %v12284 = vand.u32 %v10279, 4294901760
  %12285 = vmatmul.mubr.f32.gmra.mrb[0].mxu0 %v12284
  %v12286 = vpop.f32.mrb[0].mxu0
  %v12287 = vadd.f32 %v11994, %v12286
  %v12288 = vpop.f32.mrb[0].mxu0
  %v12289 = vadd.f32 %v11996, %v12288
  %12290 = vdwg.mxu0
  %v12291 = vmul.f32 %v9960, %v12070
  %v12292 = vmul.f32 %v9962, %v12072
  %v12293 = vmul.f32 %v9967, %v12077
  %v12294 = vmul.f32 %v9969, %v12079
  %v12295 = vmul.f32 %v9974, %v12084
  %v12296 = vmul.f32 %v9976, %v12086
  %v12297 = vmul.f32 %v9981, %v12091
  %v12298 = vmul.f32 %v9983, %v12093
  %v12299 = vmul.f32 %v9988, %v12098
  %v12300 = vmul.f32 %v9990, %v12100
  %v12301 = vmul.f32 %v9995, %v12105
  %v12302 = vmul.f32 %v9997, %v12107
  %v12303 = vmul.f32 %v10002, %v12112
  %v12304 = vmul.f32 %v10004, %v12114
  %v12305 = vmul.f32 %v10009, %v12119
  %v12306 = vmul.f32 %v10011, %v12121
  %v12307 = vmul.f32 %v10016, %v12126
  %v12308 = vmul.f32 %v10018, %v12128
  %v12309 = vmul.f32 %v10023, %v12133
  %v12310 = vmul.f32 %v10025, %v12135
  %v12311 = vmul.f32 %v10030, %v12140
  %v12312 = vmul.f32 %v10032, %v12142
  %v12313 = vmul.f32 %v10037, %v12147
  %v12314 = vmul.f32 %v10039, %v12149
  %v12315 = vmul.f32 %v10044, %v12154
  %v12316 = vmul.f32 %v10046, %v12156
  %v12317 = vmul.f32 %v10051, %v12161
  %v12318 = vmul.f32 %v10053, %v12163
  %v12319 = vmul.f32 %v10058, %v12168
  %v12320 = vmul.f32 %v10060, %v12170
  %v12321 = vmul.f32 %v10065, %v12175
  %v12322 = vmul.f32 %v10067, %v12177
  %v12323 = vmul.f32 %v10072, %v12182
  %v12324 = vmul.f32 %v10074, %v12184
  %v12325 = vmul.f32 %v10079, %v12189
  %v12326 = vmul.f32 %v10081, %v12191
  %v12327 = vmul.f32 %v10086, %v12196
  %v12328 = vmul.f32 %v10088, %v12198
  %v12329 = vmul.f32 %v10093, %v12203
  %v12330 = vmul.f32 %v10095, %v12205
  %v12331 = vmul.f32 %v10100, %v12210
  %v12332 = vmul.f32 %v10102, %v12212
  %v12333 = vmul.f32 %v10107, %v12217
  %v12334 = vmul.f32 %v10109, %v12219
  %v12335 = vmul.f32 %v10114, %v12224
  %v12336 = vmul.f32 %v10116, %v12226
  %v12337 = vmul.f32 %v10121, %v12231
  %v12338 = vmul.f32 %v10123, %v12233
  %v12339 = vmul.f32 %v10128, %v12238
  %v12340 = vmul.f32 %v10130, %v12240
  %v12341 = vmul.f32 %v10135, %v12245
  %v12342 = vmul.f32 %v10137, %v12247
  %v12343 = vmul.f32 %v10142, %v12252
  %v12344 = vmul.f32 %v10144, %v12254
  %v12345 = vmul.f32 %v10149, %v12259
  %v12346 = vmul.f32 %v10151, %v12261
  %v12347 = vmul.f32 %v10156, %v12266
  %v12348 = vmul.f32 %v10158, %v12268
  %v12349 = vmul.f32 %v10163, %v12273
  %v12350 = vmul.f32 %v10165, %v12275
  %v12351 = vmul.f32 %v10170, %v12280
  %v12352 = vmul.f32 %v10172, %v12282
  %v12353 = vmul.f32 %v10177, %v12287
  %v12354 = vmul.f32 %v10179, %v12289
  %v12355 = vmul.f32 %v35, %v12291
  %v12356 = vmul.f32 %v36, %v12292
  %v12357 = vmul.f32 %v37, %v12293
  %v12358 = vmul.f32 %v38, %v12294
  %v12359 = vmul.f32 %v39, %v12295
  %v12360 = vmul.f32 %v40, %v12296
  %v12361 = vmul.f32 %v41, %v12297
  %v12362 = vmul.f32 %v42, %v12298
  %v12363 = vmul.f32 %v43, %v12299
  %v12364 = vmul.f32 %v44, %v12300
  %v12365 = vmul.f32 %v45, %v12301
  %v12366 = vmul.f32 %v46, %v12302
  %v12367 = vmul.f32 %v47, %v12303
  %v12368 = vmul.f32 %v48, %v12304
  %v12369 = vmul.f32 %v49, %v12305
  %v12370 = vmul.f32 %v50, %v12306
  %v12371 = vmul.f32 %v51, %v12307
  %v12372 = vmul.f32 %v52, %v12308
  %v12373 = vmul.f32 %v53, %v12309
  %v12374 = vmul.f32 %v54, %v12310
  %v12375 = vmul.f32 %v55, %v12311
  %v12376 = vmul.f32 %v56, %v12312
  %v12377 = vmul.f32 %v57, %v12313
  %v12378 = vmul.f32 %v58, %v12314
  %v12379 = vmul.f32 %v59, %v12315
  %v12380 = vmul.f32 %v60, %v12316
  %v12381 = vmul.f32 %v61, %v12317
  %v12382 = vmul.f32 %v62, %v12318
  %v12383 = vmul.f32 %v63, %v12319
  %v12384 = vmul.f32 %v64, %v12320
  %v12385 = vmul.f32 %v65, %v12321
  %v12386 = vmul.f32 %v66, %v12322
  %v12387 = vmul.f32 %v67, %v12323
  %v12388 = vmul.f32 %v68, %v12324
  %v12389 = vmul.f32 %v69, %v12325
  %v12390 = vmul.f32 %v70, %v12326
  %v12391 = vmul.f32 %v71, %v12327
  %v12392 = vmul.f32 %v72, %v12328
  %v12393 = vmul.f32 %v73, %v12329
  %v12394 = vmul.f32 %v74, %v12330
  %v12395 = vmul.f32 %v75, %v12331
  %v12396 = vmul.f32 %v76, %v12332
  %v12397 = vmul.f32 %v77, %v12333
  %v12398 = vmul.f32 %v78, %v12334
  %v12399 = vmul.f32 %v79, %v12335
  %v12400 = vmul.f32 %v80, %v12336
  %v12401 = vmul.f32 %v81, %v12337
  %v12402 = vmul.f32 %v82, %v12338
  %v12403 = vmul.f32 %v83, %v12339
  %v12404 = vmul.f32 %v84, %v12340
  %v12405 = vmul.f32 %v85, %v12341
  %v12406 = vmul.f32 %v86, %v12342
  %v12407 = vmul.f32 %v87, %v12343
  %v12408 = vmul.f32 %v88, %v12344
  %v12409 = vmul.f32 %v89, %v12345
  %v12410 = vmul.f32 %v90, %v12346
  %v12411 = vmul.f32 %v91, %v12347
  %v12412 = vmul.f32 %v92, %v12348
  %v12413 = vmul.f32 %v93, %v12349
  %v12414 = vmul.f32 %v94, %v12350
  %v12415 = vmul.f32 %v95, %v12351
  %v12416 = vmul.f32 %v96, %v12352
  %v12417 = vmul.f32 %v97, %v12353
  %v12418 = vmul.f32 %v98, %v12354
  %12419 = vst [vmem:[%s10] sm:$0xff] %v12355
  %12420 = vst [vmem:[%s10 + $0x8] sm:$0xff] %v12356
  %12421 = vst [vmem:[%s10 + $0x10] sm:$0xff] %v12357
  %12422 = vst [vmem:[%s10 + $0x18] sm:$0xff] %v12358
  %12423 = vst [vmem:[%s10 + $0x20] sm:$0xff] %v12359
  %12424 = vst [vmem:[%s10 + $0x28] sm:$0xff] %v12360
  %12425 = vst [vmem:[%s10 + $0x30] sm:$0xff] %v12361
  %12426 = vst [vmem:[%s10 + $0x38] sm:$0xff] %v12362
  %12427 = vst [vmem:[%s10 + $0x40] sm:$0xff] %v12363
  %12428 = vst [vmem:[%s10 + $0x48] sm:$0xff] %v12364
  %12429 = vst [vmem:[%s10 + $0x50] sm:$0xff] %v12365
  %12430 = vst [vmem:[%s10 + $0x58] sm:$0xff] %v12366
  %12431 = vst [vmem:[%s10 + $0x60] sm:$0xff] %v12367
  %12432 = vst [vmem:[%s10 + $0x68] sm:$0xff] %v12368
  %12433 = vst [vmem:[%s10 + $0x70] sm:$0xff] %v12369
  %12434 = vst [vmem:[%s10 + $0x78] sm:$0xff] %v12370
  %12435 = vst [vmem:[%s10 + $0x80] sm:$0xff] %v12371
  %12436 = vst [vmem:[%s10 + $0x88] sm:$0xff] %v12372
  %12437 = vst [vmem:[%s10 + $0x90] sm:$0xff] %v12373
  %12438 = vst [vmem:[%s10 + $0x98] sm:$0xff] %v12374
  %12439 = vst [vmem:[%s10 + $0xa0] sm:$0xff] %v12375
  %12440 = vst [vmem:[%s10 + $0xa8] sm:$0xff] %v12376
  %12441 = vst [vmem:[%s10 + $0xb0] sm:$0xff] %v12377
  %12442 = vst [vmem:[%s10 + $0xb8] sm:$0xff] %v12378
  %12443 = vst [vmem:[%s10 + $0xc0] sm:$0xff] %v12379
  %12444 = vst [vmem:[%s10 + $0xc8] sm:$0xff] %v12380
  %12445 = vst [vmem:[%s10 + $0xd0] sm:$0xff] %v12381
  %12446 = vst [vmem:[%s10 + $0xd8] sm:$0xff] %v12382
  %12447 = vst [vmem:[%s10 + $0xe0] sm:$0xff] %v12383
  %12448 = vst [vmem:[%s10 + $0xe8] sm:$0xff] %v12384
  %12449 = vst [vmem:[%s10 + $0xf0] sm:$0xff] %v12385
  %12450 = vst [vmem:[%s10 + $0xf8] sm:$0xff] %v12386
  %12451 = vst [vmem:[%s10 + $0x100] sm:$0xff] %v12387
  %12452 = vst [vmem:[%s10 + $0x108] sm:$0xff] %v12388
  %12453 = vst [vmem:[%s10 + $0x110] sm:$0xff] %v12389
  %12454 = vst [vmem:[%s10 + $0x118] sm:$0xff] %v12390
  %12455 = vst [vmem:[%s10 + $0x120] sm:$0xff] %v12391
  %12456 = vst [vmem:[%s10 + $0x128] sm:$0xff] %v12392
  %12457 = vst [vmem:[%s10 + $0x130] sm:$0xff] %v12393
  %12458 = vst [vmem:[%s10 + $0x138] sm:$0xff] %v12394
  %12459 = vst [vmem:[%s10 + $0x140] sm:$0xff] %v12395
  %12460 = vst [vmem:[%s10 + $0x148] sm:$0xff] %v12396
  %12461 = vst [vmem:[%s10 + $0x150] sm:$0xff] %v12397
  %12462 = vst [vmem:[%s10 + $0x158] sm:$0xff] %v12398
  %12463 = vst [vmem:[%s10 + $0x160] sm:$0xff] %v12399
  %12464 = vst [vmem:[%s10 + $0x168] sm:$0xff] %v12400
  %12465 = vst [vmem:[%s10 + $0x170] sm:$0xff] %v12401
  %12466 = vst [vmem:[%s10 + $0x178] sm:$0xff] %v12402
  %12467 = vst [vmem:[%s10 + $0x180] sm:$0xff] %v12403
  %12468 = vst [vmem:[%s10 + $0x188] sm:$0xff] %v12404
  %12469 = vst [vmem:[%s10 + $0x190] sm:$0xff] %v12405
  %12470 = vst [vmem:[%s10 + $0x198] sm:$0xff] %v12406
  %12471 = vst [vmem:[%s10 + $0x1a0] sm:$0xff] %v12407
  %12472 = vst [vmem:[%s10 + $0x1a8] sm:$0xff] %v12408
  %12473 = vst [vmem:[%s10 + $0x1b0] sm:$0xff] %v12409
  %12474 = vst [vmem:[%s10 + $0x1b8] sm:$0xff] %v12410
  %12475 = vst [vmem:[%s10 + $0x1c0] sm:$0xff] %v12411
  %12476 = vst [vmem:[%s10 + $0x1c8] sm:$0xff] %v12412
  %12477 = vst [vmem:[%s10 + $0x1d0] sm:$0xff] %v12413
  %12478 = vst [vmem:[%s10 + $0x1d8] sm:$0xff] %v12414
  %12479 = vst [vmem:[%s10 + $0x1e0] sm:$0xff] %v12415
  %12480 = vst [vmem:[%s10 + $0x1e8] sm:$0xff] %v12416
  %12481 = vst [vmem:[%s10 + $0x1f0] sm:$0xff] %v12417
  %12482 = vst [vmem:[%s10 + $0x1f8] sm:$0xff] %v12418
  // Predicated region
  $region42: #{ca_forward.1} parent=0 // pred_check
    _
  $region43: #{ca_forward.1} parent=0 // pred_check_branch
    %12484 = sbr.rel (0) target = $region45
  $region44: #{ca_forward.1} parent=0 // pred_region
    _
  $region45: #{ca_forward.1} parent=0 // pred_fallthru
    _
  // Predicated region
  $region46: #{ca_forward.1} parent=0 // pred_check
    _
  $region47: #{ca_forward.1} parent=0 // pred_check_branch
    %12486 = sbr.rel (0) target = $region49
  $region48: #{ca_forward.1} parent=0 // pred_region
    _
  $region49: #{ca_forward.1} parent=0 // pred_fallthru
    _

</llo_original>
